<compile_context>
chip_gen: v6e
topology: v6e:2x2x1
jax: 0.10.0
libtpu: 0.0.40
codegen_flags: <defaults>
</compile_context>

<pallas_src>
import jax
import jax.numpy as jnp
from jax import lax
from jax.experimental import pallas as pl
from jax.experimental.pallas import tpu as pltpu

BN_EPS = 1e-5


# ----------------------------------------------------------------------------
# Fused Bottleneck kernel
# ----------------------------------------------------------------------------
def _make_bottleneck_kernel(H, W, planes, has_ds, pad_rows, G):
    """Fused kernel body: G images per grid step, rows = H*W, channels on lanes."""
    HW = H * W

    def kernel(x_ref, w1_ref, b1_ref, w2_ref, b2_ref, w3_ref, b3_ref, o_ref, pad_ref):
        # --- zero ONLY the two pad strips (every step; megacore-safe) --------------
        zeros_strip = jnp.zeros((pad_rows, planes), jnp.bfloat16)
        pad_ref[pl.ds(0, pad_rows), :] = zeros_strip
        pad_ref[pl.ds(pad_rows + HW, pad_rows), :] = zeros_strip

        # --- column-wrap masks, computed once and reused for all dy taps ----------
        # flattened row r encodes (i, j) = divmod(r, W); W is a power of two -> AND.
        col = lax.broadcasted_iota(jnp.int32, (HW, planes), 0) % W
        not_first_col = col != 0
        not_last_col = col != (W - 1)

        # hoist weight/shift loads out of the per-image loop
        w1 = w1_ref[...]
        w2 = w2_ref[...]          # (3, 3*planes, planes) bf16, taps [dx=-1, dx=0, dx=+1]
        w3 = w3_ref[...]          # (planes[+cin], cout) bf16 (downsample fused in)
        b1 = b1_ref[...]
        b2 = b2_ref[...]
        b3 = b3_ref[...]

        for g in range(G):
            x = x_ref[g]                               # (HW, cin), bf16 or f32
            xb = x.astype(jnp.bfloat16)

            # ---- conv1 (1x1) + BN1 + ReLU (BN scale folded into w1) --------------
            h1 = jnp.dot(xb, w1, preferred_element_type=jnp.float32)
            h1 = jnp.maximum(h1 + b1, 0.0)             # (HW, planes) f32

            # ---- stage bf16 zero-padded copy of h1 (interior rows only) ----------
            pad_ref[pl.ds(pad_rows, HW), :] = h1.astype(jnp.bfloat16)

            # ---- conv2 (3x3, stride 1, pad 1) + BN2 + ReLU ------------------------
            # 3 deep matmuls (K = 3*planes), one per dy, instead of 9 K=planes ones.
            acc = jnp.zeros((HW, planes), jnp.float32)
            for t, dy in enumerate((-1, 0, 1)):
                base = pad_rows + dy * W               # static, 16-aligned
                left = pad_ref[pl.ds(base - 1, HW), :]
                mid = pad_ref[pl.ds(base, HW), :]
                right = pad_ref[pl.ds(base + 1, HW), :]
                left = jnp.where(not_first_col, left, 0.0)
                right = jnp.where(not_last_col, right, 0.0)
                cat = jnp.concatenate([left, mid, right], axis=1)   # (HW, 3*planes) bf16
                acc = acc + jnp.dot(cat, w2[t], preferred_element_type=jnp.float32)
            h2 = jnp.maximum(acc + b2, 0.0)            # (HW, planes) f32

            # ---- conv3 (1x1) + BN3, residual fused, final ReLU --------------------
            if has_ds:
                # one MXU pass: [h2 | x] @ [w3 ; wd]  (+ folded b3+bd shift)
                lhs = jnp.concatenate([h2.astype(jnp.bfloat16), xb], axis=1)
                out = jnp.dot(lhs, w3, preferred_element_type=jnp.float32) + b3
            else:
                out = (jnp.dot(h2.astype(jnp.bfloat16), w3,
                               preferred_element_type=jnp.float32)
                       + b3 + x.astype(jnp.float32))   # identity residual in f32
            o_ref[g] = jnp.maximum(out, 0.0).astype(o_ref.dtype)

    return kernel


def bottleneck_pallas(x_flat, params, H, W, *, out_dtype=jnp.float32,
                      images_per_block=1, stride=1):
    """x_flat: (N, H*W, Cin) bf16/f32 (NHWC flattened). Returns (N, H*W, 4*planes)."""
    assert stride == 1  # TODO(synk): stride != 1 path not implemented (module default is 1)
    N, HW, cin = x_flat.shape
    assert HW == H * W
    G = images_per_block
    assert N % G == 0

    planes = params["w1"].shape[1]
    has_ds = "w3d" in params
    cout = params["w3d"].shape[1] if has_ds else params["w3"].shape[1]
    if not has_ds:
        assert cin == cout, "identity residual requires Cin == 4*planes"

    # zero-pad rows before/after the flattened image; multiple of 16 -> bf16-aligned
    pad_rows = ((W + 1 + 15) // 16) * 16
    kernel = _make_bottleneck_kernel(H, W, planes, has_ds, pad_rows, G)

    w3_rows = planes + cin if has_ds else planes
    w3_arg = params["w3d"] if has_ds else params["w3"]
    b3_arg = params["b3d"] if has_ds else params["b3"]

    in_specs = [
        pl.BlockSpec((G, HW, cin), lambda n: (n, 0, 0)),              # x (G images/step)
        pl.BlockSpec((cin, planes), lambda n: (0, 0)),                # w1 (bf16, BN folded)
        pl.BlockSpec((1, planes), lambda n: (0, 0)),                  # b1 (f32 shift)
        pl.BlockSpec((3, 3 * planes, planes), lambda n: (0, 0, 0)),   # w2 per-dy K-concat
        pl.BlockSpec((1, planes), lambda n: (0, 0)),                  # b2
        pl.BlockSpec((w3_rows, cout), lambda n: (0, 0)),              # w3 (or [w3; wd])
        pl.BlockSpec((1, cout), lambda n: (0, 0)),                    # b3 (or b3+bd)
    ]
    args = [x_flat, params["w1"], params["b1"], params["w2"], params["b2"],
            w3_arg, b3_arg]

    k3 = w3_rows
    flops = 2 * N * HW * (cin * planes + 9 * planes * planes + k3 * cout)
    bytes_accessed = (x_flat.dtype.itemsize * N * HW * cin
                      + jnp.dtype(out_dtype).itemsize * N * HW * cout
                      + 2 * (cin * planes + 9 * planes * planes + k3 * cout)
                      + 4 * (2 * planes + cout))
    cost = pl.CostEstimate(flops=flops, transcendentals=0, bytes_accessed=bytes_accessed)

    return pl.pallas_call(
        kernel,
        out_shape=jax.ShapeDtypeStruct((N, HW, cout), out_dtype),
        grid=(N // G,),
        in_specs=in_specs,
        out_specs=pl.BlockSpec((G, HW, cout), lambda n: (n, 0, 0)),
        scratch_shapes=[pltpu.VMEM((HW + 2 * pad_rows, planes), jnp.bfloat16)],
        compiler_params=pltpu.CompilerParams(dimension_semantics=("parallel",)),
        cost_estimate=cost,
    )(*args)


# ----------------------------------------------------------------------------
# Parameter generation (PyTorch layouts) + inference-mode BN folding
# ----------------------------------------------------------------------------
def _fold_bn(w_mat, gamma, beta, mean, var):
    """Fold BN scale into weight columns (last axis = Cout); keep shift separately."""
    scale = gamma / jnp.sqrt(var + BN_EPS)
    shift = beta - mean * scale
    return (w_mat * scale).astype(jnp.bfloat16), shift.reshape(1, -1).astype(jnp.float32)


def make_bottleneck_params(key, inplanes, planes, downsample, expansion=4):
    cout = planes * expansion
    ks = list(jax.random.split(key, 8))

    def conv_w(k, cout_, cin_, ksz):
        fan_in = cin_ * ksz * ksz
        std = (2.0 / fan_in) ** 0.5
        return jax.random.normal(k, (cout_, cin_, ksz, ksz), jnp.float32) * std

    def bn(k, c):  # non-trivial BN stats so the folding path is actually exercised
        kg, kb, km, kv = jax.random.split(k, 4)
        gamma = 1.0 + 0.2 * jax.random.normal(kg, (c,), jnp.float32)
        beta = 0.1 * jax.random.normal(kb, (c,), jnp.float32)
        mean = 0.1 * jax.random.normal(km, (c,), jnp.float32)
        var = 0.5 + jax.random.uniform(kv, (c,), jnp.float32)
        return gamma, beta, mean, var

    p = {}
    # conv1: 1x1, inplanes -> planes   (torch (cout,cin,1,1) -> matrix (cin,cout))
    w1 = jnp.transpose(conv_w(ks[0], planes, inplanes, 1)[:, :, 0, 0], (1, 0))
    p["w1"], p["b1"] = _fold_bn(w1, *bn(ks[1], planes))
    # conv2: 3x3, planes -> planes. torch (cout,cin,3,3) -> (ky, kx, cin, cout),
    # then fold BN and merge (kx, cin) -> K axis so each dy is one K=3*planes matmul.
    w2 = jnp.transpose(conv_w(ks[2], planes, planes, 3), (2, 3, 1, 0))
    w2f, p["b2"] = _fold_bn(w2, *bn(ks[3], planes))
    p["w2"] = w2f.reshape(3, 3 * planes, planes)
    # conv3: 1x1, planes -> planes*4
    w3 = jnp.transpose(conv_w(ks[4], cout, planes, 1)[:, :, 0, 0], (1, 0))
    w3f, b3 = _fold_bn(w3, *bn(ks[5], cout))
    if downsample:
        # canonical downsample: 1x1 conv + BN, fused with conv3 into one MXU pass
        wd = jnp.transpose(conv_w(ks[6], cout, inplanes, 1)[:, :, 0, 0], (1, 0))
        wdf, bd = _fold_bn(wd, *bn(ks[7], cout))
        p["w3d"] = jnp.concatenate([w3f, wdf], axis=0)     # (planes+inplanes, cout)
        p["b3d"] = b3 + bd
    else:
        p["w3"], p["b3"] = w3f, b3
    return p


# ----------------------------------------------------------------------------
# Forward (NCHW in / NCHW out) and a plain-JAX reference for verification
# ----------------------------------------------------------------------------
def forward(params_list, x_nchw):
    N, cin, H, W = x_nchw.shape
    # bf16 activations between blocks: halves the only HBM traffic of the fused kernel
    x = jnp.transpose(x_nchw, (0, 2, 3, 1)).reshape(N, H * W, cin).astype(jnp.bfloat16)
    # Target ~2 grid steps: keeps both v7x TensorCores busy; the extra ~0.35us step on
    # single-TC v5e/v6e is negligible at this size.
    G = N // 2 if (N >= 2 and N % 2 == 0) else 1
    for i, p in enumerate(params_list):
        last = i == len(params_list) - 1
        x = bottleneck_pallas(x, p, H, W,
                              out_dtype=jnp.float32 if last else jnp.bfloat16,
                              images_per_block=G)
    cout = x.shape[-1]
    return jnp.transpose(x.reshape(N, H, W, cout), (0, 3, 1, 2))


def _ref_conv1x1(x_b, w):
    return jnp.einsum("nhwc,cd->nhwd", x_b, w, preferred_element_type=jnp.float32)


def _ref_bottleneck(x_nhwc, p, planes):
    xb = x_nhwc.astype(jnp.bfloat16)
    h1 = jax.nn.relu(_ref_conv1x1(xb, p["w1"]) + p["b1"].reshape(1, 1, 1, -1))
    h1b = h1.astype(jnp.bfloat16)                       # same bf16 staging as the kernel
    n, h, w, c = h1b.shape
    w2 = p["w2"].reshape(3, 3, planes, planes)          # (ky, kx, cin, cout)
    xp = jnp.pad(h1b, ((0, 0), (1, 1), (1, 1), (0, 0)))
    acc = jnp.zeros((n, h, w, planes), jnp.float32)
    for ky in range(3):
        for kx in range(3):                             # static Python ints only
            tap = lax.slice(xp, (0, ky, kx, 0), (n, ky + h, kx + w, c))
            acc = acc + jnp.einsum("nhwc,cd->nhwd", tap, w2[ky, kx],
                                   preferred_element_type=jnp.float32)
    h2 = jax.nn.relu(acc + p["b2"].reshape(1, 1, 1, -1))
    h2b = h2.astype(jnp.bfloat16)
    if "w3d" in p:
        w3, wd = p["w3d"][:planes], p["w3d"][planes:]
        out = (_ref_conv1x1(h2b, w3) + _ref_conv1x1(xb, wd)
               + p["b3d"].reshape(1, 1, 1, -1))
    else:
        out = (_ref_conv1x1(h2b, p["w3"]) + p["b3"].reshape(1, 1, 1, -1)
               + x_nhwc.astype(jnp.float32))
    return jax.nn.relu(out)


def ref_forward(params_list, x_nchw):
    x = jnp.transpose(x_nchw, (0, 2, 3, 1)).astype(jnp.bfloat16)
    for i, p in enumerate(params_list):
        planes = p["w1"].shape[1]
        y = _ref_bottleneck(x, p, planes)
        x = y.astype(jnp.bfloat16) if i < len(params_list) - 1 else y
    return jnp.transpose(x, (0, 3, 1, 2))


# ----------------------------------------------------------------------------
if __name__ == "__main__":
    N, H, W = 2, 16, 16
    inplanes, planes = 64, 32            # expansion 4 -> 128 output channels (lane dense)

    key = jax.random.PRNGKey(0)
    kp1, kp2, kx = jax.random.split(key, 3)
    # HRNet layer1-style usage: first Bottleneck carries a 1x1+BN downsample (64 -> 128),
    # the second uses the identity residual (128 -> 128).
    params = [
        make_bottleneck_params(kp1, inplanes, planes, downsample=True),
        make_bottleneck_params(kp2, planes * 4, planes, downsample=False),
    ]
    x = jax.random.normal(kx, (N, inplanes, H, W), jnp.float32)

    out = jax.block_until_ready(jax.jit(forward)(params, x))
    assert out.shape == (N, planes * 4, H, W), out.shape
    assert bool(jnp.all(jnp.isfinite(out)))

    # correctness vs. plain-JAX reference (same bf16 weights, bf16 inter-block
    # activations, f32 accumulation; tolerance re-baselined for bf16 activations)
    ref = jax.block_until_ready(jax.jit(ref_forward)(params, x))
    abs_err = float(jnp.max(jnp.abs(out - ref)))
    rel_err = float(jnp.linalg.norm(out - ref) / jnp.linalg.norm(ref))
    assert abs_err < 2e-1 and rel_err < 2e-2, (abs_err, rel_err)

    print("KERNEL_OK")
</pallas_src>

<mosaic_0001>
module attributes {stable_mosaic.version = 11 : i64} {
  func.func @kernel(%arg0: i32, %arg1: memref<1x256x64xbf16, #tpu.memory_space<vmem>>, %arg2: memref<64x32xbf16, #tpu.memory_space<vmem>>, %arg3: memref<1x32xf32, #tpu.memory_space<vmem>>, %arg4: memref<3x96x32xbf16, #tpu.memory_space<vmem>>, %arg5: memref<1x32xf32, #tpu.memory_space<vmem>>, %arg6: memref<96x128xbf16, #tpu.memory_space<vmem>>, %arg7: memref<1x128xf32, #tpu.memory_space<vmem>>, %arg8: memref<1x256x128xbf16, #tpu.memory_space<vmem>>, %arg9: memref<320x32xbf16, #tpu.memory_space<vmem>>) attributes {dimension_semantics = [#tpu.dimension_semantics<parallel>], iteration_bounds = array<i64: 2>, scalar_prefetch = 0 : i64, scratch_operands = 1 : i64, tpu.core_type = #tpu.core_type<tc>, window_params = [{transform_indices = @transform_0, window_bounds = array<i64: 1, 256, 64>}, {pipeline_mode = #tpu.pipeline_mode<synchronous>, transform_indices = @transform_1, window_bounds = array<i64: 64, 32>}, {pipeline_mode = #tpu.pipeline_mode<synchronous>, transform_indices = @transform_2, window_bounds = array<i64: 1, 32>}, {pipeline_mode = #tpu.pipeline_mode<synchronous>, transform_indices = @transform_3, window_bounds = array<i64: 3, 96, 32>}, {pipeline_mode = #tpu.pipeline_mode<synchronous>, transform_indices = @transform_4, window_bounds = array<i64: 1, 32>}, {pipeline_mode = #tpu.pipeline_mode<synchronous>, transform_indices = @transform_5, window_bounds = array<i64: 96, 128>}, {pipeline_mode = #tpu.pipeline_mode<synchronous>, transform_indices = @transform_6, window_bounds = array<i64: 1, 128>}, {transform_indices = @transform_7, window_bounds = array<i64: 1, 256, 128>}]} {
    %cst = arith.constant 0.000000e+00 : bf16
    %0 = vector.broadcast %cst : bf16 to vector<32x32xbf16>
    %c0 = arith.constant 0 : index
    %c0_0 = arith.constant 0 : index
    %1 = vector.load %arg9[%c0, %c0_0] : memref<320x32xbf16, #tpu.memory_space<vmem>>, vector<32x32xbf16>
    tpu.vector_store %arg9[%c0, %c0_0], %0 {strides = array<i32>} : memref<320x32xbf16, #tpu.memory_space<vmem>>, vector<32x32xbf16>,
    %c288 = arith.constant 288 : index
    %c0_1 = arith.constant 0 : index
    %2 = vector.load %arg9[%c288, %c0_1] : memref<320x32xbf16, #tpu.memory_space<vmem>>, vector<32x32xbf16>
    tpu.vector_store %arg9[%c288, %c0_1], %0 {strides = array<i32>} : memref<320x32xbf16, #tpu.memory_space<vmem>>, vector<32x32xbf16>,
    %3 = tpu.iota {dimensions = array<i32: 0>} : vector<256x32xi32>
    %c16_i32 = arith.constant 16 : i32
    %c0_i32 = arith.constant 0 : i32
    %4 = arith.cmpi eq, %c16_i32, %c0_i32 : i32
    %c1_i32 = arith.constant 1 : i32
    %5 = arith.select %4, %c1_i32, %c16_i32 : i32
    %6 = vector.broadcast %5 : i32 to vector<256x32xi32>
    %7 = arith.remsi %3, %6 : vector<256x32xi32>
    %c0_i32_2 = arith.constant 0 : i32
    %8 = vector.broadcast %c0_i32_2 : i32 to vector<256x32xi32>
    %9 = arith.cmpi ne, %7, %8 : vector<256x32xi32>
    %c0_i32_3 = arith.constant 0 : i32
    %10 = vector.broadcast %c0_i32_3 : i32 to vector<256x32xi32>
    %11 = arith.cmpi slt, %7, %10 : vector<256x32xi32>
    %c0_i32_4 = arith.constant 0 : i32
    %12 = arith.cmpi slt, %5, %c0_i32_4 : i32
    %13 = vector.broadcast %12 : i1 to vector<256x32xi1>
    %14 = vector.broadcast %13 : vector<256x32xi1> to vector<256x32xi1>
    %15 = arith.xori %11, %14 : vector<256x32xi1>
    %16 = arith.andi %15, %9 : vector<256x32xi1>
    %17 = vector.broadcast %5 : i32 to vector<256x32xi32>
    %18 = arith.addi %7, %17 : vector<256x32xi32>
    %19 = arith.select %16, %18, %7 : vector<256x32xi1>, vector<256x32xi32>
    %c0_i32_5 = arith.constant 0 : i32
    %20 = vector.broadcast %c0_i32_5 : i32 to vector<256x32xi32>
    %21 = arith.cmpi ne, %19, %20 : vector<256x32xi32>
    %c15_i32 = arith.constant 15 : i32
    %22 = vector.broadcast %c15_i32 : i32 to vector<256x32xi32>
    %23 = arith.cmpi ne, %19, %22 : vector<256x32xi32>
    %c0_6 = arith.constant 0 : index
    %c0_7 = arith.constant 0 : index
    %24 = vector.load %arg2[%c0_6, %c0_7] : memref<64x32xbf16, #tpu.memory_space<vmem>>, vector<64x32xbf16>
    %c0_8 = arith.constant 0 : index
    %c0_9 = arith.constant 0 : index
    %c0_10 = arith.constant 0 : index
    %25 = vector.load %arg4[%c0_8, %c0_9, %c0_10] : memref<3x96x32xbf16, #tpu.memory_space<vmem>>, vector<3x96x32xbf16>
    %c0_11 = arith.constant 0 : index
    %c0_12 = arith.constant 0 : index
    %26 = vector.load %arg6[%c0_11, %c0_12] : memref<96x128xbf16, #tpu.memory_space<vmem>>, vector<96x128xbf16>
    %c0_13 = arith.constant 0 : index
    %c0_14 = arith.constant 0 : index
    %27 = vector.load %arg3[%c0_13, %c0_14] : memref<1x32xf32, #tpu.memory_space<vmem>>, vector<1x32xf32>
    %c0_15 = arith.constant 0 : index
    %c0_16 = arith.constant 0 : index
    %28 = vector.load %arg5[%c0_15, %c0_16] : memref<1x32xf32, #tpu.memory_space<vmem>>, vector<1x32xf32>
    %c0_17 = arith.constant 0 : index
    %c0_18 = arith.constant 0 : index
    %29 = vector.load %arg7[%c0_17, %c0_18] : memref<1x128xf32, #tpu.memory_space<vmem>>, vector<1x128xf32>
    %c0_19 = arith.constant 0 : index
    %c0_20 = arith.constant 0 : index
    %c0_21 = arith.constant 0 : index
    %30 = vector.load %arg1[%c0_19, %c0_20, %c0_21] : memref<1x256x64xbf16, #tpu.memory_space<vmem>>, vector<1x256x64xbf16>
    %31 = vector.shape_cast %30 : vector<1x256x64xbf16> to vector<256x64xbf16>
    %cst_22 = arith.constant dense<0.000000e+00> : vector<256x32xf32>
    %32 = tpu.matmul %31, %24, %cst_22 {dimension_numbers = #tpu.dot_dimension_numbers<[1], [0], [0], [1], [0, 0, 1, 1], [], []>} : vector<256x64xbf16>, vector<64x32xbf16>, vector<256x32xf32> -> vector<256x32xf32>
    %33 = vector.broadcast %27 : vector<1x32xf32> to vector<256x32xf32>
    %34 = arith.addf %32, %33 : vector<256x32xf32>
    %cst_23 = arith.constant 0.000000e+00 : f32
    %35 = vector.broadcast %cst_23 : f32 to vector<256x32xf32>
    %36 = arith.maximumf %34, %35 : vector<256x32xf32>
    %37 = arith.truncf %36 : vector<256x32xf32> to vector<256x32xbf16>
    %c32 = arith.constant 32 : index
    %c0_24 = arith.constant 0 : index
    %38 = vector.load %arg9[%c32, %c0_24] : memref<320x32xbf16, #tpu.memory_space<vmem>>, vector<256x32xbf16>
    tpu.vector_store %arg9[%c32, %c0_24], %37 {strides = array<i32>} : memref<320x32xbf16, #tpu.memory_space<vmem>>, vector<256x32xbf16>,
    %cst_25 = arith.constant 0.000000e+00 : f32
    %39 = vector.broadcast %cst_25 : f32 to vector<256x32xf32>
    %c15 = arith.constant 15 : index
    %c0_26 = arith.constant 0 : index
    %40 = vector.load %arg9[%c15, %c0_26] : memref<320x32xbf16, #tpu.memory_space<vmem>>, vector<256x32xbf16>
    %c16 = arith.constant 16 : index
    %c0_27 = arith.constant 0 : index
    %41 = vector.load %arg9[%c16, %c0_27] : memref<320x32xbf16, #tpu.memory_space<vmem>>, vector<256x32xbf16>
    %c17 = arith.constant 17 : index
    %c0_28 = arith.constant 0 : index
    %42 = vector.load %arg9[%c17, %c0_28] : memref<320x32xbf16, #tpu.memory_space<vmem>>, vector<256x32xbf16>
    %cst_29 = arith.constant 0.000000e+00 : f32
    %43 = arith.truncf %cst_29 : f32 to bf16
    %44 = vector.broadcast %43 : bf16 to vector<256x32xbf16>
    %45 = arith.select %21, %40, %44 : vector<256x32xi1>, vector<256x32xbf16>
    %cst_30 = arith.constant 0.000000e+00 : f32
    %46 = arith.truncf %cst_30 : f32 to bf16
    %47 = vector.broadcast %46 : bf16 to vector<256x32xbf16>
    %48 = arith.select %23, %42, %47 : vector<256x32xi1>, vector<256x32xbf16>
    %49 = tpu.concatenate %45, %41, %48 in 1 : vector<256x32xbf16>, vector<256x32xbf16>, vector<256x32xbf16> -> vector<256x96xbf16>
    %50 = vector.extract_strided_slice %25 {offsets = [0, 0, 0], sizes = [1, 96, 32], strides = [1, 1, 1]} : vector<3x96x32xbf16> to vector<1x96x32xbf16>
    %51 = vector.shape_cast %50 : vector<1x96x32xbf16> to vector<96x32xbf16>
    %cst_31 = arith.constant dense<0.000000e+00> : vector<256x32xf32>
    %52 = tpu.matmul %49, %51, %cst_31 {dimension_numbers = #tpu.dot_dimension_numbers<[1], [0], [0], [1], [0, 0, 1, 1], [], []>} : vector<256x96xbf16>, vector<96x32xbf16>, vector<256x32xf32> -> vector<256x32xf32>
    %53 = arith.addf %39, %52 : vector<256x32xf32>
    %c31 = arith.constant 31 : index
    %c0_32 = arith.constant 0 : index
    %54 = vector.load %arg9[%c31, %c0_32] : memref<320x32xbf16, #tpu.memory_space<vmem>>, vector<256x32xbf16>
    %c32_33 = arith.constant 32 : index
    %c0_34 = arith.constant 0 : index
    %55 = vector.load %arg9[%c32_33, %c0_34] : memref<320x32xbf16, #tpu.memory_space<vmem>>, vector<256x32xbf16>
    %c33 = arith.constant 33 : index
    %c0_35 = arith.constant 0 : index
    %56 = vector.load %arg9[%c33, %c0_35] : memref<320x32xbf16, #tpu.memory_space<vmem>>, vector<256x32xbf16>
    %cst_36 = arith.constant 0.000000e+00 : f32
    %57 = arith.truncf %cst_36 : f32 to bf16
    %58 = vector.broadcast %57 : bf16 to vector<256x32xbf16>
    %59 = arith.select %21, %54, %58 : vector<256x32xi1>, vector<256x32xbf16>
    %cst_37 = arith.constant 0.000000e+00 : f32
    %60 = arith.truncf %cst_37 : f32 to bf16
    %61 = vector.broadcast %60 : bf16 to vector<256x32xbf16>
    %62 = arith.select %23, %56, %61 : vector<256x32xi1>, vector<256x32xbf16>
    %63 = tpu.concatenate %59, %55, %62 in 1 : vector<256x32xbf16>, vector<256x32xbf16>, vector<256x32xbf16> -> vector<256x96xbf16>
    %64 = vector.extract_strided_slice %25 {offsets = [1, 0, 0], sizes = [1, 96, 32], strides = [1, 1, 1]} : vector<3x96x32xbf16> to vector<1x96x32xbf16>
    %65 = vector.shape_cast %64 : vector<1x96x32xbf16> to vector<96x32xbf16>
    %cst_38 = arith.constant dense<0.000000e+00> : vector<256x32xf32>
    %66 = tpu.matmul %63, %65, %cst_38 {dimension_numbers = #tpu.dot_dimension_numbers<[1], [0], [0], [1], [0, 0, 1, 1], [], []>} : vector<256x96xbf16>, vector<96x32xbf16>, vector<256x32xf32> -> vector<256x32xf32>
    %67 = arith.addf %53, %66 : vector<256x32xf32>
    %c47 = arith.constant 47 : index
    %c0_39 = arith.constant 0 : index
    %68 = vector.load %arg9[%c47, %c0_39] : memref<320x32xbf16, #tpu.memory_space<vmem>>, vector<256x32xbf16>
    %c48 = arith.constant 48 : index
    %c0_40 = arith.constant 0 : index
    %69 = vector.load %arg9[%c48, %c0_40] : memref<320x32xbf16, #tpu.memory_space<vmem>>, vector<256x32xbf16>
    %c49 = arith.constant 49 : index
    %c0_41 = arith.constant 0 : index
    %70 = vector.load %arg9[%c49, %c0_41] : memref<320x32xbf16, #tpu.memory_space<vmem>>, vector<256x32xbf16>
    %cst_42 = arith.constant 0.000000e+00 : f32
    %71 = arith.truncf %cst_42 : f32 to bf16
    %72 = vector.broadcast %71 : bf16 to vector<256x32xbf16>
    %73 = arith.select %21, %68, %72 : vector<256x32xi1>, vector<256x32xbf16>
    %cst_43 = arith.constant 0.000000e+00 : f32
    %74 = arith.truncf %cst_43 : f32 to bf16
    %75 = vector.broadcast %74 : bf16 to vector<256x32xbf16>
    %76 = arith.select %23, %70, %75 : vector<256x32xi1>, vector<256x32xbf16>
    %77 = tpu.concatenate %73, %69, %76 in 1 : vector<256x32xbf16>, vector<256x32xbf16>, vector<256x32xbf16> -> vector<256x96xbf16>
    %78 = vector.extract_strided_slice %25 {offsets = [2, 0, 0], sizes = [1, 96, 32], strides = [1, 1, 1]} : vector<3x96x32xbf16> to vector<1x96x32xbf16>
    %79 = vector.shape_cast %78 : vector<1x96x32xbf16> to vector<96x32xbf16>
    %cst_44 = arith.constant dense<0.000000e+00> : vector<256x32xf32>
    %80 = tpu.matmul %77, %79, %cst_44 {dimension_numbers = #tpu.dot_dimension_numbers<[1], [0], [0], [1], [0, 0, 1, 1], [], []>} : vector<256x96xbf16>, vector<96x32xbf16>, vector<256x32xf32> -> vector<256x32xf32>
    %81 = arith.addf %67, %80 : vector<256x32xf32>
    %82 = vector.broadcast %28 : vector<1x32xf32> to vector<256x32xf32>
    %83 = arith.addf %81, %82 : vector<256x32xf32>
    %cst_45 = arith.constant 0.000000e+00 : f32
    %84 = vector.broadcast %cst_45 : f32 to vector<256x32xf32>
    %85 = arith.maximumf %83, %84 : vector<256x32xf32>
    %86 = arith.truncf %85 : vector<256x32xf32> to vector<256x32xbf16>
    %87 = tpu.concatenate %86, %31 in 1 : vector<256x32xbf16>, vector<256x64xbf16> -> vector<256x96xbf16>
    %cst_46 = arith.constant dense<0.000000e+00> : vector<256x128xf32>
    %88 = tpu.matmul %87, %26, %cst_46 {dimension_numbers = #tpu.dot_dimension_numbers<[1], [0], [0], [1], [0, 0, 1, 1], [], []>} : vector<256x96xbf16>, vector<96x128xbf16>, vector<256x128xf32> -> vector<256x128xf32>
    %89 = vector.broadcast %29 : vector<1x128xf32> to vector<256x128xf32>
    %90 = arith.addf %88, %89 : vector<256x128xf32>
    %cst_47 = arith.constant 0.000000e+00 : f32
    %91 = vector.broadcast %cst_47 : f32 to vector<256x128xf32>
    %92 = arith.maximumf %90, %91 : vector<256x128xf32>
    %93 = arith.truncf %92 : vector<256x128xf32> to vector<256x128xbf16>
    %c0_48 = arith.constant 0 : index
    %c0_49 = arith.constant 0 : index
    %c0_50 = arith.constant 0 : index
    %94 = vector.load %arg8[%c0_48, %c0_49, %c0_50] : memref<1x256x128xbf16, #tpu.memory_space<vmem>>, vector<1x256x128xbf16>
    %95 = vector.shape_cast %94 : vector<1x256x128xbf16> to vector<256x128xbf16>
    %96 = vector.shape_cast %93 : vector<256x128xbf16> to vector<1x256x128xbf16>
    tpu.vector_store %arg8[%c0_48, %c0_49, %c0_50], %96 {strides = array<i32>} : memref<1x256x128xbf16, #tpu.memory_space<vmem>>, vector<1x256x128xbf16>,
    return
  }
  func.func @transform_0(%arg0: i32) -> (i32, i32, i32) {
    %c0_i32 = arith.constant 0 : i32
    %c0_i32_0 = arith.constant 0 : i32
    %c0_i32_1 = arith.constant 0 : i32
    return %arg0, %c0_i32, %c0_i32_0 : i32, i32, i32
  }
  func.func @transform_1(%arg0: i32) -> (i32, i32) {
    %c0_i32 = arith.constant 0 : i32
    %c0_i32_0 = arith.constant 0 : i32
    %c0_i32_1 = arith.constant 0 : i32
    return %c0_i32, %c0_i32_0 : i32, i32
  }
  func.func @transform_2(%arg0: i32) -> (i32, i32) {
    %c0_i32 = arith.constant 0 : i32
    %c0_i32_0 = arith.constant 0 : i32
    %c0_i32_1 = arith.constant 0 : i32
    return %c0_i32, %c0_i32_0 : i32, i32
  }
  func.func @transform_3(%arg0: i32) -> (i32, i32, i32) {
    %c0_i32 = arith.constant 0 : i32
    %c0_i32_0 = arith.constant 0 : i32
    %c0_i32_1 = arith.constant 0 : i32
    %c0_i32_2 = arith.constant 0 : i32
    return %c0_i32, %c0_i32_0, %c0_i32_1 : i32, i32, i32
  }
  func.func @transform_4(%arg0: i32) -> (i32, i32) {
    %c0_i32 = arith.constant 0 : i32
    %c0_i32_0 = arith.constant 0 : i32
    %c0_i32_1 = arith.constant 0 : i32
    return %c0_i32, %c0_i32_0 : i32, i32
  }
  func.func @transform_5(%arg0: i32) -> (i32, i32) {
    %c0_i32 = arith.constant 0 : i32
    %c0_i32_0 = arith.constant 0 : i32
    %c0_i32_1 = arith.constant 0 : i32
    return %c0_i32, %c0_i32_0 : i32, i32
  }
  func.func @transform_6(%arg0: i32) -> (i32, i32) {
    %c0_i32 = arith.constant 0 : i32
    %c0_i32_0 = arith.constant 0 : i32
    %c0_i32_1 = arith.constant 0 : i32
    return %c0_i32, %c0_i32_0 : i32, i32
  }
  func.func @transform_7(%arg0: i32) -> (i32, i32, i32) {
    %c0_i32 = arith.constant 0 : i32
    %c0_i32_0 = arith.constant 0 : i32
    %c0_i32_1 = arith.constant 0 : i32
    return %arg0, %c0_i32, %c0_i32_0 : i32, i32, i32
  }
}

module attributes {stable_mosaic.version = 11 : i64} {
  func.func @kernel(%arg0: i32, %arg1: memref<1x256x128xbf16, #tpu.memory_space<vmem>>, %arg2: memref<128x32xbf16, #tpu.memory_space<vmem>>, %arg3: memref<1x32xf32, #tpu.memory_space<vmem>>, %arg4: memref<3x96x32xbf16, #tpu.memory_space<vmem>>, %arg5: memref<1x32xf32, #tpu.memory_space<vmem>>, %arg6: memref<32x128xbf16, #tpu.memory_space<vmem>>, %arg7: memref<1x128xf32, #tpu.memory_space<vmem>>, %arg8: memref<1x256x128xf32, #tpu.memory_space<vmem>>, %arg9: memref<320x32xbf16, #tpu.memory_space<vmem>>) attributes {dimension_semantics = [#tpu.dimension_semantics<parallel>], iteration_bounds = array<i64: 2>, scalar_prefetch = 0 : i64, scratch_operands = 1 : i64, tpu.core_type = #tpu.core_type<tc>, window_params = [{transform_indices = @transform_0, window_bounds = array<i64: 1, 256, 128>}, {pipeline_mode = #tpu.pipeline_mode<synchronous>, transform_indices = @transform_1, window_bounds = array<i64: 128, 32>}, {pipeline_mode = #tpu.pipeline_mode<synchronous>, transform_indices = @transform_2, window_bounds = array<i64: 1, 32>}, {pipeline_mode = #tpu.pipeline_mode<synchronous>, transform_indices = @transform_3, window_bounds = array<i64: 3, 96, 32>}, {pipeline_mode = #tpu.pipeline_mode<synchronous>, transform_indices = @transform_4, window_bounds = array<i64: 1, 32>}, {pipeline_mode = #tpu.pipeline_mode<synchronous>, transform_indices = @transform_5, window_bounds = array<i64: 32, 128>}, {pipeline_mode = #tpu.pipeline_mode<synchronous>, transform_indices = @transform_6, window_bounds = array<i64: 1, 128>}, {transform_indices = @transform_7, window_bounds = array<i64: 1, 256, 128>}]} {
    %cst = arith.constant 0.000000e+00 : bf16
    %0 = vector.broadcast %cst : bf16 to vector<32x32xbf16>
    %c0 = arith.constant 0 : index
    %c0_0 = arith.constant 0 : index
    %1 = vector.load %arg9[%c0, %c0_0] : memref<320x32xbf16, #tpu.memory_space<vmem>>, vector<32x32xbf16>
    tpu.vector_store %arg9[%c0, %c0_0], %0 {strides = array<i32>} : memref<320x32xbf16, #tpu.memory_space<vmem>>, vector<32x32xbf16>,
    %c288 = arith.constant 288 : index
    %c0_1 = arith.constant 0 : index
    %2 = vector.load %arg9[%c288, %c0_1] : memref<320x32xbf16, #tpu.memory_space<vmem>>, vector<32x32xbf16>
    tpu.vector_store %arg9[%c288, %c0_1], %0 {strides = array<i32>} : memref<320x32xbf16, #tpu.memory_space<vmem>>, vector<32x32xbf16>,
    %3 = tpu.iota {dimensions = array<i32: 0>} : vector<256x32xi32>
    %c16_i32 = arith.constant 16 : i32
    %c0_i32 = arith.constant 0 : i32
    %4 = arith.cmpi eq, %c16_i32, %c0_i32 : i32
    %c1_i32 = arith.constant 1 : i32
    %5 = arith.select %4, %c1_i32, %c16_i32 : i32
    %6 = vector.broadcast %5 : i32 to vector<256x32xi32>
    %7 = arith.remsi %3, %6 : vector<256x32xi32>
    %c0_i32_2 = arith.constant 0 : i32
    %8 = vector.broadcast %c0_i32_2 : i32 to vector<256x32xi32>
    %9 = arith.cmpi ne, %7, %8 : vector<256x32xi32>
    %c0_i32_3 = arith.constant 0 : i32
    %10 = vector.broadcast %c0_i32_3 : i32 to vector<256x32xi32>
    %11 = arith.cmpi slt, %7, %10 : vector<256x32xi32>
    %c0_i32_4 = arith.constant 0 : i32
    %12 = arith.cmpi slt, %5, %c0_i32_4 : i32
    %13 = vector.broadcast %12 : i1 to vector<256x32xi1>
    %14 = vector.broadcast %13 : vector<256x32xi1> to vector<256x32xi1>
    %15 = arith.xori %11, %14 : vector<256x32xi1>
    %16 = arith.andi %15, %9 : vector<256x32xi1>
    %17 = vector.broadcast %5 : i32 to vector<256x32xi32>
    %18 = arith.addi %7, %17 : vector<256x32xi32>
    %19 = arith.select %16, %18, %7 : vector<256x32xi1>, vector<256x32xi32>
    %c0_i32_5 = arith.constant 0 : i32
    %20 = vector.broadcast %c0_i32_5 : i32 to vector<256x32xi32>
    %21 = arith.cmpi ne, %19, %20 : vector<256x32xi32>
    %c15_i32 = arith.constant 15 : i32
    %22 = vector.broadcast %c15_i32 : i32 to vector<256x32xi32>
    %23 = arith.cmpi ne, %19, %22 : vector<256x32xi32>
    %c0_6 = arith.constant 0 : index
    %c0_7 = arith.constant 0 : index
    %24 = vector.load %arg2[%c0_6, %c0_7] : memref<128x32xbf16, #tpu.memory_space<vmem>>, vector<128x32xbf16>
    %c0_8 = arith.constant 0 : index
    %c0_9 = arith.constant 0 : index
    %c0_10 = arith.constant 0 : index
    %25 = vector.load %arg4[%c0_8, %c0_9, %c0_10] : memref<3x96x32xbf16, #tpu.memory_space<vmem>>, vector<3x96x32xbf16>
    %c0_11 = arith.constant 0 : index
    %c0_12 = arith.constant 0 : index
    %26 = vector.load %arg6[%c0_11, %c0_12] : memref<32x128xbf16, #tpu.memory_space<vmem>>, vector<32x128xbf16>
    %c0_13 = arith.constant 0 : index
    %c0_14 = arith.constant 0 : index
    %27 = vector.load %arg3[%c0_13, %c0_14] : memref<1x32xf32, #tpu.memory_space<vmem>>, vector<1x32xf32>
    %c0_15 = arith.constant 0 : index
    %c0_16 = arith.constant 0 : index
    %28 = vector.load %arg5[%c0_15, %c0_16] : memref<1x32xf32, #tpu.memory_space<vmem>>, vector<1x32xf32>
    %c0_17 = arith.constant 0 : index
    %c0_18 = arith.constant 0 : index
    %29 = vector.load %arg7[%c0_17, %c0_18] : memref<1x128xf32, #tpu.memory_space<vmem>>, vector<1x128xf32>
    %c0_19 = arith.constant 0 : index
    %c0_20 = arith.constant 0 : index
    %c0_21 = arith.constant 0 : index
    %30 = vector.load %arg1[%c0_19, %c0_20, %c0_21] : memref<1x256x128xbf16, #tpu.memory_space<vmem>>, vector<1x256x128xbf16>
    %31 = vector.shape_cast %30 : vector<1x256x128xbf16> to vector<256x128xbf16>
    %cst_22 = arith.constant dense<0.000000e+00> : vector<256x32xf32>
    %32 = tpu.matmul %31, %24, %cst_22 {dimension_numbers = #tpu.dot_dimension_numbers<[1], [0], [0], [1], [0, 0, 1, 1], [], []>} : vector<256x128xbf16>, vector<128x32xbf16>, vector<256x32xf32> -> vector<256x32xf32>
    %33 = vector.broadcast %27 : vector<1x32xf32> to vector<256x32xf32>
    %34 = arith.addf %32, %33 : vector<256x32xf32>
    %cst_23 = arith.constant 0.000000e+00 : f32
    %35 = vector.broadcast %cst_23 : f32 to vector<256x32xf32>
    %36 = arith.maximumf %34, %35 : vector<256x32xf32>
    %37 = arith.truncf %36 : vector<256x32xf32> to vector<256x32xbf16>
    %c32 = arith.constant 32 : index
    %c0_24 = arith.constant 0 : index
    %38 = vector.load %arg9[%c32, %c0_24] : memref<320x32xbf16, #tpu.memory_space<vmem>>, vector<256x32xbf16>
    tpu.vector_store %arg9[%c32, %c0_24], %37 {strides = array<i32>} : memref<320x32xbf16, #tpu.memory_space<vmem>>, vector<256x32xbf16>,
    %cst_25 = arith.constant 0.000000e+00 : f32
    %39 = vector.broadcast %cst_25 : f32 to vector<256x32xf32>
    %c15 = arith.constant 15 : index
    %c0_26 = arith.constant 0 : index
    %40 = vector.load %arg9[%c15, %c0_26] : memref<320x32xbf16, #tpu.memory_space<vmem>>, vector<256x32xbf16>
    %c16 = arith.constant 16 : index
    %c0_27 = arith.constant 0 : index
    %41 = vector.load %arg9[%c16, %c0_27] : memref<320x32xbf16, #tpu.memory_space<vmem>>, vector<256x32xbf16>
    %c17 = arith.constant 17 : index
    %c0_28 = arith.constant 0 : index
    %42 = vector.load %arg9[%c17, %c0_28] : memref<320x32xbf16, #tpu.memory_space<vmem>>, vector<256x32xbf16>
    %cst_29 = arith.constant 0.000000e+00 : f32
    %43 = arith.truncf %cst_29 : f32 to bf16
    %44 = vector.broadcast %43 : bf16 to vector<256x32xbf16>
    %45 = arith.select %21, %40, %44 : vector<256x32xi1>, vector<256x32xbf16>
    %cst_30 = arith.constant 0.000000e+00 : f32
    %46 = arith.truncf %cst_30 : f32 to bf16
    %47 = vector.broadcast %46 : bf16 to vector<256x32xbf16>
    %48 = arith.select %23, %42, %47 : vector<256x32xi1>, vector<256x32xbf16>
    %49 = tpu.concatenate %45, %41, %48 in 1 : vector<256x32xbf16>, vector<256x32xbf16>, vector<256x32xbf16> -> vector<256x96xbf16>
    %50 = vector.extract_strided_slice %25 {offsets = [0, 0, 0], sizes = [1, 96, 32], strides = [1, 1, 1]} : vector<3x96x32xbf16> to vector<1x96x32xbf16>
    %51 = vector.shape_cast %50 : vector<1x96x32xbf16> to vector<96x32xbf16>
    %cst_31 = arith.constant dense<0.000000e+00> : vector<256x32xf32>
    %52 = tpu.matmul %49, %51, %cst_31 {dimension_numbers = #tpu.dot_dimension_numbers<[1], [0], [0], [1], [0, 0, 1, 1], [], []>} : vector<256x96xbf16>, vector<96x32xbf16>, vector<256x32xf32> -> vector<256x32xf32>
    %53 = arith.addf %39, %52 : vector<256x32xf32>
    %c31 = arith.constant 31 : index
    %c0_32 = arith.constant 0 : index
    %54 = vector.load %arg9[%c31, %c0_32] : memref<320x32xbf16, #tpu.memory_space<vmem>>, vector<256x32xbf16>
    %c32_33 = arith.constant 32 : index
    %c0_34 = arith.constant 0 : index
    %55 = vector.load %arg9[%c32_33, %c0_34] : memref<320x32xbf16, #tpu.memory_space<vmem>>, vector<256x32xbf16>
    %c33 = arith.constant 33 : index
    %c0_35 = arith.constant 0 : index
    %56 = vector.load %arg9[%c33, %c0_35] : memref<320x32xbf16, #tpu.memory_space<vmem>>, vector<256x32xbf16>
    %cst_36 = arith.constant 0.000000e+00 : f32
    %57 = arith.truncf %cst_36 : f32 to bf16
    %58 = vector.broadcast %57 : bf16 to vector<256x32xbf16>
    %59 = arith.select %21, %54, %58 : vector<256x32xi1>, vector<256x32xbf16>
    %cst_37 = arith.constant 0.000000e+00 : f32
    %60 = arith.truncf %cst_37 : f32 to bf16
    %61 = vector.broadcast %60 : bf16 to vector<256x32xbf16>
    %62 = arith.select %23, %56, %61 : vector<256x32xi1>, vector<256x32xbf16>
    %63 = tpu.concatenate %59, %55, %62 in 1 : vector<256x32xbf16>, vector<256x32xbf16>, vector<256x32xbf16> -> vector<256x96xbf16>
    %64 = vector.extract_strided_slice %25 {offsets = [1, 0, 0], sizes = [1, 96, 32], strides = [1, 1, 1]} : vector<3x96x32xbf16> to vector<1x96x32xbf16>
    %65 = vector.shape_cast %64 : vector<1x96x32xbf16> to vector<96x32xbf16>
    %cst_38 = arith.constant dense<0.000000e+00> : vector<256x32xf32>
    %66 = tpu.matmul %63, %65, %cst_38 {dimension_numbers = #tpu.dot_dimension_numbers<[1], [0], [0], [1], [0, 0, 1, 1], [], []>} : vector<256x96xbf16>, vector<96x32xbf16>, vector<256x32xf32> -> vector<256x32xf32>
    %67 = arith.addf %53, %66 : vector<256x32xf32>
    %c47 = arith.constant 47 : index
    %c0_39 = arith.constant 0 : index
    %68 = vector.load %arg9[%c47, %c0_39] : memref<320x32xbf16, #tpu.memory_space<vmem>>, vector<256x32xbf16>
    %c48 = arith.constant 48 : index
    %c0_40 = arith.constant 0 : index
    %69 = vector.load %arg9[%c48, %c0_40] : memref<320x32xbf16, #tpu.memory_space<vmem>>, vector<256x32xbf16>
    %c49 = arith.constant 49 : index
    %c0_41 = arith.constant 0 : index
    %70 = vector.load %arg9[%c49, %c0_41] : memref<320x32xbf16, #tpu.memory_space<vmem>>, vector<256x32xbf16>
    %cst_42 = arith.constant 0.000000e+00 : f32
    %71 = arith.truncf %cst_42 : f32 to bf16
    %72 = vector.broadcast %71 : bf16 to vector<256x32xbf16>
    %73 = arith.select %21, %68, %72 : vector<256x32xi1>, vector<256x32xbf16>
    %cst_43 = arith.constant 0.000000e+00 : f32
    %74 = arith.truncf %cst_43 : f32 to bf16
    %75 = vector.broadcast %74 : bf16 to vector<256x32xbf16>
    %76 = arith.select %23, %70, %75 : vector<256x32xi1>, vector<256x32xbf16>
    %77 = tpu.concatenate %73, %69, %76 in 1 : vector<256x32xbf16>, vector<256x32xbf16>, vector<256x32xbf16> -> vector<256x96xbf16>
    %78 = vector.extract_strided_slice %25 {offsets = [2, 0, 0], sizes = [1, 96, 32], strides = [1, 1, 1]} : vector<3x96x32xbf16> to vector<1x96x32xbf16>
    %79 = vector.shape_cast %78 : vector<1x96x32xbf16> to vector<96x32xbf16>
    %cst_44 = arith.constant dense<0.000000e+00> : vector<256x32xf32>
    %80 = tpu.matmul %77, %79, %cst_44 {dimension_numbers = #tpu.dot_dimension_numbers<[1], [0], [0], [1], [0, 0, 1, 1], [], []>} : vector<256x96xbf16>, vector<96x32xbf16>, vector<256x32xf32> -> vector<256x32xf32>
    %81 = arith.addf %67, %80 : vector<256x32xf32>
    %82 = vector.broadcast %28 : vector<1x32xf32> to vector<256x32xf32>
    %83 = arith.addf %81, %82 : vector<256x32xf32>
    %cst_45 = arith.constant 0.000000e+00 : f32
    %84 = vector.broadcast %cst_45 : f32 to vector<256x32xf32>
    %85 = arith.maximumf %83, %84 : vector<256x32xf32>
    %86 = arith.truncf %85 : vector<256x32xf32> to vector<256x32xbf16>
    %cst_46 = arith.constant dense<0.000000e+00> : vector<256x128xf32>
    %87 = tpu.matmul %86, %26, %cst_46 {dimension_numbers = #tpu.dot_dimension_numbers<[1], [0], [0], [1], [0, 0, 1, 1], [], []>} : vector<256x32xbf16>, vector<32x128xbf16>, vector<256x128xf32> -> vector<256x128xf32>
    %88 = vector.broadcast %29 : vector<1x128xf32> to vector<256x128xf32>
    %89 = arith.addf %87, %88 : vector<256x128xf32>
    %90 = arith.extf %31 : vector<256x128xbf16> to vector<256x128xf32>
    %91 = arith.addf %89, %90 : vector<256x128xf32>
    %cst_47 = arith.constant 0.000000e+00 : f32
    %92 = vector.broadcast %cst_47 : f32 to vector<256x128xf32>
    %93 = arith.maximumf %91, %92 : vector<256x128xf32>
    %c0_48 = arith.constant 0 : index
    %c0_49 = arith.constant 0 : index
    %c0_50 = arith.constant 0 : index
    %94 = vector.load %arg8[%c0_48, %c0_49, %c0_50] : memref<1x256x128xf32, #tpu.memory_space<vmem>>, vector<1x256x128xf32>
    %95 = vector.shape_cast %94 : vector<1x256x128xf32> to vector<256x128xf32>
    %96 = vector.shape_cast %93 : vector<256x128xf32> to vector<1x256x128xf32>
    tpu.vector_store %arg8[%c0_48, %c0_49, %c0_50], %96 {strides = array<i32>} : memref<1x256x128xf32, #tpu.memory_space<vmem>>, vector<1x256x128xf32>,
    return
  }
  func.func @transform_0(%arg0: i32) -> (i32, i32, i32) {
    %c0_i32 = arith.constant 0 : i32
    %c0_i32_0 = arith.constant 0 : i32
    %c0_i32_1 = arith.constant 0 : i32
    return %arg0, %c0_i32, %c0_i32_0 : i32, i32, i32
  }
  func.func @transform_1(%arg0: i32) -> (i32, i32) {
    %c0_i32 = arith.constant 0 : i32
    %c0_i32_0 = arith.constant 0 : i32
    %c0_i32_1 = arith.constant 0 : i32
    return %c0_i32, %c0_i32_0 : i32, i32
  }
  func.func @transform_2(%arg0: i32) -> (i32, i32) {
    %c0_i32 = arith.constant 0 : i32
    %c0_i32_0 = arith.constant 0 : i32
    %c0_i32_1 = arith.constant 0 : i32
    return %c0_i32, %c0_i32_0 : i32, i32
  }
  func.func @transform_3(%arg0: i32) -> (i32, i32, i32) {
    %c0_i32 = arith.constant 0 : i32
    %c0_i32_0 = arith.constant 0 : i32
    %c0_i32_1 = arith.constant 0 : i32
    %c0_i32_2 = arith.constant 0 : i32
    return %c0_i32, %c0_i32_0, %c0_i32_1 : i32, i32, i32
  }
  func.func @transform_4(%arg0: i32) -> (i32, i32) {
    %c0_i32 = arith.constant 0 : i32
    %c0_i32_0 = arith.constant 0 : i32
    %c0_i32_1 = arith.constant 0 : i32
    return %c0_i32, %c0_i32_0 : i32, i32
  }
  func.func @transform_5(%arg0: i32) -> (i32, i32) {
    %c0_i32 = arith.constant 0 : i32
    %c0_i32_0 = arith.constant 0 : i32
    %c0_i32_1 = arith.constant 0 : i32
    return %c0_i32, %c0_i32_0 : i32, i32
  }
  func.func @transform_6(%arg0: i32) -> (i32, i32) {
    %c0_i32 = arith.constant 0 : i32
    %c0_i32_0 = arith.constant 0 : i32
    %c0_i32_1 = arith.constant 0 : i32
    return %c0_i32, %c0_i32_0 : i32, i32
  }
  func.func @transform_7(%arg0: i32) -> (i32, i32, i32) {
    %c0_i32 = arith.constant 0 : i32
    %c0_i32_0 = arith.constant 0 : i32
    %c0_i32_1 = arith.constant 0 : i32
    return %arg0, %c0_i32, %c0_i32_0 : i32, i32, i32
  }
}

</mosaic_0001>

<llo_original>
// kernel: forward.2
$region0: #{forward.2}
  #allocation0 [shape = 'u32[]', space=smem, size = 0x4, offset = 0x4, fixed_abs, tag = 'smem constant byte address 0x4 - core index']
  #allocation1 [shape = 'u32[144,128]{1,0:T(1,128)}', space=vmem, size = 0x12000, scoped, tag = 'internal scratch']
  #allocation2 [shape = 'bf16[320,32]{1,0:T(8,128)(2,1)}', space=vmem, size = 0x14000, scoped, tag = 'scratch operand']
  %s0 = inlined_call_operand.vmem [shape: bf16[2,256,64], index: 0, kind: input, shape index: {}]
  %s1 = inlined_call_operand.vmem [shape: bf16[64,32], index: 1, kind: input, shape index: {}]
  %s2 = inlined_call_operand.vmem [shape: f32[1,32], index: 2, kind: input, shape index: {}]
  %s3 = inlined_call_operand.vmem [shape: bf16[3,96,32], index: 3, kind: input, shape index: {}]
  %s4 = inlined_call_operand.vmem [shape: f32[1,32], index: 4, kind: input, shape index: {}]
  %s5 = inlined_call_operand.vmem [shape: bf16[96,128], index: 5, kind: input, shape index: {}]
  %s6 = inlined_call_operand.vmem [shape: f32[1,128], index: 6, kind: input, shape index: {}]
  %s7 = inlined_call_operand.vmem [shape: bf16[2,256,128], index: 7, kind: output, shape index: {}]
  %s8 = sld [smem:[#allocation0]]
  $region61: #{forward.2} parent=0
    _
  %s10 = ssub.s32 1, %s8
  %s11 = scalar_select 0, %s10, %s8
  loop: start=0, step=1, limit=4
  $region2: #{forward.2} parent=0 // loop_pre_header
    _
  $region3: #{forward.2} parent=0 // loop_header
    %s13 = sphi 0, %s17
    %p14 = scmp.ge.s32.totalorder %s13, 4
    %s23 = sphi 0, %s25
    %s26 = sphi 0, %s23
    %s27 = sphi 0, %s26
    %s43 = sphi 0, %s27
    %s47 = sphi 0, %s47
    %s49 = sphi 0, %s47
    %s50 = sphi 0, %s49
    %s64 = sphi 0, %s50
    %s68 = sphi 0, %s68
    %s70 = sphi 0, %s68
    %s71 = sphi 0, %s70
    %s85 = sphi 0, %s71
    %s89 = sphi 0, %s89
    %s91 = sphi 0, %s89
    %s92 = sphi 0, %s91
    %s106 = sphi 0, %s92
    %s110 = sphi 0, %s110
    %s112 = sphi 0, %s110
    %s113 = sphi 0, %s112
    %s127 = sphi 0, %s113
    %s131 = sphi 0, %s131
    %s133 = sphi 0, %s131
    %s134 = sphi 0, %s133
    %s148 = sphi 0, %s134
    %s152 = sphi 0, %s152
    %s154 = sphi 0, %s152
    %s155 = sphi 0, %s154
    %s169 = sphi 0, %s155
    %s175 = sphi 0, %s177
    %s178 = sphi 0, %s175
    %s179 = sphi 0, %s178
    %s195 = sphi 0, %s179
  $region4: #{forward.2} parent=0 // loop_header_branch
    %16 = sbr.rel (%p14) target = $region8
  $region5: #{forward.2} parent=0 // loop_body
    %s18 = ssub.s32 %s13, 1
    %s19 = ssub.s32 %s13, 2
    %s20 = sadd.s32 %s13, 1
    %s21 = ssub.s32 %s13, %s20
    %p22 = scmp.eq.s32.totalorder %s21, 0
    %s24 = sadd.s32 %s23, 1
    %s25 = scalar_select %p22, %s23, %s24
    %p28 = pneg %p22
    %p29 = scmp.eq.s32.totalorder %s13, 1
    %p30 = por %p28, %p29
    %p31 = scmp.ne.s32.totalorder %s23, %s26
    %p32 = scmp.eq.s32.totalorder %s13, 0
    %p33 = por %p31, %p32
    %p34 = scmp.ne.s32.totalorder %s23, %s26
    %p35 = scmp.eq.s32.totalorder %s18, 1
    %p36 = por %p34, %p35
    %p37 = scmp.ne.s32.totalorder %s26, %s27
    %p38 = scmp.eq.s32.totalorder %s18, 0
    %p39 = por %p37, %p38
    %p40 = scmp.ne.s32.totalorder %s26, %s27
    %p41 = scmp.eq.s32.totalorder %s19, 1
    %p42 = por %p40, %p41
    %p44 = scmp.ne.s32.totalorder %s27, %s43
    %p45 = scmp.eq.s32.totalorder %s19, 0
    %p46 = por %p44, %p45
    %s48 = sadd.s32 %s47, 1
    %p51 = scmp.eq.s32.totalorder %s13, 1
    %p52 = scmp.ne.s32.totalorder %s47, %s49
    %p53 = scmp.eq.s32.totalorder %s13, 0
    %p54 = por %p52, %p53
    %p55 = scmp.ne.s32.totalorder %s47, %s49
    %p56 = scmp.eq.s32.totalorder %s18, 1
    %p57 = por %p55, %p56
    %p58 = scmp.ne.s32.totalorder %s49, %s50
    %p59 = scmp.eq.s32.totalorder %s18, 0
    %p60 = por %p58, %p59
    %p61 = scmp.ne.s32.totalorder %s49, %s50
    %p62 = scmp.eq.s32.totalorder %s19, 1
    %p63 = por %p61, %p62
    %p65 = scmp.ne.s32.totalorder %s50, %s64
    %p66 = scmp.eq.s32.totalorder %s19, 0
    %p67 = por %p65, %p66
    %s69 = sadd.s32 %s68, 1
    %p72 = scmp.eq.s32.totalorder %s13, 1
    %p73 = scmp.ne.s32.totalorder %s68, %s70
    %p74 = scmp.eq.s32.totalorder %s13, 0
    %p75 = por %p73, %p74
    %p76 = scmp.ne.s32.totalorder %s68, %s70
    %p77 = scmp.eq.s32.totalorder %s18, 1
    %p78 = por %p76, %p77
    %p79 = scmp.ne.s32.totalorder %s70, %s71
    %p80 = scmp.eq.s32.totalorder %s18, 0
    %p81 = por %p79, %p80
    %p82 = scmp.ne.s32.totalorder %s70, %s71
    %p83 = scmp.eq.s32.totalorder %s19, 1
    %p84 = por %p82, %p83
    %p86 = scmp.ne.s32.totalorder %s71, %s85
    %p87 = scmp.eq.s32.totalorder %s19, 0
    %p88 = por %p86, %p87
    %s90 = sadd.s32 %s89, 1
    %p93 = scmp.eq.s32.totalorder %s13, 1
    %p94 = scmp.ne.s32.totalorder %s89, %s91
    %p95 = scmp.eq.s32.totalorder %s13, 0
    %p96 = por %p94, %p95
    %p97 = scmp.ne.s32.totalorder %s89, %s91
    %p98 = scmp.eq.s32.totalorder %s18, 1
    %p99 = por %p97, %p98
    %p100 = scmp.ne.s32.totalorder %s91, %s92
    %p101 = scmp.eq.s32.totalorder %s18, 0
    %p102 = por %p100, %p101
    %p103 = scmp.ne.s32.totalorder %s91, %s92
    %p104 = scmp.eq.s32.totalorder %s19, 1
    %p105 = por %p103, %p104
    %p107 = scmp.ne.s32.totalorder %s92, %s106
    %p108 = scmp.eq.s32.totalorder %s19, 0
    %p109 = por %p107, %p108
    %s111 = sadd.s32 %s110, 1
    %p114 = scmp.eq.s32.totalorder %s13, 1
    %p115 = scmp.ne.s32.totalorder %s110, %s112
    %p116 = scmp.eq.s32.totalorder %s13, 0
    %p117 = por %p115, %p116
    %p118 = scmp.ne.s32.totalorder %s110, %s112
    %p119 = scmp.eq.s32.totalorder %s18, 1
    %p120 = por %p118, %p119
    %p121 = scmp.ne.s32.totalorder %s112, %s113
    %p122 = scmp.eq.s32.totalorder %s18, 0
    %p123 = por %p121, %p122
    %p124 = scmp.ne.s32.totalorder %s112, %s113
    %p125 = scmp.eq.s32.totalorder %s19, 1
    %p126 = por %p124, %p125
    %p128 = scmp.ne.s32.totalorder %s113, %s127
    %p129 = scmp.eq.s32.totalorder %s19, 0
    %p130 = por %p128, %p129
    %s132 = sadd.s32 %s131, 1
    %p135 = scmp.eq.s32.totalorder %s13, 1
    %p136 = scmp.ne.s32.totalorder %s131, %s133
    %p137 = scmp.eq.s32.totalorder %s13, 0
    %p138 = por %p136, %p137
    %p139 = scmp.ne.s32.totalorder %s131, %s133
    %p140 = scmp.eq.s32.totalorder %s18, 1
    %p141 = por %p139, %p140
    %p142 = scmp.ne.s32.totalorder %s133, %s134
    %p143 = scmp.eq.s32.totalorder %s18, 0
    %p144 = por %p142, %p143
    %p145 = scmp.ne.s32.totalorder %s133, %s134
    %p146 = scmp.eq.s32.totalorder %s19, 1
    %p147 = por %p145, %p146
    %p149 = scmp.ne.s32.totalorder %s134, %s148
    %p150 = scmp.eq.s32.totalorder %s19, 0
    %p151 = por %p149, %p150
    %s153 = sadd.s32 %s152, 1
    %p156 = scmp.eq.s32.totalorder %s13, 1
    %p157 = scmp.ne.s32.totalorder %s152, %s154
    %p158 = scmp.eq.s32.totalorder %s13, 0
    %p159 = por %p157, %p158
    %p160 = scmp.ne.s32.totalorder %s152, %s154
    %p161 = scmp.eq.s32.totalorder %s18, 1
    %p162 = por %p160, %p161
    %p163 = scmp.ne.s32.totalorder %s154, %s155
    %p164 = scmp.eq.s32.totalorder %s18, 0
    %p165 = por %p163, %p164
    %p166 = scmp.ne.s32.totalorder %s154, %s155
    %p167 = scmp.eq.s32.totalorder %s19, 1
    %p168 = por %p166, %p167
    %p170 = scmp.ne.s32.totalorder %s155, %s169
    %p171 = scmp.eq.s32.totalorder %s19, 0
    %p172 = por %p170, %p171
    %s173 = ssub.s32 %s13, %s20
    %p174 = scmp.eq.s32.totalorder %s173, 0
    %s176 = sadd.s32 %s175, 1
    %s177 = scalar_select %p174, %s175, %s176
    %p180 = pneg %p174
    %p181 = scmp.eq.s32.totalorder %s13, 1
    %p182 = por %p180, %p181
    %p183 = scmp.ne.s32.totalorder %s175, %s178
    %p184 = scmp.eq.s32.totalorder %s13, 0
    %p185 = por %p183, %p184
    %p186 = scmp.ne.s32.totalorder %s175, %s178
    %p187 = scmp.eq.s32.totalorder %s18, 1
    %p188 = por %p186, %p187
    %p189 = scmp.ne.s32.totalorder %s178, %s179
    %p190 = scmp.eq.s32.totalorder %s18, 0
    %p191 = por %p189, %p190
    %p192 = scmp.ne.s32.totalorder %s178, %s179
    %p193 = scmp.eq.s32.totalorder %s19, 1
    %p194 = por %p192, %p193
    %p196 = scmp.ne.s32.totalorder %s179, %s195
    %p197 = scmp.eq.s32.totalorder %s19, 0
    %p198 = por %p196, %p197
    %p199 = scmp.le.s32.totalorder 1, %s13
    %p200 = scmp.lt.s32.totalorder %s13, 3
    %p201 = pnand %p199, %p200
    %p202 = pneg %p201
    // Predicated region
    $region9: #{forward.2} parent=5 // pred_check
      _
    $region10: #{forward.2} parent=5 // pred_check_branch
      %204 = sbr.rel (%p201) target = $region12
    $region11: #{forward.2} parent=5 // pred_region
      %s205 = ssub.s32 %s13, 1
      // Predicated region
      $region13: #{forward.2} parent=11 // pred_check
        %p206 = pneg %p60
      $region14: #{forward.2} parent=11 // pred_check_branch
        %208 = sbr.rel (%p206) target = $region16
      $region15: #{forward.2} parent=11 // pred_region
        _
      $region16: #{forward.2} parent=11 // pred_fallthru
        _
      // Predicated region
      $region17: #{forward.2} parent=11 // pred_check
        %p209 = pneg %p81
      $region18: #{forward.2} parent=11 // pred_check_branch
        %211 = sbr.rel (%p209) target = $region20
      $region19: #{forward.2} parent=11 // pred_region
        _
      $region20: #{forward.2} parent=11 // pred_fallthru
        _
      // Predicated region
      $region21: #{forward.2} parent=11 // pred_check
        %p212 = pneg %p102
      $region22: #{forward.2} parent=11 // pred_check_branch
        %214 = sbr.rel (%p212) target = $region24
      $region23: #{forward.2} parent=11 // pred_region
        _
      $region24: #{forward.2} parent=11 // pred_fallthru
        _
      // Predicated region
      $region25: #{forward.2} parent=11 // pred_check
        %p215 = pneg %p123
      $region26: #{forward.2} parent=11 // pred_check_branch
        %217 = sbr.rel (%p215) target = $region28
      $region27: #{forward.2} parent=11 // pred_region
        _
      $region28: #{forward.2} parent=11 // pred_fallthru
        _
      // Predicated region
      $region29: #{forward.2} parent=11 // pred_check
        %p218 = pneg %p144
      $region30: #{forward.2} parent=11 // pred_check_branch
        %220 = sbr.rel (%p218) target = $region32
      $region31: #{forward.2} parent=11 // pred_region
        _
      $region32: #{forward.2} parent=11 // pred_fallthru
        _
      // Predicated region
      $region33: #{forward.2} parent=11 // pred_check
        %p221 = pneg %p165
      $region34: #{forward.2} parent=11 // pred_check_branch
        %223 = sbr.rel (%p221) target = $region36
      $region35: #{forward.2} parent=11 // pred_region
        _
      $region36: #{forward.2} parent=11 // pred_fallthru
        _
    $region12: #{forward.2} parent=5 // pred_fallthru
      _
    %p224 = scmp.lt.s32.totalorder %s13, 2
    // Predicated region
    $region37: #{forward.2} parent=5 // pred_check
      %p225 = pneg %p224
    $region38: #{forward.2} parent=5 // pred_check_branch
      %227 = sbr.rel (%p225) target = $region40
    $region39: #{forward.2} parent=5 // pred_region
      // Predicated region
      $region41: #{forward.2} parent=39 // pred_check
        %p228 = pneg %p33
      $region42: #{forward.2} parent=39 // pred_check_branch
        %230 = sbr.rel (%p228) target = $region44
      $region43: #{forward.2} parent=39 // pred_region
        %p231 = scmp.lt.s32.totalorder %s13, 1
        %s232 = scalar_select %p231, %s13, 1
        %s233 = smul.addr %s232, 32
        %s234 = smul.addr %s233, 4
        %s235 = scalar_lea.vmem %s0, %s234
      $region44: #{forward.2} parent=39 // pred_fallthru
        _
    $region40: #{forward.2} parent=5 // pred_fallthru
      _
    %p236 = scmp.le.s32.totalorder 1, %s13
    %p237 = scmp.lt.s32.totalorder %s13, 3
    %p238 = pnand %p236, %p237
    %p239 = pneg %p238
    // Predicated region
    $region45: #{forward.2} parent=5 // pred_check
      _
    $region46: #{forward.2} parent=5 // pred_check_branch
      %241 = sbr.rel (%p238) target = $region48
    $region47: #{forward.2} parent=5 // pred_region
      %s242 = ssub.s32 %s13, 1
      %p243 = scmp.lt.s32.totalorder %s18, 1
      %s244 = scalar_select %p243, %s18, 1
      %s245 = smul.addr %s244, 32
      %s246 = smul.addr %s245, 4
      %s247 = scalar_lea.vmem %s0, %s246
      %p248 = pneg %p39
      %p249 = pneg %p36
      %p250 = pneg %p60
      %p251 = pneg %p57
      %p252 = pneg %p81
      %p253 = pneg %p78
      %p254 = pneg %p102
      %p255 = pneg %p99
      %p256 = pneg %p123
      %p257 = pneg %p120
      %p258 = pneg %p144
      %p259 = pneg %p141
      %p260 = pneg %p165
      %p261 = pneg %p162
      %p262 = pneg %p191
      %p263 = pneg %p188
      %p264 = scmp.lt.s32.totalorder %s18, 1
      %s265 = scalar_select %p264, %s18, 1
      %s266 = smul.addr %s265, 32
      %s267 = smul.addr %s266, 4
      %s268 = scalar_lea.vmem %s7, %s267
      %p269 = scmp.lt.s32.totalorder %s18, 1
      %s270 = scalar_select %p269, %s18, 1
      %s271 = smul.addr %s270, 32
      %s272 = smul.addr %s271, 4
      %s273 = scalar_lea.vmem %s0, %s272
      %p274 = scmp.lt.s32.totalorder %s18, 1
      %s275 = scalar_select %p274, %s18, 1
      %s276 = smul.addr %s275, 32
      %s277 = smul.addr %s276, 4
      %s278 = scalar_lea.vmem %s7, %s277
      %vm282 = vcmask 257024
      %283 = vst.msk [vmem:[#allocation2] sm:$0xf] %vm282, 0
      %284 = vst.msk [vmem:[#allocation2 + $0x4] sm:$0xf] %vm282, 0
      %285 = vst.msk [vmem:[#allocation2 + $0x8] sm:$0xf] %vm282, 0
      %286 = vst.msk [vmem:[#allocation2 + $0xc] sm:$0xf] %vm282, 0
      %287 = vst.msk [vmem:[#allocation2 + $0x90] sm:$0xf] %vm282, 0
      %288 = vst.msk [vmem:[#allocation2 + $0x94] sm:$0xf] %vm282, 0
      %289 = vst.msk [vmem:[#allocation2 + $0x98] sm:$0xf] %vm282, 0
      %290 = vst.msk [vmem:[#allocation2 + $0x9c] sm:$0xf] %vm282, 0
      %v291 = vlaneseq
      %v292 = vshrl.u32 %v291, 7
      %v293 = vadd.s32 %v292, 8
      %v294 = vadd.s32 %v292, 16
      %v295 = vadd.s32 %v292, 24
      %v296 = vadd.s32 %v292, 32
      %v297 = vadd.s32 %v292, 40
      %v298 = vadd.s32 %v292, 48
      %v299 = vadd.s32 %v292, 56
      %v300 = vadd.s32 %v292, 64
      %v301 = vadd.s32 %v292, 72
      %v302 = vadd.s32 %v292, 80
      %v303 = vadd.s32 %v292, 88
      %v304 = vadd.s32 %v292, 96
      %v305 = vadd.s32 %v292, 104
      %v306 = vadd.s32 %v292, 112
      %v307 = vadd.s32 %v292, 120
      %v308 = vadd.s32 %v292, 128
      %v309 = vadd.s32 %v292, 136
      %v310 = vadd.s32 %v292, 144
      %v311 = vadd.s32 %v292, 152
      %v312 = vadd.s32 %v292, 160
      %v313 = vadd.s32 %v292, 168
      %v314 = vadd.s32 %v292, 176
      %v315 = vadd.s32 %v292, 184
      %v316 = vadd.s32 %v292, 192
      %v317 = vadd.s32 %v292, 200
      %v318 = vadd.s32 %v292, 208
      %v319 = vadd.s32 %v292, 216
      %v320 = vadd.s32 %v292, 224
      %v321 = vadd.s32 %v292, 232
      %v322 = vadd.s32 %v292, 240
      %v323 = vadd.s32 %v292, 248
      %vm324 = vcmp.lt.s32.totalorder %v292, 0
      %v325 = vsub.s32 0, %v292
      %v326 = vsel %vm324, %v325, %v292
      %v327 = vshrl.u32 %v326, 4
      %v328 = vand.u32 %v326, 15
      %v329 = vsub.s32 0, %v328
      %v330 = vsel %vm324, %v329, %v328
      %vm331 = vcmp.lt.s32.totalorder %v293, 0
      %v332 = vsub.s32 0, %v293
      %v333 = vsel %vm331, %v332, %v293
      %v334 = vshrl.u32 %v333, 4
      %v335 = vand.u32 %v333, 15
      %v336 = vsub.s32 0, %v335
      %v337 = vsel %vm331, %v336, %v335
      %vm338 = vcmp.lt.s32.totalorder %v294, 0
      %v339 = vsub.s32 0, %v294
      %v340 = vsel %vm338, %v339, %v294
      %v341 = vshrl.u32 %v340, 4
      %v342 = vand.u32 %v340, 15
      %v343 = vsub.s32 0, %v342
      %v344 = vsel %vm338, %v343, %v342
      %vm345 = vcmp.lt.s32.totalorder %v295, 0
      %v346 = vsub.s32 0, %v295
      %v347 = vsel %vm345, %v346, %v295
      %v348 = vshrl.u32 %v347, 4
      %v349 = vand.u32 %v347, 15
      %v350 = vsub.s32 0, %v349
      %v351 = vsel %vm345, %v350, %v349
      %vm352 = vcmp.lt.s32.totalorder %v296, 0
      %v353 = vsub.s32 0, %v296
      %v354 = vsel %vm352, %v353, %v296
      %v355 = vshrl.u32 %v354, 4
      %v356 = vand.u32 %v354, 15
      %v357 = vsub.s32 0, %v356
      %v358 = vsel %vm352, %v357, %v356
      %vm359 = vcmp.lt.s32.totalorder %v297, 0
      %v360 = vsub.s32 0, %v297
      %v361 = vsel %vm359, %v360, %v297
      %v362 = vshrl.u32 %v361, 4
      %v363 = vand.u32 %v361, 15
      %v364 = vsub.s32 0, %v363
      %v365 = vsel %vm359, %v364, %v363
      %vm366 = vcmp.lt.s32.totalorder %v298, 0
      %v367 = vsub.s32 0, %v298
      %v368 = vsel %vm366, %v367, %v298
      %v369 = vshrl.u32 %v368, 4
      %v370 = vand.u32 %v368, 15
      %v371 = vsub.s32 0, %v370
      %v372 = vsel %vm366, %v371, %v370
      %vm373 = vcmp.lt.s32.totalorder %v299, 0
      %v374 = vsub.s32 0, %v299
      %v375 = vsel %vm373, %v374, %v299
      %v376 = vshrl.u32 %v375, 4
      %v377 = vand.u32 %v375, 15
      %v378 = vsub.s32 0, %v377
      %v379 = vsel %vm373, %v378, %v377
      %vm380 = vcmp.lt.s32.totalorder %v300, 0
      %v381 = vsub.s32 0, %v300
      %v382 = vsel %vm380, %v381, %v300
      %v383 = vshrl.u32 %v382, 4
      %v384 = vand.u32 %v382, 15
      %v385 = vsub.s32 0, %v384
      %v386 = vsel %vm380, %v385, %v384
      %vm387 = vcmp.lt.s32.totalorder %v301, 0
      %v388 = vsub.s32 0, %v301
      %v389 = vsel %vm387, %v388, %v301
      %v390 = vshrl.u32 %v389, 4
      %v391 = vand.u32 %v389, 15
      %v392 = vsub.s32 0, %v391
      %v393 = vsel %vm387, %v392, %v391
      %vm394 = vcmp.lt.s32.totalorder %v302, 0
      %v395 = vsub.s32 0, %v302
      %v396 = vsel %vm394, %v395, %v302
      %v397 = vshrl.u32 %v396, 4
      %v398 = vand.u32 %v396, 15
      %v399 = vsub.s32 0, %v398
      %v400 = vsel %vm394, %v399, %v398
      %vm401 = vcmp.lt.s32.totalorder %v303, 0
      %v402 = vsub.s32 0, %v303
      %v403 = vsel %vm401, %v402, %v303
      %v404 = vshrl.u32 %v403, 4
      %v405 = vand.u32 %v403, 15
      %v406 = vsub.s32 0, %v405
      %v407 = vsel %vm401, %v406, %v405
      %vm408 = vcmp.lt.s32.totalorder %v304, 0
      %v409 = vsub.s32 0, %v304
      %v410 = vsel %vm408, %v409, %v304
      %v411 = vshrl.u32 %v410, 4
      %v412 = vand.u32 %v410, 15
      %v413 = vsub.s32 0, %v412
      %v414 = vsel %vm408, %v413, %v412
      %vm415 = vcmp.lt.s32.totalorder %v305, 0
      %v416 = vsub.s32 0, %v305
      %v417 = vsel %vm415, %v416, %v305
      %v418 = vshrl.u32 %v417, 4
      %v419 = vand.u32 %v417, 15
      %v420 = vsub.s32 0, %v419
      %v421 = vsel %vm415, %v420, %v419
      %vm422 = vcmp.lt.s32.totalorder %v306, 0
      %v423 = vsub.s32 0, %v306
      %v424 = vsel %vm422, %v423, %v306
      %v425 = vshrl.u32 %v424, 4
      %v426 = vand.u32 %v424, 15
      %v427 = vsub.s32 0, %v426
      %v428 = vsel %vm422, %v427, %v426
      %vm429 = vcmp.lt.s32.totalorder %v307, 0
      %v430 = vsub.s32 0, %v307
      %v431 = vsel %vm429, %v430, %v307
      %v432 = vshrl.u32 %v431, 4
      %v433 = vand.u32 %v431, 15
      %v434 = vsub.s32 0, %v433
      %v435 = vsel %vm429, %v434, %v433
      %vm436 = vcmp.lt.s32.totalorder %v308, 0
      %v437 = vsub.s32 0, %v308
      %v438 = vsel %vm436, %v437, %v308
      %v439 = vshrl.u32 %v438, 4
      %v440 = vand.u32 %v438, 15
      %v441 = vsub.s32 0, %v440
      %v442 = vsel %vm436, %v441, %v440
      %vm443 = vcmp.lt.s32.totalorder %v309, 0
      %v444 = vsub.s32 0, %v309
      %v445 = vsel %vm443, %v444, %v309
      %v446 = vshrl.u32 %v445, 4
      %v447 = vand.u32 %v445, 15
      %v448 = vsub.s32 0, %v447
      %v449 = vsel %vm443, %v448, %v447
      %vm450 = vcmp.lt.s32.totalorder %v310, 0
      %v451 = vsub.s32 0, %v310
      %v452 = vsel %vm450, %v451, %v310
      %v453 = vshrl.u32 %v452, 4
      %v454 = vand.u32 %v452, 15
      %v455 = vsub.s32 0, %v454
      %v456 = vsel %vm450, %v455, %v454
      %vm457 = vcmp.lt.s32.totalorder %v311, 0
      %v458 = vsub.s32 0, %v311
      %v459 = vsel %vm457, %v458, %v311
      %v460 = vshrl.u32 %v459, 4
      %v461 = vand.u32 %v459, 15
      %v462 = vsub.s32 0, %v461
      %v463 = vsel %vm457, %v462, %v461
      %vm464 = vcmp.lt.s32.totalorder %v312, 0
      %v465 = vsub.s32 0, %v312
      %v466 = vsel %vm464, %v465, %v312
      %v467 = vshrl.u32 %v466, 4
      %v468 = vand.u32 %v466, 15
      %v469 = vsub.s32 0, %v468
      %v470 = vsel %vm464, %v469, %v468
      %vm471 = vcmp.lt.s32.totalorder %v313, 0
      %v472 = vsub.s32 0, %v313
      %v473 = vsel %vm471, %v472, %v313
      %v474 = vshrl.u32 %v473, 4
      %v475 = vand.u32 %v473, 15
      %v476 = vsub.s32 0, %v475
      %v477 = vsel %vm471, %v476, %v475
      %vm478 = vcmp.lt.s32.totalorder %v314, 0
      %v479 = vsub.s32 0, %v314
      %v480 = vsel %vm478, %v479, %v314
      %v481 = vshrl.u32 %v480, 4
      %v482 = vand.u32 %v480, 15
      %v483 = vsub.s32 0, %v482
      %v484 = vsel %vm478, %v483, %v482
      %vm485 = vcmp.lt.s32.totalorder %v315, 0
      %v486 = vsub.s32 0, %v315
      %v487 = vsel %vm485, %v486, %v315
      %v488 = vshrl.u32 %v487, 4
      %v489 = vand.u32 %v487, 15
      %v490 = vsub.s32 0, %v489
      %v491 = vsel %vm485, %v490, %v489
      %vm492 = vcmp.lt.s32.totalorder %v316, 0
      %v493 = vsub.s32 0, %v316
      %v494 = vsel %vm492, %v493, %v316
      %v495 = vshrl.u32 %v494, 4
      %v496 = vand.u32 %v494, 15
      %v497 = vsub.s32 0, %v496
      %v498 = vsel %vm492, %v497, %v496
      %vm499 = vcmp.lt.s32.totalorder %v317, 0
      %v500 = vsub.s32 0, %v317
      %v501 = vsel %vm499, %v500, %v317
      %v502 = vshrl.u32 %v501, 4
      %v503 = vand.u32 %v501, 15
      %v504 = vsub.s32 0, %v503
      %v505 = vsel %vm499, %v504, %v503
      %vm506 = vcmp.lt.s32.totalorder %v318, 0
      %v507 = vsub.s32 0, %v318
      %v508 = vsel %vm506, %v507, %v318
      %v509 = vshrl.u32 %v508, 4
      %v510 = vand.u32 %v508, 15
      %v511 = vsub.s32 0, %v510
      %v512 = vsel %vm506, %v511, %v510
      %vm513 = vcmp.lt.s32.totalorder %v319, 0
      %v514 = vsub.s32 0, %v319
      %v515 = vsel %vm513, %v514, %v319
      %v516 = vshrl.u32 %v515, 4
      %v517 = vand.u32 %v515, 15
      %v518 = vsub.s32 0, %v517
      %v519 = vsel %vm513, %v518, %v517
      %vm520 = vcmp.lt.s32.totalorder %v320, 0
      %v521 = vsub.s32 0, %v320
      %v522 = vsel %vm520, %v521, %v320
      %v523 = vshrl.u32 %v522, 4
      %v524 = vand.u32 %v522, 15
      %v525 = vsub.s32 0, %v524
      %v526 = vsel %vm520, %v525, %v524
      %vm527 = vcmp.lt.s32.totalorder %v321, 0
      %v528 = vsub.s32 0, %v321
      %v529 = vsel %vm527, %v528, %v321
      %v530 = vshrl.u32 %v529, 4
      %v531 = vand.u32 %v529, 15
      %v532 = vsub.s32 0, %v531
      %v533 = vsel %vm527, %v532, %v531
      %vm534 = vcmp.lt.s32.totalorder %v322, 0
      %v535 = vsub.s32 0, %v322
      %v536 = vsel %vm534, %v535, %v322
      %v537 = vshrl.u32 %v536, 4
      %v538 = vand.u32 %v536, 15
      %v539 = vsub.s32 0, %v538
      %v540 = vsel %vm534, %v539, %v538
      %vm541 = vcmp.lt.s32.totalorder %v323, 0
      %v542 = vsub.s32 0, %v323
      %v543 = vsel %vm541, %v542, %v323
      %v544 = vshrl.u32 %v543, 4
      %v545 = vand.u32 %v543, 15
      %v546 = vsub.s32 0, %v545
      %v547 = vsel %vm541, %v546, %v545
      %vm548 = vcmp.ne.s32.totalorder %v330, 0
      %vm549 = vcmp.ne.s32.totalorder %v337, 0
      %vm550 = vcmp.ne.s32.totalorder %v344, 0
      %vm551 = vcmp.ne.s32.totalorder %v351, 0
      %vm552 = vcmp.ne.s32.totalorder %v358, 0
      %vm553 = vcmp.ne.s32.totalorder %v365, 0
      %vm554 = vcmp.ne.s32.totalorder %v372, 0
      %vm555 = vcmp.ne.s32.totalorder %v379, 0
      %vm556 = vcmp.ne.s32.totalorder %v386, 0
      %vm557 = vcmp.ne.s32.totalorder %v393, 0
      %vm558 = vcmp.ne.s32.totalorder %v400, 0
      %vm559 = vcmp.ne.s32.totalorder %v407, 0
      %vm560 = vcmp.ne.s32.totalorder %v414, 0
      %vm561 = vcmp.ne.s32.totalorder %v421, 0
      %vm562 = vcmp.ne.s32.totalorder %v428, 0
      %vm563 = vcmp.ne.s32.totalorder %v435, 0
      %vm564 = vcmp.ne.s32.totalorder %v442, 0
      %vm565 = vcmp.ne.s32.totalorder %v449, 0
      %vm566 = vcmp.ne.s32.totalorder %v456, 0
      %vm567 = vcmp.ne.s32.totalorder %v463, 0
      %vm568 = vcmp.ne.s32.totalorder %v470, 0
      %vm569 = vcmp.ne.s32.totalorder %v477, 0
      %vm570 = vcmp.ne.s32.totalorder %v484, 0
      %vm571 = vcmp.ne.s32.totalorder %v491, 0
      %vm572 = vcmp.ne.s32.totalorder %v498, 0
      %vm573 = vcmp.ne.s32.totalorder %v505, 0
      %vm574 = vcmp.ne.s32.totalorder %v512, 0
      %vm575 = vcmp.ne.s32.totalorder %v519, 0
      %vm576 = vcmp.ne.s32.totalorder %v526, 0
      %vm577 = vcmp.ne.s32.totalorder %v533, 0
      %vm578 = vcmp.ne.s32.totalorder %v540, 0
      %vm579 = vcmp.ne.s32.totalorder %v547, 0
      %vm580 = vcmp.lt.s32.totalorder %v330, 0
      %vm581 = vcmp.lt.s32.totalorder %v337, 0
      %vm582 = vcmp.lt.s32.totalorder %v344, 0
      %vm583 = vcmp.lt.s32.totalorder %v351, 0
      %vm584 = vcmp.lt.s32.totalorder %v358, 0
      %vm585 = vcmp.lt.s32.totalorder %v365, 0
      %vm586 = vcmp.lt.s32.totalorder %v372, 0
      %vm587 = vcmp.lt.s32.totalorder %v379, 0
      %vm588 = vcmp.lt.s32.totalorder %v386, 0
      %vm589 = vcmp.lt.s32.totalorder %v393, 0
      %vm590 = vcmp.lt.s32.totalorder %v400, 0
      %vm591 = vcmp.lt.s32.totalorder %v407, 0
      %vm592 = vcmp.lt.s32.totalorder %v414, 0
      %vm593 = vcmp.lt.s32.totalorder %v421, 0
      %vm594 = vcmp.lt.s32.totalorder %v428, 0
      %vm595 = vcmp.lt.s32.totalorder %v435, 0
      %vm596 = vcmp.lt.s32.totalorder %v442, 0
      %vm597 = vcmp.lt.s32.totalorder %v449, 0
      %vm598 = vcmp.lt.s32.totalorder %v456, 0
      %vm599 = vcmp.lt.s32.totalorder %v463, 0
      %vm600 = vcmp.lt.s32.totalorder %v470, 0
      %vm601 = vcmp.lt.s32.totalorder %v477, 0
      %vm602 = vcmp.lt.s32.totalorder %v484, 0
      %vm603 = vcmp.lt.s32.totalorder %v491, 0
      %vm604 = vcmp.lt.s32.totalorder %v498, 0
      %vm605 = vcmp.lt.s32.totalorder %v505, 0
      %vm606 = vcmp.lt.s32.totalorder %v512, 0
      %vm607 = vcmp.lt.s32.totalorder %v519, 0
      %vm608 = vcmp.lt.s32.totalorder %v526, 0
      %vm609 = vcmp.lt.s32.totalorder %v533, 0
      %vm610 = vcmp.lt.s32.totalorder %v540, 0
      %vm611 = vcmp.lt.s32.totalorder %v547, 0
      %vm612 = vmand %vm580, %vm548
      %vm613 = vmand %vm581, %vm549
      %vm614 = vmand %vm582, %vm550
      %vm615 = vmand %vm583, %vm551
      %vm616 = vmand %vm584, %vm552
      %vm617 = vmand %vm585, %vm553
      %vm618 = vmand %vm586, %vm554
      %vm619 = vmand %vm587, %vm555
      %vm620 = vmand %vm588, %vm556
      %vm621 = vmand %vm589, %vm557
      %vm622 = vmand %vm590, %vm558
      %vm623 = vmand %vm591, %vm559
      %vm624 = vmand %vm592, %vm560
      %vm625 = vmand %vm593, %vm561
      %vm626 = vmand %vm594, %vm562
      %vm627 = vmand %vm595, %vm563
      %vm628 = vmand %vm596, %vm564
      %vm629 = vmand %vm597, %vm565
      %vm630 = vmand %vm598, %vm566
      %vm631 = vmand %vm599, %vm567
      %vm632 = vmand %vm600, %vm568
      %vm633 = vmand %vm601, %vm569
      %vm634 = vmand %vm602, %vm570
      %vm635 = vmand %vm603, %vm571
      %vm636 = vmand %vm604, %vm572
      %vm637 = vmand %vm605, %vm573
      %vm638 = vmand %vm606, %vm574
      %vm639 = vmand %vm607, %vm575
      %vm640 = vmand %vm608, %vm576
      %vm641 = vmand %vm609, %vm577
      %vm642 = vmand %vm610, %vm578
      %vm643 = vmand %vm611, %vm579
      %v644 = vadd.s32 %v330, 16
      %v645 = vadd.s32 %v337, 16
      %v646 = vadd.s32 %v344, 16
      %v647 = vadd.s32 %v351, 16
      %v648 = vadd.s32 %v358, 16
      %v649 = vadd.s32 %v365, 16
      %v650 = vadd.s32 %v372, 16
      %v651 = vadd.s32 %v379, 16
      %v652 = vadd.s32 %v386, 16
      %v653 = vadd.s32 %v393, 16
      %v654 = vadd.s32 %v400, 16
      %v655 = vadd.s32 %v407, 16
      %v656 = vadd.s32 %v414, 16
      %v657 = vadd.s32 %v421, 16
      %v658 = vadd.s32 %v428, 16
      %v659 = vadd.s32 %v435, 16
      %v660 = vadd.s32 %v442, 16
      %v661 = vadd.s32 %v449, 16
      %v662 = vadd.s32 %v456, 16
      %v663 = vadd.s32 %v463, 16
      %v664 = vadd.s32 %v470, 16
      %v665 = vadd.s32 %v477, 16
      %v666 = vadd.s32 %v484, 16
      %v667 = vadd.s32 %v491, 16
      %v668 = vadd.s32 %v498, 16
      %v669 = vadd.s32 %v505, 16
      %v670 = vadd.s32 %v512, 16
      %v671 = vadd.s32 %v519, 16
      %v672 = vadd.s32 %v526, 16
      %v673 = vadd.s32 %v533, 16
      %v674 = vadd.s32 %v540, 16
      %v675 = vadd.s32 %v547, 16
      %v676 = vsel %vm612, %v644, %v330
      %v677 = vsel %vm613, %v645, %v337
      %v678 = vsel %vm614, %v646, %v344
      %v679 = vsel %vm615, %v647, %v351
      %v680 = vsel %vm616, %v648, %v358
      %v681 = vsel %vm617, %v649, %v365
      %v682 = vsel %vm618, %v650, %v372
      %v683 = vsel %vm619, %v651, %v379
      %v684 = vsel %vm620, %v652, %v386
      %v685 = vsel %vm621, %v653, %v393
      %v686 = vsel %vm622, %v654, %v400
      %v687 = vsel %vm623, %v655, %v407
      %v688 = vsel %vm624, %v656, %v414
      %v689 = vsel %vm625, %v657, %v421
      %v690 = vsel %vm626, %v658, %v428
      %v691 = vsel %vm627, %v659, %v435
      %v692 = vsel %vm628, %v660, %v442
      %v693 = vsel %vm629, %v661, %v449
      %v694 = vsel %vm630, %v662, %v456
      %v695 = vsel %vm631, %v663, %v463
      %v696 = vsel %vm632, %v664, %v470
      %v697 = vsel %vm633, %v665, %v477
      %v698 = vsel %vm634, %v666, %v484
      %v699 = vsel %vm635, %v667, %v491
      %v700 = vsel %vm636, %v668, %v498
      %v701 = vsel %vm637, %v669, %v505
      %v702 = vsel %vm638, %v670, %v512
      %v703 = vsel %vm639, %v671, %v519
      %v704 = vsel %vm640, %v672, %v526
      %v705 = vsel %vm641, %v673, %v533
      %v706 = vsel %vm642, %v674, %v540
      %v707 = vsel %vm643, %v675, %v547
      %vm708 = vcmp.ne.s32.totalorder %v676, 0
      %vm709 = vcmp.ne.s32.totalorder %v677, 0
      %vm710 = vcmp.ne.s32.totalorder %v678, 0
      %vm711 = vcmp.ne.s32.totalorder %v679, 0
      %vm712 = vcmp.ne.s32.totalorder %v680, 0
      %vm713 = vcmp.ne.s32.totalorder %v681, 0
      %vm714 = vcmp.ne.s32.totalorder %v682, 0
      %vm715 = vcmp.ne.s32.totalorder %v683, 0
      %vm716 = vcmp.ne.s32.totalorder %v684, 0
      %vm717 = vcmp.ne.s32.totalorder %v685, 0
      %vm718 = vcmp.ne.s32.totalorder %v686, 0
      %vm719 = vcmp.ne.s32.totalorder %v687, 0
      %vm720 = vcmp.ne.s32.totalorder %v688, 0
      %vm721 = vcmp.ne.s32.totalorder %v689, 0
      %vm722 = vcmp.ne.s32.totalorder %v690, 0
      %vm723 = vcmp.ne.s32.totalorder %v691, 0
      %vm724 = vcmp.ne.s32.totalorder %v692, 0
      %vm725 = vcmp.ne.s32.totalorder %v693, 0
      %vm726 = vcmp.ne.s32.totalorder %v694, 0
      %vm727 = vcmp.ne.s32.totalorder %v695, 0
      %vm728 = vcmp.ne.s32.totalorder %v696, 0
      %vm729 = vcmp.ne.s32.totalorder %v697, 0
      %vm730 = vcmp.ne.s32.totalorder %v698, 0
      %vm731 = vcmp.ne.s32.totalorder %v699, 0
      %vm732 = vcmp.ne.s32.totalorder %v700, 0
      %vm733 = vcmp.ne.s32.totalorder %v701, 0
      %vm734 = vcmp.ne.s32.totalorder %v702, 0
      %vm735 = vcmp.ne.s32.totalorder %v703, 0
      %vm736 = vcmp.ne.s32.totalorder %v704, 0
      %vm737 = vcmp.ne.s32.totalorder %v705, 0
      %vm738 = vcmp.ne.s32.totalorder %v706, 0
      %vm739 = vcmp.ne.s32.totalorder %v707, 0
      %vm740 = vcmp.ne.s32.totalorder %v676, 15
      %vm741 = vcmp.ne.s32.totalorder %v677, 15
      %vm742 = vcmp.ne.s32.totalorder %v678, 15
      %vm743 = vcmp.ne.s32.totalorder %v679, 15
      %vm744 = vcmp.ne.s32.totalorder %v680, 15
      %vm745 = vcmp.ne.s32.totalorder %v681, 15
      %vm746 = vcmp.ne.s32.totalorder %v682, 15
      %vm747 = vcmp.ne.s32.totalorder %v683, 15
      %vm748 = vcmp.ne.s32.totalorder %v684, 15
      %vm749 = vcmp.ne.s32.totalorder %v685, 15
      %vm750 = vcmp.ne.s32.totalorder %v686, 15
      %vm751 = vcmp.ne.s32.totalorder %v687, 15
      %vm752 = vcmp.ne.s32.totalorder %v688, 15
      %vm753 = vcmp.ne.s32.totalorder %v689, 15
      %vm754 = vcmp.ne.s32.totalorder %v690, 15
      %vm755 = vcmp.ne.s32.totalorder %v691, 15
      %vm756 = vcmp.ne.s32.totalorder %v692, 15
      %vm757 = vcmp.ne.s32.totalorder %v693, 15
      %vm758 = vcmp.ne.s32.totalorder %v694, 15
      %vm759 = vcmp.ne.s32.totalorder %v695, 15
      %vm760 = vcmp.ne.s32.totalorder %v696, 15
      %vm761 = vcmp.ne.s32.totalorder %v697, 15
      %vm762 = vcmp.ne.s32.totalorder %v698, 15
      %vm763 = vcmp.ne.s32.totalorder %v699, 15
      %vm764 = vcmp.ne.s32.totalorder %v700, 15
      %vm765 = vcmp.ne.s32.totalorder %v701, 15
      %vm766 = vcmp.ne.s32.totalorder %v702, 15
      %vm767 = vcmp.ne.s32.totalorder %v703, 15
      %vm768 = vcmp.ne.s32.totalorder %v704, 15
      %vm769 = vcmp.ne.s32.totalorder %v705, 15
      %vm770 = vcmp.ne.s32.totalorder %v706, 15
      %vm771 = vcmp.ne.s32.totalorder %v707, 15
      %v772 = vld [vmem:[%s1] sm:$0xf]
      %v773 = vld [vmem:[%s1 + $0x4] sm:$0xf]
      %v774 = vld [vmem:[%s1 + $0x8] sm:$0xf]
      %v775 = vld [vmem:[%s1 + $0xc] sm:$0xf]
      %v776 = vld [vmem:[%s1 + $0x10] sm:$0xf]
      %v777 = vld [vmem:[%s1 + $0x14] sm:$0xf]
      %v778 = vld [vmem:[%s1 + $0x18] sm:$0xf]
      %v779 = vld [vmem:[%s1 + $0x1c] sm:$0xf]
      %v780 = vld [vmem:[%s3] sm:$0xf]
      %v781 = vld [vmem:[%s3 + $0x4] sm:$0xf]
      %v782 = vld [vmem:[%s3 + $0x8] sm:$0xf]
      %v783 = vld [vmem:[%s3 + $0xc] sm:$0xf]
      %v784 = vld [vmem:[%s3 + $0x10] sm:$0xf]
      %v785 = vld [vmem:[%s3 + $0x14] sm:$0xf]
      %v786 = vld [vmem:[%s3 + $0x18] sm:$0xf]
      %v787 = vld [vmem:[%s3 + $0x1c] sm:$0xf]
      %v788 = vld [vmem:[%s3 + $0x20] sm:$0xf]
      %v789 = vld [vmem:[%s3 + $0x24] sm:$0xf]
      %v790 = vld [vmem:[%s3 + $0x28] sm:$0xf]
      %v791 = vld [vmem:[%s3 + $0x2c] sm:$0xf]
      %v792 = vld [vmem:[%s3 + $0x30] sm:$0xf]
      %v793 = vld [vmem:[%s3 + $0x34] sm:$0xf]
      %v794 = vld [vmem:[%s3 + $0x38] sm:$0xf]
      %v795 = vld [vmem:[%s3 + $0x3c] sm:$0xf]
      %v796 = vld [vmem:[%s3 + $0x40] sm:$0xf]
      %v797 = vld [vmem:[%s3 + $0x44] sm:$0xf]
      %v798 = vld [vmem:[%s3 + $0x48] sm:$0xf]
      %v799 = vld [vmem:[%s3 + $0x4c] sm:$0xf]
      %v800 = vld [vmem:[%s3 + $0x50] sm:$0xf]
      %v801 = vld [vmem:[%s3 + $0x54] sm:$0xf]
      %v802 = vld [vmem:[%s3 + $0x58] sm:$0xf]
      %v803 = vld [vmem:[%s3 + $0x5c] sm:$0xf]
      %v804 = vld [vmem:[%s3 + $0x60] sm:$0xf]
      %v805 = vld [vmem:[%s3 + $0x64] sm:$0xf]
      %v806 = vld [vmem:[%s3 + $0x68] sm:$0xf]
      %v807 = vld [vmem:[%s3 + $0x6c] sm:$0xf]
      %v808 = vld [vmem:[%s3 + $0x70] sm:$0xf]
      %v809 = vld [vmem:[%s3 + $0x74] sm:$0xf]
      %v810 = vld [vmem:[%s3 + $0x78] sm:$0xf]
      %v811 = vld [vmem:[%s3 + $0x7c] sm:$0xf]
      %v812 = vld [vmem:[%s3 + $0x80] sm:$0xf]
      %v813 = vld [vmem:[%s3 + $0x84] sm:$0xf]
      %v814 = vld [vmem:[%s3 + $0x88] sm:$0xf]
      %v815 = vld [vmem:[%s3 + $0x8c] sm:$0xf]
      %v816 = vld [vmem:[%s5] sm:$0xf]
      %v817 = vld [vmem:[%s5 + $0x4] sm:$0xf]
      %v818 = vld [vmem:[%s5 + $0x8] sm:$0xf]
      %v819 = vld [vmem:[%s5 + $0xc] sm:$0xf]
      %v820 = vld [vmem:[%s5 + $0x10] sm:$0xf]
      %v821 = vld [vmem:[%s5 + $0x14] sm:$0xf]
      %v822 = vld [vmem:[%s5 + $0x18] sm:$0xf]
      %v823 = vld [vmem:[%s5 + $0x1c] sm:$0xf]
      %v824 = vld [vmem:[%s5 + $0x20] sm:$0xf]
      %v825 = vld [vmem:[%s5 + $0x24] sm:$0xf]
      %v826 = vld [vmem:[%s5 + $0x28] sm:$0xf]
      %v827 = vld [vmem:[%s5 + $0x2c] sm:$0xf]
      %v828 = vld [vmem:[%s2] sm:$0x1]
      %v829 = vld [vmem:[%s4] sm:$0x1]
      %v830 = vld [vmem:[%s6] sm:$0x1]
      %v831 = vld [vmem:[%s273] sm:$0xf]
      %v832 = vld [vmem:[%s273 + $0x4] sm:$0xf]
      %v833 = vld [vmem:[%s273 + $0x8] sm:$0xf]
      %v834 = vld [vmem:[%s273 + $0xc] sm:$0xf]
      %v835 = vld [vmem:[%s273 + $0x10] sm:$0xf]
      %v836 = vld [vmem:[%s273 + $0x14] sm:$0xf]
      %v837 = vld [vmem:[%s273 + $0x18] sm:$0xf]
      %v838 = vld [vmem:[%s273 + $0x1c] sm:$0xf]
      %v839 = vld [vmem:[%s273 + $0x20] sm:$0xf]
      %v840 = vld [vmem:[%s273 + $0x24] sm:$0xf]
      %v841 = vld [vmem:[%s273 + $0x28] sm:$0xf]
      %v842 = vld [vmem:[%s273 + $0x2c] sm:$0xf]
      %v843 = vld [vmem:[%s273 + $0x30] sm:$0xf]
      %v844 = vld [vmem:[%s273 + $0x34] sm:$0xf]
      %v845 = vld [vmem:[%s273 + $0x38] sm:$0xf]
      %v846 = vld [vmem:[%s273 + $0x3c] sm:$0xf]
      %v847 = vld [vmem:[%s273 + $0x40] sm:$0xf]
      %v848 = vld [vmem:[%s273 + $0x44] sm:$0xf]
      %v849 = vld [vmem:[%s273 + $0x48] sm:$0xf]
      %v850 = vld [vmem:[%s273 + $0x4c] sm:$0xf]
      %v851 = vld [vmem:[%s273 + $0x50] sm:$0xf]
      %v852 = vld [vmem:[%s273 + $0x54] sm:$0xf]
      %v853 = vld [vmem:[%s273 + $0x58] sm:$0xf]
      %v854 = vld [vmem:[%s273 + $0x5c] sm:$0xf]
      %v855 = vld [vmem:[%s273 + $0x60] sm:$0xf]
      %v856 = vld [vmem:[%s273 + $0x64] sm:$0xf]
      %v857 = vld [vmem:[%s273 + $0x68] sm:$0xf]
      %v858 = vld [vmem:[%s273 + $0x6c] sm:$0xf]
      %v859 = vld [vmem:[%s273 + $0x70] sm:$0xf]
      %v860 = vld [vmem:[%s273 + $0x74] sm:$0xf]
      %v861 = vld [vmem:[%s273 + $0x78] sm:$0xf]
      %v862 = vld [vmem:[%s273 + $0x7c] sm:$0xf]
      %v864 = vlaneseq
      %v865 = vshrl.u32 %v864, 7
      %v866 = vsub.s32 0, %v865
      %v867 = vrot.slane %v828, %v866
      %v901 = vunpack.c.l.b16 %v831
      %v902 = vunpack.c.l.b16 %v832
      %v903 = vunpack.c.l.b16 %v833
      %v904 = vunpack.c.l.b16 %v834
      %v905 = vunpack.c.l.b16 %v835
      %v906 = vunpack.c.l.b16 %v836
      %v907 = vunpack.c.l.b16 %v837
      %v908 = vunpack.c.l.b16 %v838
      %v909 = vunpack.c.l.b16 %v839
      %v910 = vunpack.c.l.b16 %v840
      %v911 = vunpack.c.l.b16 %v841
      %v912 = vunpack.c.l.b16 %v842
      %v913 = vunpack.c.l.b16 %v843
      %v914 = vunpack.c.l.b16 %v844
      %v915 = vunpack.c.l.b16 %v845
      %v916 = vunpack.c.l.b16 %v846
      %v917 = vunpack.c.l.b16 %v847
      %v918 = vunpack.c.l.b16 %v848
      %v919 = vunpack.c.l.b16 %v849
      %v920 = vunpack.c.l.b16 %v850
      %v921 = vunpack.c.l.b16 %v851
      %v922 = vunpack.c.l.b16 %v852
      %v923 = vunpack.c.l.b16 %v853
      %v924 = vunpack.c.l.b16 %v854
      %v925 = vunpack.c.l.b16 %v855
      %v926 = vunpack.c.l.b16 %v856
      %v927 = vunpack.c.l.b16 %v857
      %v928 = vunpack.c.l.b16 %v858
      %v929 = vunpack.c.l.b16 %v859
      %v930 = vunpack.c.l.b16 %v860
      %v931 = vunpack.c.l.b16 %v861
      %v932 = vunpack.c.l.b16 %v862
      %v933 = vpack.c.b16 %v902, %v901
      %v934 = vpack.c.b16 %v904, %v903
      %v935 = vpack.c.b16 %v906, %v905
      %v936 = vpack.c.b16 %v908, %v907
      %v937 = vpack.c.b16 %v910, %v909
      %v938 = vpack.c.b16 %v912, %v911
      %v939 = vpack.c.b16 %v914, %v913
      %v940 = vpack.c.b16 %v916, %v915
      %v941 = vpack.c.b16 %v918, %v917
      %v942 = vpack.c.b16 %v920, %v919
      %v943 = vpack.c.b16 %v922, %v921
      %v944 = vpack.c.b16 %v924, %v923
      %v945 = vpack.c.b16 %v926, %v925
      %v946 = vpack.c.b16 %v928, %v927
      %v947 = vpack.c.b16 %v930, %v929
      %v948 = vpack.c.b16 %v932, %v931
      %v957 = vunpack.c.l.b16 %v772
      %v958 = vunpack.c.l.b16 %v773
      %v959 = vunpack.c.l.b16 %v774
      %v960 = vunpack.c.l.b16 %v775
      %v961 = vunpack.c.l.b16 %v776
      %v962 = vunpack.c.l.b16 %v777
      %v963 = vunpack.c.l.b16 %v778
      %v964 = vunpack.c.l.b16 %v779
      %v965 = vpack.c.b16 %v958, %v957
      %v966 = vpack.c.b16 %v960, %v959
      %v967 = vpack.c.b16 %v962, %v961
      %v968 = vpack.c.b16 %v964, %v963
      %vm973 = vcmask 523264
      %v975 = vsel %vm973, %v933, 0
      %v978 = vsel %vm973, %v934, 0
      %v981 = vsel %vm973, %v935, 0
      %v984 = vsel %vm973, %v936, 0
      %v987 = vsel %vm973, %v937, 0
      %v990 = vsel %vm973, %v938, 0
      %v993 = vsel %vm973, %v939, 0
      %v996 = vsel %vm973, %v940, 0
      %v999 = vsel %vm973, %v941, 0
      %v1002 = vsel %vm973, %v942, 0
      %v1005 = vsel %vm973, %v943, 0
      %v1008 = vsel %vm973, %v944, 0
      %v1011 = vsel %vm973, %v945, 0
      %v1014 = vsel %vm973, %v946, 0
      %v1017 = vsel %vm973, %v947, 0
      %v1020 = vsel %vm973, %v948, 0
      %1022 = vmatprep.subr.bf16.mxu0 0
      %1023 = vmatpush1.bf16.msra.mxu0 0
      %1024 = vmatprep.subr.bf16.mxu0 0
      %1025 = vmatpush1.bf16.msra.mxu0 0
      %1026 = vmatprep.subr.bf16.mxu0 0
      %1027 = vmatpush1.bf16.msra.mxu0 0
      %1028 = vmatprep.subr.bf16.mxu0 0
      %1029 = vmatpush1.bf16.msra.mxu0 0
      %1030 = vmatprep.subr.bf16.mxu0 0
      %1031 = vmatpush1.bf16.msra.mxu0 %v968
      %1032 = vmatprep.subr.bf16.mxu0 0
      %1033 = vmatpush1.bf16.msra.mxu0 %v967
      %1034 = vmatprep.subr.bf16.mxu0 0
      %1035 = vmatpush1.bf16.msra.mxu0 %v966
      %1036 = vmatprep.subr.bf16.mxu0 0
      %1037 = vmatpush1.bf16.msra.mxu0 %v965
      %1038 = vmatprep.subr.bf16.mxu0 0
      %1039 = vmatpush2.bf16.msra.mxu0 0
      %1040 = vmatprep.subr.bf16.mxu0 0
      %1041 = vmatpush2.bf16.msra.mxu0 0
      %1042 = vmatprep.subr.bf16.mxu0 0
      %1043 = vmatpush2.bf16.msra.mxu0 0
      %1044 = vmatprep.subr.bf16.mxu0 0
      %1045 = vmatpush2.bf16.msra.mxu0 0
      %1046 = vmatprep.subr.bf16.mxu0 0
      %1047 = vmatpush2.bf16.msra.mxu0 0
      %1048 = vmatprep.subr.bf16.mxu0 0
      %1049 = vmatpush2.bf16.msra.mxu0 0
      %1050 = vmatprep.subr.bf16.mxu0 0
      %1051 = vmatpush2.bf16.msra.mxu0 0
      %1052 = vmatprep.subr.bf16.mxu0 0
      %1053 = vmatpush2.bf16.msra.mxu0 0
      %1054 = vmatprep.mubr.bf16.mxu0 0
      %1055 = vmatmul.mubr.bf16.gmra.mxu0 %v975
      %v1056 = vpop.f32.mrf.mxu0
      %v1057 = vadd.f32 %v867, %v1056
      %v1058 = vpop.f32.mrf.mxu0
      %v1059 = vpop.f32.mrf.mxu0
      %v1060 = vadd.f32 %v867, %v1059
      %v1061 = vpop.f32.mrf.mxu0
      %1062 = vmatprep.mubr.bf16.mxu0 0
      %1063 = vmatmul.mubr.bf16.gmra.mxu0 %v978
      %v1064 = vpop.f32.mrf.mxu0
      %v1065 = vadd.f32 %v867, %v1064
      %v1066 = vpop.f32.mrf.mxu0
      %v1067 = vpop.f32.mrf.mxu0
      %v1068 = vadd.f32 %v867, %v1067
      %v1069 = vpop.f32.mrf.mxu0
      %1070 = vmatprep.mubr.bf16.mxu0 0
      %1071 = vmatmul.mubr.bf16.gmra.mxu0 %v981
      %v1072 = vpop.f32.mrf.mxu0
      %v1073 = vadd.f32 %v867, %v1072
      %v1074 = vpop.f32.mrf.mxu0
      %v1075 = vpop.f32.mrf.mxu0
      %v1076 = vadd.f32 %v867, %v1075
      %v1077 = vpop.f32.mrf.mxu0
      %1078 = vmatprep.mubr.bf16.mxu0 0
      %1079 = vmatmul.mubr.bf16.gmra.mxu0 %v984
      %v1080 = vpop.f32.mrf.mxu0
      %v1081 = vadd.f32 %v867, %v1080
      %v1082 = vpop.f32.mrf.mxu0
      %v1083 = vpop.f32.mrf.mxu0
      %v1084 = vadd.f32 %v867, %v1083
      %v1085 = vpop.f32.mrf.mxu0
      %1086 = vmatprep.mubr.bf16.mxu0 0
      %1087 = vmatmul.mubr.bf16.gmra.mxu0 %v987
      %v1088 = vpop.f32.mrf.mxu0
      %v1089 = vadd.f32 %v867, %v1088
      %v1090 = vpop.f32.mrf.mxu0
      %v1091 = vpop.f32.mrf.mxu0
      %v1092 = vadd.f32 %v867, %v1091
      %v1093 = vpop.f32.mrf.mxu0
      %1094 = vmatprep.mubr.bf16.mxu0 0
      %1095 = vmatmul.mubr.bf16.gmra.mxu0 %v990
      %v1096 = vpop.f32.mrf.mxu0
      %v1097 = vadd.f32 %v867, %v1096
      %v1098 = vpop.f32.mrf.mxu0
      %v1099 = vpop.f32.mrf.mxu0
      %v1100 = vadd.f32 %v867, %v1099
      %v1101 = vpop.f32.mrf.mxu0
      %1102 = vmatprep.mubr.bf16.mxu0 0
      %1103 = vmatmul.mubr.bf16.gmra.mxu0 %v993
      %v1104 = vpop.f32.mrf.mxu0
      %v1105 = vadd.f32 %v867, %v1104
      %v1106 = vpop.f32.mrf.mxu0
      %v1107 = vpop.f32.mrf.mxu0
      %v1108 = vadd.f32 %v867, %v1107
      %v1109 = vpop.f32.mrf.mxu0
      %1110 = vmatprep.mubr.bf16.mxu0 0
      %1111 = vmatmul.mubr.bf16.gmra.mxu0 %v996
      %v1112 = vpop.f32.mrf.mxu0
      %v1113 = vadd.f32 %v867, %v1112
      %v1114 = vpop.f32.mrf.mxu0
      %v1115 = vpop.f32.mrf.mxu0
      %v1116 = vadd.f32 %v867, %v1115
      %v1117 = vpop.f32.mrf.mxu0
      %1118 = vmatprep.mubr.bf16.mxu0 0
      %1119 = vmatmul.mubr.bf16.gmra.mxu0 %v999
      %v1120 = vpop.f32.mrf.mxu0
      %v1121 = vadd.f32 %v867, %v1120
      %v1122 = vpop.f32.mrf.mxu0
      %v1123 = vpop.f32.mrf.mxu0
      %v1124 = vadd.f32 %v867, %v1123
      %v1125 = vpop.f32.mrf.mxu0
      %1126 = vmatprep.mubr.bf16.mxu0 0
      %1127 = vmatmul.mubr.bf16.gmra.mxu0 %v1002
      %v1128 = vpop.f32.mrf.mxu0
      %v1129 = vadd.f32 %v867, %v1128
      %v1130 = vpop.f32.mrf.mxu0
      %v1131 = vpop.f32.mrf.mxu0
      %v1132 = vadd.f32 %v867, %v1131
      %v1133 = vpop.f32.mrf.mxu0
      %1134 = vmatprep.mubr.bf16.mxu0 0
      %1135 = vmatmul.mubr.bf16.gmra.mxu0 %v1005
      %v1136 = vpop.f32.mrf.mxu0
      %v1137 = vadd.f32 %v867, %v1136
      %v1138 = vpop.f32.mrf.mxu0
      %v1139 = vpop.f32.mrf.mxu0
      %v1140 = vadd.f32 %v867, %v1139
      %v1141 = vpop.f32.mrf.mxu0
      %1142 = vmatprep.mubr.bf16.mxu0 0
      %1143 = vmatmul.mubr.bf16.gmra.mxu0 %v1008
      %v1144 = vpop.f32.mrf.mxu0
      %v1145 = vadd.f32 %v867, %v1144
      %v1146 = vpop.f32.mrf.mxu0
      %v1147 = vpop.f32.mrf.mxu0
      %v1148 = vadd.f32 %v867, %v1147
      %v1149 = vpop.f32.mrf.mxu0
      %1150 = vmatprep.mubr.bf16.mxu0 0
      %1151 = vmatmul.mubr.bf16.gmra.mxu0 %v1011
      %v1152 = vpop.f32.mrf.mxu0
      %v1153 = vadd.f32 %v867, %v1152
      %v1154 = vpop.f32.mrf.mxu0
      %v1155 = vpop.f32.mrf.mxu0
      %v1156 = vadd.f32 %v867, %v1155
      %v1157 = vpop.f32.mrf.mxu0
      %1158 = vmatprep.mubr.bf16.mxu0 0
      %1159 = vmatmul.mubr.bf16.gmra.mxu0 %v1014
      %v1160 = vpop.f32.mrf.mxu0
      %v1161 = vadd.f32 %v867, %v1160
      %v1162 = vpop.f32.mrf.mxu0
      %v1163 = vpop.f32.mrf.mxu0
      %v1164 = vadd.f32 %v867, %v1163
      %v1165 = vpop.f32.mrf.mxu0
      %1166 = vmatprep.mubr.bf16.mxu0 0
      %1167 = vmatmul.mubr.bf16.gmra.mxu0 %v1017
      %v1168 = vpop.f32.mrf.mxu0
      %v1169 = vadd.f32 %v867, %v1168
      %v1170 = vpop.f32.mrf.mxu0
      %v1171 = vpop.f32.mrf.mxu0
      %v1172 = vadd.f32 %v867, %v1171
      %v1173 = vpop.f32.mrf.mxu0
      %1174 = vmatprep.mubr.bf16.mxu0 0
      %1175 = vmatmul.mubr.bf16.gmra.mxu0 %v1020
      %v1176 = vpop.f32.mrf.mxu0
      %v1177 = vadd.f32 %v867, %v1176
      %v1178 = vpop.f32.mrf.mxu0
      %v1179 = vpop.f32.mrf.mxu0
      %v1180 = vadd.f32 %v867, %v1179
      %v1181 = vpop.f32.mrf.mxu0
      %1182 = vdwg.mxu0
      %v1183 = vmax.f32 %v1057, 0.0
      %v1184 = vmax.f32 %v1060, 0.0
      %v1185 = vmax.f32 %v1065, 0.0
      %v1186 = vmax.f32 %v1068, 0.0
      %v1187 = vmax.f32 %v1073, 0.0
      %v1188 = vmax.f32 %v1076, 0.0
      %v1189 = vmax.f32 %v1081, 0.0
      %v1190 = vmax.f32 %v1084, 0.0
      %v1191 = vmax.f32 %v1089, 0.0
      %v1192 = vmax.f32 %v1092, 0.0
      %v1193 = vmax.f32 %v1097, 0.0
      %v1194 = vmax.f32 %v1100, 0.0
      %v1195 = vmax.f32 %v1105, 0.0
      %v1196 = vmax.f32 %v1108, 0.0
      %v1197 = vmax.f32 %v1113, 0.0
      %v1198 = vmax.f32 %v1116, 0.0
      %v1199 = vmax.f32 %v1121, 0.0
      %v1200 = vmax.f32 %v1124, 0.0
      %v1201 = vmax.f32 %v1129, 0.0
      %v1202 = vmax.f32 %v1132, 0.0
      %v1203 = vmax.f32 %v1137, 0.0
      %v1204 = vmax.f32 %v1140, 0.0
      %v1205 = vmax.f32 %v1145, 0.0
      %v1206 = vmax.f32 %v1148, 0.0
      %v1207 = vmax.f32 %v1153, 0.0
      %v1208 = vmax.f32 %v1156, 0.0
      %v1209 = vmax.f32 %v1161, 0.0
      %v1210 = vmax.f32 %v1164, 0.0
      %v1211 = vmax.f32 %v1169, 0.0
      %v1212 = vmax.f32 %v1172, 0.0
      %v1213 = vmax.f32 %v1177, 0.0
      %v1214 = vmax.f32 %v1180, 0.0
      %v1215 = vpack.c.bf16 %v1184, %v1183
      %v1216 = vpack.c.bf16 %v1186, %v1185
      %v1217 = vpack.c.bf16 %v1188, %v1187
      %v1218 = vpack.c.bf16 %v1190, %v1189
      %v1219 = vpack.c.bf16 %v1192, %v1191
      %v1220 = vpack.c.bf16 %v1194, %v1193
      %v1221 = vpack.c.bf16 %v1196, %v1195
      %v1222 = vpack.c.bf16 %v1198, %v1197
      %v1223 = vpack.c.bf16 %v1200, %v1199
      %v1224 = vpack.c.bf16 %v1202, %v1201
      %v1225 = vpack.c.bf16 %v1204, %v1203
      %v1226 = vpack.c.bf16 %v1206, %v1205
      %v1227 = vpack.c.bf16 %v1208, %v1207
      %v1228 = vpack.c.bf16 %v1210, %v1209
      %v1229 = vpack.c.bf16 %v1212, %v1211
      %v1230 = vpack.c.bf16 %v1214, %v1213
      %v1247 = vunpack.c.l.b16 %v1215
      %v1248 = vunpack.c.h.b16 %v1215
      %v1249 = vunpack.c.l.b16 %v1216
      %v1250 = vunpack.c.h.b16 %v1216
      %v1251 = vunpack.c.l.b16 %v1217
      %v1252 = vunpack.c.h.b16 %v1217
      %v1253 = vunpack.c.l.b16 %v1218
      %v1254 = vunpack.c.h.b16 %v1218
      %v1255 = vunpack.c.l.b16 %v1219
      %v1256 = vunpack.c.h.b16 %v1219
      %v1257 = vunpack.c.l.b16 %v1220
      %v1258 = vunpack.c.h.b16 %v1220
      %v1259 = vunpack.c.l.b16 %v1221
      %v1260 = vunpack.c.h.b16 %v1221
      %v1261 = vunpack.c.l.b16 %v1222
      %v1262 = vunpack.c.h.b16 %v1222
      %v1263 = vunpack.c.l.b16 %v1223
      %v1264 = vunpack.c.h.b16 %v1223
      %v1265 = vunpack.c.l.b16 %v1224
      %v1266 = vunpack.c.h.b16 %v1224
      %v1267 = vunpack.c.l.b16 %v1225
      %v1268 = vunpack.c.h.b16 %v1225
      %v1269 = vunpack.c.l.b16 %v1226
      %v1270 = vunpack.c.h.b16 %v1226
      %v1271 = vunpack.c.l.b16 %v1227
      %v1272 = vunpack.c.h.b16 %v1227
      %v1273 = vunpack.c.l.b16 %v1228
      %v1274 = vunpack.c.h.b16 %v1228
      %v1275 = vunpack.c.l.b16 %v1229
      %v1276 = vunpack.c.h.b16 %v1229
      %v1277 = vunpack.c.l.b16 %v1230
      %v1278 = vunpack.c.h.b16 %v1230
      %v1279 = vpack.c.b16 %v1247, %v1247
      %v1280 = vpack.c.b16 %v1248, %v1248
      %v1281 = vpack.c.b16 %v1249, %v1249
      %v1282 = vpack.c.b16 %v1250, %v1250
      %v1283 = vpack.c.b16 %v1251, %v1251
      %v1284 = vpack.c.b16 %v1252, %v1252
      %v1285 = vpack.c.b16 %v1253, %v1253
      %v1286 = vpack.c.b16 %v1254, %v1254
      %v1287 = vpack.c.b16 %v1255, %v1255
      %v1288 = vpack.c.b16 %v1256, %v1256
      %v1289 = vpack.c.b16 %v1257, %v1257
      %v1290 = vpack.c.b16 %v1258, %v1258
      %v1291 = vpack.c.b16 %v1259, %v1259
      %v1292 = vpack.c.b16 %v1260, %v1260
      %v1293 = vpack.c.b16 %v1261, %v1261
      %v1294 = vpack.c.b16 %v1262, %v1262
      %v1295 = vpack.c.b16 %v1263, %v1263
      %v1296 = vpack.c.b16 %v1264, %v1264
      %v1297 = vpack.c.b16 %v1265, %v1265
      %v1298 = vpack.c.b16 %v1266, %v1266
      %v1299 = vpack.c.b16 %v1267, %v1267
      %v1300 = vpack.c.b16 %v1268, %v1268
      %v1301 = vpack.c.b16 %v1269, %v1269
      %v1302 = vpack.c.b16 %v1270, %v1270
      %v1303 = vpack.c.b16 %v1271, %v1271
      %v1304 = vpack.c.b16 %v1272, %v1272
      %v1305 = vpack.c.b16 %v1273, %v1273
      %v1306 = vpack.c.b16 %v1274, %v1274
      %v1307 = vpack.c.b16 %v1275, %v1275
      %v1308 = vpack.c.b16 %v1276, %v1276
      %v1309 = vpack.c.b16 %v1277, %v1277
      %v1310 = vpack.c.b16 %v1278, %v1278
      %1343 = vst.msk [vmem:[#allocation2 + $0x10] sm:$0xf] %vm282, %v1279
      %1344 = vst.msk [vmem:[#allocation2 + $0x14] sm:$0xf] %vm282, %v1280
      %1345 = vst.msk [vmem:[#allocation2 + $0x18] sm:$0xf] %vm282, %v1281
      %1346 = vst.msk [vmem:[#allocation2 + $0x1c] sm:$0xf] %vm282, %v1282
      %1347 = vst.msk [vmem:[#allocation2 + $0x20] sm:$0xf] %vm282, %v1283
      %1348 = vst.msk [vmem:[#allocation2 + $0x24] sm:$0xf] %vm282, %v1284
      %1349 = vst.msk [vmem:[#allocation2 + $0x28] sm:$0xf] %vm282, %v1285
      %1350 = vst.msk [vmem:[#allocation2 + $0x2c] sm:$0xf] %vm282, %v1286
      %1351 = vst.msk [vmem:[#allocation2 + $0x30] sm:$0xf] %vm282, %v1287
      %1352 = vst.msk [vmem:[#allocation2 + $0x34] sm:$0xf] %vm282, %v1288
      %1353 = vst.msk [vmem:[#allocation2 + $0x38] sm:$0xf] %vm282, %v1289
      %1354 = vst.msk [vmem:[#allocation2 + $0x3c] sm:$0xf] %vm282, %v1290
      %1355 = vst.msk [vmem:[#allocation2 + $0x40] sm:$0xf] %vm282, %v1291
      %1356 = vst.msk [vmem:[#allocation2 + $0x44] sm:$0xf] %vm282, %v1292
      %1357 = vst.msk [vmem:[#allocation2 + $0x48] sm:$0xf] %vm282, %v1293
      %1358 = vst.msk [vmem:[#allocation2 + $0x4c] sm:$0xf] %vm282, %v1294
      %1359 = vst.msk [vmem:[#allocation2 + $0x50] sm:$0xf] %vm282, %v1295
      %1360 = vst.msk [vmem:[#allocation2 + $0x54] sm:$0xf] %vm282, %v1296
      %1361 = vst.msk [vmem:[#allocation2 + $0x58] sm:$0xf] %vm282, %v1297
      %1362 = vst.msk [vmem:[#allocation2 + $0x5c] sm:$0xf] %vm282, %v1298
      %1363 = vst.msk [vmem:[#allocation2 + $0x60] sm:$0xf] %vm282, %v1299
      %1364 = vst.msk [vmem:[#allocation2 + $0x64] sm:$0xf] %vm282, %v1300
      %1365 = vst.msk [vmem:[#allocation2 + $0x68] sm:$0xf] %vm282, %v1301
      %1366 = vst.msk [vmem:[#allocation2 + $0x6c] sm:$0xf] %vm282, %v1302
      %1367 = vst.msk [vmem:[#allocation2 + $0x70] sm:$0xf] %vm282, %v1303
      %1368 = vst.msk [vmem:[#allocation2 + $0x74] sm:$0xf] %vm282, %v1304
      %1369 = vst.msk [vmem:[#allocation2 + $0x78] sm:$0xf] %vm282, %v1305
      %1370 = vst.msk [vmem:[#allocation2 + $0x7c] sm:$0xf] %vm282, %v1306
      %1371 = vst.msk [vmem:[#allocation2 + $0x80] sm:$0xf] %vm282, %v1307
      %1372 = vst.msk [vmem:[#allocation2 + $0x84] sm:$0xf] %vm282, %v1308
      %1373 = vst.msk [vmem:[#allocation2 + $0x88] sm:$0xf] %vm282, %v1309
      %1374 = vst.msk [vmem:[#allocation2 + $0x8c] sm:$0xf] %vm282, %v1310
      %v1375 = vld [vmem:[#allocation2 + $0x4] sm:$0x8]
      %v1376 = vld [vmem:[#allocation2 + $0x8] sm:$0xf]
      %v1377 = vld [vmem:[#allocation2 + $0xc] sm:$0xf]
      %v1378 = vld [vmem:[#allocation2 + $0x10] sm:$0xf]
      %v1379 = vld [vmem:[#allocation2 + $0x14] sm:$0xf]
      %v1380 = vld [vmem:[#allocation2 + $0x18] sm:$0xf]
      %v1381 = vld [vmem:[#allocation2 + $0x1c] sm:$0xf]
      %v1382 = vld [vmem:[#allocation2 + $0x20] sm:$0xf]
      %v1383 = vld [vmem:[#allocation2 + $0x24] sm:$0xf]
      %v1384 = vld [vmem:[#allocation2 + $0x28] sm:$0xf]
      %v1385 = vld [vmem:[#allocation2 + $0x2c] sm:$0xf]
      %v1386 = vld [vmem:[#allocation2 + $0x30] sm:$0xf]
      %v1387 = vld [vmem:[#allocation2 + $0x34] sm:$0xf]
      %v1388 = vld [vmem:[#allocation2 + $0x38] sm:$0xf]
      %v1389 = vld [vmem:[#allocation2 + $0x3c] sm:$0xf]
      %v1390 = vld [vmem:[#allocation2 + $0x40] sm:$0xf]
      %v1391 = vld [vmem:[#allocation2 + $0x44] sm:$0xf]
      %v1392 = vld [vmem:[#allocation2 + $0x48] sm:$0xf]
      %v1393 = vld [vmem:[#allocation2 + $0x4c] sm:$0xf]
      %v1394 = vld [vmem:[#allocation2 + $0x50] sm:$0xf]
      %v1395 = vld [vmem:[#allocation2 + $0x54] sm:$0xf]
      %v1396 = vld [vmem:[#allocation2 + $0x58] sm:$0xf]
      %v1397 = vld [vmem:[#allocation2 + $0x5c] sm:$0xf]
      %v1398 = vld [vmem:[#allocation2 + $0x60] sm:$0xf]
      %v1399 = vld [vmem:[#allocation2 + $0x64] sm:$0xf]
      %v1400 = vld [vmem:[#allocation2 + $0x68] sm:$0xf]
      %v1401 = vld [vmem:[#allocation2 + $0x6c] sm:$0xf]
      %v1402 = vld [vmem:[#allocation2 + $0x70] sm:$0xf]
      %v1403 = vld [vmem:[#allocation2 + $0x74] sm:$0xf]
      %v1404 = vld [vmem:[#allocation2 + $0x78] sm:$0xf]
      %v1405 = vld [vmem:[#allocation2 + $0x7c] sm:$0xf]
      %v1406 = vld [vmem:[#allocation2 + $0x80] sm:$0xf]
      %v1407 = vld [vmem:[#allocation2 + $0x84] sm:$0xf]
      %v1408 = vld [vmem:[#allocation2 + $0x88] sm:$0x1]
      %vm1409 = vmpackc.low %vm708, %vm708
      %vm1410 = vmpackc.low %vm709, %vm709
      %vm1411 = vmpackc.low %vm710, %vm710
      %vm1412 = vmpackc.low %vm711, %vm711
      %vm1413 = vmpackc.low %vm712, %vm712
      %vm1414 = vmpackc.low %vm713, %vm713
      %vm1415 = vmpackc.low %vm714, %vm714
      %vm1416 = vmpackc.low %vm715, %vm715
      %vm1417 = vmpackc.low %vm716, %vm716
      %vm1418 = vmpackc.low %vm717, %vm717
      %vm1419 = vmpackc.low %vm718, %vm718
      %vm1420 = vmpackc.low %vm719, %vm719
      %vm1421 = vmpackc.low %vm720, %vm720
      %vm1422 = vmpackc.low %vm721, %vm721
      %vm1423 = vmpackc.low %vm722, %vm722
      %vm1424 = vmpackc.low %vm723, %vm723
      %vm1425 = vmpackc.low %vm724, %vm724
      %vm1426 = vmpackc.low %vm725, %vm725
      %vm1427 = vmpackc.low %vm726, %vm726
      %vm1428 = vmpackc.low %vm727, %vm727
      %vm1429 = vmpackc.low %vm728, %vm728
      %vm1430 = vmpackc.low %vm729, %vm729
      %vm1431 = vmpackc.low %vm730, %vm730
      %vm1432 = vmpackc.low %vm731, %vm731
      %vm1433 = vmpackc.low %vm732, %vm732
      %vm1434 = vmpackc.low %vm733, %vm733
      %vm1435 = vmpackc.low %vm734, %vm734
      %vm1436 = vmpackc.low %vm735, %vm735
      %vm1437 = vmpackc.low %vm736, %vm736
      %vm1438 = vmpackc.low %vm737, %vm737
      %vm1439 = vmpackc.low %vm738, %vm738
      %vm1440 = vmpackc.low %vm739, %vm739
      %v1441 = vsel %vm1409, 65537, 0
      %v1442 = vsel %vm1410, 65537, 0
      %v1443 = vsel %vm1411, 65537, 0
      %v1444 = vsel %vm1412, 65537, 0
      %v1445 = vsel %vm1413, 65537, 0
      %v1446 = vsel %vm1414, 65537, 0
      %v1447 = vsel %vm1415, 65537, 0
      %v1448 = vsel %vm1416, 65537, 0
      %v1449 = vsel %vm1417, 65537, 0
      %v1450 = vsel %vm1418, 65537, 0
      %v1451 = vsel %vm1419, 65537, 0
      %v1452 = vsel %vm1420, 65537, 0
      %v1453 = vsel %vm1421, 65537, 0
      %v1454 = vsel %vm1422, 65537, 0
      %v1455 = vsel %vm1423, 65537, 0
      %v1456 = vsel %vm1424, 65537, 0
      %v1457 = vsel %vm1425, 65537, 0
      %v1458 = vsel %vm1426, 65537, 0
      %v1459 = vsel %vm1427, 65537, 0
      %v1460 = vsel %vm1428, 65537, 0
      %v1461 = vsel %vm1429, 65537, 0
      %v1462 = vsel %vm1430, 65537, 0
      %v1463 = vsel %vm1431, 65537, 0
      %v1464 = vsel %vm1432, 65537, 0
      %v1465 = vsel %vm1433, 65537, 0
      %v1466 = vsel %vm1434, 65537, 0
      %v1467 = vsel %vm1435, 65537, 0
      %v1468 = vsel %vm1436, 65537, 0
      %v1469 = vsel %vm1437, 65537, 0
      %v1470 = vsel %vm1438, 65537, 0
      %v1471 = vsel %vm1439, 65537, 0
      %v1472 = vsel %vm1440, 65537, 0
      %vm1473 = vsmask.f32 3328
      %vm1474 = vsmask.f32 7440
      %vm1475 = vmor %vm1473, %vm1474
      %v1477 = vshll.u32 %v1441, 16
      %v1479 = vrot.slane %v1477, 5
      %v1480 = vshrl.u32 %v1441, 16
      %v1482 = vrot.slane %v1480, 4
      %v1483 = vor.u32 %v1482, %v1479
      %v1484 = vrot.slane %v1483, 4
      %v1486 = vshll.u32 %v1442, 16
      %v1488 = vrot.slane %v1486, 5
      %v1489 = vsel %vm1475, %v1484, %v1488
      %v1490 = vshrl.u32 %v1442, 16
      %v1492 = vrot.slane %v1490, 4
      %v1493 = vor.u32 %v1492, %v1488
      %v1494 = vrot.slane %v1493, 4
      %v1496 = vshll.u32 %v1443, 16
      %v1498 = vrot.slane %v1496, 5
      %v1499 = vsel %vm1475, %v1494, %v1498
      %v1500 = vshrl.u32 %v1443, 16
      %v1502 = vrot.slane %v1500, 4
      %v1503 = vor.u32 %v1502, %v1498
      %v1504 = vrot.slane %v1503, 4
      %v1506 = vshll.u32 %v1444, 16
      %v1508 = vrot.slane %v1506, 5
      %v1509 = vsel %vm1475, %v1504, %v1508
      %v1510 = vshrl.u32 %v1444, 16
      %v1512 = vrot.slane %v1510, 4
      %v1513 = vor.u32 %v1512, %v1508
      %v1514 = vrot.slane %v1513, 4
      %v1516 = vshll.u32 %v1445, 16
      %v1518 = vrot.slane %v1516, 5
      %v1519 = vsel %vm1475, %v1514, %v1518
      %v1520 = vshrl.u32 %v1445, 16
      %v1522 = vrot.slane %v1520, 4
      %v1523 = vor.u32 %v1522, %v1518
      %v1524 = vrot.slane %v1523, 4
      %v1526 = vshll.u32 %v1446, 16
      %v1528 = vrot.slane %v1526, 5
      %v1529 = vsel %vm1475, %v1524, %v1528
      %v1530 = vshrl.u32 %v1446, 16
      %v1532 = vrot.slane %v1530, 4
      %v1533 = vor.u32 %v1532, %v1528
      %v1534 = vrot.slane %v1533, 4
      %v1536 = vshll.u32 %v1447, 16
      %v1538 = vrot.slane %v1536, 5
      %v1539 = vsel %vm1475, %v1534, %v1538
      %v1540 = vshrl.u32 %v1447, 16
      %v1542 = vrot.slane %v1540, 4
      %v1543 = vor.u32 %v1542, %v1538
      %v1544 = vrot.slane %v1543, 4
      %v1546 = vshll.u32 %v1448, 16
      %v1548 = vrot.slane %v1546, 5
      %v1549 = vsel %vm1475, %v1544, %v1548
      %v1550 = vshrl.u32 %v1448, 16
      %v1552 = vrot.slane %v1550, 4
      %v1553 = vor.u32 %v1552, %v1548
      %v1554 = vrot.slane %v1553, 4
      %v1556 = vshll.u32 %v1449, 16
      %v1558 = vrot.slane %v1556, 5
      %v1559 = vsel %vm1475, %v1554, %v1558
      %v1560 = vshrl.u32 %v1449, 16
      %v1562 = vrot.slane %v1560, 4
      %v1563 = vor.u32 %v1562, %v1558
      %v1564 = vrot.slane %v1563, 4
      %v1566 = vshll.u32 %v1450, 16
      %v1568 = vrot.slane %v1566, 5
      %v1569 = vsel %vm1475, %v1564, %v1568
      %v1570 = vshrl.u32 %v1450, 16
      %v1572 = vrot.slane %v1570, 4
      %v1573 = vor.u32 %v1572, %v1568
      %v1574 = vrot.slane %v1573, 4
      %v1576 = vshll.u32 %v1451, 16
      %v1578 = vrot.slane %v1576, 5
      %v1579 = vsel %vm1475, %v1574, %v1578
      %v1580 = vshrl.u32 %v1451, 16
      %v1582 = vrot.slane %v1580, 4
      %v1583 = vor.u32 %v1582, %v1578
      %v1584 = vrot.slane %v1583, 4
      %v1586 = vshll.u32 %v1452, 16
      %v1588 = vrot.slane %v1586, 5
      %v1589 = vsel %vm1475, %v1584, %v1588
      %v1590 = vshrl.u32 %v1452, 16
      %v1592 = vrot.slane %v1590, 4
      %v1593 = vor.u32 %v1592, %v1588
      %v1594 = vrot.slane %v1593, 4
      %v1596 = vshll.u32 %v1453, 16
      %v1598 = vrot.slane %v1596, 5
      %v1599 = vsel %vm1475, %v1594, %v1598
      %v1600 = vshrl.u32 %v1453, 16
      %v1602 = vrot.slane %v1600, 4
      %v1603 = vor.u32 %v1602, %v1598
      %v1604 = vrot.slane %v1603, 4
      %v1606 = vshll.u32 %v1454, 16
      %v1608 = vrot.slane %v1606, 5
      %v1609 = vsel %vm1475, %v1604, %v1608
      %v1610 = vshrl.u32 %v1454, 16
      %v1612 = vrot.slane %v1610, 4
      %v1613 = vor.u32 %v1612, %v1608
      %v1614 = vrot.slane %v1613, 4
      %v1616 = vshll.u32 %v1455, 16
      %v1618 = vrot.slane %v1616, 5
      %v1619 = vsel %vm1475, %v1614, %v1618
      %v1620 = vshrl.u32 %v1455, 16
      %v1622 = vrot.slane %v1620, 4
      %v1623 = vor.u32 %v1622, %v1618
      %v1624 = vrot.slane %v1623, 4
      %v1626 = vshll.u32 %v1456, 16
      %v1628 = vrot.slane %v1626, 5
      %v1629 = vsel %vm1475, %v1624, %v1628
      %v1630 = vshrl.u32 %v1456, 16
      %v1632 = vrot.slane %v1630, 4
      %v1633 = vor.u32 %v1632, %v1628
      %v1634 = vrot.slane %v1633, 4
      %v1636 = vshll.u32 %v1457, 16
      %v1638 = vrot.slane %v1636, 5
      %v1639 = vsel %vm1475, %v1634, %v1638
      %v1640 = vshrl.u32 %v1457, 16
      %v1642 = vrot.slane %v1640, 4
      %v1643 = vor.u32 %v1642, %v1638
      %v1644 = vrot.slane %v1643, 4
      %v1646 = vshll.u32 %v1458, 16
      %v1648 = vrot.slane %v1646, 5
      %v1649 = vsel %vm1475, %v1644, %v1648
      %v1650 = vshrl.u32 %v1458, 16
      %v1652 = vrot.slane %v1650, 4
      %v1653 = vor.u32 %v1652, %v1648
      %v1654 = vrot.slane %v1653, 4
      %v1656 = vshll.u32 %v1459, 16
      %v1658 = vrot.slane %v1656, 5
      %v1659 = vsel %vm1475, %v1654, %v1658
      %v1660 = vshrl.u32 %v1459, 16
      %v1662 = vrot.slane %v1660, 4
      %v1663 = vor.u32 %v1662, %v1658
      %v1664 = vrot.slane %v1663, 4
      %v1666 = vshll.u32 %v1460, 16
      %v1668 = vrot.slane %v1666, 5
      %v1669 = vsel %vm1475, %v1664, %v1668
      %v1670 = vshrl.u32 %v1460, 16
      %v1672 = vrot.slane %v1670, 4
      %v1673 = vor.u32 %v1672, %v1668
      %v1674 = vrot.slane %v1673, 4
      %v1676 = vshll.u32 %v1461, 16
      %v1678 = vrot.slane %v1676, 5
      %v1679 = vsel %vm1475, %v1674, %v1678
      %v1680 = vshrl.u32 %v1461, 16
      %v1682 = vrot.slane %v1680, 4
      %v1683 = vor.u32 %v1682, %v1678
      %v1684 = vrot.slane %v1683, 4
      %v1686 = vshll.u32 %v1462, 16
      %v1688 = vrot.slane %v1686, 5
      %v1689 = vsel %vm1475, %v1684, %v1688
      %v1690 = vshrl.u32 %v1462, 16
      %v1692 = vrot.slane %v1690, 4
      %v1693 = vor.u32 %v1692, %v1688
      %v1694 = vrot.slane %v1693, 4
      %v1696 = vshll.u32 %v1463, 16
      %v1698 = vrot.slane %v1696, 5
      %v1699 = vsel %vm1475, %v1694, %v1698
      %v1700 = vshrl.u32 %v1463, 16
      %v1702 = vrot.slane %v1700, 4
      %v1703 = vor.u32 %v1702, %v1698
      %v1704 = vrot.slane %v1703, 4
      %v1706 = vshll.u32 %v1464, 16
      %v1708 = vrot.slane %v1706, 5
      %v1709 = vsel %vm1475, %v1704, %v1708
      %v1710 = vshrl.u32 %v1464, 16
      %v1712 = vrot.slane %v1710, 4
      %v1713 = vor.u32 %v1712, %v1708
      %v1714 = vrot.slane %v1713, 4
      %v1716 = vshll.u32 %v1465, 16
      %v1718 = vrot.slane %v1716, 5
      %v1719 = vsel %vm1475, %v1714, %v1718
      %v1720 = vshrl.u32 %v1465, 16
      %v1722 = vrot.slane %v1720, 4
      %v1723 = vor.u32 %v1722, %v1718
      %v1724 = vrot.slane %v1723, 4
      %v1726 = vshll.u32 %v1466, 16
      %v1728 = vrot.slane %v1726, 5
      %v1729 = vsel %vm1475, %v1724, %v1728
      %v1730 = vshrl.u32 %v1466, 16
      %v1732 = vrot.slane %v1730, 4
      %v1733 = vor.u32 %v1732, %v1728
      %v1734 = vrot.slane %v1733, 4
      %v1736 = vshll.u32 %v1467, 16
      %v1738 = vrot.slane %v1736, 5
      %v1739 = vsel %vm1475, %v1734, %v1738
      %v1740 = vshrl.u32 %v1467, 16
      %v1742 = vrot.slane %v1740, 4
      %v1743 = vor.u32 %v1742, %v1738
      %v1744 = vrot.slane %v1743, 4
      %v1746 = vshll.u32 %v1468, 16
      %v1748 = vrot.slane %v1746, 5
      %v1749 = vsel %vm1475, %v1744, %v1748
      %v1750 = vshrl.u32 %v1468, 16
      %v1752 = vrot.slane %v1750, 4
      %v1753 = vor.u32 %v1752, %v1748
      %v1754 = vrot.slane %v1753, 4
      %v1756 = vshll.u32 %v1469, 16
      %v1758 = vrot.slane %v1756, 5
      %v1759 = vsel %vm1475, %v1754, %v1758
      %v1760 = vshrl.u32 %v1469, 16
      %v1762 = vrot.slane %v1760, 4
      %v1763 = vor.u32 %v1762, %v1758
      %v1764 = vrot.slane %v1763, 4
      %v1766 = vshll.u32 %v1470, 16
      %v1768 = vrot.slane %v1766, 5
      %v1769 = vsel %vm1475, %v1764, %v1768
      %v1770 = vshrl.u32 %v1470, 16
      %v1772 = vrot.slane %v1770, 4
      %v1773 = vor.u32 %v1772, %v1768
      %v1774 = vrot.slane %v1773, 4
      %v1776 = vshll.u32 %v1471, 16
      %v1778 = vrot.slane %v1776, 5
      %v1779 = vsel %vm1475, %v1774, %v1778
      %v1780 = vshrl.u32 %v1471, 16
      %v1782 = vrot.slane %v1780, 4
      %v1783 = vor.u32 %v1782, %v1778
      %v1784 = vrot.slane %v1783, 4
      %v1786 = vshll.u32 %v1472, 16
      %v1788 = vrot.slane %v1786, 5
      %v1789 = vsel %vm1475, %v1784, %v1788
      %v1790 = vshrl.u32 %v1472, 16
      %v1792 = vrot.slane %v1790, 4
      %v1793 = vor.u32 %v1792, %v1788
      %v1794 = vrot.slane %v1793, 4
      %vm1795 = vcmp.ne.s16.totalorder %v1479, 0
      %vm1796 = vcmp.ne.s16.totalorder %v1489, 0
      %vm1797 = vcmp.ne.s16.totalorder %v1499, 0
      %vm1798 = vcmp.ne.s16.totalorder %v1509, 0
      %vm1799 = vcmp.ne.s16.totalorder %v1519, 0
      %vm1800 = vcmp.ne.s16.totalorder %v1529, 0
      %vm1801 = vcmp.ne.s16.totalorder %v1539, 0
      %vm1802 = vcmp.ne.s16.totalorder %v1549, 0
      %vm1803 = vcmp.ne.s16.totalorder %v1559, 0
      %vm1804 = vcmp.ne.s16.totalorder %v1569, 0
      %vm1805 = vcmp.ne.s16.totalorder %v1579, 0
      %vm1806 = vcmp.ne.s16.totalorder %v1589, 0
      %vm1807 = vcmp.ne.s16.totalorder %v1599, 0
      %vm1808 = vcmp.ne.s16.totalorder %v1609, 0
      %vm1809 = vcmp.ne.s16.totalorder %v1619, 0
      %vm1810 = vcmp.ne.s16.totalorder %v1629, 0
      %vm1811 = vcmp.ne.s16.totalorder %v1639, 0
      %vm1812 = vcmp.ne.s16.totalorder %v1649, 0
      %vm1813 = vcmp.ne.s16.totalorder %v1659, 0
      %vm1814 = vcmp.ne.s16.totalorder %v1669, 0
      %vm1815 = vcmp.ne.s16.totalorder %v1679, 0
      %vm1816 = vcmp.ne.s16.totalorder %v1689, 0
      %vm1817 = vcmp.ne.s16.totalorder %v1699, 0
      %vm1818 = vcmp.ne.s16.totalorder %v1709, 0
      %vm1819 = vcmp.ne.s16.totalorder %v1719, 0
      %vm1820 = vcmp.ne.s16.totalorder %v1729, 0
      %vm1821 = vcmp.ne.s16.totalorder %v1739, 0
      %vm1822 = vcmp.ne.s16.totalorder %v1749, 0
      %vm1823 = vcmp.ne.s16.totalorder %v1759, 0
      %vm1824 = vcmp.ne.s16.totalorder %v1769, 0
      %vm1825 = vcmp.ne.s16.totalorder %v1779, 0
      %vm1826 = vcmp.ne.s16.totalorder %v1789, 0
      %vm1827 = vcmp.ne.s16.totalorder %v1794, 0
      %v1828 = vsel %vm1795, %v1375, 0
      %v1829 = vsel %vm1796, %v1376, 0
      %v1830 = vsel %vm1797, %v1377, 0
      %v1831 = vsel %vm1798, %v1378, 0
      %v1832 = vsel %vm1799, %v1379, 0
      %v1833 = vsel %vm1800, %v1380, 0
      %v1834 = vsel %vm1801, %v1381, 0
      %v1835 = vsel %vm1802, %v1382, 0
      %v1836 = vsel %vm1803, %v1383, 0
      %v1837 = vsel %vm1804, %v1384, 0
      %v1838 = vsel %vm1805, %v1385, 0
      %v1839 = vsel %vm1806, %v1386, 0
      %v1840 = vsel %vm1807, %v1387, 0
      %v1841 = vsel %vm1808, %v1388, 0
      %v1842 = vsel %vm1809, %v1389, 0
      %v1843 = vsel %vm1810, %v1390, 0
      %v1844 = vsel %vm1811, %v1391, 0
      %v1845 = vsel %vm1812, %v1392, 0
      %v1846 = vsel %vm1813, %v1393, 0
      %v1847 = vsel %vm1814, %v1394, 0
      %v1848 = vsel %vm1815, %v1395, 0
      %v1849 = vsel %vm1816, %v1396, 0
      %v1850 = vsel %vm1817, %v1397, 0
      %v1851 = vsel %vm1818, %v1398, 0
      %v1852 = vsel %vm1819, %v1399, 0
      %v1853 = vsel %vm1820, %v1400, 0
      %v1854 = vsel %vm1821, %v1401, 0
      %v1855 = vsel %vm1822, %v1402, 0
      %v1856 = vsel %vm1823, %v1403, 0
      %v1857 = vsel %vm1824, %v1404, 0
      %v1858 = vsel %vm1825, %v1405, 0
      %v1859 = vsel %vm1826, %v1406, 0
      %v1860 = vsel %vm1827, %v1407, 0
      %vm1861 = vmpackc.low %vm740, %vm740
      %vm1862 = vmpackc.low %vm741, %vm741
      %vm1863 = vmpackc.low %vm742, %vm742
      %vm1864 = vmpackc.low %vm743, %vm743
      %vm1865 = vmpackc.low %vm744, %vm744
      %vm1866 = vmpackc.low %vm745, %vm745
      %vm1867 = vmpackc.low %vm746, %vm746
      %vm1868 = vmpackc.low %vm747, %vm747
      %vm1869 = vmpackc.low %vm748, %vm748
      %vm1870 = vmpackc.low %vm749, %vm749
      %vm1871 = vmpackc.low %vm750, %vm750
      %vm1872 = vmpackc.low %vm751, %vm751
      %vm1873 = vmpackc.low %vm752, %vm752
      %vm1874 = vmpackc.low %vm753, %vm753
      %vm1875 = vmpackc.low %vm754, %vm754
      %vm1876 = vmpackc.low %vm755, %vm755
      %vm1877 = vmpackc.low %vm756, %vm756
      %vm1878 = vmpackc.low %vm757, %vm757
      %vm1879 = vmpackc.low %vm758, %vm758
      %vm1880 = vmpackc.low %vm759, %vm759
      %vm1881 = vmpackc.low %vm760, %vm760
      %vm1882 = vmpackc.low %vm761, %vm761
      %vm1883 = vmpackc.low %vm762, %vm762
      %vm1884 = vmpackc.low %vm763, %vm763
      %vm1885 = vmpackc.low %vm764, %vm764
      %vm1886 = vmpackc.low %vm765, %vm765
      %vm1887 = vmpackc.low %vm766, %vm766
      %vm1888 = vmpackc.low %vm767, %vm767
      %vm1889 = vmpackc.low %vm768, %vm768
      %vm1890 = vmpackc.low %vm769, %vm769
      %vm1891 = vmpackc.low %vm770, %vm770
      %vm1892 = vmpackc.low %vm771, %vm771
      %v1893 = vsel %vm1861, 65537, 0
      %v1894 = vsel %vm1862, 65537, 0
      %v1895 = vsel %vm1863, 65537, 0
      %v1896 = vsel %vm1864, 65537, 0
      %v1897 = vsel %vm1865, 65537, 0
      %v1898 = vsel %vm1866, 65537, 0
      %v1899 = vsel %vm1867, 65537, 0
      %v1900 = vsel %vm1868, 65537, 0
      %v1901 = vsel %vm1869, 65537, 0
      %v1902 = vsel %vm1870, 65537, 0
      %v1903 = vsel %vm1871, 65537, 0
      %v1904 = vsel %vm1872, 65537, 0
      %v1905 = vsel %vm1873, 65537, 0
      %v1906 = vsel %vm1874, 65537, 0
      %v1907 = vsel %vm1875, 65537, 0
      %v1908 = vsel %vm1876, 65537, 0
      %v1909 = vsel %vm1877, 65537, 0
      %v1910 = vsel %vm1878, 65537, 0
      %v1911 = vsel %vm1879, 65537, 0
      %v1912 = vsel %vm1880, 65537, 0
      %v1913 = vsel %vm1881, 65537, 0
      %v1914 = vsel %vm1882, 65537, 0
      %v1915 = vsel %vm1883, 65537, 0
      %v1916 = vsel %vm1884, 65537, 0
      %v1917 = vsel %vm1885, 65537, 0
      %v1918 = vsel %vm1886, 65537, 0
      %v1919 = vsel %vm1887, 65537, 0
      %v1920 = vsel %vm1888, 65537, 0
      %v1921 = vsel %vm1889, 65537, 0
      %v1922 = vsel %vm1890, 65537, 0
      %v1923 = vsel %vm1891, 65537, 0
      %v1924 = vsel %vm1892, 65537, 0
      %vm1925 = vsmask.f32 256
      %vm1926 = vsmask.f32 4368
      %vm1927 = vmor %vm1925, %vm1926
      %v1929 = vshrl.u32 %v1893, 16
      %v1931 = vrot.slane %v1929, 7
      %v1932 = vshll.u32 %v1893, 16
      %v1934 = vor.u32 %v1931, %v1932
      %v1935 = vrot.slane %v1931, 4
      %v1937 = vshrl.u32 %v1894, 16
      %v1939 = vrot.slane %v1937, 7
      %v1940 = vshll.u32 %v1894, 16
      %v1942 = vor.u32 %v1939, %v1940
      %v1943 = vsel %vm1927, %v1935, %v1942
      %v1944 = vrot.slane %v1939, 4
      %v1946 = vshrl.u32 %v1895, 16
      %v1948 = vrot.slane %v1946, 7
      %v1949 = vshll.u32 %v1895, 16
      %v1951 = vor.u32 %v1948, %v1949
      %v1952 = vsel %vm1927, %v1944, %v1951
      %v1953 = vrot.slane %v1948, 4
      %v1955 = vshrl.u32 %v1896, 16
      %v1957 = vrot.slane %v1955, 7
      %v1958 = vshll.u32 %v1896, 16
      %v1960 = vor.u32 %v1957, %v1958
      %v1961 = vsel %vm1927, %v1953, %v1960
      %v1962 = vrot.slane %v1957, 4
      %v1964 = vshrl.u32 %v1897, 16
      %v1966 = vrot.slane %v1964, 7
      %v1967 = vshll.u32 %v1897, 16
      %v1969 = vor.u32 %v1966, %v1967
      %v1970 = vsel %vm1927, %v1962, %v1969
      %v1971 = vrot.slane %v1966, 4
      %v1973 = vshrl.u32 %v1898, 16
      %v1975 = vrot.slane %v1973, 7
      %v1976 = vshll.u32 %v1898, 16
      %v1978 = vor.u32 %v1975, %v1976
      %v1979 = vsel %vm1927, %v1971, %v1978
      %v1980 = vrot.slane %v1975, 4
      %v1982 = vshrl.u32 %v1899, 16
      %v1984 = vrot.slane %v1982, 7
      %v1985 = vshll.u32 %v1899, 16
      %v1987 = vor.u32 %v1984, %v1985
      %v1988 = vsel %vm1927, %v1980, %v1987
      %v1989 = vrot.slane %v1984, 4
      %v1991 = vshrl.u32 %v1900, 16
      %v1993 = vrot.slane %v1991, 7
      %v1994 = vshll.u32 %v1900, 16
      %v1996 = vor.u32 %v1993, %v1994
      %v1997 = vsel %vm1927, %v1989, %v1996
      %v1998 = vrot.slane %v1993, 4
      %v2000 = vshrl.u32 %v1901, 16
      %v2002 = vrot.slane %v2000, 7
      %v2003 = vshll.u32 %v1901, 16
      %v2005 = vor.u32 %v2002, %v2003
      %v2006 = vsel %vm1927, %v1998, %v2005
      %v2007 = vrot.slane %v2002, 4
      %v2009 = vshrl.u32 %v1902, 16
      %v2011 = vrot.slane %v2009, 7
      %v2012 = vshll.u32 %v1902, 16
      %v2014 = vor.u32 %v2011, %v2012
      %v2015 = vsel %vm1927, %v2007, %v2014
      %v2016 = vrot.slane %v2011, 4
      %v2018 = vshrl.u32 %v1903, 16
      %v2020 = vrot.slane %v2018, 7
      %v2021 = vshll.u32 %v1903, 16
      %v2023 = vor.u32 %v2020, %v2021
      %v2024 = vsel %vm1927, %v2016, %v2023
      %v2025 = vrot.slane %v2020, 4
      %v2027 = vshrl.u32 %v1904, 16
      %v2029 = vrot.slane %v2027, 7
      %v2030 = vshll.u32 %v1904, 16
      %v2032 = vor.u32 %v2029, %v2030
      %v2033 = vsel %vm1927, %v2025, %v2032
      %v2034 = vrot.slane %v2029, 4
      %v2036 = vshrl.u32 %v1905, 16
      %v2038 = vrot.slane %v2036, 7
      %v2039 = vshll.u32 %v1905, 16
      %v2041 = vor.u32 %v2038, %v2039
      %v2042 = vsel %vm1927, %v2034, %v2041
      %v2043 = vrot.slane %v2038, 4
      %v2045 = vshrl.u32 %v1906, 16
      %v2047 = vrot.slane %v2045, 7
      %v2048 = vshll.u32 %v1906, 16
      %v2050 = vor.u32 %v2047, %v2048
      %v2051 = vsel %vm1927, %v2043, %v2050
      %v2052 = vrot.slane %v2047, 4
      %v2054 = vshrl.u32 %v1907, 16
      %v2056 = vrot.slane %v2054, 7
      %v2057 = vshll.u32 %v1907, 16
      %v2059 = vor.u32 %v2056, %v2057
      %v2060 = vsel %vm1927, %v2052, %v2059
      %v2061 = vrot.slane %v2056, 4
      %v2063 = vshrl.u32 %v1908, 16
      %v2065 = vrot.slane %v2063, 7
      %v2066 = vshll.u32 %v1908, 16
      %v2068 = vor.u32 %v2065, %v2066
      %v2069 = vsel %vm1927, %v2061, %v2068
      %v2070 = vrot.slane %v2065, 4
      %v2072 = vshrl.u32 %v1909, 16
      %v2074 = vrot.slane %v2072, 7
      %v2075 = vshll.u32 %v1909, 16
      %v2077 = vor.u32 %v2074, %v2075
      %v2078 = vsel %vm1927, %v2070, %v2077
      %v2079 = vrot.slane %v2074, 4
      %v2081 = vshrl.u32 %v1910, 16
      %v2083 = vrot.slane %v2081, 7
      %v2084 = vshll.u32 %v1910, 16
      %v2086 = vor.u32 %v2083, %v2084
      %v2087 = vsel %vm1927, %v2079, %v2086
      %v2088 = vrot.slane %v2083, 4
      %v2090 = vshrl.u32 %v1911, 16
      %v2092 = vrot.slane %v2090, 7
      %v2093 = vshll.u32 %v1911, 16
      %v2095 = vor.u32 %v2092, %v2093
      %v2096 = vsel %vm1927, %v2088, %v2095
      %v2097 = vrot.slane %v2092, 4
      %v2099 = vshrl.u32 %v1912, 16
      %v2101 = vrot.slane %v2099, 7
      %v2102 = vshll.u32 %v1912, 16
      %v2104 = vor.u32 %v2101, %v2102
      %v2105 = vsel %vm1927, %v2097, %v2104
      %v2106 = vrot.slane %v2101, 4
      %v2108 = vshrl.u32 %v1913, 16
      %v2110 = vrot.slane %v2108, 7
      %v2111 = vshll.u32 %v1913, 16
      %v2113 = vor.u32 %v2110, %v2111
      %v2114 = vsel %vm1927, %v2106, %v2113
      %v2115 = vrot.slane %v2110, 4
      %v2117 = vshrl.u32 %v1914, 16
      %v2119 = vrot.slane %v2117, 7
      %v2120 = vshll.u32 %v1914, 16
      %v2122 = vor.u32 %v2119, %v2120
      %v2123 = vsel %vm1927, %v2115, %v2122
      %v2124 = vrot.slane %v2119, 4
      %v2126 = vshrl.u32 %v1915, 16
      %v2128 = vrot.slane %v2126, 7
      %v2129 = vshll.u32 %v1915, 16
      %v2131 = vor.u32 %v2128, %v2129
      %v2132 = vsel %vm1927, %v2124, %v2131
      %v2133 = vrot.slane %v2128, 4
      %v2135 = vshrl.u32 %v1916, 16
      %v2137 = vrot.slane %v2135, 7
      %v2138 = vshll.u32 %v1916, 16
      %v2140 = vor.u32 %v2137, %v2138
      %v2141 = vsel %vm1927, %v2133, %v2140
      %v2142 = vrot.slane %v2137, 4
      %v2144 = vshrl.u32 %v1917, 16
      %v2146 = vrot.slane %v2144, 7
      %v2147 = vshll.u32 %v1917, 16
      %v2149 = vor.u32 %v2146, %v2147
      %v2150 = vsel %vm1927, %v2142, %v2149
      %v2151 = vrot.slane %v2146, 4
      %v2153 = vshrl.u32 %v1918, 16
      %v2155 = vrot.slane %v2153, 7
      %v2156 = vshll.u32 %v1918, 16
      %v2158 = vor.u32 %v2155, %v2156
      %v2159 = vsel %vm1927, %v2151, %v2158
      %v2160 = vrot.slane %v2155, 4
      %v2162 = vshrl.u32 %v1919, 16
      %v2164 = vrot.slane %v2162, 7
      %v2165 = vshll.u32 %v1919, 16
      %v2167 = vor.u32 %v2164, %v2165
      %v2168 = vsel %vm1927, %v2160, %v2167
      %v2169 = vrot.slane %v2164, 4
      %v2171 = vshrl.u32 %v1920, 16
      %v2173 = vrot.slane %v2171, 7
      %v2174 = vshll.u32 %v1920, 16
      %v2176 = vor.u32 %v2173, %v2174
      %v2177 = vsel %vm1927, %v2169, %v2176
      %v2178 = vrot.slane %v2173, 4
      %v2180 = vshrl.u32 %v1921, 16
      %v2182 = vrot.slane %v2180, 7
      %v2183 = vshll.u32 %v1921, 16
      %v2185 = vor.u32 %v2182, %v2183
      %v2186 = vsel %vm1927, %v2178, %v2185
      %v2187 = vrot.slane %v2182, 4
      %v2189 = vshrl.u32 %v1922, 16
      %v2191 = vrot.slane %v2189, 7
      %v2192 = vshll.u32 %v1922, 16
      %v2194 = vor.u32 %v2191, %v2192
      %v2195 = vsel %vm1927, %v2187, %v2194
      %v2196 = vrot.slane %v2191, 4
      %v2198 = vshrl.u32 %v1923, 16
      %v2200 = vrot.slane %v2198, 7
      %v2201 = vshll.u32 %v1923, 16
      %v2203 = vor.u32 %v2200, %v2201
      %v2204 = vsel %vm1927, %v2196, %v2203
      %v2205 = vrot.slane %v2200, 4
      %v2207 = vshrl.u32 %v1924, 16
      %v2209 = vrot.slane %v2207, 7
      %v2210 = vshll.u32 %v1924, 16
      %v2212 = vor.u32 %v2209, %v2210
      %v2213 = vsel %vm1927, %v2205, %v2212
      %v2214 = vrot.slane %v2209, 4
      %vm2215 = vcmp.ne.s16.totalorder %v1934, 0
      %vm2216 = vcmp.ne.s16.totalorder %v1943, 0
      %vm2217 = vcmp.ne.s16.totalorder %v1952, 0
      %vm2218 = vcmp.ne.s16.totalorder %v1961, 0
      %vm2219 = vcmp.ne.s16.totalorder %v1970, 0
      %vm2220 = vcmp.ne.s16.totalorder %v1979, 0
      %vm2221 = vcmp.ne.s16.totalorder %v1988, 0
      %vm2222 = vcmp.ne.s16.totalorder %v1997, 0
      %vm2223 = vcmp.ne.s16.totalorder %v2006, 0
      %vm2224 = vcmp.ne.s16.totalorder %v2015, 0
      %vm2225 = vcmp.ne.s16.totalorder %v2024, 0
      %vm2226 = vcmp.ne.s16.totalorder %v2033, 0
      %vm2227 = vcmp.ne.s16.totalorder %v2042, 0
      %vm2228 = vcmp.ne.s16.totalorder %v2051, 0
      %vm2229 = vcmp.ne.s16.totalorder %v2060, 0
      %vm2230 = vcmp.ne.s16.totalorder %v2069, 0
      %vm2231 = vcmp.ne.s16.totalorder %v2078, 0
      %vm2232 = vcmp.ne.s16.totalorder %v2087, 0
      %vm2233 = vcmp.ne.s16.totalorder %v2096, 0
      %vm2234 = vcmp.ne.s16.totalorder %v2105, 0
      %vm2235 = vcmp.ne.s16.totalorder %v2114, 0
      %vm2236 = vcmp.ne.s16.totalorder %v2123, 0
      %vm2237 = vcmp.ne.s16.totalorder %v2132, 0
      %vm2238 = vcmp.ne.s16.totalorder %v2141, 0
      %vm2239 = vcmp.ne.s16.totalorder %v2150, 0
      %vm2240 = vcmp.ne.s16.totalorder %v2159, 0
      %vm2241 = vcmp.ne.s16.totalorder %v2168, 0
      %vm2242 = vcmp.ne.s16.totalorder %v2177, 0
      %vm2243 = vcmp.ne.s16.totalorder %v2186, 0
      %vm2244 = vcmp.ne.s16.totalorder %v2195, 0
      %vm2245 = vcmp.ne.s16.totalorder %v2204, 0
      %vm2246 = vcmp.ne.s16.totalorder %v2213, 0
      %vm2247 = vcmp.ne.s16.totalorder %v2214, 0
      %v2248 = vsel %vm2215, %v1376, 0
      %v2249 = vsel %vm2216, %v1377, 0
      %v2250 = vsel %vm2217, %v1378, 0
      %v2251 = vsel %vm2218, %v1379, 0
      %v2252 = vsel %vm2219, %v1380, 0
      %v2253 = vsel %vm2220, %v1381, 0
      %v2254 = vsel %vm2221, %v1382, 0
      %v2255 = vsel %vm2222, %v1383, 0
      %v2256 = vsel %vm2223, %v1384, 0
      %v2257 = vsel %vm2224, %v1385, 0
      %v2258 = vsel %vm2225, %v1386, 0
      %v2259 = vsel %vm2226, %v1387, 0
      %v2260 = vsel %vm2227, %v1388, 0
      %v2261 = vsel %vm2228, %v1389, 0
      %v2262 = vsel %vm2229, %v1390, 0
      %v2263 = vsel %vm2230, %v1391, 0
      %v2264 = vsel %vm2231, %v1392, 0
      %v2265 = vsel %vm2232, %v1393, 0
      %v2266 = vsel %vm2233, %v1394, 0
      %v2267 = vsel %vm2234, %v1395, 0
      %v2268 = vsel %vm2235, %v1396, 0
      %v2269 = vsel %vm2236, %v1397, 0
      %v2270 = vsel %vm2237, %v1398, 0
      %v2271 = vsel %vm2238, %v1399, 0
      %v2272 = vsel %vm2239, %v1400, 0
      %v2273 = vsel %vm2240, %v1401, 0
      %v2274 = vsel %vm2241, %v1402, 0
      %v2275 = vsel %vm2242, %v1403, 0
      %v2276 = vsel %vm2243, %v1404, 0
      %v2277 = vsel %vm2244, %v1405, 0
      %v2278 = vsel %vm2245, %v1406, 0
      %v2279 = vsel %vm2246, %v1407, 0
      %v2280 = vsel %vm2247, %v1408, 0
      %v2314 = vunpack.c.l.b16 %v1828
      %v2315 = vunpack.c.l.b16 %v1829
      %v2316 = vunpack.c.l.b16 %v1830
      %v2317 = vunpack.c.l.b16 %v1831
      %v2318 = vunpack.c.l.b16 %v1832
      %v2319 = vunpack.c.l.b16 %v1833
      %v2320 = vunpack.c.l.b16 %v1834
      %v2321 = vunpack.c.l.b16 %v1835
      %v2322 = vunpack.c.l.b16 %v1836
      %v2323 = vunpack.c.l.b16 %v1837
      %v2324 = vunpack.c.l.b16 %v1838
      %v2325 = vunpack.c.l.b16 %v1839
      %v2326 = vunpack.c.l.b16 %v1840
      %v2327 = vunpack.c.l.b16 %v1841
      %v2328 = vunpack.c.l.b16 %v1842
      %v2329 = vunpack.c.l.b16 %v1843
      %v2330 = vunpack.c.l.b16 %v1844
      %v2331 = vunpack.c.l.b16 %v1845
      %v2332 = vunpack.c.l.b16 %v1846
      %v2333 = vunpack.c.l.b16 %v1847
      %v2334 = vunpack.c.l.b16 %v1848
      %v2335 = vunpack.c.l.b16 %v1849
      %v2336 = vunpack.c.l.b16 %v1850
      %v2337 = vunpack.c.l.b16 %v1851
      %v2338 = vunpack.c.l.b16 %v1852
      %v2339 = vunpack.c.l.b16 %v1853
      %v2340 = vunpack.c.l.b16 %v1854
      %v2341 = vunpack.c.l.b16 %v1855
      %v2342 = vunpack.c.l.b16 %v1856
      %v2343 = vunpack.c.l.b16 %v1857
      %v2344 = vunpack.c.l.b16 %v1858
      %v2345 = vunpack.c.l.b16 %v1859
      %v2346 = vunpack.c.l.b16 %v1860
      %v2347 = vpack.c.b16 %v2315, %v2314
      %v2348 = vpack.c.b16 %v2317, %v2316
      %v2349 = vpack.c.b16 %v2319, %v2318
      %v2350 = vpack.c.b16 %v2321, %v2320
      %v2351 = vpack.c.b16 %v2323, %v2322
      %v2352 = vpack.c.b16 %v2325, %v2324
      %v2353 = vpack.c.b16 %v2327, %v2326
      %v2354 = vpack.c.b16 %v2329, %v2328
      %v2355 = vpack.c.b16 %v2331, %v2330
      %v2356 = vpack.c.b16 %v2333, %v2332
      %v2357 = vpack.c.b16 %v2335, %v2334
      %v2358 = vpack.c.b16 %v2337, %v2336
      %v2359 = vpack.c.b16 %v2339, %v2338
      %v2360 = vpack.c.b16 %v2341, %v2340
      %v2361 = vpack.c.b16 %v2343, %v2342
      %v2362 = vpack.c.b16 %v2345, %v2344
      %v2363 = vpack.c.b16 %v2346, %v2346
      %v2396 = vunpack.c.l.b16 %v1376
      %v2397 = vunpack.c.l.b16 %v1377
      %v2398 = vunpack.c.l.b16 %v1378
      %v2399 = vunpack.c.l.b16 %v1379
      %v2400 = vunpack.c.l.b16 %v1380
      %v2401 = vunpack.c.l.b16 %v1381
      %v2402 = vunpack.c.l.b16 %v1382
      %v2403 = vunpack.c.l.b16 %v1383
      %v2404 = vunpack.c.l.b16 %v1384
      %v2405 = vunpack.c.l.b16 %v1385
      %v2406 = vunpack.c.l.b16 %v1386
      %v2407 = vunpack.c.l.b16 %v1387
      %v2408 = vunpack.c.l.b16 %v1388
      %v2409 = vunpack.c.l.b16 %v1389
      %v2410 = vunpack.c.l.b16 %v1390
      %v2411 = vunpack.c.l.b16 %v1391
      %v2412 = vunpack.c.l.b16 %v1392
      %v2413 = vunpack.c.l.b16 %v1393
      %v2414 = vunpack.c.l.b16 %v1394
      %v2415 = vunpack.c.l.b16 %v1395
      %v2416 = vunpack.c.l.b16 %v1396
      %v2417 = vunpack.c.l.b16 %v1397
      %v2418 = vunpack.c.l.b16 %v1398
      %v2419 = vunpack.c.l.b16 %v1399
      %v2420 = vunpack.c.l.b16 %v1400
      %v2421 = vunpack.c.l.b16 %v1401
      %v2422 = vunpack.c.l.b16 %v1402
      %v2423 = vunpack.c.l.b16 %v1403
      %v2424 = vunpack.c.l.b16 %v1404
      %v2425 = vunpack.c.l.b16 %v1405
      %v2426 = vunpack.c.l.b16 %v1406
      %v2427 = vunpack.c.l.b16 %v1407
      %v2428 = vpack.c.b16 %v2397, %v2396
      %v2429 = vpack.c.b16 %v2399, %v2398
      %v2430 = vpack.c.b16 %v2401, %v2400
      %v2431 = vpack.c.b16 %v2403, %v2402
      %v2432 = vpack.c.b16 %v2405, %v2404
      %v2433 = vpack.c.b16 %v2407, %v2406
      %v2434 = vpack.c.b16 %v2409, %v2408
      %v2435 = vpack.c.b16 %v2411, %v2410
      %v2436 = vpack.c.b16 %v2413, %v2412
      %v2437 = vpack.c.b16 %v2415, %v2414
      %v2438 = vpack.c.b16 %v2417, %v2416
      %v2439 = vpack.c.b16 %v2419, %v2418
      %v2440 = vpack.c.b16 %v2421, %v2420
      %v2441 = vpack.c.b16 %v2423, %v2422
      %v2442 = vpack.c.b16 %v2425, %v2424
      %v2443 = vpack.c.b16 %v2427, %v2426
      %v2445 = vshrl.u32 %v2428, 16
      %v2447 = vrot.slane %v2445, 4
      %v2448 = vshll.u32 %v2428, 16
      %v2450 = vrot.slane %v2448, 5
      %v2451 = vor.u32 %v2447, %v2450
      %v2453 = vshrl.u32 %v2429, 16
      %v2455 = vrot.slane %v2453, 4
      %v2456 = vshll.u32 %v2429, 16
      %v2458 = vrot.slane %v2456, 5
      %v2459 = vor.u32 %v2455, %v2458
      %v2460 = vsel %vm1473, %v2451, %v2459
      %v2462 = vshrl.u32 %v2430, 16
      %v2464 = vrot.slane %v2462, 4
      %v2465 = vshll.u32 %v2430, 16
      %v2467 = vrot.slane %v2465, 5
      %v2468 = vor.u32 %v2464, %v2467
      %v2469 = vsel %vm1473, %v2459, %v2468
      %v2471 = vshrl.u32 %v2431, 16
      %v2473 = vrot.slane %v2471, 4
      %v2474 = vshll.u32 %v2431, 16
      %v2476 = vrot.slane %v2474, 5
      %v2477 = vor.u32 %v2473, %v2476
      %v2478 = vsel %vm1473, %v2468, %v2477
      %v2480 = vshrl.u32 %v2432, 16
      %v2482 = vrot.slane %v2480, 4
      %v2483 = vshll.u32 %v2432, 16
      %v2485 = vrot.slane %v2483, 5
      %v2486 = vor.u32 %v2482, %v2485
      %v2487 = vsel %vm1473, %v2477, %v2486
      %v2489 = vshrl.u32 %v2433, 16
      %v2491 = vrot.slane %v2489, 4
      %v2492 = vshll.u32 %v2433, 16
      %v2494 = vrot.slane %v2492, 5
      %v2495 = vor.u32 %v2491, %v2494
      %v2496 = vsel %vm1473, %v2486, %v2495
      %v2498 = vshrl.u32 %v2434, 16
      %v2500 = vrot.slane %v2498, 4
      %v2501 = vshll.u32 %v2434, 16
      %v2503 = vrot.slane %v2501, 5
      %v2504 = vor.u32 %v2500, %v2503
      %v2505 = vsel %vm1473, %v2495, %v2504
      %v2507 = vshrl.u32 %v2435, 16
      %v2509 = vrot.slane %v2507, 4
      %v2510 = vshll.u32 %v2435, 16
      %v2512 = vrot.slane %v2510, 5
      %v2513 = vor.u32 %v2509, %v2512
      %v2514 = vsel %vm1473, %v2504, %v2513
      %v2516 = vshrl.u32 %v2436, 16
      %v2518 = vrot.slane %v2516, 4
      %v2519 = vshll.u32 %v2436, 16
      %v2521 = vrot.slane %v2519, 5
      %v2522 = vor.u32 %v2518, %v2521
      %v2523 = vsel %vm1473, %v2513, %v2522
      %v2525 = vshrl.u32 %v2437, 16
      %v2527 = vrot.slane %v2525, 4
      %v2528 = vshll.u32 %v2437, 16
      %v2530 = vrot.slane %v2528, 5
      %v2531 = vor.u32 %v2527, %v2530
      %v2532 = vsel %vm1473, %v2522, %v2531
      %v2534 = vshrl.u32 %v2438, 16
      %v2536 = vrot.slane %v2534, 4
      %v2537 = vshll.u32 %v2438, 16
      %v2539 = vrot.slane %v2537, 5
      %v2540 = vor.u32 %v2536, %v2539
      %v2541 = vsel %vm1473, %v2531, %v2540
      %v2543 = vshrl.u32 %v2439, 16
      %v2545 = vrot.slane %v2543, 4
      %v2546 = vshll.u32 %v2439, 16
      %v2548 = vrot.slane %v2546, 5
      %v2549 = vor.u32 %v2545, %v2548
      %v2550 = vsel %vm1473, %v2540, %v2549
      %v2552 = vshrl.u32 %v2440, 16
      %v2554 = vrot.slane %v2552, 4
      %v2555 = vshll.u32 %v2440, 16
      %v2557 = vrot.slane %v2555, 5
      %v2558 = vor.u32 %v2554, %v2557
      %v2559 = vsel %vm1473, %v2549, %v2558
      %v2561 = vshrl.u32 %v2441, 16
      %v2563 = vrot.slane %v2561, 4
      %v2564 = vshll.u32 %v2441, 16
      %v2566 = vrot.slane %v2564, 5
      %v2567 = vor.u32 %v2563, %v2566
      %v2568 = vsel %vm1473, %v2558, %v2567
      %v2570 = vshrl.u32 %v2442, 16
      %v2572 = vrot.slane %v2570, 4
      %v2573 = vshll.u32 %v2442, 16
      %v2575 = vrot.slane %v2573, 5
      %v2576 = vor.u32 %v2572, %v2575
      %v2577 = vsel %vm1473, %v2567, %v2576
      %v2579 = vshrl.u32 %v2443, 16
      %v2581 = vrot.slane %v2579, 4
      %v2582 = vshll.u32 %v2443, 16
      %v2584 = vrot.slane %v2582, 5
      %v2585 = vor.u32 %v2581, %v2584
      %v2586 = vsel %vm1473, %v2576, %v2585
      %2587 = vrot.lane.b32.xlu0 %v2451, 32
      %v2588 = vpop.permute.xlu0 %2587
      %2589 = vrot.lane.b32.xlu0 %v2460, 32
      %v2590 = vpop.permute.xlu0 %2589
      %2591 = vrot.lane.b32.xlu0 %v2469, 32
      %v2592 = vpop.permute.xlu0 %2591
      %2593 = vrot.lane.b32.xlu0 %v2478, 32
      %v2594 = vpop.permute.xlu0 %2593
      %2595 = vrot.lane.b32.xlu0 %v2487, 32
      %v2596 = vpop.permute.xlu0 %2595
      %2597 = vrot.lane.b32.xlu0 %v2496, 32
      %v2598 = vpop.permute.xlu0 %2597
      %2599 = vrot.lane.b32.xlu0 %v2505, 32
      %v2600 = vpop.permute.xlu0 %2599
      %2601 = vrot.lane.b32.xlu0 %v2514, 32
      %v2602 = vpop.permute.xlu0 %2601
      %2603 = vrot.lane.b32.xlu0 %v2523, 32
      %v2604 = vpop.permute.xlu0 %2603
      %2605 = vrot.lane.b32.xlu0 %v2532, 32
      %v2606 = vpop.permute.xlu0 %2605
      %2607 = vrot.lane.b32.xlu0 %v2541, 32
      %v2608 = vpop.permute.xlu0 %2607
      %2609 = vrot.lane.b32.xlu0 %v2550, 32
      %v2610 = vpop.permute.xlu0 %2609
      %2611 = vrot.lane.b32.xlu0 %v2559, 32
      %v2612 = vpop.permute.xlu0 %2611
      %2613 = vrot.lane.b32.xlu0 %v2568, 32
      %v2614 = vpop.permute.xlu0 %2613
      %2615 = vrot.lane.b32.xlu0 %v2577, 32
      %v2616 = vpop.permute.xlu0 %2615
      %2617 = vrot.lane.b32.xlu0 %v2586, 32
      %v2618 = vpop.permute.xlu0 %2617
      %2619 = vrot.lane.b32.xlu0 %v2585, 32
      %v2620 = vpop.permute.xlu0 %2619
      %v2654 = vunpack.c.l.b16 %v2248
      %v2655 = vunpack.c.l.b16 %v2249
      %v2656 = vunpack.c.l.b16 %v2250
      %v2657 = vunpack.c.l.b16 %v2251
      %v2658 = vunpack.c.l.b16 %v2252
      %v2659 = vunpack.c.l.b16 %v2253
      %v2660 = vunpack.c.l.b16 %v2254
      %v2661 = vunpack.c.l.b16 %v2255
      %v2662 = vunpack.c.l.b16 %v2256
      %v2663 = vunpack.c.l.b16 %v2257
      %v2664 = vunpack.c.l.b16 %v2258
      %v2665 = vunpack.c.l.b16 %v2259
      %v2666 = vunpack.c.l.b16 %v2260
      %v2667 = vunpack.c.l.b16 %v2261
      %v2668 = vunpack.c.l.b16 %v2262
      %v2669 = vunpack.c.l.b16 %v2263
      %v2670 = vunpack.c.l.b16 %v2264
      %v2671 = vunpack.c.l.b16 %v2265
      %v2672 = vunpack.c.l.b16 %v2266
      %v2673 = vunpack.c.l.b16 %v2267
      %v2674 = vunpack.c.l.b16 %v2268
      %v2675 = vunpack.c.l.b16 %v2269
      %v2676 = vunpack.c.l.b16 %v2270
      %v2677 = vunpack.c.l.b16 %v2271
      %v2678 = vunpack.c.l.b16 %v2272
      %v2679 = vunpack.c.l.b16 %v2273
      %v2680 = vunpack.c.l.b16 %v2274
      %v2681 = vunpack.c.l.b16 %v2275
      %v2682 = vunpack.c.l.b16 %v2276
      %v2683 = vunpack.c.l.b16 %v2277
      %v2684 = vunpack.c.l.b16 %v2278
      %v2685 = vunpack.c.l.b16 %v2279
      %v2686 = vunpack.c.l.b16 %v2280
      %v2687 = vpack.c.b16 %v2655, %v2654
      %v2688 = vpack.c.b16 %v2657, %v2656
      %v2689 = vpack.c.b16 %v2659, %v2658
      %v2690 = vpack.c.b16 %v2661, %v2660
      %v2691 = vpack.c.b16 %v2663, %v2662
      %v2692 = vpack.c.b16 %v2665, %v2664
      %v2693 = vpack.c.b16 %v2667, %v2666
      %v2694 = vpack.c.b16 %v2669, %v2668
      %v2695 = vpack.c.b16 %v2671, %v2670
      %v2696 = vpack.c.b16 %v2673, %v2672
      %v2697 = vpack.c.b16 %v2675, %v2674
      %v2698 = vpack.c.b16 %v2677, %v2676
      %v2699 = vpack.c.b16 %v2679, %v2678
      %v2700 = vpack.c.b16 %v2681, %v2680
      %v2701 = vpack.c.b16 %v2683, %v2682
      %v2702 = vpack.c.b16 %v2685, %v2684
      %v2703 = vpack.c.b16 %v2686, %v2686
      %vm2704 = vcmask 1042432
      %v2705 = vrot.slane %v2687, 5
      %v2706 = vrot.slane %v2688, 5
      %v2707 = vsel %vm2704, %v2705, %v2706
      %v2708 = vrot.slane %v2689, 5
      %v2709 = vsel %vm2704, %v2706, %v2708
      %v2710 = vrot.slane %v2690, 5
      %v2711 = vsel %vm2704, %v2708, %v2710
      %v2712 = vrot.slane %v2691, 5
      %v2713 = vsel %vm2704, %v2710, %v2712
      %v2714 = vrot.slane %v2692, 5
      %v2715 = vsel %vm2704, %v2712, %v2714
      %v2716 = vrot.slane %v2693, 5
      %v2717 = vsel %vm2704, %v2714, %v2716
      %v2718 = vrot.slane %v2694, 5
      %v2719 = vsel %vm2704, %v2716, %v2718
      %v2720 = vrot.slane %v2695, 5
      %v2721 = vsel %vm2704, %v2718, %v2720
      %v2722 = vrot.slane %v2696, 5
      %v2723 = vsel %vm2704, %v2720, %v2722
      %v2724 = vrot.slane %v2697, 5
      %v2725 = vsel %vm2704, %v2722, %v2724
      %v2726 = vrot.slane %v2698, 5
      %v2727 = vsel %vm2704, %v2724, %v2726
      %v2728 = vrot.slane %v2699, 5
      %v2729 = vsel %vm2704, %v2726, %v2728
      %v2730 = vrot.slane %v2700, 5
      %v2731 = vsel %vm2704, %v2728, %v2730
      %v2732 = vrot.slane %v2701, 5
      %v2733 = vsel %vm2704, %v2730, %v2732
      %v2734 = vrot.slane %v2702, 5
      %v2735 = vsel %vm2704, %v2732, %v2734
      %v2736 = vrot.slane %v2703, 5
      %v2737 = vsel %vm2704, %v2734, %v2736
      %2738 = vrot.lane.b32.xlu0 %v2705, 64
      %v2739 = vpop.permute.xlu0 %2738
      %2740 = vrot.lane.b32.xlu0 %v2707, 64
      %v2741 = vpop.permute.xlu0 %2740
      %2742 = vrot.lane.b32.xlu0 %v2709, 64
      %v2743 = vpop.permute.xlu0 %2742
      %2744 = vrot.lane.b32.xlu0 %v2711, 64
      %v2745 = vpop.permute.xlu0 %2744
      %2746 = vrot.lane.b32.xlu0 %v2713, 64
      %v2747 = vpop.permute.xlu0 %2746
      %2748 = vrot.lane.b32.xlu0 %v2715, 64
      %v2749 = vpop.permute.xlu0 %2748
      %2750 = vrot.lane.b32.xlu0 %v2717, 64
      %v2751 = vpop.permute.xlu0 %2750
      %2752 = vrot.lane.b32.xlu0 %v2719, 64
      %v2753 = vpop.permute.xlu0 %2752
      %2754 = vrot.lane.b32.xlu0 %v2721, 64
      %v2755 = vpop.permute.xlu0 %2754
      %2756 = vrot.lane.b32.xlu0 %v2723, 64
      %v2757 = vpop.permute.xlu0 %2756
      %2758 = vrot.lane.b32.xlu0 %v2725, 64
      %v2759 = vpop.permute.xlu0 %2758
      %2760 = vrot.lane.b32.xlu0 %v2727, 64
      %v2761 = vpop.permute.xlu0 %2760
      %2762 = vrot.lane.b32.xlu0 %v2729, 64
      %v2763 = vpop.permute.xlu0 %2762
      %2764 = vrot.lane.b32.xlu0 %v2731, 64
      %v2765 = vpop.permute.xlu0 %2764
      %2766 = vrot.lane.b32.xlu0 %v2733, 64
      %v2767 = vpop.permute.xlu0 %2766
      %2768 = vrot.lane.b32.xlu0 %v2735, 64
      %v2769 = vpop.permute.xlu0 %2768
      %2770 = vrot.lane.b32.xlu0 %v2737, 64
      %v2771 = vpop.permute.xlu0 %2770
      %vm2772 = vcmask 261120
      %v2775 = vsel %vm2772, %v2347, %v2588
      %v2778 = vsel %vm2772, %v2348, %v2590
      %v2781 = vsel %vm2772, %v2349, %v2592
      %v2784 = vsel %vm2772, %v2350, %v2594
      %v2787 = vsel %vm2772, %v2351, %v2596
      %v2790 = vsel %vm2772, %v2352, %v2598
      %v2793 = vsel %vm2772, %v2353, %v2600
      %v2796 = vsel %vm2772, %v2354, %v2602
      %v2799 = vsel %vm2772, %v2355, %v2604
      %v2802 = vsel %vm2772, %v2356, %v2606
      %v2805 = vsel %vm2772, %v2357, %v2608
      %v2808 = vsel %vm2772, %v2358, %v2610
      %v2811 = vsel %vm2772, %v2359, %v2612
      %v2814 = vsel %vm2772, %v2360, %v2614
      %v2817 = vsel %vm2772, %v2361, %v2616
      %v2820 = vsel %vm2772, %v2362, %v2618
      %v2823 = vsel %vm2772, %v2363, %v2620
      %v2825 = vsel %vm973, %v2775, %v2739
      %v2827 = vsel %vm973, %v2778, %v2741
      %v2829 = vsel %vm973, %v2781, %v2743
      %v2831 = vsel %vm973, %v2784, %v2745
      %v2833 = vsel %vm973, %v2787, %v2747
      %v2835 = vsel %vm973, %v2790, %v2749
      %v2837 = vsel %vm973, %v2793, %v2751
      %v2839 = vsel %vm973, %v2796, %v2753
      %v2841 = vsel %vm973, %v2799, %v2755
      %v2843 = vsel %vm973, %v2802, %v2757
      %v2845 = vsel %vm973, %v2805, %v2759
      %v2847 = vsel %vm973, %v2808, %v2761
      %v2849 = vsel %vm973, %v2811, %v2763
      %v2851 = vsel %vm973, %v2814, %v2765
      %v2853 = vsel %vm973, %v2817, %v2767
      %v2855 = vsel %vm973, %v2820, %v2769
      %v2857 = vsel %vm973, %v2823, %v2771
      %v2858 = vld [vmem:[#allocation2 + $0xc] sm:$0x8]
      %v2859 = vld [vmem:[#allocation2 + $0x88] sm:$0xf]
      %v2860 = vld [vmem:[#allocation2 + $0x8c] sm:$0xf]
      %v2861 = vld [vmem:[#allocation2 + $0x90] sm:$0x1]
      %v2862 = vsel %vm1795, %v2858, 0
      %v2863 = vsel %vm1796, %v1378, 0
      %v2864 = vsel %vm1797, %v1379, 0
      %v2865 = vsel %vm1798, %v1380, 0
      %v2866 = vsel %vm1799, %v1381, 0
      %v2867 = vsel %vm1800, %v1382, 0
      %v2868 = vsel %vm1801, %v1383, 0
      %v2869 = vsel %vm1802, %v1384, 0
      %v2870 = vsel %vm1803, %v1385, 0
      %v2871 = vsel %vm1804, %v1386, 0
      %v2872 = vsel %vm1805, %v1387, 0
      %v2873 = vsel %vm1806, %v1388, 0
      %v2874 = vsel %vm1807, %v1389, 0
      %v2875 = vsel %vm1808, %v1390, 0
      %v2876 = vsel %vm1809, %v1391, 0
      %v2877 = vsel %vm1810, %v1392, 0
      %v2878 = vsel %vm1811, %v1393, 0
      %v2879 = vsel %vm1812, %v1394, 0
      %v2880 = vsel %vm1813, %v1395, 0
      %v2881 = vsel %vm1814, %v1396, 0
      %v2882 = vsel %vm1815, %v1397, 0
      %v2883 = vsel %vm1816, %v1398, 0
      %v2884 = vsel %vm1817, %v1399, 0
      %v2885 = vsel %vm1818, %v1400, 0
      %v2886 = vsel %vm1819, %v1401, 0
      %v2887 = vsel %vm1820, %v1402, 0
      %v2888 = vsel %vm1821, %v1403, 0
      %v2889 = vsel %vm1822, %v1404, 0
      %v2890 = vsel %vm1823, %v1405, 0
      %v2891 = vsel %vm1824, %v1406, 0
      %v2892 = vsel %vm1825, %v1407, 0
      %v2893 = vsel %vm1826, %v2859, 0
      %v2894 = vsel %vm1827, %v2860, 0
      %v2895 = vsel %vm2215, %v1378, 0
      %v2896 = vsel %vm2216, %v1379, 0
      %v2897 = vsel %vm2217, %v1380, 0
      %v2898 = vsel %vm2218, %v1381, 0
      %v2899 = vsel %vm2219, %v1382, 0
      %v2900 = vsel %vm2220, %v1383, 0
      %v2901 = vsel %vm2221, %v1384, 0
      %v2902 = vsel %vm2222, %v1385, 0
      %v2903 = vsel %vm2223, %v1386, 0
      %v2904 = vsel %vm2224, %v1387, 0
      %v2905 = vsel %vm2225, %v1388, 0
      %v2906 = vsel %vm2226, %v1389, 0
      %v2907 = vsel %vm2227, %v1390, 0
      %v2908 = vsel %vm2228, %v1391, 0
      %v2909 = vsel %vm2229, %v1392, 0
      %v2910 = vsel %vm2230, %v1393, 0
      %v2911 = vsel %vm2231, %v1394, 0
      %v2912 = vsel %vm2232, %v1395, 0
      %v2913 = vsel %vm2233, %v1396, 0
      %v2914 = vsel %vm2234, %v1397, 0
      %v2915 = vsel %vm2235, %v1398, 0
      %v2916 = vsel %vm2236, %v1399, 0
      %v2917 = vsel %vm2237, %v1400, 0
      %v2918 = vsel %vm2238, %v1401, 0
      %v2919 = vsel %vm2239, %v1402, 0
      %v2920 = vsel %vm2240, %v1403, 0
      %v2921 = vsel %vm2241, %v1404, 0
      %v2922 = vsel %vm2242, %v1405, 0
      %v2923 = vsel %vm2243, %v1406, 0
      %v2924 = vsel %vm2244, %v1407, 0
      %v2925 = vsel %vm2245, %v2859, 0
      %v2926 = vsel %vm2246, %v2860, 0
      %v2927 = vsel %vm2247, %v2861, 0
      %v2961 = vunpack.c.l.b16 %v2862
      %v2962 = vunpack.c.l.b16 %v2863
      %v2963 = vunpack.c.l.b16 %v2864
      %v2964 = vunpack.c.l.b16 %v2865
      %v2965 = vunpack.c.l.b16 %v2866
      %v2966 = vunpack.c.l.b16 %v2867
      %v2967 = vunpack.c.l.b16 %v2868
      %v2968 = vunpack.c.l.b16 %v2869
      %v2969 = vunpack.c.l.b16 %v2870
      %v2970 = vunpack.c.l.b16 %v2871
      %v2971 = vunpack.c.l.b16 %v2872
      %v2972 = vunpack.c.l.b16 %v2873
      %v2973 = vunpack.c.l.b16 %v2874
      %v2974 = vunpack.c.l.b16 %v2875
      %v2975 = vunpack.c.l.b16 %v2876
      %v2976 = vunpack.c.l.b16 %v2877
      %v2977 = vunpack.c.l.b16 %v2878
      %v2978 = vunpack.c.l.b16 %v2879
      %v2979 = vunpack.c.l.b16 %v2880
      %v2980 = vunpack.c.l.b16 %v2881
      %v2981 = vunpack.c.l.b16 %v2882
      %v2982 = vunpack.c.l.b16 %v2883
      %v2983 = vunpack.c.l.b16 %v2884
      %v2984 = vunpack.c.l.b16 %v2885
      %v2985 = vunpack.c.l.b16 %v2886
      %v2986 = vunpack.c.l.b16 %v2887
      %v2987 = vunpack.c.l.b16 %v2888
      %v2988 = vunpack.c.l.b16 %v2889
      %v2989 = vunpack.c.l.b16 %v2890
      %v2990 = vunpack.c.l.b16 %v2891
      %v2991 = vunpack.c.l.b16 %v2892
      %v2992 = vunpack.c.l.b16 %v2893
      %v2993 = vunpack.c.l.b16 %v2894
      %v2994 = vpack.c.b16 %v2962, %v2961
      %v2995 = vpack.c.b16 %v2964, %v2963
      %v2996 = vpack.c.b16 %v2966, %v2965
      %v2997 = vpack.c.b16 %v2968, %v2967
      %v2998 = vpack.c.b16 %v2970, %v2969
      %v2999 = vpack.c.b16 %v2972, %v2971
      %v3000 = vpack.c.b16 %v2974, %v2973
      %v3001 = vpack.c.b16 %v2976, %v2975
      %v3002 = vpack.c.b16 %v2978, %v2977
      %v3003 = vpack.c.b16 %v2980, %v2979
      %v3004 = vpack.c.b16 %v2982, %v2981
      %v3005 = vpack.c.b16 %v2984, %v2983
      %v3006 = vpack.c.b16 %v2986, %v2985
      %v3007 = vpack.c.b16 %v2988, %v2987
      %v3008 = vpack.c.b16 %v2990, %v2989
      %v3009 = vpack.c.b16 %v2992, %v2991
      %v3010 = vpack.c.b16 %v2993, %v2993
      %v3013 = vunpack.c.l.b16 %v2859
      %v3014 = vunpack.c.l.b16 %v2860
      %v3015 = vpack.c.b16 %v3014, %v3013
      %v3017 = vshrl.u32 %v3015, 16
      %v3019 = vrot.slane %v3017, 4
      %v3020 = vshll.u32 %v3015, 16
      %v3022 = vrot.slane %v3020, 5
      %v3023 = vor.u32 %v3019, %v3022
      %v3024 = vsel %vm1473, %v2585, %v3023
      %3025 = vrot.lane.b32.xlu0 %v2459, 32
      %v3026 = vpop.permute.xlu0 %3025
      %3027 = vrot.lane.b32.xlu0 %v3024, 32
      %v3028 = vpop.permute.xlu0 %3027
      %3029 = vrot.lane.b32.xlu0 %v3023, 32
      %v3030 = vpop.permute.xlu0 %3029
      %v3064 = vunpack.c.l.b16 %v2895
      %v3065 = vunpack.c.l.b16 %v2896
      %v3066 = vunpack.c.l.b16 %v2897
      %v3067 = vunpack.c.l.b16 %v2898
      %v3068 = vunpack.c.l.b16 %v2899
      %v3069 = vunpack.c.l.b16 %v2900
      %v3070 = vunpack.c.l.b16 %v2901
      %v3071 = vunpack.c.l.b16 %v2902
      %v3072 = vunpack.c.l.b16 %v2903
      %v3073 = vunpack.c.l.b16 %v2904
      %v3074 = vunpack.c.l.b16 %v2905
      %v3075 = vunpack.c.l.b16 %v2906
      %v3076 = vunpack.c.l.b16 %v2907
      %v3077 = vunpack.c.l.b16 %v2908
      %v3078 = vunpack.c.l.b16 %v2909
      %v3079 = vunpack.c.l.b16 %v2910
      %v3080 = vunpack.c.l.b16 %v2911
      %v3081 = vunpack.c.l.b16 %v2912
      %v3082 = vunpack.c.l.b16 %v2913
      %v3083 = vunpack.c.l.b16 %v2914
      %v3084 = vunpack.c.l.b16 %v2915
      %v3085 = vunpack.c.l.b16 %v2916
      %v3086 = vunpack.c.l.b16 %v2917
      %v3087 = vunpack.c.l.b16 %v2918
      %v3088 = vunpack.c.l.b16 %v2919
      %v3089 = vunpack.c.l.b16 %v2920
      %v3090 = vunpack.c.l.b16 %v2921
      %v3091 = vunpack.c.l.b16 %v2922
      %v3092 = vunpack.c.l.b16 %v2923
      %v3093 = vunpack.c.l.b16 %v2924
      %v3094 = vunpack.c.l.b16 %v2925
      %v3095 = vunpack.c.l.b16 %v2926
      %v3096 = vunpack.c.l.b16 %v2927
      %v3097 = vpack.c.b16 %v3065, %v3064
      %v3098 = vpack.c.b16 %v3067, %v3066
      %v3099 = vpack.c.b16 %v3069, %v3068
      %v3100 = vpack.c.b16 %v3071, %v3070
      %v3101 = vpack.c.b16 %v3073, %v3072
      %v3102 = vpack.c.b16 %v3075, %v3074
      %v3103 = vpack.c.b16 %v3077, %v3076
      %v3104 = vpack.c.b16 %v3079, %v3078
      %v3105 = vpack.c.b16 %v3081, %v3080
      %v3106 = vpack.c.b16 %v3083, %v3082
      %v3107 = vpack.c.b16 %v3085, %v3084
      %v3108 = vpack.c.b16 %v3087, %v3086
      %v3109 = vpack.c.b16 %v3089, %v3088
      %v3110 = vpack.c.b16 %v3091, %v3090
      %v3111 = vpack.c.b16 %v3093, %v3092
      %v3112 = vpack.c.b16 %v3095, %v3094
      %v3113 = vpack.c.b16 %v3096, %v3096
      %v3114 = vrot.slane %v3097, 5
      %v3115 = vrot.slane %v3098, 5
      %v3116 = vsel %vm2704, %v3114, %v3115
      %v3117 = vrot.slane %v3099, 5
      %v3118 = vsel %vm2704, %v3115, %v3117
      %v3119 = vrot.slane %v3100, 5
      %v3120 = vsel %vm2704, %v3117, %v3119
      %v3121 = vrot.slane %v3101, 5
      %v3122 = vsel %vm2704, %v3119, %v3121
      %v3123 = vrot.slane %v3102, 5
      %v3124 = vsel %vm2704, %v3121, %v3123
      %v3125 = vrot.slane %v3103, 5
      %v3126 = vsel %vm2704, %v3123, %v3125
      %v3127 = vrot.slane %v3104, 5
      %v3128 = vsel %vm2704, %v3125, %v3127
      %v3129 = vrot.slane %v3105, 5
      %v3130 = vsel %vm2704, %v3127, %v3129
      %v3131 = vrot.slane %v3106, 5
      %v3132 = vsel %vm2704, %v3129, %v3131
      %v3133 = vrot.slane %v3107, 5
      %v3134 = vsel %vm2704, %v3131, %v3133
      %v3135 = vrot.slane %v3108, 5
      %v3136 = vsel %vm2704, %v3133, %v3135
      %v3137 = vrot.slane %v3109, 5
      %v3138 = vsel %vm2704, %v3135, %v3137
      %v3139 = vrot.slane %v3110, 5
      %v3140 = vsel %vm2704, %v3137, %v3139
      %v3141 = vrot.slane %v3111, 5
      %v3142 = vsel %vm2704, %v3139, %v3141
      %v3143 = vrot.slane %v3112, 5
      %v3144 = vsel %vm2704, %v3141, %v3143
      %v3145 = vrot.slane %v3113, 5
      %v3146 = vsel %vm2704, %v3143, %v3145
      %3147 = vrot.lane.b32.xlu0 %v3114, 64
      %v3148 = vpop.permute.xlu0 %3147
      %3149 = vrot.lane.b32.xlu0 %v3116, 64
      %v3150 = vpop.permute.xlu0 %3149
      %3151 = vrot.lane.b32.xlu0 %v3118, 64
      %v3152 = vpop.permute.xlu0 %3151
      %3153 = vrot.lane.b32.xlu0 %v3120, 64
      %v3154 = vpop.permute.xlu0 %3153
      %3155 = vrot.lane.b32.xlu0 %v3122, 64
      %v3156 = vpop.permute.xlu0 %3155
      %3157 = vrot.lane.b32.xlu0 %v3124, 64
      %v3158 = vpop.permute.xlu0 %3157
      %3159 = vrot.lane.b32.xlu0 %v3126, 64
      %v3160 = vpop.permute.xlu0 %3159
      %3161 = vrot.lane.b32.xlu0 %v3128, 64
      %v3162 = vpop.permute.xlu0 %3161
      %3163 = vrot.lane.b32.xlu0 %v3130, 64
      %v3164 = vpop.permute.xlu0 %3163
      %3165 = vrot.lane.b32.xlu0 %v3132, 64
      %v3166 = vpop.permute.xlu0 %3165
      %3167 = vrot.lane.b32.xlu0 %v3134, 64
      %v3168 = vpop.permute.xlu0 %3167
      %3169 = vrot.lane.b32.xlu0 %v3136, 64
      %v3170 = vpop.permute.xlu0 %3169
      %3171 = vrot.lane.b32.xlu0 %v3138, 64
      %v3172 = vpop.permute.xlu0 %3171
      %3173 = vrot.lane.b32.xlu0 %v3140, 64
      %v3174 = vpop.permute.xlu0 %3173
      %3175 = vrot.lane.b32.xlu0 %v3142, 64
      %v3176 = vpop.permute.xlu0 %3175
      %3177 = vrot.lane.b32.xlu0 %v3144, 64
      %v3178 = vpop.permute.xlu0 %3177
      %3179 = vrot.lane.b32.xlu0 %v3146, 64
      %v3180 = vpop.permute.xlu0 %3179
      %v3183 = vsel %vm2772, %v2994, %v3026
      %v3185 = vsel %vm2772, %v2995, %v2592
      %v3187 = vsel %vm2772, %v2996, %v2594
      %v3189 = vsel %vm2772, %v2997, %v2596
      %v3191 = vsel %vm2772, %v2998, %v2598
      %v3193 = vsel %vm2772, %v2999, %v2600
      %v3195 = vsel %vm2772, %v3000, %v2602
      %v3197 = vsel %vm2772, %v3001, %v2604
      %v3199 = vsel %vm2772, %v3002, %v2606
      %v3201 = vsel %vm2772, %v3003, %v2608
      %v3203 = vsel %vm2772, %v3004, %v2610
      %v3205 = vsel %vm2772, %v3005, %v2612
      %v3207 = vsel %vm2772, %v3006, %v2614
      %v3209 = vsel %vm2772, %v3007, %v2616
      %v3211 = vsel %vm2772, %v3008, %v2618
      %v3214 = vsel %vm2772, %v3009, %v3028
      %v3217 = vsel %vm2772, %v3010, %v3030
      %v3219 = vsel %vm973, %v3183, %v3148
      %v3221 = vsel %vm973, %v3185, %v3150
      %v3223 = vsel %vm973, %v3187, %v3152
      %v3225 = vsel %vm973, %v3189, %v3154
      %v3227 = vsel %vm973, %v3191, %v3156
      %v3229 = vsel %vm973, %v3193, %v3158
      %v3231 = vsel %vm973, %v3195, %v3160
      %v3233 = vsel %vm973, %v3197, %v3162
      %v3235 = vsel %vm973, %v3199, %v3164
      %v3237 = vsel %vm973, %v3201, %v3166
      %v3239 = vsel %vm973, %v3203, %v3168
      %v3241 = vsel %vm973, %v3205, %v3170
      %v3243 = vsel %vm973, %v3207, %v3172
      %v3245 = vsel %vm973, %v3209, %v3174
      %v3247 = vsel %vm973, %v3211, %v3176
      %v3249 = vsel %vm973, %v3214, %v3178
      %v3251 = vsel %vm973, %v3217, %v3180
      %vm3252 = vsmask.f32 4352
      %v3253 = vshrl.u32 %v3219, 16
      %v3255 = vrot.slane %v3253, 3
      %v3256 = vshll.u32 %v3219, 16
      %v3258 = vrot.slane %v3256, 4
      %v3259 = vor.u32 %v3255, %v3258
      %v3260 = vshrl.u32 %v3221, 16
      %v3262 = vrot.slane %v3260, 3
      %v3263 = vshll.u32 %v3221, 16
      %v3265 = vrot.slane %v3263, 4
      %v3266 = vor.u32 %v3262, %v3265
      %v3267 = vsel %vm3252, %v3259, %v3266
      %v3268 = vshrl.u32 %v3223, 16
      %v3270 = vrot.slane %v3268, 3
      %v3271 = vshll.u32 %v3223, 16
      %v3273 = vrot.slane %v3271, 4
      %v3274 = vor.u32 %v3270, %v3273
      %v3275 = vsel %vm3252, %v3266, %v3274
      %v3276 = vshrl.u32 %v3225, 16
      %v3278 = vrot.slane %v3276, 3
      %v3279 = vshll.u32 %v3225, 16
      %v3281 = vrot.slane %v3279, 4
      %v3282 = vor.u32 %v3278, %v3281
      %v3283 = vsel %vm3252, %v3274, %v3282
      %v3284 = vshrl.u32 %v3227, 16
      %v3286 = vrot.slane %v3284, 3
      %v3287 = vshll.u32 %v3227, 16
      %v3289 = vrot.slane %v3287, 4
      %v3290 = vor.u32 %v3286, %v3289
      %v3291 = vsel %vm3252, %v3282, %v3290
      %v3292 = vshrl.u32 %v3229, 16
      %v3294 = vrot.slane %v3292, 3
      %v3295 = vshll.u32 %v3229, 16
      %v3297 = vrot.slane %v3295, 4
      %v3298 = vor.u32 %v3294, %v3297
      %v3299 = vsel %vm3252, %v3290, %v3298
      %v3300 = vshrl.u32 %v3231, 16
      %v3302 = vrot.slane %v3300, 3
      %v3303 = vshll.u32 %v3231, 16
      %v3305 = vrot.slane %v3303, 4
      %v3306 = vor.u32 %v3302, %v3305
      %v3307 = vsel %vm3252, %v3298, %v3306
      %v3308 = vshrl.u32 %v3233, 16
      %v3310 = vrot.slane %v3308, 3
      %v3311 = vshll.u32 %v3233, 16
      %v3313 = vrot.slane %v3311, 4
      %v3314 = vor.u32 %v3310, %v3313
      %v3315 = vsel %vm3252, %v3306, %v3314
      %v3316 = vshrl.u32 %v3235, 16
      %v3318 = vrot.slane %v3316, 3
      %v3319 = vshll.u32 %v3235, 16
      %v3321 = vrot.slane %v3319, 4
      %v3322 = vor.u32 %v3318, %v3321
      %v3323 = vsel %vm3252, %v3314, %v3322
      %v3324 = vshrl.u32 %v3237, 16
      %v3326 = vrot.slane %v3324, 3
      %v3327 = vshll.u32 %v3237, 16
      %v3329 = vrot.slane %v3327, 4
      %v3330 = vor.u32 %v3326, %v3329
      %v3331 = vsel %vm3252, %v3322, %v3330
      %v3332 = vshrl.u32 %v3239, 16
      %v3334 = vrot.slane %v3332, 3
      %v3335 = vshll.u32 %v3239, 16
      %v3337 = vrot.slane %v3335, 4
      %v3338 = vor.u32 %v3334, %v3337
      %v3339 = vsel %vm3252, %v3330, %v3338
      %v3340 = vshrl.u32 %v3241, 16
      %v3342 = vrot.slane %v3340, 3
      %v3343 = vshll.u32 %v3241, 16
      %v3345 = vrot.slane %v3343, 4
      %v3346 = vor.u32 %v3342, %v3345
      %v3347 = vsel %vm3252, %v3338, %v3346
      %v3348 = vshrl.u32 %v3243, 16
      %v3350 = vrot.slane %v3348, 3
      %v3351 = vshll.u32 %v3243, 16
      %v3353 = vrot.slane %v3351, 4
      %v3354 = vor.u32 %v3350, %v3353
      %v3355 = vsel %vm3252, %v3346, %v3354
      %v3356 = vshrl.u32 %v3245, 16
      %v3358 = vrot.slane %v3356, 3
      %v3359 = vshll.u32 %v3245, 16
      %v3361 = vrot.slane %v3359, 4
      %v3362 = vor.u32 %v3358, %v3361
      %v3363 = vsel %vm3252, %v3354, %v3362
      %v3364 = vshrl.u32 %v3247, 16
      %v3366 = vrot.slane %v3364, 3
      %v3367 = vshll.u32 %v3247, 16
      %v3369 = vrot.slane %v3367, 4
      %v3370 = vor.u32 %v3366, %v3369
      %v3371 = vsel %vm3252, %v3362, %v3370
      %v3372 = vshrl.u32 %v3249, 16
      %v3374 = vrot.slane %v3372, 3
      %v3375 = vshll.u32 %v3249, 16
      %v3377 = vrot.slane %v3375, 4
      %v3378 = vor.u32 %v3374, %v3377
      %v3379 = vsel %vm3252, %v3370, %v3378
      %v3380 = vshrl.u32 %v3251, 16
      %v3382 = vrot.slane %v3380, 3
      %v3383 = vshll.u32 %v3251, 16
      %v3385 = vrot.slane %v3383, 4
      %v3386 = vor.u32 %v3382, %v3385
      %v3387 = vsel %vm3252, %v3378, %v3386
      %v3400 = vunpack.c.l.b16 %v792
      %v3401 = vunpack.c.l.b16 %v793
      %v3402 = vunpack.c.l.b16 %v794
      %v3403 = vunpack.c.l.b16 %v795
      %v3404 = vunpack.c.l.b16 %v796
      %v3405 = vunpack.c.l.b16 %v797
      %v3406 = vunpack.c.l.b16 %v798
      %v3407 = vunpack.c.l.b16 %v799
      %v3408 = vunpack.c.l.b16 %v800
      %v3409 = vunpack.c.l.b16 %v801
      %v3410 = vunpack.c.l.b16 %v802
      %v3411 = vunpack.c.l.b16 %v803
      %v3412 = vpack.c.b16 %v3401, %v3400
      %v3413 = vpack.c.b16 %v3403, %v3402
      %v3414 = vpack.c.b16 %v3405, %v3404
      %v3415 = vpack.c.b16 %v3407, %v3406
      %v3416 = vpack.c.b16 %v3409, %v3408
      %v3417 = vpack.c.b16 %v3411, %v3410
      %vm3424 = vcmask 785408
      %v3426 = vsel %vm3424, %v3267, 0
      %v3429 = vsel %vm3424, %v3275, 0
      %v3432 = vsel %vm3424, %v3283, 0
      %v3435 = vsel %vm3424, %v3291, 0
      %v3438 = vsel %vm3424, %v3299, 0
      %v3441 = vsel %vm3424, %v3307, 0
      %v3444 = vsel %vm3424, %v3315, 0
      %v3447 = vsel %vm3424, %v3323, 0
      %v3450 = vsel %vm3424, %v3331, 0
      %v3453 = vsel %vm3424, %v3339, 0
      %v3456 = vsel %vm3424, %v3347, 0
      %v3459 = vsel %vm3424, %v3355, 0
      %v3462 = vsel %vm3424, %v3363, 0
      %v3465 = vsel %vm3424, %v3371, 0
      %v3468 = vsel %vm3424, %v3379, 0
      %v3471 = vsel %vm3424, %v3387, 0
      %3473 = vmatprep.subr.bf16.mxu0 0
      %3474 = vmatpush1.bf16.msra.mxu0 0
      %3475 = vmatprep.subr.bf16.mxu0 0
      %3476 = vmatpush1.bf16.msra.mxu0 0
      %3477 = vmatprep.subr.bf16.mxu0 0
      %3478 = vmatpush1.bf16.msra.mxu0 %v3417
      %3479 = vmatprep.subr.bf16.mxu0 0
      %3480 = vmatpush1.bf16.msra.mxu0 %v3416
      %3481 = vmatprep.subr.bf16.mxu0 0
      %3482 = vmatpush1.bf16.msra.mxu0 %v3415
      %3483 = vmatprep.subr.bf16.mxu0 0
      %3484 = vmatpush1.bf16.msra.mxu0 %v3414
      %3485 = vmatprep.subr.bf16.mxu0 0
      %3486 = vmatpush1.bf16.msra.mxu0 %v3413
      %3487 = vmatprep.subr.bf16.mxu0 0
      %3488 = vmatpush1.bf16.msra.mxu0 %v3412
      %3489 = vmatprep.subr.bf16.mxu0 0
      %3490 = vmatpush2.bf16.msra.mxu0 0
      %3491 = vmatprep.subr.bf16.mxu0 0
      %3492 = vmatpush2.bf16.msra.mxu0 0
      %3493 = vmatprep.subr.bf16.mxu0 0
      %3494 = vmatpush2.bf16.msra.mxu0 0
      %3495 = vmatprep.subr.bf16.mxu0 0
      %3496 = vmatpush2.bf16.msra.mxu0 0
      %3497 = vmatprep.subr.bf16.mxu0 0
      %3498 = vmatpush2.bf16.msra.mxu0 0
      %3499 = vmatprep.subr.bf16.mxu0 0
      %3500 = vmatpush2.bf16.msra.mxu0 0
      %3501 = vmatprep.subr.bf16.mxu0 0
      %3502 = vmatpush2.bf16.msra.mxu0 0
      %3503 = vmatprep.subr.bf16.mxu0 0
      %3504 = vmatpush2.bf16.msra.mxu0 0
      %3505 = vmatprep.mubr.bf16.mxu0 0
      %3506 = vmatmul.mubr.bf16.gmra.mxu0 %v3426
      %v3507 = vpop.f32.mrf.mxu0
      %v3508 = vadd.f32 0.0, %v3507
      %v3509 = vpop.f32.mrf.mxu0
      %v3510 = vpop.f32.mrf.mxu0
      %v3511 = vadd.f32 0.0, %v3510
      %v3512 = vpop.f32.mrf.mxu0
      %3513 = vmatprep.mubr.bf16.mxu0 0
      %3514 = vmatmul.mubr.bf16.gmra.mxu0 %v3429
      %v3515 = vpop.f32.mrf.mxu0
      %v3516 = vadd.f32 0.0, %v3515
      %v3517 = vpop.f32.mrf.mxu0
      %v3518 = vpop.f32.mrf.mxu0
      %v3519 = vadd.f32 0.0, %v3518
      %v3520 = vpop.f32.mrf.mxu0
      %3521 = vmatprep.mubr.bf16.mxu0 0
      %3522 = vmatmul.mubr.bf16.gmra.mxu0 %v3432
      %v3523 = vpop.f32.mrf.mxu0
      %v3524 = vadd.f32 0.0, %v3523
      %v3525 = vpop.f32.mrf.mxu0
      %v3526 = vpop.f32.mrf.mxu0
      %v3527 = vadd.f32 0.0, %v3526
      %v3528 = vpop.f32.mrf.mxu0
      %3529 = vmatprep.mubr.bf16.mxu0 0
      %3530 = vmatmul.mubr.bf16.gmra.mxu0 %v3435
      %v3531 = vpop.f32.mrf.mxu0
      %v3532 = vadd.f32 0.0, %v3531
      %v3533 = vpop.f32.mrf.mxu0
      %v3534 = vpop.f32.mrf.mxu0
      %v3535 = vadd.f32 0.0, %v3534
      %v3536 = vpop.f32.mrf.mxu0
      %3537 = vmatprep.mubr.bf16.mxu0 0
      %3538 = vmatmul.mubr.bf16.gmra.mxu0 %v3438
      %v3539 = vpop.f32.mrf.mxu0
      %v3540 = vadd.f32 0.0, %v3539
      %v3541 = vpop.f32.mrf.mxu0
      %v3542 = vpop.f32.mrf.mxu0
      %v3543 = vadd.f32 0.0, %v3542
      %v3544 = vpop.f32.mrf.mxu0
      %3545 = vmatprep.mubr.bf16.mxu0 0
      %3546 = vmatmul.mubr.bf16.gmra.mxu0 %v3441
      %v3547 = vpop.f32.mrf.mxu0
      %v3548 = vadd.f32 0.0, %v3547
      %v3549 = vpop.f32.mrf.mxu0
      %v3550 = vpop.f32.mrf.mxu0
      %v3551 = vadd.f32 0.0, %v3550
      %v3552 = vpop.f32.mrf.mxu0
      %3553 = vmatprep.mubr.bf16.mxu0 0
      %3554 = vmatmul.mubr.bf16.gmra.mxu0 %v3444
      %v3555 = vpop.f32.mrf.mxu0
      %v3556 = vadd.f32 0.0, %v3555
      %v3557 = vpop.f32.mrf.mxu0
      %v3558 = vpop.f32.mrf.mxu0
      %v3559 = vadd.f32 0.0, %v3558
      %v3560 = vpop.f32.mrf.mxu0
      %3561 = vmatprep.mubr.bf16.mxu0 0
      %3562 = vmatmul.mubr.bf16.gmra.mxu0 %v3447
      %v3563 = vpop.f32.mrf.mxu0
      %v3564 = vadd.f32 0.0, %v3563
      %v3565 = vpop.f32.mrf.mxu0
      %v3566 = vpop.f32.mrf.mxu0
      %v3567 = vadd.f32 0.0, %v3566
      %v3568 = vpop.f32.mrf.mxu0
      %3569 = vmatprep.mubr.bf16.mxu0 0
      %3570 = vmatmul.mubr.bf16.gmra.mxu0 %v3450
      %v3571 = vpop.f32.mrf.mxu0
      %v3572 = vadd.f32 0.0, %v3571
      %v3573 = vpop.f32.mrf.mxu0
      %v3574 = vpop.f32.mrf.mxu0
      %v3575 = vadd.f32 0.0, %v3574
      %v3576 = vpop.f32.mrf.mxu0
      %3577 = vmatprep.mubr.bf16.mxu0 0
      %3578 = vmatmul.mubr.bf16.gmra.mxu0 %v3453
      %v3579 = vpop.f32.mrf.mxu0
      %v3580 = vadd.f32 0.0, %v3579
      %v3581 = vpop.f32.mrf.mxu0
      %v3582 = vpop.f32.mrf.mxu0
      %v3583 = vadd.f32 0.0, %v3582
      %v3584 = vpop.f32.mrf.mxu0
      %3585 = vmatprep.mubr.bf16.mxu0 0
      %3586 = vmatmul.mubr.bf16.gmra.mxu0 %v3456
      %v3587 = vpop.f32.mrf.mxu0
      %v3588 = vadd.f32 0.0, %v3587
      %v3589 = vpop.f32.mrf.mxu0
      %v3590 = vpop.f32.mrf.mxu0
      %v3591 = vadd.f32 0.0, %v3590
      %v3592 = vpop.f32.mrf.mxu0
      %3593 = vmatprep.mubr.bf16.mxu0 0
      %3594 = vmatmul.mubr.bf16.gmra.mxu0 %v3459
      %v3595 = vpop.f32.mrf.mxu0
      %v3596 = vadd.f32 0.0, %v3595
      %v3597 = vpop.f32.mrf.mxu0
      %v3598 = vpop.f32.mrf.mxu0
      %v3599 = vadd.f32 0.0, %v3598
      %v3600 = vpop.f32.mrf.mxu0
      %3601 = vmatprep.mubr.bf16.mxu0 0
      %3602 = vmatmul.mubr.bf16.gmra.mxu0 %v3462
      %v3603 = vpop.f32.mrf.mxu0
      %v3604 = vadd.f32 0.0, %v3603
      %v3605 = vpop.f32.mrf.mxu0
      %v3606 = vpop.f32.mrf.mxu0
      %v3607 = vadd.f32 0.0, %v3606
      %v3608 = vpop.f32.mrf.mxu0
      %3609 = vmatprep.mubr.bf16.mxu0 0
      %3610 = vmatmul.mubr.bf16.gmra.mxu0 %v3465
      %v3611 = vpop.f32.mrf.mxu0
      %v3612 = vadd.f32 0.0, %v3611
      %v3613 = vpop.f32.mrf.mxu0
      %v3614 = vpop.f32.mrf.mxu0
      %v3615 = vadd.f32 0.0, %v3614
      %v3616 = vpop.f32.mrf.mxu0
      %3617 = vmatprep.mubr.bf16.mxu0 0
      %3618 = vmatmul.mubr.bf16.gmra.mxu0 %v3468
      %v3619 = vpop.f32.mrf.mxu0
      %v3620 = vadd.f32 0.0, %v3619
      %v3621 = vpop.f32.mrf.mxu0
      %v3622 = vpop.f32.mrf.mxu0
      %v3623 = vadd.f32 0.0, %v3622
      %v3624 = vpop.f32.mrf.mxu0
      %3625 = vmatprep.mubr.bf16.mxu0 0
      %3626 = vmatmul.mubr.bf16.gmra.mxu0 %v3471
      %v3627 = vpop.f32.mrf.mxu0
      %v3628 = vadd.f32 0.0, %v3627
      %v3629 = vpop.f32.mrf.mxu0
      %v3630 = vpop.f32.mrf.mxu0
      %v3631 = vadd.f32 0.0, %v3630
      %v3632 = vpop.f32.mrf.mxu0
      %3633 = vdwg.mxu0
      %v3634 = vshrl.u32 %v2825, 16
      %v3636 = vrot.slane %v3634, 3
      %v3637 = vshll.u32 %v2825, 16
      %v3639 = vrot.slane %v3637, 4
      %v3640 = vor.u32 %v3636, %v3639
      %v3641 = vshrl.u32 %v2827, 16
      %v3643 = vrot.slane %v3641, 3
      %v3644 = vshll.u32 %v2827, 16
      %v3646 = vrot.slane %v3644, 4
      %v3647 = vor.u32 %v3643, %v3646
      %v3648 = vsel %vm3252, %v3640, %v3647
      %v3649 = vshrl.u32 %v2829, 16
      %v3651 = vrot.slane %v3649, 3
      %v3652 = vshll.u32 %v2829, 16
      %v3654 = vrot.slane %v3652, 4
      %v3655 = vor.u32 %v3651, %v3654
      %v3656 = vsel %vm3252, %v3647, %v3655
      %v3657 = vshrl.u32 %v2831, 16
      %v3659 = vrot.slane %v3657, 3
      %v3660 = vshll.u32 %v2831, 16
      %v3662 = vrot.slane %v3660, 4
      %v3663 = vor.u32 %v3659, %v3662
      %v3664 = vsel %vm3252, %v3655, %v3663
      %v3665 = vshrl.u32 %v2833, 16
      %v3667 = vrot.slane %v3665, 3
      %v3668 = vshll.u32 %v2833, 16
      %v3670 = vrot.slane %v3668, 4
      %v3671 = vor.u32 %v3667, %v3670
      %v3672 = vsel %vm3252, %v3663, %v3671
      %v3673 = vshrl.u32 %v2835, 16
      %v3675 = vrot.slane %v3673, 3
      %v3676 = vshll.u32 %v2835, 16
      %v3678 = vrot.slane %v3676, 4
      %v3679 = vor.u32 %v3675, %v3678
      %v3680 = vsel %vm3252, %v3671, %v3679
      %v3681 = vshrl.u32 %v2837, 16
      %v3683 = vrot.slane %v3681, 3
      %v3684 = vshll.u32 %v2837, 16
      %v3686 = vrot.slane %v3684, 4
      %v3687 = vor.u32 %v3683, %v3686
      %v3688 = vsel %vm3252, %v3679, %v3687
      %v3689 = vshrl.u32 %v2839, 16
      %v3691 = vrot.slane %v3689, 3
      %v3692 = vshll.u32 %v2839, 16
      %v3694 = vrot.slane %v3692, 4
      %v3695 = vor.u32 %v3691, %v3694
      %v3696 = vsel %vm3252, %v3687, %v3695
      %v3697 = vshrl.u32 %v2841, 16
      %v3699 = vrot.slane %v3697, 3
      %v3700 = vshll.u32 %v2841, 16
      %v3702 = vrot.slane %v3700, 4
      %v3703 = vor.u32 %v3699, %v3702
      %v3704 = vsel %vm3252, %v3695, %v3703
      %v3705 = vshrl.u32 %v2843, 16
      %v3707 = vrot.slane %v3705, 3
      %v3708 = vshll.u32 %v2843, 16
      %v3710 = vrot.slane %v3708, 4
      %v3711 = vor.u32 %v3707, %v3710
      %v3712 = vsel %vm3252, %v3703, %v3711
      %v3713 = vshrl.u32 %v2845, 16
      %v3715 = vrot.slane %v3713, 3
      %v3716 = vshll.u32 %v2845, 16
      %v3718 = vrot.slane %v3716, 4
      %v3719 = vor.u32 %v3715, %v3718
      %v3720 = vsel %vm3252, %v3711, %v3719
      %v3721 = vshrl.u32 %v2847, 16
      %v3723 = vrot.slane %v3721, 3
      %v3724 = vshll.u32 %v2847, 16
      %v3726 = vrot.slane %v3724, 4
      %v3727 = vor.u32 %v3723, %v3726
      %v3728 = vsel %vm3252, %v3719, %v3727
      %v3729 = vshrl.u32 %v2849, 16
      %v3731 = vrot.slane %v3729, 3
      %v3732 = vshll.u32 %v2849, 16
      %v3734 = vrot.slane %v3732, 4
      %v3735 = vor.u32 %v3731, %v3734
      %v3736 = vsel %vm3252, %v3727, %v3735
      %v3737 = vshrl.u32 %v2851, 16
      %v3739 = vrot.slane %v3737, 3
      %v3740 = vshll.u32 %v2851, 16
      %v3742 = vrot.slane %v3740, 4
      %v3743 = vor.u32 %v3739, %v3742
      %v3744 = vsel %vm3252, %v3735, %v3743
      %v3745 = vshrl.u32 %v2853, 16
      %v3747 = vrot.slane %v3745, 3
      %v3748 = vshll.u32 %v2853, 16
      %v3750 = vrot.slane %v3748, 4
      %v3751 = vor.u32 %v3747, %v3750
      %v3752 = vsel %vm3252, %v3743, %v3751
      %v3753 = vshrl.u32 %v2855, 16
      %v3755 = vrot.slane %v3753, 3
      %v3756 = vshll.u32 %v2855, 16
      %v3758 = vrot.slane %v3756, 4
      %v3759 = vor.u32 %v3755, %v3758
      %v3760 = vsel %vm3252, %v3751, %v3759
      %v3761 = vshrl.u32 %v2857, 16
      %v3763 = vrot.slane %v3761, 3
      %v3764 = vshll.u32 %v2857, 16
      %v3766 = vrot.slane %v3764, 4
      %v3767 = vor.u32 %v3763, %v3766
      %v3768 = vsel %vm3252, %v3759, %v3767
      %v3781 = vunpack.c.l.b16 %v780
      %v3782 = vunpack.c.l.b16 %v781
      %v3783 = vunpack.c.l.b16 %v782
      %v3784 = vunpack.c.l.b16 %v783
      %v3785 = vunpack.c.l.b16 %v784
      %v3786 = vunpack.c.l.b16 %v785
      %v3787 = vunpack.c.l.b16 %v786
      %v3788 = vunpack.c.l.b16 %v787
      %v3789 = vunpack.c.l.b16 %v788
      %v3790 = vunpack.c.l.b16 %v789
      %v3791 = vunpack.c.l.b16 %v790
      %v3792 = vunpack.c.l.b16 %v791
      %v3793 = vpack.c.b16 %v3782, %v3781
      %v3794 = vpack.c.b16 %v3784, %v3783
      %v3795 = vpack.c.b16 %v3786, %v3785
      %v3796 = vpack.c.b16 %v3788, %v3787
      %v3797 = vpack.c.b16 %v3790, %v3789
      %v3798 = vpack.c.b16 %v3792, %v3791
      %v3806 = vsel %vm3424, %v3648, 0
      %v3809 = vsel %vm3424, %v3656, 0
      %v3812 = vsel %vm3424, %v3664, 0
      %v3815 = vsel %vm3424, %v3672, 0
      %v3818 = vsel %vm3424, %v3680, 0
      %v3821 = vsel %vm3424, %v3688, 0
      %v3824 = vsel %vm3424, %v3696, 0
      %v3827 = vsel %vm3424, %v3704, 0
      %v3830 = vsel %vm3424, %v3712, 0
      %v3833 = vsel %vm3424, %v3720, 0
      %v3836 = vsel %vm3424, %v3728, 0
      %v3839 = vsel %vm3424, %v3736, 0
      %v3842 = vsel %vm3424, %v3744, 0
      %v3845 = vsel %vm3424, %v3752, 0
      %v3848 = vsel %vm3424, %v3760, 0
      %v3851 = vsel %vm3424, %v3768, 0
      %3853 = vmatprep.subr.bf16.mxu0 0
      %3854 = vmatpush1.bf16.msra.mxu0 0
      %3855 = vmatprep.subr.bf16.mxu0 0
      %3856 = vmatpush1.bf16.msra.mxu0 0
      %3857 = vmatprep.subr.bf16.mxu0 0
      %3858 = vmatpush1.bf16.msra.mxu0 %v3798
      %3859 = vmatprep.subr.bf16.mxu0 0
      %3860 = vmatpush1.bf16.msra.mxu0 %v3797
      %3861 = vmatprep.subr.bf16.mxu0 0
      %3862 = vmatpush1.bf16.msra.mxu0 %v3796
      %3863 = vmatprep.subr.bf16.mxu0 0
      %3864 = vmatpush1.bf16.msra.mxu0 %v3795
      %3865 = vmatprep.subr.bf16.mxu0 0
      %3866 = vmatpush1.bf16.msra.mxu0 %v3794
      %3867 = vmatprep.subr.bf16.mxu0 0
      %3868 = vmatpush1.bf16.msra.mxu0 %v3793
      %3869 = vmatprep.subr.bf16.mxu0 0
      %3870 = vmatpush2.bf16.msra.mxu0 0
      %3871 = vmatprep.subr.bf16.mxu0 0
      %3872 = vmatpush2.bf16.msra.mxu0 0
      %3873 = vmatprep.subr.bf16.mxu0 0
      %3874 = vmatpush2.bf16.msra.mxu0 0
      %3875 = vmatprep.subr.bf16.mxu0 0
      %3876 = vmatpush2.bf16.msra.mxu0 0
      %3877 = vmatprep.subr.bf16.mxu0 0
      %3878 = vmatpush2.bf16.msra.mxu0 0
      %3879 = vmatprep.subr.bf16.mxu0 0
      %3880 = vmatpush2.bf16.msra.mxu0 0
      %3881 = vmatprep.subr.bf16.mxu0 0
      %3882 = vmatpush2.bf16.msra.mxu0 0
      %3883 = vmatprep.subr.bf16.mxu0 0
      %3884 = vmatpush2.bf16.msra.mxu0 0
      %3885 = vmatprep.mubr.bf16.mxu0 0
      %3886 = vmatmul.mubr.bf16.gmra.mxu0 %v3806
      %v3887 = vpop.f32.mrf.mxu0
      %v3888 = vadd.f32 %v3508, %v3887
      %v3889 = vpop.f32.mrf.mxu0
      %v3890 = vpop.f32.mrf.mxu0
      %v3891 = vadd.f32 %v3511, %v3890
      %v3892 = vpop.f32.mrf.mxu0
      %3893 = vmatprep.mubr.bf16.mxu0 0
      %3894 = vmatmul.mubr.bf16.gmra.mxu0 %v3809
      %v3895 = vpop.f32.mrf.mxu0
      %v3896 = vadd.f32 %v3516, %v3895
      %v3897 = vpop.f32.mrf.mxu0
      %v3898 = vpop.f32.mrf.mxu0
      %v3899 = vadd.f32 %v3519, %v3898
      %v3900 = vpop.f32.mrf.mxu0
      %3901 = vmatprep.mubr.bf16.mxu0 0
      %3902 = vmatmul.mubr.bf16.gmra.mxu0 %v3812
      %v3903 = vpop.f32.mrf.mxu0
      %v3904 = vadd.f32 %v3524, %v3903
      %v3905 = vpop.f32.mrf.mxu0
      %v3906 = vpop.f32.mrf.mxu0
      %v3907 = vadd.f32 %v3527, %v3906
      %v3908 = vpop.f32.mrf.mxu0
      %3909 = vmatprep.mubr.bf16.mxu0 0
      %3910 = vmatmul.mubr.bf16.gmra.mxu0 %v3815
      %v3911 = vpop.f32.mrf.mxu0
      %v3912 = vadd.f32 %v3532, %v3911
      %v3913 = vpop.f32.mrf.mxu0
      %v3914 = vpop.f32.mrf.mxu0
      %v3915 = vadd.f32 %v3535, %v3914
      %v3916 = vpop.f32.mrf.mxu0
      %3917 = vmatprep.mubr.bf16.mxu0 0
      %3918 = vmatmul.mubr.bf16.gmra.mxu0 %v3818
      %v3919 = vpop.f32.mrf.mxu0
      %v3920 = vadd.f32 %v3540, %v3919
      %v3921 = vpop.f32.mrf.mxu0
      %v3922 = vpop.f32.mrf.mxu0
      %v3923 = vadd.f32 %v3543, %v3922
      %v3924 = vpop.f32.mrf.mxu0
      %3925 = vmatprep.mubr.bf16.mxu0 0
      %3926 = vmatmul.mubr.bf16.gmra.mxu0 %v3821
      %v3927 = vpop.f32.mrf.mxu0
      %v3928 = vadd.f32 %v3548, %v3927
      %v3929 = vpop.f32.mrf.mxu0
      %v3930 = vpop.f32.mrf.mxu0
      %v3931 = vadd.f32 %v3551, %v3930
      %v3932 = vpop.f32.mrf.mxu0
      %3933 = vmatprep.mubr.bf16.mxu0 0
      %3934 = vmatmul.mubr.bf16.gmra.mxu0 %v3824
      %v3935 = vpop.f32.mrf.mxu0
      %v3936 = vadd.f32 %v3556, %v3935
      %v3937 = vpop.f32.mrf.mxu0
      %v3938 = vpop.f32.mrf.mxu0
      %v3939 = vadd.f32 %v3559, %v3938
      %v3940 = vpop.f32.mrf.mxu0
      %3941 = vmatprep.mubr.bf16.mxu0 0
      %3942 = vmatmul.mubr.bf16.gmra.mxu0 %v3827
      %v3943 = vpop.f32.mrf.mxu0
      %v3944 = vadd.f32 %v3564, %v3943
      %v3945 = vpop.f32.mrf.mxu0
      %v3946 = vpop.f32.mrf.mxu0
      %v3947 = vadd.f32 %v3567, %v3946
      %v3948 = vpop.f32.mrf.mxu0
      %3949 = vmatprep.mubr.bf16.mxu0 0
      %3950 = vmatmul.mubr.bf16.gmra.mxu0 %v3830
      %v3951 = vpop.f32.mrf.mxu0
      %v3952 = vadd.f32 %v3572, %v3951
      %v3953 = vpop.f32.mrf.mxu0
      %v3954 = vpop.f32.mrf.mxu0
      %v3955 = vadd.f32 %v3575, %v3954
      %v3956 = vpop.f32.mrf.mxu0
      %3957 = vmatprep.mubr.bf16.mxu0 0
      %3958 = vmatmul.mubr.bf16.gmra.mxu0 %v3833
      %v3959 = vpop.f32.mrf.mxu0
      %v3960 = vadd.f32 %v3580, %v3959
      %v3961 = vpop.f32.mrf.mxu0
      %v3962 = vpop.f32.mrf.mxu0
      %v3963 = vadd.f32 %v3583, %v3962
      %v3964 = vpop.f32.mrf.mxu0
      %3965 = vmatprep.mubr.bf16.mxu0 0
      %3966 = vmatmul.mubr.bf16.gmra.mxu0 %v3836
      %v3967 = vpop.f32.mrf.mxu0
      %v3968 = vadd.f32 %v3588, %v3967
      %v3969 = vpop.f32.mrf.mxu0
      %v3970 = vpop.f32.mrf.mxu0
      %v3971 = vadd.f32 %v3591, %v3970
      %v3972 = vpop.f32.mrf.mxu0
      %3973 = vmatprep.mubr.bf16.mxu0 0
      %3974 = vmatmul.mubr.bf16.gmra.mxu0 %v3839
      %v3975 = vpop.f32.mrf.mxu0
      %v3976 = vadd.f32 %v3596, %v3975
      %v3977 = vpop.f32.mrf.mxu0
      %v3978 = vpop.f32.mrf.mxu0
      %v3979 = vadd.f32 %v3599, %v3978
      %v3980 = vpop.f32.mrf.mxu0
      %3981 = vmatprep.mubr.bf16.mxu0 0
      %3982 = vmatmul.mubr.bf16.gmra.mxu0 %v3842
      %v3983 = vpop.f32.mrf.mxu0
      %v3984 = vadd.f32 %v3604, %v3983
      %v3985 = vpop.f32.mrf.mxu0
      %v3986 = vpop.f32.mrf.mxu0
      %v3987 = vadd.f32 %v3607, %v3986
      %v3988 = vpop.f32.mrf.mxu0
      %3989 = vmatprep.mubr.bf16.mxu0 0
      %3990 = vmatmul.mubr.bf16.gmra.mxu0 %v3845
      %v3991 = vpop.f32.mrf.mxu0
      %v3992 = vadd.f32 %v3612, %v3991
      %v3993 = vpop.f32.mrf.mxu0
      %v3994 = vpop.f32.mrf.mxu0
      %v3995 = vadd.f32 %v3615, %v3994
      %v3996 = vpop.f32.mrf.mxu0
      %3997 = vmatprep.mubr.bf16.mxu0 0
      %3998 = vmatmul.mubr.bf16.gmra.mxu0 %v3848
      %v3999 = vpop.f32.mrf.mxu0
      %v4000 = vadd.f32 %v3620, %v3999
      %v4001 = vpop.f32.mrf.mxu0
      %v4002 = vpop.f32.mrf.mxu0
      %v4003 = vadd.f32 %v3623, %v4002
      %v4004 = vpop.f32.mrf.mxu0
      %4005 = vmatprep.mubr.bf16.mxu0 0
      %4006 = vmatmul.mubr.bf16.gmra.mxu0 %v3851
      %v4007 = vpop.f32.mrf.mxu0
      %v4008 = vadd.f32 %v3628, %v4007
      %v4009 = vpop.f32.mrf.mxu0
      %v4010 = vpop.f32.mrf.mxu0
      %v4011 = vadd.f32 %v3631, %v4010
      %v4012 = vpop.f32.mrf.mxu0
      %4013 = vdwg.mxu0
      %v4014 = vld [vmem:[#allocation2 + $0x14] sm:$0x8]
      %v4015 = vld [vmem:[#allocation2 + $0x18] sm:$0xf]
      %v4016 = vld [vmem:[#allocation2 + $0x1c] sm:$0xf]
      %v4017 = vld [vmem:[#allocation2 + $0x20] sm:$0xf]
      %v4018 = vld [vmem:[#allocation2 + $0x24] sm:$0xf]
      %v4019 = vld [vmem:[#allocation2 + $0x28] sm:$0xf]
      %v4020 = vld [vmem:[#allocation2 + $0x2c] sm:$0xf]
      %v4021 = vld [vmem:[#allocation2 + $0x30] sm:$0xf]
      %v4022 = vld [vmem:[#allocation2 + $0x34] sm:$0xf]
      %v4023 = vld [vmem:[#allocation2 + $0x38] sm:$0xf]
      %v4024 = vld [vmem:[#allocation2 + $0x3c] sm:$0xf]
      %v4025 = vld [vmem:[#allocation2 + $0x40] sm:$0xf]
      %v4026 = vld [vmem:[#allocation2 + $0x44] sm:$0xf]
      %v4027 = vld [vmem:[#allocation2 + $0x48] sm:$0xf]
      %v4028 = vld [vmem:[#allocation2 + $0x4c] sm:$0xf]
      %v4029 = vld [vmem:[#allocation2 + $0x50] sm:$0xf]
      %v4030 = vld [vmem:[#allocation2 + $0x54] sm:$0xf]
      %v4031 = vld [vmem:[#allocation2 + $0x58] sm:$0xf]
      %v4032 = vld [vmem:[#allocation2 + $0x5c] sm:$0xf]
      %v4033 = vld [vmem:[#allocation2 + $0x60] sm:$0xf]
      %v4034 = vld [vmem:[#allocation2 + $0x64] sm:$0xf]
      %v4035 = vld [vmem:[#allocation2 + $0x68] sm:$0xf]
      %v4036 = vld [vmem:[#allocation2 + $0x6c] sm:$0xf]
      %v4037 = vld [vmem:[#allocation2 + $0x70] sm:$0xf]
      %v4038 = vld [vmem:[#allocation2 + $0x74] sm:$0xf]
      %v4039 = vld [vmem:[#allocation2 + $0x78] sm:$0xf]
      %v4040 = vld [vmem:[#allocation2 + $0x7c] sm:$0xf]
      %v4041 = vld [vmem:[#allocation2 + $0x80] sm:$0xf]
      %v4042 = vld [vmem:[#allocation2 + $0x84] sm:$0xf]
      %v4043 = vld [vmem:[#allocation2 + $0x88] sm:$0xf]
      %v4044 = vld [vmem:[#allocation2 + $0x8c] sm:$0xf]
      %v4045 = vld [vmem:[#allocation2 + $0x90] sm:$0xf]
      %v4046 = vld [vmem:[#allocation2 + $0x94] sm:$0xf]
      %v4047 = vld [vmem:[#allocation2 + $0x98] sm:$0x1]
      %v4048 = vsel %vm1795, %v4014, 0
      %v4049 = vsel %vm1796, %v4015, 0
      %v4050 = vsel %vm1797, %v4016, 0
      %v4051 = vsel %vm1798, %v4017, 0
      %v4052 = vsel %vm1799, %v4018, 0
      %v4053 = vsel %vm1800, %v4019, 0
      %v4054 = vsel %vm1801, %v4020, 0
      %v4055 = vsel %vm1802, %v4021, 0
      %v4056 = vsel %vm1803, %v4022, 0
      %v4057 = vsel %vm1804, %v4023, 0
      %v4058 = vsel %vm1805, %v4024, 0
      %v4059 = vsel %vm1806, %v4025, 0
      %v4060 = vsel %vm1807, %v4026, 0
      %v4061 = vsel %vm1808, %v4027, 0
      %v4062 = vsel %vm1809, %v4028, 0
      %v4063 = vsel %vm1810, %v4029, 0
      %v4064 = vsel %vm1811, %v4030, 0
      %v4065 = vsel %vm1812, %v4031, 0
      %v4066 = vsel %vm1813, %v4032, 0
      %v4067 = vsel %vm1814, %v4033, 0
      %v4068 = vsel %vm1815, %v4034, 0
      %v4069 = vsel %vm1816, %v4035, 0
      %v4070 = vsel %vm1817, %v4036, 0
      %v4071 = vsel %vm1818, %v4037, 0
      %v4072 = vsel %vm1819, %v4038, 0
      %v4073 = vsel %vm1820, %v4039, 0
      %v4074 = vsel %vm1821, %v4040, 0
      %v4075 = vsel %vm1822, %v4041, 0
      %v4076 = vsel %vm1823, %v4042, 0
      %v4077 = vsel %vm1824, %v4043, 0
      %v4078 = vsel %vm1825, %v4044, 0
      %v4079 = vsel %vm1826, %v4045, 0
      %v4080 = vsel %vm1827, %v4046, 0
      %v4081 = vsel %vm2215, %v4015, 0
      %v4082 = vsel %vm2216, %v4016, 0
      %v4083 = vsel %vm2217, %v4017, 0
      %v4084 = vsel %vm2218, %v4018, 0
      %v4085 = vsel %vm2219, %v4019, 0
      %v4086 = vsel %vm2220, %v4020, 0
      %v4087 = vsel %vm2221, %v4021, 0
      %v4088 = vsel %vm2222, %v4022, 0
      %v4089 = vsel %vm2223, %v4023, 0
      %v4090 = vsel %vm2224, %v4024, 0
      %v4091 = vsel %vm2225, %v4025, 0
      %v4092 = vsel %vm2226, %v4026, 0
      %v4093 = vsel %vm2227, %v4027, 0
      %v4094 = vsel %vm2228, %v4028, 0
      %v4095 = vsel %vm2229, %v4029, 0
      %v4096 = vsel %vm2230, %v4030, 0
      %v4097 = vsel %vm2231, %v4031, 0
      %v4098 = vsel %vm2232, %v4032, 0
      %v4099 = vsel %vm2233, %v4033, 0
      %v4100 = vsel %vm2234, %v4034, 0
      %v4101 = vsel %vm2235, %v4035, 0
      %v4102 = vsel %vm2236, %v4036, 0
      %v4103 = vsel %vm2237, %v4037, 0
      %v4104 = vsel %vm2238, %v4038, 0
      %v4105 = vsel %vm2239, %v4039, 0
      %v4106 = vsel %vm2240, %v4040, 0
      %v4107 = vsel %vm2241, %v4041, 0
      %v4108 = vsel %vm2242, %v4042, 0
      %v4109 = vsel %vm2243, %v4043, 0
      %v4110 = vsel %vm2244, %v4044, 0
      %v4111 = vsel %vm2245, %v4045, 0
      %v4112 = vsel %vm2246, %v4046, 0
      %v4113 = vsel %vm2247, %v4047, 0
      %v4147 = vunpack.c.l.b16 %v4048
      %v4148 = vunpack.c.l.b16 %v4049
      %v4149 = vunpack.c.l.b16 %v4050
      %v4150 = vunpack.c.l.b16 %v4051
      %v4151 = vunpack.c.l.b16 %v4052
      %v4152 = vunpack.c.l.b16 %v4053
      %v4153 = vunpack.c.l.b16 %v4054
      %v4154 = vunpack.c.l.b16 %v4055
      %v4155 = vunpack.c.l.b16 %v4056
      %v4156 = vunpack.c.l.b16 %v4057
      %v4157 = vunpack.c.l.b16 %v4058
      %v4158 = vunpack.c.l.b16 %v4059
      %v4159 = vunpack.c.l.b16 %v4060
      %v4160 = vunpack.c.l.b16 %v4061
      %v4161 = vunpack.c.l.b16 %v4062
      %v4162 = vunpack.c.l.b16 %v4063
      %v4163 = vunpack.c.l.b16 %v4064
      %v4164 = vunpack.c.l.b16 %v4065
      %v4165 = vunpack.c.l.b16 %v4066
      %v4166 = vunpack.c.l.b16 %v4067
      %v4167 = vunpack.c.l.b16 %v4068
      %v4168 = vunpack.c.l.b16 %v4069
      %v4169 = vunpack.c.l.b16 %v4070
      %v4170 = vunpack.c.l.b16 %v4071
      %v4171 = vunpack.c.l.b16 %v4072
      %v4172 = vunpack.c.l.b16 %v4073
      %v4173 = vunpack.c.l.b16 %v4074
      %v4174 = vunpack.c.l.b16 %v4075
      %v4175 = vunpack.c.l.b16 %v4076
      %v4176 = vunpack.c.l.b16 %v4077
      %v4177 = vunpack.c.l.b16 %v4078
      %v4178 = vunpack.c.l.b16 %v4079
      %v4179 = vunpack.c.l.b16 %v4080
      %v4180 = vpack.c.b16 %v4148, %v4147
      %v4181 = vpack.c.b16 %v4150, %v4149
      %v4182 = vpack.c.b16 %v4152, %v4151
      %v4183 = vpack.c.b16 %v4154, %v4153
      %v4184 = vpack.c.b16 %v4156, %v4155
      %v4185 = vpack.c.b16 %v4158, %v4157
      %v4186 = vpack.c.b16 %v4160, %v4159
      %v4187 = vpack.c.b16 %v4162, %v4161
      %v4188 = vpack.c.b16 %v4164, %v4163
      %v4189 = vpack.c.b16 %v4166, %v4165
      %v4190 = vpack.c.b16 %v4168, %v4167
      %v4191 = vpack.c.b16 %v4170, %v4169
      %v4192 = vpack.c.b16 %v4172, %v4171
      %v4193 = vpack.c.b16 %v4174, %v4173
      %v4194 = vpack.c.b16 %v4176, %v4175
      %v4195 = vpack.c.b16 %v4178, %v4177
      %v4196 = vpack.c.b16 %v4179, %v4179
      %v4229 = vunpack.c.l.b16 %v4015
      %v4230 = vunpack.c.l.b16 %v4016
      %v4231 = vunpack.c.l.b16 %v4017
      %v4232 = vunpack.c.l.b16 %v4018
      %v4233 = vunpack.c.l.b16 %v4019
      %v4234 = vunpack.c.l.b16 %v4020
      %v4235 = vunpack.c.l.b16 %v4021
      %v4236 = vunpack.c.l.b16 %v4022
      %v4237 = vunpack.c.l.b16 %v4023
      %v4238 = vunpack.c.l.b16 %v4024
      %v4239 = vunpack.c.l.b16 %v4025
      %v4240 = vunpack.c.l.b16 %v4026
      %v4241 = vunpack.c.l.b16 %v4027
      %v4242 = vunpack.c.l.b16 %v4028
      %v4243 = vunpack.c.l.b16 %v4029
      %v4244 = vunpack.c.l.b16 %v4030
      %v4245 = vunpack.c.l.b16 %v4031
      %v4246 = vunpack.c.l.b16 %v4032
      %v4247 = vunpack.c.l.b16 %v4033
      %v4248 = vunpack.c.l.b16 %v4034
      %v4249 = vunpack.c.l.b16 %v4035
      %v4250 = vunpack.c.l.b16 %v4036
      %v4251 = vunpack.c.l.b16 %v4037
      %v4252 = vunpack.c.l.b16 %v4038
      %v4253 = vunpack.c.l.b16 %v4039
      %v4254 = vunpack.c.l.b16 %v4040
      %v4255 = vunpack.c.l.b16 %v4041
      %v4256 = vunpack.c.l.b16 %v4042
      %v4257 = vunpack.c.l.b16 %v4043
      %v4258 = vunpack.c.l.b16 %v4044
      %v4259 = vunpack.c.l.b16 %v4045
      %v4260 = vunpack.c.l.b16 %v4046
      %v4261 = vpack.c.b16 %v4230, %v4229
      %v4262 = vpack.c.b16 %v4232, %v4231
      %v4263 = vpack.c.b16 %v4234, %v4233
      %v4264 = vpack.c.b16 %v4236, %v4235
      %v4265 = vpack.c.b16 %v4238, %v4237
      %v4266 = vpack.c.b16 %v4240, %v4239
      %v4267 = vpack.c.b16 %v4242, %v4241
      %v4268 = vpack.c.b16 %v4244, %v4243
      %v4269 = vpack.c.b16 %v4246, %v4245
      %v4270 = vpack.c.b16 %v4248, %v4247
      %v4271 = vpack.c.b16 %v4250, %v4249
      %v4272 = vpack.c.b16 %v4252, %v4251
      %v4273 = vpack.c.b16 %v4254, %v4253
      %v4274 = vpack.c.b16 %v4256, %v4255
      %v4275 = vpack.c.b16 %v4258, %v4257
      %v4276 = vpack.c.b16 %v4260, %v4259
      %v4278 = vshrl.u32 %v4261, 16
      %v4280 = vrot.slane %v4278, 4
      %v4281 = vshll.u32 %v4261, 16
      %v4283 = vrot.slane %v4281, 5
      %v4284 = vor.u32 %v4280, %v4283
      %v4286 = vshrl.u32 %v4262, 16
      %v4288 = vrot.slane %v4286, 4
      %v4289 = vshll.u32 %v4262, 16
      %v4291 = vrot.slane %v4289, 5
      %v4292 = vor.u32 %v4288, %v4291
      %v4293 = vsel %vm1473, %v4284, %v4292
      %v4295 = vshrl.u32 %v4263, 16
      %v4297 = vrot.slane %v4295, 4
      %v4298 = vshll.u32 %v4263, 16
      %v4300 = vrot.slane %v4298, 5
      %v4301 = vor.u32 %v4297, %v4300
      %v4302 = vsel %vm1473, %v4292, %v4301
      %v4304 = vshrl.u32 %v4264, 16
      %v4306 = vrot.slane %v4304, 4
      %v4307 = vshll.u32 %v4264, 16
      %v4309 = vrot.slane %v4307, 5
      %v4310 = vor.u32 %v4306, %v4309
      %v4311 = vsel %vm1473, %v4301, %v4310
      %v4313 = vshrl.u32 %v4265, 16
      %v4315 = vrot.slane %v4313, 4
      %v4316 = vshll.u32 %v4265, 16
      %v4318 = vrot.slane %v4316, 5
      %v4319 = vor.u32 %v4315, %v4318
      %v4320 = vsel %vm1473, %v4310, %v4319
      %v4322 = vshrl.u32 %v4266, 16
      %v4324 = vrot.slane %v4322, 4
      %v4325 = vshll.u32 %v4266, 16
      %v4327 = vrot.slane %v4325, 5
      %v4328 = vor.u32 %v4324, %v4327
      %v4329 = vsel %vm1473, %v4319, %v4328
      %v4331 = vshrl.u32 %v4267, 16
      %v4333 = vrot.slane %v4331, 4
      %v4334 = vshll.u32 %v4267, 16
      %v4336 = vrot.slane %v4334, 5
      %v4337 = vor.u32 %v4333, %v4336
      %v4338 = vsel %vm1473, %v4328, %v4337
      %v4340 = vshrl.u32 %v4268, 16
      %v4342 = vrot.slane %v4340, 4
      %v4343 = vshll.u32 %v4268, 16
      %v4345 = vrot.slane %v4343, 5
      %v4346 = vor.u32 %v4342, %v4345
      %v4347 = vsel %vm1473, %v4337, %v4346
      %v4349 = vshrl.u32 %v4269, 16
      %v4351 = vrot.slane %v4349, 4
      %v4352 = vshll.u32 %v4269, 16
      %v4354 = vrot.slane %v4352, 5
      %v4355 = vor.u32 %v4351, %v4354
      %v4356 = vsel %vm1473, %v4346, %v4355
      %v4358 = vshrl.u32 %v4270, 16
      %v4360 = vrot.slane %v4358, 4
      %v4361 = vshll.u32 %v4270, 16
      %v4363 = vrot.slane %v4361, 5
      %v4364 = vor.u32 %v4360, %v4363
      %v4365 = vsel %vm1473, %v4355, %v4364
      %v4367 = vshrl.u32 %v4271, 16
      %v4369 = vrot.slane %v4367, 4
      %v4370 = vshll.u32 %v4271, 16
      %v4372 = vrot.slane %v4370, 5
      %v4373 = vor.u32 %v4369, %v4372
      %v4374 = vsel %vm1473, %v4364, %v4373
      %v4376 = vshrl.u32 %v4272, 16
      %v4378 = vrot.slane %v4376, 4
      %v4379 = vshll.u32 %v4272, 16
      %v4381 = vrot.slane %v4379, 5
      %v4382 = vor.u32 %v4378, %v4381
      %v4383 = vsel %vm1473, %v4373, %v4382
      %v4385 = vshrl.u32 %v4273, 16
      %v4387 = vrot.slane %v4385, 4
      %v4388 = vshll.u32 %v4273, 16
      %v4390 = vrot.slane %v4388, 5
      %v4391 = vor.u32 %v4387, %v4390
      %v4392 = vsel %vm1473, %v4382, %v4391
      %v4394 = vshrl.u32 %v4274, 16
      %v4396 = vrot.slane %v4394, 4
      %v4397 = vshll.u32 %v4274, 16
      %v4399 = vrot.slane %v4397, 5
      %v4400 = vor.u32 %v4396, %v4399
      %v4401 = vsel %vm1473, %v4391, %v4400
      %v4403 = vshrl.u32 %v4275, 16
      %v4405 = vrot.slane %v4403, 4
      %v4406 = vshll.u32 %v4275, 16
      %v4408 = vrot.slane %v4406, 5
      %v4409 = vor.u32 %v4405, %v4408
      %v4410 = vsel %vm1473, %v4400, %v4409
      %v4412 = vshrl.u32 %v4276, 16
      %v4414 = vrot.slane %v4412, 4
      %v4415 = vshll.u32 %v4276, 16
      %v4417 = vrot.slane %v4415, 5
      %v4418 = vor.u32 %v4414, %v4417
      %v4419 = vsel %vm1473, %v4409, %v4418
      %4420 = vrot.lane.b32.xlu0 %v4284, 32
      %v4421 = vpop.permute.xlu0 %4420
      %4422 = vrot.lane.b32.xlu0 %v4293, 32
      %v4423 = vpop.permute.xlu0 %4422
      %4424 = vrot.lane.b32.xlu0 %v4302, 32
      %v4425 = vpop.permute.xlu0 %4424
      %4426 = vrot.lane.b32.xlu0 %v4311, 32
      %v4427 = vpop.permute.xlu0 %4426
      %4428 = vrot.lane.b32.xlu0 %v4320, 32
      %v4429 = vpop.permute.xlu0 %4428
      %4430 = vrot.lane.b32.xlu0 %v4329, 32
      %v4431 = vpop.permute.xlu0 %4430
      %4432 = vrot.lane.b32.xlu0 %v4338, 32
      %v4433 = vpop.permute.xlu0 %4432
      %4434 = vrot.lane.b32.xlu0 %v4347, 32
      %v4435 = vpop.permute.xlu0 %4434
      %4436 = vrot.lane.b32.xlu0 %v4356, 32
      %v4437 = vpop.permute.xlu0 %4436
      %4438 = vrot.lane.b32.xlu0 %v4365, 32
      %v4439 = vpop.permute.xlu0 %4438
      %4440 = vrot.lane.b32.xlu0 %v4374, 32
      %v4441 = vpop.permute.xlu0 %4440
      %4442 = vrot.lane.b32.xlu0 %v4383, 32
      %v4443 = vpop.permute.xlu0 %4442
      %4444 = vrot.lane.b32.xlu0 %v4392, 32
      %v4445 = vpop.permute.xlu0 %4444
      %4446 = vrot.lane.b32.xlu0 %v4401, 32
      %v4447 = vpop.permute.xlu0 %4446
      %4448 = vrot.lane.b32.xlu0 %v4410, 32
      %v4449 = vpop.permute.xlu0 %4448
      %4450 = vrot.lane.b32.xlu0 %v4419, 32
      %v4451 = vpop.permute.xlu0 %4450
      %4452 = vrot.lane.b32.xlu0 %v4418, 32
      %v4453 = vpop.permute.xlu0 %4452
      %v4487 = vunpack.c.l.b16 %v4081
      %v4488 = vunpack.c.l.b16 %v4082
      %v4489 = vunpack.c.l.b16 %v4083
      %v4490 = vunpack.c.l.b16 %v4084
      %v4491 = vunpack.c.l.b16 %v4085
      %v4492 = vunpack.c.l.b16 %v4086
      %v4493 = vunpack.c.l.b16 %v4087
      %v4494 = vunpack.c.l.b16 %v4088
      %v4495 = vunpack.c.l.b16 %v4089
      %v4496 = vunpack.c.l.b16 %v4090
      %v4497 = vunpack.c.l.b16 %v4091
      %v4498 = vunpack.c.l.b16 %v4092
      %v4499 = vunpack.c.l.b16 %v4093
      %v4500 = vunpack.c.l.b16 %v4094
      %v4501 = vunpack.c.l.b16 %v4095
      %v4502 = vunpack.c.l.b16 %v4096
      %v4503 = vunpack.c.l.b16 %v4097
      %v4504 = vunpack.c.l.b16 %v4098
      %v4505 = vunpack.c.l.b16 %v4099
      %v4506 = vunpack.c.l.b16 %v4100
      %v4507 = vunpack.c.l.b16 %v4101
      %v4508 = vunpack.c.l.b16 %v4102
      %v4509 = vunpack.c.l.b16 %v4103
      %v4510 = vunpack.c.l.b16 %v4104
      %v4511 = vunpack.c.l.b16 %v4105
      %v4512 = vunpack.c.l.b16 %v4106
      %v4513 = vunpack.c.l.b16 %v4107
      %v4514 = vunpack.c.l.b16 %v4108
      %v4515 = vunpack.c.l.b16 %v4109
      %v4516 = vunpack.c.l.b16 %v4110
      %v4517 = vunpack.c.l.b16 %v4111
      %v4518 = vunpack.c.l.b16 %v4112
      %v4519 = vunpack.c.l.b16 %v4113
      %v4520 = vpack.c.b16 %v4488, %v4487
      %v4521 = vpack.c.b16 %v4490, %v4489
      %v4522 = vpack.c.b16 %v4492, %v4491
      %v4523 = vpack.c.b16 %v4494, %v4493
      %v4524 = vpack.c.b16 %v4496, %v4495
      %v4525 = vpack.c.b16 %v4498, %v4497
      %v4526 = vpack.c.b16 %v4500, %v4499
      %v4527 = vpack.c.b16 %v4502, %v4501
      %v4528 = vpack.c.b16 %v4504, %v4503
      %v4529 = vpack.c.b16 %v4506, %v4505
      %v4530 = vpack.c.b16 %v4508, %v4507
      %v4531 = vpack.c.b16 %v4510, %v4509
      %v4532 = vpack.c.b16 %v4512, %v4511
      %v4533 = vpack.c.b16 %v4514, %v4513
      %v4534 = vpack.c.b16 %v4516, %v4515
      %v4535 = vpack.c.b16 %v4518, %v4517
      %v4536 = vpack.c.b16 %v4519, %v4519
      %v4537 = vrot.slane %v4520, 5
      %v4538 = vrot.slane %v4521, 5
      %v4539 = vsel %vm2704, %v4537, %v4538
      %v4540 = vrot.slane %v4522, 5
      %v4541 = vsel %vm2704, %v4538, %v4540
      %v4542 = vrot.slane %v4523, 5
      %v4543 = vsel %vm2704, %v4540, %v4542
      %v4544 = vrot.slane %v4524, 5
      %v4545 = vsel %vm2704, %v4542, %v4544
      %v4546 = vrot.slane %v4525, 5
      %v4547 = vsel %vm2704, %v4544, %v4546
      %v4548 = vrot.slane %v4526, 5
      %v4549 = vsel %vm2704, %v4546, %v4548
      %v4550 = vrot.slane %v4527, 5
      %v4551 = vsel %vm2704, %v4548, %v4550
      %v4552 = vrot.slane %v4528, 5
      %v4553 = vsel %vm2704, %v4550, %v4552
      %v4554 = vrot.slane %v4529, 5
      %v4555 = vsel %vm2704, %v4552, %v4554
      %v4556 = vrot.slane %v4530, 5
      %v4557 = vsel %vm2704, %v4554, %v4556
      %v4558 = vrot.slane %v4531, 5
      %v4559 = vsel %vm2704, %v4556, %v4558
      %v4560 = vrot.slane %v4532, 5
      %v4561 = vsel %vm2704, %v4558, %v4560
      %v4562 = vrot.slane %v4533, 5
      %v4563 = vsel %vm2704, %v4560, %v4562
      %v4564 = vrot.slane %v4534, 5
      %v4565 = vsel %vm2704, %v4562, %v4564
      %v4566 = vrot.slane %v4535, 5
      %v4567 = vsel %vm2704, %v4564, %v4566
      %v4568 = vrot.slane %v4536, 5
      %v4569 = vsel %vm2704, %v4566, %v4568
      %4570 = vrot.lane.b32.xlu0 %v4537, 64
      %v4571 = vpop.permute.xlu0 %4570
      %4572 = vrot.lane.b32.xlu0 %v4539, 64
      %v4573 = vpop.permute.xlu0 %4572
      %4574 = vrot.lane.b32.xlu0 %v4541, 64
      %v4575 = vpop.permute.xlu0 %4574
      %4576 = vrot.lane.b32.xlu0 %v4543, 64
      %v4577 = vpop.permute.xlu0 %4576
      %4578 = vrot.lane.b32.xlu0 %v4545, 64
      %v4579 = vpop.permute.xlu0 %4578
      %4580 = vrot.lane.b32.xlu0 %v4547, 64
      %v4581 = vpop.permute.xlu0 %4580
      %4582 = vrot.lane.b32.xlu0 %v4549, 64
      %v4583 = vpop.permute.xlu0 %4582
      %4584 = vrot.lane.b32.xlu0 %v4551, 64
      %v4585 = vpop.permute.xlu0 %4584
      %4586 = vrot.lane.b32.xlu0 %v4553, 64
      %v4587 = vpop.permute.xlu0 %4586
      %4588 = vrot.lane.b32.xlu0 %v4555, 64
      %v4589 = vpop.permute.xlu0 %4588
      %4590 = vrot.lane.b32.xlu0 %v4557, 64
      %v4591 = vpop.permute.xlu0 %4590
      %4592 = vrot.lane.b32.xlu0 %v4559, 64
      %v4593 = vpop.permute.xlu0 %4592
      %4594 = vrot.lane.b32.xlu0 %v4561, 64
      %v4595 = vpop.permute.xlu0 %4594
      %4596 = vrot.lane.b32.xlu0 %v4563, 64
      %v4597 = vpop.permute.xlu0 %4596
      %4598 = vrot.lane.b32.xlu0 %v4565, 64
      %v4599 = vpop.permute.xlu0 %4598
      %4600 = vrot.lane.b32.xlu0 %v4567, 64
      %v4601 = vpop.permute.xlu0 %4600
      %4602 = vrot.lane.b32.xlu0 %v4569, 64
      %v4603 = vpop.permute.xlu0 %4602
      %v4606 = vsel %vm2772, %v4180, %v4421
      %v4609 = vsel %vm2772, %v4181, %v4423
      %v4612 = vsel %vm2772, %v4182, %v4425
      %v4615 = vsel %vm2772, %v4183, %v4427
      %v4618 = vsel %vm2772, %v4184, %v4429
      %v4621 = vsel %vm2772, %v4185, %v4431
      %v4624 = vsel %vm2772, %v4186, %v4433
      %v4627 = vsel %vm2772, %v4187, %v4435
      %v4630 = vsel %vm2772, %v4188, %v4437
      %v4633 = vsel %vm2772, %v4189, %v4439
      %v4636 = vsel %vm2772, %v4190, %v4441
      %v4639 = vsel %vm2772, %v4191, %v4443
      %v4642 = vsel %vm2772, %v4192, %v4445
      %v4645 = vsel %vm2772, %v4193, %v4447
      %v4648 = vsel %vm2772, %v4194, %v4449
      %v4651 = vsel %vm2772, %v4195, %v4451
      %v4654 = vsel %vm2772, %v4196, %v4453
      %v4656 = vsel %vm973, %v4606, %v4571
      %v4658 = vsel %vm973, %v4609, %v4573
      %v4660 = vsel %vm973, %v4612, %v4575
      %v4662 = vsel %vm973, %v4615, %v4577
      %v4664 = vsel %vm973, %v4618, %v4579
      %v4666 = vsel %vm973, %v4621, %v4581
      %v4668 = vsel %vm973, %v4624, %v4583
      %v4670 = vsel %vm973, %v4627, %v4585
      %v4672 = vsel %vm973, %v4630, %v4587
      %v4674 = vsel %vm973, %v4633, %v4589
      %v4676 = vsel %vm973, %v4636, %v4591
      %v4678 = vsel %vm973, %v4639, %v4593
      %v4680 = vsel %vm973, %v4642, %v4595
      %v4682 = vsel %vm973, %v4645, %v4597
      %v4684 = vsel %vm973, %v4648, %v4599
      %v4686 = vsel %vm973, %v4651, %v4601
      %v4688 = vsel %vm973, %v4654, %v4603
      %v4689 = vshrl.u32 %v4656, 16
      %v4691 = vrot.slane %v4689, 3
      %v4692 = vshll.u32 %v4656, 16
      %v4694 = vrot.slane %v4692, 4
      %v4695 = vor.u32 %v4691, %v4694
      %v4696 = vshrl.u32 %v4658, 16
      %v4698 = vrot.slane %v4696, 3
      %v4699 = vshll.u32 %v4658, 16
      %v4701 = vrot.slane %v4699, 4
      %v4702 = vor.u32 %v4698, %v4701
      %v4703 = vsel %vm3252, %v4695, %v4702
      %v4704 = vshrl.u32 %v4660, 16
      %v4706 = vrot.slane %v4704, 3
      %v4707 = vshll.u32 %v4660, 16
      %v4709 = vrot.slane %v4707, 4
      %v4710 = vor.u32 %v4706, %v4709
      %v4711 = vsel %vm3252, %v4702, %v4710
      %v4712 = vshrl.u32 %v4662, 16
      %v4714 = vrot.slane %v4712, 3
      %v4715 = vshll.u32 %v4662, 16
      %v4717 = vrot.slane %v4715, 4
      %v4718 = vor.u32 %v4714, %v4717
      %v4719 = vsel %vm3252, %v4710, %v4718
      %v4720 = vshrl.u32 %v4664, 16
      %v4722 = vrot.slane %v4720, 3
      %v4723 = vshll.u32 %v4664, 16
      %v4725 = vrot.slane %v4723, 4
      %v4726 = vor.u32 %v4722, %v4725
      %v4727 = vsel %vm3252, %v4718, %v4726
      %v4728 = vshrl.u32 %v4666, 16
      %v4730 = vrot.slane %v4728, 3
      %v4731 = vshll.u32 %v4666, 16
      %v4733 = vrot.slane %v4731, 4
      %v4734 = vor.u32 %v4730, %v4733
      %v4735 = vsel %vm3252, %v4726, %v4734
      %v4736 = vshrl.u32 %v4668, 16
      %v4738 = vrot.slane %v4736, 3
      %v4739 = vshll.u32 %v4668, 16
      %v4741 = vrot.slane %v4739, 4
      %v4742 = vor.u32 %v4738, %v4741
      %v4743 = vsel %vm3252, %v4734, %v4742
      %v4744 = vshrl.u32 %v4670, 16
      %v4746 = vrot.slane %v4744, 3
      %v4747 = vshll.u32 %v4670, 16
      %v4749 = vrot.slane %v4747, 4
      %v4750 = vor.u32 %v4746, %v4749
      %v4751 = vsel %vm3252, %v4742, %v4750
      %v4752 = vshrl.u32 %v4672, 16
      %v4754 = vrot.slane %v4752, 3
      %v4755 = vshll.u32 %v4672, 16
      %v4757 = vrot.slane %v4755, 4
      %v4758 = vor.u32 %v4754, %v4757
      %v4759 = vsel %vm3252, %v4750, %v4758
      %v4760 = vshrl.u32 %v4674, 16
      %v4762 = vrot.slane %v4760, 3
      %v4763 = vshll.u32 %v4674, 16
      %v4765 = vrot.slane %v4763, 4
      %v4766 = vor.u32 %v4762, %v4765
      %v4767 = vsel %vm3252, %v4758, %v4766
      %v4768 = vshrl.u32 %v4676, 16
      %v4770 = vrot.slane %v4768, 3
      %v4771 = vshll.u32 %v4676, 16
      %v4773 = vrot.slane %v4771, 4
      %v4774 = vor.u32 %v4770, %v4773
      %v4775 = vsel %vm3252, %v4766, %v4774
      %v4776 = vshrl.u32 %v4678, 16
      %v4778 = vrot.slane %v4776, 3
      %v4779 = vshll.u32 %v4678, 16
      %v4781 = vrot.slane %v4779, 4
      %v4782 = vor.u32 %v4778, %v4781
      %v4783 = vsel %vm3252, %v4774, %v4782
      %v4784 = vshrl.u32 %v4680, 16
      %v4786 = vrot.slane %v4784, 3
      %v4787 = vshll.u32 %v4680, 16
      %v4789 = vrot.slane %v4787, 4
      %v4790 = vor.u32 %v4786, %v4789
      %v4791 = vsel %vm3252, %v4782, %v4790
      %v4792 = vshrl.u32 %v4682, 16
      %v4794 = vrot.slane %v4792, 3
      %v4795 = vshll.u32 %v4682, 16
      %v4797 = vrot.slane %v4795, 4
      %v4798 = vor.u32 %v4794, %v4797
      %v4799 = vsel %vm3252, %v4790, %v4798
      %v4800 = vshrl.u32 %v4684, 16
      %v4802 = vrot.slane %v4800, 3
      %v4803 = vshll.u32 %v4684, 16
      %v4805 = vrot.slane %v4803, 4
      %v4806 = vor.u32 %v4802, %v4805
      %v4807 = vsel %vm3252, %v4798, %v4806
      %v4808 = vshrl.u32 %v4686, 16
      %v4810 = vrot.slane %v4808, 3
      %v4811 = vshll.u32 %v4686, 16
      %v4813 = vrot.slane %v4811, 4
      %v4814 = vor.u32 %v4810, %v4813
      %v4815 = vsel %vm3252, %v4806, %v4814
      %v4816 = vshrl.u32 %v4688, 16
      %v4818 = vrot.slane %v4816, 3
      %v4819 = vshll.u32 %v4688, 16
      %v4821 = vrot.slane %v4819, 4
      %v4822 = vor.u32 %v4818, %v4821
      %v4823 = vsel %vm3252, %v4814, %v4822
      %v4836 = vunpack.c.l.b16 %v804
      %v4837 = vunpack.c.l.b16 %v805
      %v4838 = vunpack.c.l.b16 %v806
      %v4839 = vunpack.c.l.b16 %v807
      %v4840 = vunpack.c.l.b16 %v808
      %v4841 = vunpack.c.l.b16 %v809
      %v4842 = vunpack.c.l.b16 %v810
      %v4843 = vunpack.c.l.b16 %v811
      %v4844 = vunpack.c.l.b16 %v812
      %v4845 = vunpack.c.l.b16 %v813
      %v4846 = vunpack.c.l.b16 %v814
      %v4847 = vunpack.c.l.b16 %v815
      %v4848 = vpack.c.b16 %v4837, %v4836
      %v4849 = vpack.c.b16 %v4839, %v4838
      %v4850 = vpack.c.b16 %v4841, %v4840
      %v4851 = vpack.c.b16 %v4843, %v4842
      %v4852 = vpack.c.b16 %v4845, %v4844
      %v4853 = vpack.c.b16 %v4847, %v4846
      %v4861 = vsel %vm3424, %v4703, 0
      %v4864 = vsel %vm3424, %v4711, 0
      %v4867 = vsel %vm3424, %v4719, 0
      %v4870 = vsel %vm3424, %v4727, 0
      %v4873 = vsel %vm3424, %v4735, 0
      %v4876 = vsel %vm3424, %v4743, 0
      %v4879 = vsel %vm3424, %v4751, 0
      %v4882 = vsel %vm3424, %v4759, 0
      %v4885 = vsel %vm3424, %v4767, 0
      %v4888 = vsel %vm3424, %v4775, 0
      %v4891 = vsel %vm3424, %v4783, 0
      %v4894 = vsel %vm3424, %v4791, 0
      %v4897 = vsel %vm3424, %v4799, 0
      %v4900 = vsel %vm3424, %v4807, 0
      %v4903 = vsel %vm3424, %v4815, 0
      %v4906 = vsel %vm3424, %v4823, 0
      %4908 = vmatprep.subr.bf16.mxu0 0
      %4909 = vmatpush1.bf16.msra.mxu0 0
      %4910 = vmatprep.subr.bf16.mxu0 0
      %4911 = vmatpush1.bf16.msra.mxu0 0
      %4912 = vmatprep.subr.bf16.mxu0 0
      %4913 = vmatpush1.bf16.msra.mxu0 %v4853
      %4914 = vmatprep.subr.bf16.mxu0 0
      %4915 = vmatpush1.bf16.msra.mxu0 %v4852
      %4916 = vmatprep.subr.bf16.mxu0 0
      %4917 = vmatpush1.bf16.msra.mxu0 %v4851
      %4918 = vmatprep.subr.bf16.mxu0 0
      %4919 = vmatpush1.bf16.msra.mxu0 %v4850
      %4920 = vmatprep.subr.bf16.mxu0 0
      %4921 = vmatpush1.bf16.msra.mxu0 %v4849
      %4922 = vmatprep.subr.bf16.mxu0 0
      %4923 = vmatpush1.bf16.msra.mxu0 %v4848
      %4924 = vmatprep.subr.bf16.mxu0 0
      %4925 = vmatpush2.bf16.msra.mxu0 0
      %4926 = vmatprep.subr.bf16.mxu0 0
      %4927 = vmatpush2.bf16.msra.mxu0 0
      %4928 = vmatprep.subr.bf16.mxu0 0
      %4929 = vmatpush2.bf16.msra.mxu0 0
      %4930 = vmatprep.subr.bf16.mxu0 0
      %4931 = vmatpush2.bf16.msra.mxu0 0
      %4932 = vmatprep.subr.bf16.mxu0 0
      %4933 = vmatpush2.bf16.msra.mxu0 0
      %4934 = vmatprep.subr.bf16.mxu0 0
      %4935 = vmatpush2.bf16.msra.mxu0 0
      %4936 = vmatprep.subr.bf16.mxu0 0
      %4937 = vmatpush2.bf16.msra.mxu0 0
      %4938 = vmatprep.subr.bf16.mxu0 0
      %4939 = vmatpush2.bf16.msra.mxu0 0
      %4940 = vmatprep.mubr.bf16.mxu0 0
      %4941 = vmatmul.mubr.bf16.gmra.mxu0 %v4861
      %v4942 = vpop.f32.mrf.mxu0
      %v4943 = vadd.f32 0.0, %v4942
      %v4944 = vpop.f32.mrf.mxu0
      %v4945 = vpop.f32.mrf.mxu0
      %v4946 = vadd.f32 0.0, %v4945
      %v4947 = vpop.f32.mrf.mxu0
      %4948 = vmatprep.mubr.bf16.mxu0 0
      %4949 = vmatmul.mubr.bf16.gmra.mxu0 %v4864
      %v4950 = vpop.f32.mrf.mxu0
      %v4951 = vadd.f32 0.0, %v4950
      %v4952 = vpop.f32.mrf.mxu0
      %v4953 = vpop.f32.mrf.mxu0
      %v4954 = vadd.f32 0.0, %v4953
      %v4955 = vpop.f32.mrf.mxu0
      %4956 = vmatprep.mubr.bf16.mxu0 0
      %4957 = vmatmul.mubr.bf16.gmra.mxu0 %v4867
      %v4958 = vpop.f32.mrf.mxu0
      %v4959 = vadd.f32 0.0, %v4958
      %v4960 = vpop.f32.mrf.mxu0
      %v4961 = vpop.f32.mrf.mxu0
      %v4962 = vadd.f32 0.0, %v4961
      %v4963 = vpop.f32.mrf.mxu0
      %4964 = vmatprep.mubr.bf16.mxu0 0
      %4965 = vmatmul.mubr.bf16.gmra.mxu0 %v4870
      %v4966 = vpop.f32.mrf.mxu0
      %v4967 = vadd.f32 0.0, %v4966
      %v4968 = vpop.f32.mrf.mxu0
      %v4969 = vpop.f32.mrf.mxu0
      %v4970 = vadd.f32 0.0, %v4969
      %v4971 = vpop.f32.mrf.mxu0
      %4972 = vmatprep.mubr.bf16.mxu0 0
      %4973 = vmatmul.mubr.bf16.gmra.mxu0 %v4873
      %v4974 = vpop.f32.mrf.mxu0
      %v4975 = vadd.f32 0.0, %v4974
      %v4976 = vpop.f32.mrf.mxu0
      %v4977 = vpop.f32.mrf.mxu0
      %v4978 = vadd.f32 0.0, %v4977
      %v4979 = vpop.f32.mrf.mxu0
      %4980 = vmatprep.mubr.bf16.mxu0 0
      %4981 = vmatmul.mubr.bf16.gmra.mxu0 %v4876
      %v4982 = vpop.f32.mrf.mxu0
      %v4983 = vadd.f32 0.0, %v4982
      %v4984 = vpop.f32.mrf.mxu0
      %v4985 = vpop.f32.mrf.mxu0
      %v4986 = vadd.f32 0.0, %v4985
      %v4987 = vpop.f32.mrf.mxu0
      %4988 = vmatprep.mubr.bf16.mxu0 0
      %4989 = vmatmul.mubr.bf16.gmra.mxu0 %v4879
      %v4990 = vpop.f32.mrf.mxu0
      %v4991 = vadd.f32 0.0, %v4990
      %v4992 = vpop.f32.mrf.mxu0
      %v4993 = vpop.f32.mrf.mxu0
      %v4994 = vadd.f32 0.0, %v4993
      %v4995 = vpop.f32.mrf.mxu0
      %4996 = vmatprep.mubr.bf16.mxu0 0
      %4997 = vmatmul.mubr.bf16.gmra.mxu0 %v4882
      %v4998 = vpop.f32.mrf.mxu0
      %v4999 = vadd.f32 0.0, %v4998
      %v5000 = vpop.f32.mrf.mxu0
      %v5001 = vpop.f32.mrf.mxu0
      %v5002 = vadd.f32 0.0, %v5001
      %v5003 = vpop.f32.mrf.mxu0
      %5004 = vmatprep.mubr.bf16.mxu0 0
      %5005 = vmatmul.mubr.bf16.gmra.mxu0 %v4885
      %v5006 = vpop.f32.mrf.mxu0
      %v5007 = vadd.f32 0.0, %v5006
      %v5008 = vpop.f32.mrf.mxu0
      %v5009 = vpop.f32.mrf.mxu0
      %v5010 = vadd.f32 0.0, %v5009
      %v5011 = vpop.f32.mrf.mxu0
      %5012 = vmatprep.mubr.bf16.mxu0 0
      %5013 = vmatmul.mubr.bf16.gmra.mxu0 %v4888
      %v5014 = vpop.f32.mrf.mxu0
      %v5015 = vadd.f32 0.0, %v5014
      %v5016 = vpop.f32.mrf.mxu0
      %v5017 = vpop.f32.mrf.mxu0
      %v5018 = vadd.f32 0.0, %v5017
      %v5019 = vpop.f32.mrf.mxu0
      %5020 = vmatprep.mubr.bf16.mxu0 0
      %5021 = vmatmul.mubr.bf16.gmra.mxu0 %v4891
      %v5022 = vpop.f32.mrf.mxu0
      %v5023 = vadd.f32 0.0, %v5022
      %v5024 = vpop.f32.mrf.mxu0
      %v5025 = vpop.f32.mrf.mxu0
      %v5026 = vadd.f32 0.0, %v5025
      %v5027 = vpop.f32.mrf.mxu0
      %5028 = vmatprep.mubr.bf16.mxu0 0
      %5029 = vmatmul.mubr.bf16.gmra.mxu0 %v4894
      %v5030 = vpop.f32.mrf.mxu0
      %v5031 = vadd.f32 0.0, %v5030
      %v5032 = vpop.f32.mrf.mxu0
      %v5033 = vpop.f32.mrf.mxu0
      %v5034 = vadd.f32 0.0, %v5033
      %v5035 = vpop.f32.mrf.mxu0
      %5036 = vmatprep.mubr.bf16.mxu0 0
      %5037 = vmatmul.mubr.bf16.gmra.mxu0 %v4897
      %v5038 = vpop.f32.mrf.mxu0
      %v5039 = vadd.f32 0.0, %v5038
      %v5040 = vpop.f32.mrf.mxu0
      %v5041 = vpop.f32.mrf.mxu0
      %v5042 = vadd.f32 0.0, %v5041
      %v5043 = vpop.f32.mrf.mxu0
      %5044 = vmatprep.mubr.bf16.mxu0 0
      %5045 = vmatmul.mubr.bf16.gmra.mxu0 %v4900
      %v5046 = vpop.f32.mrf.mxu0
      %v5047 = vadd.f32 0.0, %v5046
      %v5048 = vpop.f32.mrf.mxu0
      %v5049 = vpop.f32.mrf.mxu0
      %v5050 = vadd.f32 0.0, %v5049
      %v5051 = vpop.f32.mrf.mxu0
      %5052 = vmatprep.mubr.bf16.mxu0 0
      %5053 = vmatmul.mubr.bf16.gmra.mxu0 %v4903
      %v5054 = vpop.f32.mrf.mxu0
      %v5055 = vadd.f32 0.0, %v5054
      %v5056 = vpop.f32.mrf.mxu0
      %v5057 = vpop.f32.mrf.mxu0
      %v5058 = vadd.f32 0.0, %v5057
      %v5059 = vpop.f32.mrf.mxu0
      %5060 = vmatprep.mubr.bf16.mxu0 0
      %5061 = vmatmul.mubr.bf16.gmra.mxu0 %v4906
      %v5062 = vpop.f32.mrf.mxu0
      %v5063 = vadd.f32 0.0, %v5062
      %v5064 = vpop.f32.mrf.mxu0
      %v5065 = vpop.f32.mrf.mxu0
      %v5066 = vadd.f32 0.0, %v5065
      %v5067 = vpop.f32.mrf.mxu0
      %5068 = vdwg.mxu0
      %v5069 = vadd.f32 %v3888, %v4943
      %v5070 = vadd.f32 %v3891, %v4946
      %v5071 = vadd.f32 %v3896, %v4951
      %v5072 = vadd.f32 %v3899, %v4954
      %v5073 = vadd.f32 %v3904, %v4959
      %v5074 = vadd.f32 %v3907, %v4962
      %v5075 = vadd.f32 %v3912, %v4967
      %v5076 = vadd.f32 %v3915, %v4970
      %v5077 = vadd.f32 %v3920, %v4975
      %v5078 = vadd.f32 %v3923, %v4978
      %v5079 = vadd.f32 %v3928, %v4983
      %v5080 = vadd.f32 %v3931, %v4986
      %v5081 = vadd.f32 %v3936, %v4991
      %v5082 = vadd.f32 %v3939, %v4994
      %v5083 = vadd.f32 %v3944, %v4999
      %v5084 = vadd.f32 %v3947, %v5002
      %v5085 = vadd.f32 %v3952, %v5007
      %v5086 = vadd.f32 %v3955, %v5010
      %v5087 = vadd.f32 %v3960, %v5015
      %v5088 = vadd.f32 %v3963, %v5018
      %v5089 = vadd.f32 %v3968, %v5023
      %v5090 = vadd.f32 %v3971, %v5026
      %v5091 = vadd.f32 %v3976, %v5031
      %v5092 = vadd.f32 %v3979, %v5034
      %v5093 = vadd.f32 %v3984, %v5039
      %v5094 = vadd.f32 %v3987, %v5042
      %v5095 = vadd.f32 %v3992, %v5047
      %v5096 = vadd.f32 %v3995, %v5050
      %v5097 = vadd.f32 %v4000, %v5055
      %v5098 = vadd.f32 %v4003, %v5058
      %v5099 = vadd.f32 %v4008, %v5063
      %v5100 = vadd.f32 %v4011, %v5066
      %v5102 = vlaneseq
      %v5103 = vshrl.u32 %v5102, 7
      %v5104 = vsub.s32 0, %v5103
      %v5105 = vrot.slane %v829, %v5104
      %v5107 = vadd.f32 %v5069, %v5105
      %v5108 = vadd.f32 %v5070, %v5105
      %v5109 = vadd.f32 %v5071, %v5105
      %v5110 = vadd.f32 %v5072, %v5105
      %v5111 = vadd.f32 %v5073, %v5105
      %v5112 = vadd.f32 %v5074, %v5105
      %v5113 = vadd.f32 %v5075, %v5105
      %v5114 = vadd.f32 %v5076, %v5105
      %v5115 = vadd.f32 %v5077, %v5105
      %v5116 = vadd.f32 %v5078, %v5105
      %v5117 = vadd.f32 %v5079, %v5105
      %v5118 = vadd.f32 %v5080, %v5105
      %v5119 = vadd.f32 %v5081, %v5105
      %v5120 = vadd.f32 %v5082, %v5105
      %v5121 = vadd.f32 %v5083, %v5105
      %v5122 = vadd.f32 %v5084, %v5105
      %v5123 = vadd.f32 %v5085, %v5105
      %v5124 = vadd.f32 %v5086, %v5105
      %v5125 = vadd.f32 %v5087, %v5105
      %v5126 = vadd.f32 %v5088, %v5105
      %v5127 = vadd.f32 %v5089, %v5105
      %v5128 = vadd.f32 %v5090, %v5105
      %v5129 = vadd.f32 %v5091, %v5105
      %v5130 = vadd.f32 %v5092, %v5105
      %v5131 = vadd.f32 %v5093, %v5105
      %v5132 = vadd.f32 %v5094, %v5105
      %v5133 = vadd.f32 %v5095, %v5105
      %v5134 = vadd.f32 %v5096, %v5105
      %v5135 = vadd.f32 %v5097, %v5105
      %v5136 = vadd.f32 %v5098, %v5105
      %v5137 = vadd.f32 %v5099, %v5105
      %v5138 = vadd.f32 %v5100, %v5105
      %v5139 = vmax.f32 %v5107, 0.0
      %v5140 = vmax.f32 %v5108, 0.0
      %v5141 = vmax.f32 %v5109, 0.0
      %v5142 = vmax.f32 %v5110, 0.0
      %v5143 = vmax.f32 %v5111, 0.0
      %v5144 = vmax.f32 %v5112, 0.0
      %v5145 = vmax.f32 %v5113, 0.0
      %v5146 = vmax.f32 %v5114, 0.0
      %v5147 = vmax.f32 %v5115, 0.0
      %v5148 = vmax.f32 %v5116, 0.0
      %v5149 = vmax.f32 %v5117, 0.0
      %v5150 = vmax.f32 %v5118, 0.0
      %v5151 = vmax.f32 %v5119, 0.0
      %v5152 = vmax.f32 %v5120, 0.0
      %v5153 = vmax.f32 %v5121, 0.0
      %v5154 = vmax.f32 %v5122, 0.0
      %v5155 = vmax.f32 %v5123, 0.0
      %v5156 = vmax.f32 %v5124, 0.0
      %v5157 = vmax.f32 %v5125, 0.0
      %v5158 = vmax.f32 %v5126, 0.0
      %v5159 = vmax.f32 %v5127, 0.0
      %v5160 = vmax.f32 %v5128, 0.0
      %v5161 = vmax.f32 %v5129, 0.0
      %v5162 = vmax.f32 %v5130, 0.0
      %v5163 = vmax.f32 %v5131, 0.0
      %v5164 = vmax.f32 %v5132, 0.0
      %v5165 = vmax.f32 %v5133, 0.0
      %v5166 = vmax.f32 %v5134, 0.0
      %v5167 = vmax.f32 %v5135, 0.0
      %v5168 = vmax.f32 %v5136, 0.0
      %v5169 = vmax.f32 %v5137, 0.0
      %v5170 = vmax.f32 %v5138, 0.0
      %v5171 = vpack.c.bf16 %v5140, %v5139
      %v5172 = vpack.c.bf16 %v5142, %v5141
      %v5173 = vpack.c.bf16 %v5144, %v5143
      %v5174 = vpack.c.bf16 %v5146, %v5145
      %v5175 = vpack.c.bf16 %v5148, %v5147
      %v5176 = vpack.c.bf16 %v5150, %v5149
      %v5177 = vpack.c.bf16 %v5152, %v5151
      %v5178 = vpack.c.bf16 %v5154, %v5153
      %v5179 = vpack.c.bf16 %v5156, %v5155
      %v5180 = vpack.c.bf16 %v5158, %v5157
      %v5181 = vpack.c.bf16 %v5160, %v5159
      %v5182 = vpack.c.bf16 %v5162, %v5161
      %v5183 = vpack.c.bf16 %v5164, %v5163
      %v5184 = vpack.c.bf16 %v5166, %v5165
      %v5185 = vpack.c.bf16 %v5168, %v5167
      %v5186 = vpack.c.bf16 %v5170, %v5169
      %5187 = vrot.lane.b32.xlu0 %v933, 32
      %v5188 = vpop.permute.xlu0 %5187
      %5189 = vrot.lane.b32.xlu0 %v934, 32
      %v5190 = vpop.permute.xlu0 %5189
      %5191 = vrot.lane.b32.xlu0 %v935, 32
      %v5192 = vpop.permute.xlu0 %5191
      %5193 = vrot.lane.b32.xlu0 %v936, 32
      %v5194 = vpop.permute.xlu0 %5193
      %5195 = vrot.lane.b32.xlu0 %v937, 32
      %v5196 = vpop.permute.xlu0 %5195
      %5197 = vrot.lane.b32.xlu0 %v938, 32
      %v5198 = vpop.permute.xlu0 %5197
      %5199 = vrot.lane.b32.xlu0 %v939, 32
      %v5200 = vpop.permute.xlu0 %5199
      %5201 = vrot.lane.b32.xlu0 %v940, 32
      %v5202 = vpop.permute.xlu0 %5201
      %5203 = vrot.lane.b32.xlu0 %v941, 32
      %v5204 = vpop.permute.xlu0 %5203
      %5205 = vrot.lane.b32.xlu0 %v942, 32
      %v5206 = vpop.permute.xlu0 %5205
      %5207 = vrot.lane.b32.xlu0 %v943, 32
      %v5208 = vpop.permute.xlu0 %5207
      %5209 = vrot.lane.b32.xlu0 %v944, 32
      %v5210 = vpop.permute.xlu0 %5209
      %5211 = vrot.lane.b32.xlu0 %v945, 32
      %v5212 = vpop.permute.xlu0 %5211
      %5213 = vrot.lane.b32.xlu0 %v946, 32
      %v5214 = vpop.permute.xlu0 %5213
      %5215 = vrot.lane.b32.xlu0 %v947, 32
      %v5216 = vpop.permute.xlu0 %5215
      %5217 = vrot.lane.b32.xlu0 %v948, 32
      %v5218 = vpop.permute.xlu0 %5217
      %v5221 = vsel %vm2772, %v5171, %v5188
      %v5224 = vsel %vm2772, %v5172, %v5190
      %v5227 = vsel %vm2772, %v5173, %v5192
      %v5230 = vsel %vm2772, %v5174, %v5194
      %v5233 = vsel %vm2772, %v5175, %v5196
      %v5236 = vsel %vm2772, %v5176, %v5198
      %v5239 = vsel %vm2772, %v5177, %v5200
      %v5242 = vsel %vm2772, %v5178, %v5202
      %v5245 = vsel %vm2772, %v5179, %v5204
      %v5248 = vsel %vm2772, %v5180, %v5206
      %v5251 = vsel %vm2772, %v5181, %v5208
      %v5254 = vsel %vm2772, %v5182, %v5210
      %v5257 = vsel %vm2772, %v5183, %v5212
      %v5260 = vsel %vm2772, %v5184, %v5214
      %v5263 = vsel %vm2772, %v5185, %v5216
      %v5266 = vsel %vm2772, %v5186, %v5218
      %v5268 = vlaneseq
      %v5269 = vshrl.u32 %v5268, 7
      %v5270 = vsub.s32 0, %v5269
      %v5271 = vrot.slane %v830, %v5270
      %v5285 = vunpack.c.l.b16 %v816
      %v5286 = vunpack.c.l.b16 %v817
      %v5287 = vunpack.c.l.b16 %v818
      %v5288 = vunpack.c.l.b16 %v819
      %v5289 = vunpack.c.l.b16 %v820
      %v5290 = vunpack.c.l.b16 %v821
      %v5291 = vunpack.c.l.b16 %v822
      %v5292 = vunpack.c.l.b16 %v823
      %v5293 = vunpack.c.l.b16 %v824
      %v5294 = vunpack.c.l.b16 %v825
      %v5295 = vunpack.c.l.b16 %v826
      %v5296 = vunpack.c.l.b16 %v827
      %v5297 = vpack.c.b16 %v5286, %v5285
      %v5298 = vpack.c.b16 %v5288, %v5287
      %v5299 = vpack.c.b16 %v5290, %v5289
      %v5300 = vpack.c.b16 %v5292, %v5291
      %v5301 = vpack.c.b16 %v5294, %v5293
      %v5302 = vpack.c.b16 %v5296, %v5295
      %v5309 = vsel %vm3424, %v5221, 0
      %v5311 = vsel %vm3424, %v5224, 0
      %v5313 = vsel %vm3424, %v5227, 0
      %v5315 = vsel %vm3424, %v5230, 0
      %v5317 = vsel %vm3424, %v5233, 0
      %v5319 = vsel %vm3424, %v5236, 0
      %v5321 = vsel %vm3424, %v5239, 0
      %v5323 = vsel %vm3424, %v5242, 0
      %v5325 = vsel %vm3424, %v5245, 0
      %v5327 = vsel %vm3424, %v5248, 0
      %v5329 = vsel %vm3424, %v5251, 0
      %v5331 = vsel %vm3424, %v5254, 0
      %v5333 = vsel %vm3424, %v5257, 0
      %v5335 = vsel %vm3424, %v5260, 0
      %v5337 = vsel %vm3424, %v5263, 0
      %v5339 = vsel %vm3424, %v5266, 0
      %5341 = vmatprep.subr.bf16.mxu0 0
      %5342 = vmatpush1.bf16.msra.mxu0 0
      %5343 = vmatprep.subr.bf16.mxu0 0
      %5344 = vmatpush1.bf16.msra.mxu0 0
      %5345 = vmatprep.subr.bf16.mxu0 0
      %5346 = vmatpush1.bf16.msra.mxu0 %v5302
      %5347 = vmatprep.subr.bf16.mxu0 0
      %5348 = vmatpush1.bf16.msra.mxu0 %v5301
      %5349 = vmatprep.subr.bf16.mxu0 0
      %5350 = vmatpush1.bf16.msra.mxu0 %v5300
      %5351 = vmatprep.subr.bf16.mxu0 0
      %5352 = vmatpush1.bf16.msra.mxu0 %v5299
      %5353 = vmatprep.subr.bf16.mxu0 0
      %5354 = vmatpush1.bf16.msra.mxu0 %v5298
      %5355 = vmatprep.subr.bf16.mxu0 0
      %5356 = vmatpush1.bf16.msra.mxu0 %v5297
      %5357 = vmatprep.subr.bf16.mxu0 0
      %5358 = vmatpush2.bf16.msra.mxu0 0
      %5359 = vmatprep.subr.bf16.mxu0 0
      %5360 = vmatpush2.bf16.msra.mxu0 0
      %5361 = vmatprep.subr.bf16.mxu0 0
      %5362 = vmatpush2.bf16.msra.mxu0 0
      %5363 = vmatprep.subr.bf16.mxu0 0
      %5364 = vmatpush2.bf16.msra.mxu0 0
      %5365 = vmatprep.subr.bf16.mxu0 0
      %5366 = vmatpush2.bf16.msra.mxu0 0
      %5367 = vmatprep.subr.bf16.mxu0 0
      %5368 = vmatpush2.bf16.msra.mxu0 0
      %5369 = vmatprep.subr.bf16.mxu0 0
      %5370 = vmatpush2.bf16.msra.mxu0 0
      %5371 = vmatprep.subr.bf16.mxu0 0
      %5372 = vmatpush2.bf16.msra.mxu0 0
      %5373 = vmatprep.mubr.bf16.mxu0 0
      %5374 = vmatmul.mubr.bf16.gmra.mxu0 %v5309
      %v5375 = vpop.f32.mrf.mxu0
      %v5376 = vadd.f32 %v5271, %v5375
      %v5377 = vpop.f32.mrf.mxu0
      %v5378 = vpop.f32.mrf.mxu0
      %v5379 = vadd.f32 %v5271, %v5378
      %v5380 = vpop.f32.mrf.mxu0
      %5381 = vmatprep.mubr.bf16.mxu0 0
      %5382 = vmatmul.mubr.bf16.gmra.mxu0 %v5311
      %v5383 = vpop.f32.mrf.mxu0
      %v5384 = vadd.f32 %v5271, %v5383
      %v5385 = vpop.f32.mrf.mxu0
      %v5386 = vpop.f32.mrf.mxu0
      %v5387 = vadd.f32 %v5271, %v5386
      %v5388 = vpop.f32.mrf.mxu0
      %5389 = vmatprep.mubr.bf16.mxu0 0
      %5390 = vmatmul.mubr.bf16.gmra.mxu0 %v5313
      %v5391 = vpop.f32.mrf.mxu0
      %v5392 = vadd.f32 %v5271, %v5391
      %v5393 = vpop.f32.mrf.mxu0
      %v5394 = vpop.f32.mrf.mxu0
      %v5395 = vadd.f32 %v5271, %v5394
      %v5396 = vpop.f32.mrf.mxu0
      %5397 = vmatprep.mubr.bf16.mxu0 0
      %5398 = vmatmul.mubr.bf16.gmra.mxu0 %v5315
      %v5399 = vpop.f32.mrf.mxu0
      %v5400 = vadd.f32 %v5271, %v5399
      %v5401 = vpop.f32.mrf.mxu0
      %v5402 = vpop.f32.mrf.mxu0
      %v5403 = vadd.f32 %v5271, %v5402
      %v5404 = vpop.f32.mrf.mxu0
      %5405 = vmatprep.mubr.bf16.mxu0 0
      %5406 = vmatmul.mubr.bf16.gmra.mxu0 %v5317
      %v5407 = vpop.f32.mrf.mxu0
      %v5408 = vadd.f32 %v5271, %v5407
      %v5409 = vpop.f32.mrf.mxu0
      %v5410 = vpop.f32.mrf.mxu0
      %v5411 = vadd.f32 %v5271, %v5410
      %v5412 = vpop.f32.mrf.mxu0
      %5413 = vmatprep.mubr.bf16.mxu0 0
      %5414 = vmatmul.mubr.bf16.gmra.mxu0 %v5319
      %v5415 = vpop.f32.mrf.mxu0
      %v5416 = vadd.f32 %v5271, %v5415
      %v5417 = vpop.f32.mrf.mxu0
      %v5418 = vpop.f32.mrf.mxu0
      %v5419 = vadd.f32 %v5271, %v5418
      %v5420 = vpop.f32.mrf.mxu0
      %5421 = vmatprep.mubr.bf16.mxu0 0
      %5422 = vmatmul.mubr.bf16.gmra.mxu0 %v5321
      %v5423 = vpop.f32.mrf.mxu0
      %v5424 = vadd.f32 %v5271, %v5423
      %v5425 = vpop.f32.mrf.mxu0
      %v5426 = vpop.f32.mrf.mxu0
      %v5427 = vadd.f32 %v5271, %v5426
      %v5428 = vpop.f32.mrf.mxu0
      %5429 = vmatprep.mubr.bf16.mxu0 0
      %5430 = vmatmul.mubr.bf16.gmra.mxu0 %v5323
      %v5431 = vpop.f32.mrf.mxu0
      %v5432 = vadd.f32 %v5271, %v5431
      %v5433 = vpop.f32.mrf.mxu0
      %v5434 = vpop.f32.mrf.mxu0
      %v5435 = vadd.f32 %v5271, %v5434
      %v5436 = vpop.f32.mrf.mxu0
      %5437 = vmatprep.mubr.bf16.mxu0 0
      %5438 = vmatmul.mubr.bf16.gmra.mxu0 %v5325
      %v5439 = vpop.f32.mrf.mxu0
      %v5440 = vadd.f32 %v5271, %v5439
      %v5441 = vpop.f32.mrf.mxu0
      %v5442 = vpop.f32.mrf.mxu0
      %v5443 = vadd.f32 %v5271, %v5442
      %v5444 = vpop.f32.mrf.mxu0
      %5445 = vmatprep.mubr.bf16.mxu0 0
      %5446 = vmatmul.mubr.bf16.gmra.mxu0 %v5327
      %v5447 = vpop.f32.mrf.mxu0
      %v5448 = vadd.f32 %v5271, %v5447
      %v5449 = vpop.f32.mrf.mxu0
      %v5450 = vpop.f32.mrf.mxu0
      %v5451 = vadd.f32 %v5271, %v5450
      %v5452 = vpop.f32.mrf.mxu0
      %5453 = vmatprep.mubr.bf16.mxu0 0
      %5454 = vmatmul.mubr.bf16.gmra.mxu0 %v5329
      %v5455 = vpop.f32.mrf.mxu0
      %v5456 = vadd.f32 %v5271, %v5455
      %v5457 = vpop.f32.mrf.mxu0
      %v5458 = vpop.f32.mrf.mxu0
      %v5459 = vadd.f32 %v5271, %v5458
      %v5460 = vpop.f32.mrf.mxu0
      %5461 = vmatprep.mubr.bf16.mxu0 0
      %5462 = vmatmul.mubr.bf16.gmra.mxu0 %v5331
      %v5463 = vpop.f32.mrf.mxu0
      %v5464 = vadd.f32 %v5271, %v5463
      %v5465 = vpop.f32.mrf.mxu0
      %v5466 = vpop.f32.mrf.mxu0
      %v5467 = vadd.f32 %v5271, %v5466
      %v5468 = vpop.f32.mrf.mxu0
      %5469 = vmatprep.mubr.bf16.mxu0 0
      %5470 = vmatmul.mubr.bf16.gmra.mxu0 %v5333
      %v5471 = vpop.f32.mrf.mxu0
      %v5472 = vadd.f32 %v5271, %v5471
      %v5473 = vpop.f32.mrf.mxu0
      %v5474 = vpop.f32.mrf.mxu0
      %v5475 = vadd.f32 %v5271, %v5474
      %v5476 = vpop.f32.mrf.mxu0
      %5477 = vmatprep.mubr.bf16.mxu0 0
      %5478 = vmatmul.mubr.bf16.gmra.mxu0 %v5335
      %v5479 = vpop.f32.mrf.mxu0
      %v5480 = vadd.f32 %v5271, %v5479
      %v5481 = vpop.f32.mrf.mxu0
      %v5482 = vpop.f32.mrf.mxu0
      %v5483 = vadd.f32 %v5271, %v5482
      %v5484 = vpop.f32.mrf.mxu0
      %5485 = vmatprep.mubr.bf16.mxu0 0
      %5486 = vmatmul.mubr.bf16.gmra.mxu0 %v5337
      %v5487 = vpop.f32.mrf.mxu0
      %v5488 = vadd.f32 %v5271, %v5487
      %v5489 = vpop.f32.mrf.mxu0
      %v5490 = vpop.f32.mrf.mxu0
      %v5491 = vadd.f32 %v5271, %v5490
      %v5492 = vpop.f32.mrf.mxu0
      %5493 = vmatprep.mubr.bf16.mxu0 0
      %5494 = vmatmul.mubr.bf16.gmra.mxu0 %v5339
      %v5495 = vpop.f32.mrf.mxu0
      %v5496 = vadd.f32 %v5271, %v5495
      %v5497 = vpop.f32.mrf.mxu0
      %v5498 = vpop.f32.mrf.mxu0
      %v5499 = vadd.f32 %v5271, %v5498
      %v5500 = vpop.f32.mrf.mxu0
      %5501 = vdwg.mxu0
      %v5502 = vmax.f32 %v5376, 0.0
      %v5503 = vmax.f32 %v5379, 0.0
      %v5504 = vmax.f32 %v5384, 0.0
      %v5505 = vmax.f32 %v5387, 0.0
      %v5506 = vmax.f32 %v5392, 0.0
      %v5507 = vmax.f32 %v5395, 0.0
      %v5508 = vmax.f32 %v5400, 0.0
      %v5509 = vmax.f32 %v5403, 0.0
      %v5510 = vmax.f32 %v5408, 0.0
      %v5511 = vmax.f32 %v5411, 0.0
      %v5512 = vmax.f32 %v5416, 0.0
      %v5513 = vmax.f32 %v5419, 0.0
      %v5514 = vmax.f32 %v5424, 0.0
      %v5515 = vmax.f32 %v5427, 0.0
      %v5516 = vmax.f32 %v5432, 0.0
      %v5517 = vmax.f32 %v5435, 0.0
      %v5518 = vmax.f32 %v5440, 0.0
      %v5519 = vmax.f32 %v5443, 0.0
      %v5520 = vmax.f32 %v5448, 0.0
      %v5521 = vmax.f32 %v5451, 0.0
      %v5522 = vmax.f32 %v5456, 0.0
      %v5523 = vmax.f32 %v5459, 0.0
      %v5524 = vmax.f32 %v5464, 0.0
      %v5525 = vmax.f32 %v5467, 0.0
      %v5526 = vmax.f32 %v5472, 0.0
      %v5527 = vmax.f32 %v5475, 0.0
      %v5528 = vmax.f32 %v5480, 0.0
      %v5529 = vmax.f32 %v5483, 0.0
      %v5530 = vmax.f32 %v5488, 0.0
      %v5531 = vmax.f32 %v5491, 0.0
      %v5532 = vmax.f32 %v5496, 0.0
      %v5533 = vmax.f32 %v5499, 0.0
      %v5534 = vpack.c.bf16 %v5503, %v5502
      %v5535 = vpack.c.bf16 %v5505, %v5504
      %v5536 = vpack.c.bf16 %v5507, %v5506
      %v5537 = vpack.c.bf16 %v5509, %v5508
      %v5538 = vpack.c.bf16 %v5511, %v5510
      %v5539 = vpack.c.bf16 %v5513, %v5512
      %v5540 = vpack.c.bf16 %v5515, %v5514
      %v5541 = vpack.c.bf16 %v5517, %v5516
      %v5542 = vpack.c.bf16 %v5519, %v5518
      %v5543 = vpack.c.bf16 %v5521, %v5520
      %v5544 = vpack.c.bf16 %v5523, %v5522
      %v5545 = vpack.c.bf16 %v5525, %v5524
      %v5546 = vpack.c.bf16 %v5527, %v5526
      %v5547 = vpack.c.bf16 %v5529, %v5528
      %v5548 = vpack.c.bf16 %v5531, %v5530
      %v5549 = vpack.c.bf16 %v5533, %v5532
      %v5566 = vunpack.c.l.b16 %v5534
      %v5567 = vunpack.c.h.b16 %v5534
      %v5568 = vunpack.c.l.b16 %v5535
      %v5569 = vunpack.c.h.b16 %v5535
      %v5570 = vunpack.c.l.b16 %v5536
      %v5571 = vunpack.c.h.b16 %v5536
      %v5572 = vunpack.c.l.b16 %v5537
      %v5573 = vunpack.c.h.b16 %v5537
      %v5574 = vunpack.c.l.b16 %v5538
      %v5575 = vunpack.c.h.b16 %v5538
      %v5576 = vunpack.c.l.b16 %v5539
      %v5577 = vunpack.c.h.b16 %v5539
      %v5578 = vunpack.c.l.b16 %v5540
      %v5579 = vunpack.c.h.b16 %v5540
      %v5580 = vunpack.c.l.b16 %v5541
      %v5581 = vunpack.c.h.b16 %v5541
      %v5582 = vunpack.c.l.b16 %v5542
      %v5583 = vunpack.c.h.b16 %v5542
      %v5584 = vunpack.c.l.b16 %v5543
      %v5585 = vunpack.c.h.b16 %v5543
      %v5586 = vunpack.c.l.b16 %v5544
      %v5587 = vunpack.c.h.b16 %v5544
      %v5588 = vunpack.c.l.b16 %v5545
      %v5589 = vunpack.c.h.b16 %v5545
      %v5590 = vunpack.c.l.b16 %v5546
      %v5591 = vunpack.c.h.b16 %v5546
      %v5592 = vunpack.c.l.b16 %v5547
      %v5593 = vunpack.c.h.b16 %v5547
      %v5594 = vunpack.c.l.b16 %v5548
      %v5595 = vunpack.c.h.b16 %v5548
      %v5596 = vunpack.c.l.b16 %v5549
      %v5597 = vunpack.c.h.b16 %v5549
      %v5598 = vpack.c.b16 %v5566, %v5566
      %v5599 = vpack.c.b16 %v5567, %v5567
      %v5600 = vpack.c.b16 %v5568, %v5568
      %v5601 = vpack.c.b16 %v5569, %v5569
      %v5602 = vpack.c.b16 %v5570, %v5570
      %v5603 = vpack.c.b16 %v5571, %v5571
      %v5604 = vpack.c.b16 %v5572, %v5572
      %v5605 = vpack.c.b16 %v5573, %v5573
      %v5606 = vpack.c.b16 %v5574, %v5574
      %v5607 = vpack.c.b16 %v5575, %v5575
      %v5608 = vpack.c.b16 %v5576, %v5576
      %v5609 = vpack.c.b16 %v5577, %v5577
      %v5610 = vpack.c.b16 %v5578, %v5578
      %v5611 = vpack.c.b16 %v5579, %v5579
      %v5612 = vpack.c.b16 %v5580, %v5580
      %v5613 = vpack.c.b16 %v5581, %v5581
      %v5614 = vpack.c.b16 %v5582, %v5582
      %v5615 = vpack.c.b16 %v5583, %v5583
      %v5616 = vpack.c.b16 %v5584, %v5584
      %v5617 = vpack.c.b16 %v5585, %v5585
      %v5618 = vpack.c.b16 %v5586, %v5586
      %v5619 = vpack.c.b16 %v5587, %v5587
      %v5620 = vpack.c.b16 %v5588, %v5588
      %v5621 = vpack.c.b16 %v5589, %v5589
      %v5622 = vpack.c.b16 %v5590, %v5590
      %v5623 = vpack.c.b16 %v5591, %v5591
      %v5624 = vpack.c.b16 %v5592, %v5592
      %v5625 = vpack.c.b16 %v5593, %v5593
      %v5626 = vpack.c.b16 %v5594, %v5594
      %v5627 = vpack.c.b16 %v5595, %v5595
      %v5628 = vpack.c.b16 %v5596, %v5596
      %v5629 = vpack.c.b16 %v5597, %v5597
      %5662 = vst [vmem:[%s278] sm:$0xf] %v5598
      %5663 = vst [vmem:[%s278 + $0x4] sm:$0xf] %v5599
      %5664 = vst [vmem:[%s278 + $0x8] sm:$0xf] %v5600
      %5665 = vst [vmem:[%s278 + $0xc] sm:$0xf] %v5601
      %5666 = vst [vmem:[%s278 + $0x10] sm:$0xf] %v5602
      %5667 = vst [vmem:[%s278 + $0x14] sm:$0xf] %v5603
      %5668 = vst [vmem:[%s278 + $0x18] sm:$0xf] %v5604
      %5669 = vst [vmem:[%s278 + $0x1c] sm:$0xf] %v5605
      %5670 = vst [vmem:[%s278 + $0x20] sm:$0xf] %v5606
      %5671 = vst [vmem:[%s278 + $0x24] sm:$0xf] %v5607
      %5672 = vst [vmem:[%s278 + $0x28] sm:$0xf] %v5608
      %5673 = vst [vmem:[%s278 + $0x2c] sm:$0xf] %v5609
      %5674 = vst [vmem:[%s278 + $0x30] sm:$0xf] %v5610
      %5675 = vst [vmem:[%s278 + $0x34] sm:$0xf] %v5611
      %5676 = vst [vmem:[%s278 + $0x38] sm:$0xf] %v5612
      %5677 = vst [vmem:[%s278 + $0x3c] sm:$0xf] %v5613
      %5678 = vst [vmem:[%s278 + $0x40] sm:$0xf] %v5614
      %5679 = vst [vmem:[%s278 + $0x44] sm:$0xf] %v5615
      %5680 = vst [vmem:[%s278 + $0x48] sm:$0xf] %v5616
      %5681 = vst [vmem:[%s278 + $0x4c] sm:$0xf] %v5617
      %5682 = vst [vmem:[%s278 + $0x50] sm:$0xf] %v5618
      %5683 = vst [vmem:[%s278 + $0x54] sm:$0xf] %v5619
      %5684 = vst [vmem:[%s278 + $0x58] sm:$0xf] %v5620
      %5685 = vst [vmem:[%s278 + $0x5c] sm:$0xf] %v5621
      %5686 = vst [vmem:[%s278 + $0x60] sm:$0xf] %v5622
      %5687 = vst [vmem:[%s278 + $0x64] sm:$0xf] %v5623
      %5688 = vst [vmem:[%s278 + $0x68] sm:$0xf] %v5624
      %5689 = vst [vmem:[%s278 + $0x6c] sm:$0xf] %v5625
      %5690 = vst [vmem:[%s278 + $0x70] sm:$0xf] %v5626
      %5691 = vst [vmem:[%s278 + $0x74] sm:$0xf] %v5627
      %5692 = vst [vmem:[%s278 + $0x78] sm:$0xf] %v5628
      %5693 = vst [vmem:[%s278 + $0x7c] sm:$0xf] %v5629
      %p5694 = scmp.lt.s32.totalorder %s18, 1
      %s5695 = scalar_select %p5694, %s18, 1
      %s5696 = smul.addr %s5695, 32
      %s5697 = smul.addr %s5696, 4
      %s5698 = scalar_lea.vmem %s7, %s5697
      // Predicated region
      $region49: #{forward.2} parent=47 // pred_check
        %p5699 = pneg %p188
      $region50: #{forward.2} parent=47 // pred_check_branch
        %5701 = sbr.rel (%p5699) target = $region52
      $region51: #{forward.2} parent=47 // pred_region
        _
      $region52: #{forward.2} parent=47 // pred_fallthru
        _
    $region48: #{forward.2} parent=5 // pred_fallthru
      _
    %p5702 = scmp.le.s32.totalorder 2, %s13
    // Predicated region
    $region53: #{forward.2} parent=5 // pred_check
      %p5703 = pneg %p5702
    $region54: #{forward.2} parent=5 // pred_check_branch
      %5705 = sbr.rel (%p5703) target = $region56
    $region55: #{forward.2} parent=5 // pred_region
      %s5706 = ssub.s32 %s13, 2
      // Predicated region
      $region57: #{forward.2} parent=55 // pred_check
        %p5707 = pneg %p194
      $region58: #{forward.2} parent=55 // pred_check_branch
        %5709 = sbr.rel (%p5707) target = $region60
      $region59: #{forward.2} parent=55 // pred_region
        %p5710 = scmp.lt.s32.totalorder %s19, 1
        %s5711 = scalar_select %p5710, %s19, 1
        %s5712 = smul.addr %s5711, 32
        %s5713 = smul.addr %s5712, 4
        %s5714 = scalar_lea.vmem %s7, %s5713
      $region60: #{forward.2} parent=55 // pred_fallthru
        _
    $region56: #{forward.2} parent=5 // pred_fallthru
      _
  $region6: #{forward.2} parent=0 // loop_footer
    %s17 = sadd.s32 1, %s13
  $region7: #{forward.2} parent=0 // loop_footer_branch
    %12 = sbr.rel target = $region3
  $region8: #{forward.2} parent=0 // loop_exit
    _

// kernel: forward.3
$region0: #{forward.3}
  #allocation0 [shape = 'u32[]', space=smem, size = 0x4, offset = 0x4, fixed_abs, tag = 'smem constant byte address 0x4 - core index']
  #allocation1 [shape = 'u32[144,128]{1,0:T(1,128)}', space=vmem, size = 0x12000, scoped, tag = 'internal scratch']
  #allocation2 [shape = 'bf16[320,32]{1,0:T(8,128)(2,1)}', space=vmem, size = 0x14000, scoped, tag = 'scratch operand']
  %s0 = inlined_call_operand.vmem [shape: bf16[2,256,128], index: 0, kind: input, shape index: {}]
  %s1 = inlined_call_operand.vmem [shape: bf16[128,32], index: 1, kind: input, shape index: {}]
  %s2 = inlined_call_operand.vmem [shape: f32[1,32], index: 2, kind: input, shape index: {}]
  %s3 = inlined_call_operand.vmem [shape: bf16[3,96,32], index: 3, kind: input, shape index: {}]
  %s4 = inlined_call_operand.vmem [shape: f32[1,32], index: 4, kind: input, shape index: {}]
  %s5 = inlined_call_operand.vmem [shape: bf16[32,128], index: 5, kind: input, shape index: {}]
  %s6 = inlined_call_operand.vmem [shape: f32[1,128], index: 6, kind: input, shape index: {}]
  %s7 = inlined_call_operand.hbm [shape: f32[2,256,128], index: 7, kind: output, shape index: {}]
  %s8 = sld [smem:[#allocation0]]
  $region61: #{forward.3} parent=0
    _
  %s10 = ssub.s32 1, %s8
  %s11 = scalar_select 0, %s10, %s8
  $region1: #{forward.3} parent=0
    #allocation3 [shape = 'u8[262144]{0}', space=vmem, size = 0x40000, scoped, tag = 'output window, operand 0']
    #allocation4 [shape = 's32[2]{0}', space=sflag, size = 0x8, scoped, tag = 'scoped memory for forward.3']
    %12 = vsyncpa [#allocation4], 0
    %s13 = scalar_lea.sflag [#allocation4], 1
    %14 = vsyncpa %s13, 0
    loop: start=0, step=1, limit=4
    $region2: #{forward.3} parent=1 // loop_pre_header
      _
    $region3: #{forward.3} parent=1 // loop_header
      %s16 = sphi 0, %s20
      %p17 = scmp.ge.s32.totalorder %s16, 4
      %s26 = sphi 0, %s28
      %s29 = sphi 0, %s26
      %s30 = sphi 0, %s29
      %s46 = sphi 0, %s30
      %s50 = sphi 0, %s50
      %s52 = sphi 0, %s50
      %s53 = sphi 0, %s52
      %s67 = sphi 0, %s53
      %s71 = sphi 0, %s71
      %s73 = sphi 0, %s71
      %s74 = sphi 0, %s73
      %s88 = sphi 0, %s74
      %s92 = sphi 0, %s92
      %s94 = sphi 0, %s92
      %s95 = sphi 0, %s94
      %s109 = sphi 0, %s95
      %s113 = sphi 0, %s113
      %s115 = sphi 0, %s113
      %s116 = sphi 0, %s115
      %s130 = sphi 0, %s116
      %s134 = sphi 0, %s134
      %s136 = sphi 0, %s134
      %s137 = sphi 0, %s136
      %s151 = sphi 0, %s137
      %s155 = sphi 0, %s155
      %s157 = sphi 0, %s155
      %s158 = sphi 0, %s157
      %s172 = sphi 0, %s158
      %s178 = sphi 0, %s180
      %s181 = sphi 0, %s178
      %s182 = sphi 0, %s181
      %s198 = sphi 0, %s182
    $region4: #{forward.3} parent=1 // loop_header_branch
      %19 = sbr.rel (%p17) target = $region8
    $region5: #{forward.3} parent=1 // loop_body
      %s21 = ssub.s32 %s16, 1
      %s22 = ssub.s32 %s16, 2
      %s23 = sadd.s32 %s16, 1
      %s24 = ssub.s32 %s16, %s23
      %p25 = scmp.eq.s32.totalorder %s24, 0
      %s27 = sadd.s32 %s26, 1
      %s28 = scalar_select %p25, %s26, %s27
      %p31 = pneg %p25
      %p32 = scmp.eq.s32.totalorder %s16, 1
      %p33 = por %p31, %p32
      %p34 = scmp.ne.s32.totalorder %s26, %s29
      %p35 = scmp.eq.s32.totalorder %s16, 0
      %p36 = por %p34, %p35
      %p37 = scmp.ne.s32.totalorder %s26, %s29
      %p38 = scmp.eq.s32.totalorder %s21, 1
      %p39 = por %p37, %p38
      %p40 = scmp.ne.s32.totalorder %s29, %s30
      %p41 = scmp.eq.s32.totalorder %s21, 0
      %p42 = por %p40, %p41
      %p43 = scmp.ne.s32.totalorder %s29, %s30
      %p44 = scmp.eq.s32.totalorder %s22, 1
      %p45 = por %p43, %p44
      %p47 = scmp.ne.s32.totalorder %s30, %s46
      %p48 = scmp.eq.s32.totalorder %s22, 0
      %p49 = por %p47, %p48
      %s51 = sadd.s32 %s50, 1
      %p54 = scmp.eq.s32.totalorder %s16, 1
      %p55 = scmp.ne.s32.totalorder %s50, %s52
      %p56 = scmp.eq.s32.totalorder %s16, 0
      %p57 = por %p55, %p56
      %p58 = scmp.ne.s32.totalorder %s50, %s52
      %p59 = scmp.eq.s32.totalorder %s21, 1
      %p60 = por %p58, %p59
      %p61 = scmp.ne.s32.totalorder %s52, %s53
      %p62 = scmp.eq.s32.totalorder %s21, 0
      %p63 = por %p61, %p62
      %p64 = scmp.ne.s32.totalorder %s52, %s53
      %p65 = scmp.eq.s32.totalorder %s22, 1
      %p66 = por %p64, %p65
      %p68 = scmp.ne.s32.totalorder %s53, %s67
      %p69 = scmp.eq.s32.totalorder %s22, 0
      %p70 = por %p68, %p69
      %s72 = sadd.s32 %s71, 1
      %p75 = scmp.eq.s32.totalorder %s16, 1
      %p76 = scmp.ne.s32.totalorder %s71, %s73
      %p77 = scmp.eq.s32.totalorder %s16, 0
      %p78 = por %p76, %p77
      %p79 = scmp.ne.s32.totalorder %s71, %s73
      %p80 = scmp.eq.s32.totalorder %s21, 1
      %p81 = por %p79, %p80
      %p82 = scmp.ne.s32.totalorder %s73, %s74
      %p83 = scmp.eq.s32.totalorder %s21, 0
      %p84 = por %p82, %p83
      %p85 = scmp.ne.s32.totalorder %s73, %s74
      %p86 = scmp.eq.s32.totalorder %s22, 1
      %p87 = por %p85, %p86
      %p89 = scmp.ne.s32.totalorder %s74, %s88
      %p90 = scmp.eq.s32.totalorder %s22, 0
      %p91 = por %p89, %p90
      %s93 = sadd.s32 %s92, 1
      %p96 = scmp.eq.s32.totalorder %s16, 1
      %p97 = scmp.ne.s32.totalorder %s92, %s94
      %p98 = scmp.eq.s32.totalorder %s16, 0
      %p99 = por %p97, %p98
      %p100 = scmp.ne.s32.totalorder %s92, %s94
      %p101 = scmp.eq.s32.totalorder %s21, 1
      %p102 = por %p100, %p101
      %p103 = scmp.ne.s32.totalorder %s94, %s95
      %p104 = scmp.eq.s32.totalorder %s21, 0
      %p105 = por %p103, %p104
      %p106 = scmp.ne.s32.totalorder %s94, %s95
      %p107 = scmp.eq.s32.totalorder %s22, 1
      %p108 = por %p106, %p107
      %p110 = scmp.ne.s32.totalorder %s95, %s109
      %p111 = scmp.eq.s32.totalorder %s22, 0
      %p112 = por %p110, %p111
      %s114 = sadd.s32 %s113, 1
      %p117 = scmp.eq.s32.totalorder %s16, 1
      %p118 = scmp.ne.s32.totalorder %s113, %s115
      %p119 = scmp.eq.s32.totalorder %s16, 0
      %p120 = por %p118, %p119
      %p121 = scmp.ne.s32.totalorder %s113, %s115
      %p122 = scmp.eq.s32.totalorder %s21, 1
      %p123 = por %p121, %p122
      %p124 = scmp.ne.s32.totalorder %s115, %s116
      %p125 = scmp.eq.s32.totalorder %s21, 0
      %p126 = por %p124, %p125
      %p127 = scmp.ne.s32.totalorder %s115, %s116
      %p128 = scmp.eq.s32.totalorder %s22, 1
      %p129 = por %p127, %p128
      %p131 = scmp.ne.s32.totalorder %s116, %s130
      %p132 = scmp.eq.s32.totalorder %s22, 0
      %p133 = por %p131, %p132
      %s135 = sadd.s32 %s134, 1
      %p138 = scmp.eq.s32.totalorder %s16, 1
      %p139 = scmp.ne.s32.totalorder %s134, %s136
      %p140 = scmp.eq.s32.totalorder %s16, 0
      %p141 = por %p139, %p140
      %p142 = scmp.ne.s32.totalorder %s134, %s136
      %p143 = scmp.eq.s32.totalorder %s21, 1
      %p144 = por %p142, %p143
      %p145 = scmp.ne.s32.totalorder %s136, %s137
      %p146 = scmp.eq.s32.totalorder %s21, 0
      %p147 = por %p145, %p146
      %p148 = scmp.ne.s32.totalorder %s136, %s137
      %p149 = scmp.eq.s32.totalorder %s22, 1
      %p150 = por %p148, %p149
      %p152 = scmp.ne.s32.totalorder %s137, %s151
      %p153 = scmp.eq.s32.totalorder %s22, 0
      %p154 = por %p152, %p153
      %s156 = sadd.s32 %s155, 1
      %p159 = scmp.eq.s32.totalorder %s16, 1
      %p160 = scmp.ne.s32.totalorder %s155, %s157
      %p161 = scmp.eq.s32.totalorder %s16, 0
      %p162 = por %p160, %p161
      %p163 = scmp.ne.s32.totalorder %s155, %s157
      %p164 = scmp.eq.s32.totalorder %s21, 1
      %p165 = por %p163, %p164
      %p166 = scmp.ne.s32.totalorder %s157, %s158
      %p167 = scmp.eq.s32.totalorder %s21, 0
      %p168 = por %p166, %p167
      %p169 = scmp.ne.s32.totalorder %s157, %s158
      %p170 = scmp.eq.s32.totalorder %s22, 1
      %p171 = por %p169, %p170
      %p173 = scmp.ne.s32.totalorder %s158, %s172
      %p174 = scmp.eq.s32.totalorder %s22, 0
      %p175 = por %p173, %p174
      %s176 = ssub.s32 %s16, %s23
      %p177 = scmp.eq.s32.totalorder %s176, 0
      %s179 = sadd.s32 %s178, 1
      %s180 = scalar_select %p177, %s178, %s179
      %p183 = pneg %p177
      %p184 = scmp.eq.s32.totalorder %s16, 1
      %p185 = por %p183, %p184
      %p186 = scmp.ne.s32.totalorder %s178, %s181
      %p187 = scmp.eq.s32.totalorder %s16, 0
      %p188 = por %p186, %p187
      %p189 = scmp.ne.s32.totalorder %s178, %s181
      %p190 = scmp.eq.s32.totalorder %s21, 1
      %p191 = por %p189, %p190
      %p192 = scmp.ne.s32.totalorder %s181, %s182
      %p193 = scmp.eq.s32.totalorder %s21, 0
      %p194 = por %p192, %p193
      %p195 = scmp.ne.s32.totalorder %s181, %s182
      %p196 = scmp.eq.s32.totalorder %s22, 1
      %p197 = por %p195, %p196
      %p199 = scmp.ne.s32.totalorder %s182, %s198
      %p200 = scmp.eq.s32.totalorder %s22, 0
      %p201 = por %p199, %p200
      %p202 = scmp.le.s32.totalorder 1, %s16
      %p203 = scmp.lt.s32.totalorder %s16, 3
      %p204 = pnand %p202, %p203
      %p205 = pneg %p204
      // Predicated region
      $region9: #{forward.3} parent=5 // pred_check
        _
      $region10: #{forward.3} parent=5 // pred_check_branch
        %207 = sbr.rel (%p204) target = $region12
      $region11: #{forward.3} parent=5 // pred_region
        %s208 = ssub.s32 %s16, 1
        // Predicated region
        $region13: #{forward.3} parent=11 // pred_check
          %p209 = pneg %p63
        $region14: #{forward.3} parent=11 // pred_check_branch
          %211 = sbr.rel (%p209) target = $region16
        $region15: #{forward.3} parent=11 // pred_region
          _
        $region16: #{forward.3} parent=11 // pred_fallthru
          _
        // Predicated region
        $region17: #{forward.3} parent=11 // pred_check
          %p212 = pneg %p84
        $region18: #{forward.3} parent=11 // pred_check_branch
          %214 = sbr.rel (%p212) target = $region20
        $region19: #{forward.3} parent=11 // pred_region
          _
        $region20: #{forward.3} parent=11 // pred_fallthru
          _
        // Predicated region
        $region21: #{forward.3} parent=11 // pred_check
          %p215 = pneg %p105
        $region22: #{forward.3} parent=11 // pred_check_branch
          %217 = sbr.rel (%p215) target = $region24
        $region23: #{forward.3} parent=11 // pred_region
          _
        $region24: #{forward.3} parent=11 // pred_fallthru
          _
        // Predicated region
        $region25: #{forward.3} parent=11 // pred_check
          %p218 = pneg %p126
        $region26: #{forward.3} parent=11 // pred_check_branch
          %220 = sbr.rel (%p218) target = $region28
        $region27: #{forward.3} parent=11 // pred_region
          _
        $region28: #{forward.3} parent=11 // pred_fallthru
          _
        // Predicated region
        $region29: #{forward.3} parent=11 // pred_check
          %p221 = pneg %p147
        $region30: #{forward.3} parent=11 // pred_check_branch
          %223 = sbr.rel (%p221) target = $region32
        $region31: #{forward.3} parent=11 // pred_region
          _
        $region32: #{forward.3} parent=11 // pred_fallthru
          _
        // Predicated region
        $region33: #{forward.3} parent=11 // pred_check
          %p224 = pneg %p168
        $region34: #{forward.3} parent=11 // pred_check_branch
          %226 = sbr.rel (%p224) target = $region36
        $region35: #{forward.3} parent=11 // pred_region
          _
        $region36: #{forward.3} parent=11 // pred_fallthru
          _
      $region12: #{forward.3} parent=5 // pred_fallthru
        _
      %p227 = scmp.lt.s32.totalorder %s16, 2
      // Predicated region
      $region37: #{forward.3} parent=5 // pred_check
        %p228 = pneg %p227
      $region38: #{forward.3} parent=5 // pred_check_branch
        %230 = sbr.rel (%p228) target = $region40
      $region39: #{forward.3} parent=5 // pred_region
        // Predicated region
        $region41: #{forward.3} parent=39 // pred_check
          %p231 = pneg %p36
        $region42: #{forward.3} parent=39 // pred_check_branch
          %233 = sbr.rel (%p231) target = $region44
        $region43: #{forward.3} parent=39 // pred_region
          %p234 = scmp.lt.s32.totalorder %s16, 1
          %s235 = scalar_select %p234, %s16, 1
          %s236 = smul.addr %s235, 32
          %s237 = smul.addr %s236, 4
          %s238 = scalar_lea.vmem %s0, %s237
        $region44: #{forward.3} parent=39 // pred_fallthru
          _
      $region40: #{forward.3} parent=5 // pred_fallthru
        _
      %p239 = scmp.le.s32.totalorder 1, %s16
      %p240 = scmp.lt.s32.totalorder %s16, 3
      %p241 = pnand %p239, %p240
      %p242 = pneg %p241
      // Predicated region
      $region45: #{forward.3} parent=5 // pred_check
        _
      $region46: #{forward.3} parent=5 // pred_check_branch
        %244 = sbr.rel (%p241) target = $region48
      $region47: #{forward.3} parent=5 // pred_region
        %s245 = ssub.s32 %s16, 1
        %p246 = scmp.lt.s32.totalorder %s21, 1
        %s247 = scalar_select %p246, %s21, 1
        %s248 = smul.addr %s247, 32
        %s249 = smul.addr %s248, 4
        %s250 = scalar_lea.vmem %s0, %s249
        %p251 = pneg %p42
        %p252 = pneg %p39
        %p253 = pneg %p63
        %p254 = pneg %p60
        %p255 = pneg %p84
        %p256 = pneg %p81
        %p257 = pneg %p105
        %p258 = pneg %p102
        %p259 = pneg %p126
        %p260 = pneg %p123
        %p261 = pneg %p147
        %p262 = pneg %p144
        %p263 = pneg %p168
        %p264 = pneg %p165
        %p265 = pneg %p194
        %p266 = pneg %p191
        %s267 = sand.u32 %s181, 1
        %s268 = scalar_lea.sflag [#allocation4], %s267
        %s269 = sand.u32 %s181, 1
        %s270 = smul.addr %s269, 256
        %s271 = scalar_lea.vmem [#allocation3], %s270
        %p272 = scmp.lt.s32.totalorder %s21, 1
        %s273 = scalar_select %p272, %s21, 1
        %s274 = smul.addr %s273, 32
        %s275 = smul.addr %s274, 4
        %s276 = scalar_lea.vmem %s0, %s275
        %vm280 = vcmask 257024
        %281 = vst.msk [vmem:[#allocation2] sm:$0xf] %vm280, 0
        %282 = vst.msk [vmem:[#allocation2 + $0x4] sm:$0xf] %vm280, 0
        %283 = vst.msk [vmem:[#allocation2 + $0x8] sm:$0xf] %vm280, 0
        %284 = vst.msk [vmem:[#allocation2 + $0xc] sm:$0xf] %vm280, 0
        %285 = vst.msk [vmem:[#allocation2 + $0x90] sm:$0xf] %vm280, 0
        %286 = vst.msk [vmem:[#allocation2 + $0x94] sm:$0xf] %vm280, 0
        %287 = vst.msk [vmem:[#allocation2 + $0x98] sm:$0xf] %vm280, 0
        %288 = vst.msk [vmem:[#allocation2 + $0x9c] sm:$0xf] %vm280, 0
        %v289 = vlaneseq
        %v290 = vshrl.u32 %v289, 7
        %v291 = vadd.s32 %v290, 8
        %v292 = vadd.s32 %v290, 16
        %v293 = vadd.s32 %v290, 24
        %v294 = vadd.s32 %v290, 32
        %v295 = vadd.s32 %v290, 40
        %v296 = vadd.s32 %v290, 48
        %v297 = vadd.s32 %v290, 56
        %v298 = vadd.s32 %v290, 64
        %v299 = vadd.s32 %v290, 72
        %v300 = vadd.s32 %v290, 80
        %v301 = vadd.s32 %v290, 88
        %v302 = vadd.s32 %v290, 96
        %v303 = vadd.s32 %v290, 104
        %v304 = vadd.s32 %v290, 112
        %v305 = vadd.s32 %v290, 120
        %v306 = vadd.s32 %v290, 128
        %v307 = vadd.s32 %v290, 136
        %v308 = vadd.s32 %v290, 144
        %v309 = vadd.s32 %v290, 152
        %v310 = vadd.s32 %v290, 160
        %v311 = vadd.s32 %v290, 168
        %v312 = vadd.s32 %v290, 176
        %v313 = vadd.s32 %v290, 184
        %v314 = vadd.s32 %v290, 192
        %v315 = vadd.s32 %v290, 200
        %v316 = vadd.s32 %v290, 208
        %v317 = vadd.s32 %v290, 216
        %v318 = vadd.s32 %v290, 224
        %v319 = vadd.s32 %v290, 232
        %v320 = vadd.s32 %v290, 240
        %v321 = vadd.s32 %v290, 248
        %vm322 = vcmp.lt.s32.totalorder %v290, 0
        %v323 = vsub.s32 0, %v290
        %v324 = vsel %vm322, %v323, %v290
        %v325 = vshrl.u32 %v324, 4
        %v326 = vand.u32 %v324, 15
        %v327 = vsub.s32 0, %v326
        %v328 = vsel %vm322, %v327, %v326
        %vm329 = vcmp.lt.s32.totalorder %v291, 0
        %v330 = vsub.s32 0, %v291
        %v331 = vsel %vm329, %v330, %v291
        %v332 = vshrl.u32 %v331, 4
        %v333 = vand.u32 %v331, 15
        %v334 = vsub.s32 0, %v333
        %v335 = vsel %vm329, %v334, %v333
        %vm336 = vcmp.lt.s32.totalorder %v292, 0
        %v337 = vsub.s32 0, %v292
        %v338 = vsel %vm336, %v337, %v292
        %v339 = vshrl.u32 %v338, 4
        %v340 = vand.u32 %v338, 15
        %v341 = vsub.s32 0, %v340
        %v342 = vsel %vm336, %v341, %v340
        %vm343 = vcmp.lt.s32.totalorder %v293, 0
        %v344 = vsub.s32 0, %v293
        %v345 = vsel %vm343, %v344, %v293
        %v346 = vshrl.u32 %v345, 4
        %v347 = vand.u32 %v345, 15
        %v348 = vsub.s32 0, %v347
        %v349 = vsel %vm343, %v348, %v347
        %vm350 = vcmp.lt.s32.totalorder %v294, 0
        %v351 = vsub.s32 0, %v294
        %v352 = vsel %vm350, %v351, %v294
        %v353 = vshrl.u32 %v352, 4
        %v354 = vand.u32 %v352, 15
        %v355 = vsub.s32 0, %v354
        %v356 = vsel %vm350, %v355, %v354
        %vm357 = vcmp.lt.s32.totalorder %v295, 0
        %v358 = vsub.s32 0, %v295
        %v359 = vsel %vm357, %v358, %v295
        %v360 = vshrl.u32 %v359, 4
        %v361 = vand.u32 %v359, 15
        %v362 = vsub.s32 0, %v361
        %v363 = vsel %vm357, %v362, %v361
        %vm364 = vcmp.lt.s32.totalorder %v296, 0
        %v365 = vsub.s32 0, %v296
        %v366 = vsel %vm364, %v365, %v296
        %v367 = vshrl.u32 %v366, 4
        %v368 = vand.u32 %v366, 15
        %v369 = vsub.s32 0, %v368
        %v370 = vsel %vm364, %v369, %v368
        %vm371 = vcmp.lt.s32.totalorder %v297, 0
        %v372 = vsub.s32 0, %v297
        %v373 = vsel %vm371, %v372, %v297
        %v374 = vshrl.u32 %v373, 4
        %v375 = vand.u32 %v373, 15
        %v376 = vsub.s32 0, %v375
        %v377 = vsel %vm371, %v376, %v375
        %vm378 = vcmp.lt.s32.totalorder %v298, 0
        %v379 = vsub.s32 0, %v298
        %v380 = vsel %vm378, %v379, %v298
        %v381 = vshrl.u32 %v380, 4
        %v382 = vand.u32 %v380, 15
        %v383 = vsub.s32 0, %v382
        %v384 = vsel %vm378, %v383, %v382
        %vm385 = vcmp.lt.s32.totalorder %v299, 0
        %v386 = vsub.s32 0, %v299
        %v387 = vsel %vm385, %v386, %v299
        %v388 = vshrl.u32 %v387, 4
        %v389 = vand.u32 %v387, 15
        %v390 = vsub.s32 0, %v389
        %v391 = vsel %vm385, %v390, %v389
        %vm392 = vcmp.lt.s32.totalorder %v300, 0
        %v393 = vsub.s32 0, %v300
        %v394 = vsel %vm392, %v393, %v300
        %v395 = vshrl.u32 %v394, 4
        %v396 = vand.u32 %v394, 15
        %v397 = vsub.s32 0, %v396
        %v398 = vsel %vm392, %v397, %v396
        %vm399 = vcmp.lt.s32.totalorder %v301, 0
        %v400 = vsub.s32 0, %v301
        %v401 = vsel %vm399, %v400, %v301
        %v402 = vshrl.u32 %v401, 4
        %v403 = vand.u32 %v401, 15
        %v404 = vsub.s32 0, %v403
        %v405 = vsel %vm399, %v404, %v403
        %vm406 = vcmp.lt.s32.totalorder %v302, 0
        %v407 = vsub.s32 0, %v302
        %v408 = vsel %vm406, %v407, %v302
        %v409 = vshrl.u32 %v408, 4
        %v410 = vand.u32 %v408, 15
        %v411 = vsub.s32 0, %v410
        %v412 = vsel %vm406, %v411, %v410
        %vm413 = vcmp.lt.s32.totalorder %v303, 0
        %v414 = vsub.s32 0, %v303
        %v415 = vsel %vm413, %v414, %v303
        %v416 = vshrl.u32 %v415, 4
        %v417 = vand.u32 %v415, 15
        %v418 = vsub.s32 0, %v417
        %v419 = vsel %vm413, %v418, %v417
        %vm420 = vcmp.lt.s32.totalorder %v304, 0
        %v421 = vsub.s32 0, %v304
        %v422 = vsel %vm420, %v421, %v304
        %v423 = vshrl.u32 %v422, 4
        %v424 = vand.u32 %v422, 15
        %v425 = vsub.s32 0, %v424
        %v426 = vsel %vm420, %v425, %v424
        %vm427 = vcmp.lt.s32.totalorder %v305, 0
        %v428 = vsub.s32 0, %v305
        %v429 = vsel %vm427, %v428, %v305
        %v430 = vshrl.u32 %v429, 4
        %v431 = vand.u32 %v429, 15
        %v432 = vsub.s32 0, %v431
        %v433 = vsel %vm427, %v432, %v431
        %vm434 = vcmp.lt.s32.totalorder %v306, 0
        %v435 = vsub.s32 0, %v306
        %v436 = vsel %vm434, %v435, %v306
        %v437 = vshrl.u32 %v436, 4
        %v438 = vand.u32 %v436, 15
        %v439 = vsub.s32 0, %v438
        %v440 = vsel %vm434, %v439, %v438
        %vm441 = vcmp.lt.s32.totalorder %v307, 0
        %v442 = vsub.s32 0, %v307
        %v443 = vsel %vm441, %v442, %v307
        %v444 = vshrl.u32 %v443, 4
        %v445 = vand.u32 %v443, 15
        %v446 = vsub.s32 0, %v445
        %v447 = vsel %vm441, %v446, %v445
        %vm448 = vcmp.lt.s32.totalorder %v308, 0
        %v449 = vsub.s32 0, %v308
        %v450 = vsel %vm448, %v449, %v308
        %v451 = vshrl.u32 %v450, 4
        %v452 = vand.u32 %v450, 15
        %v453 = vsub.s32 0, %v452
        %v454 = vsel %vm448, %v453, %v452
        %vm455 = vcmp.lt.s32.totalorder %v309, 0
        %v456 = vsub.s32 0, %v309
        %v457 = vsel %vm455, %v456, %v309
        %v458 = vshrl.u32 %v457, 4
        %v459 = vand.u32 %v457, 15
        %v460 = vsub.s32 0, %v459
        %v461 = vsel %vm455, %v460, %v459
        %vm462 = vcmp.lt.s32.totalorder %v310, 0
        %v463 = vsub.s32 0, %v310
        %v464 = vsel %vm462, %v463, %v310
        %v465 = vshrl.u32 %v464, 4
        %v466 = vand.u32 %v464, 15
        %v467 = vsub.s32 0, %v466
        %v468 = vsel %vm462, %v467, %v466
        %vm469 = vcmp.lt.s32.totalorder %v311, 0
        %v470 = vsub.s32 0, %v311
        %v471 = vsel %vm469, %v470, %v311
        %v472 = vshrl.u32 %v471, 4
        %v473 = vand.u32 %v471, 15
        %v474 = vsub.s32 0, %v473
        %v475 = vsel %vm469, %v474, %v473
        %vm476 = vcmp.lt.s32.totalorder %v312, 0
        %v477 = vsub.s32 0, %v312
        %v478 = vsel %vm476, %v477, %v312
        %v479 = vshrl.u32 %v478, 4
        %v480 = vand.u32 %v478, 15
        %v481 = vsub.s32 0, %v480
        %v482 = vsel %vm476, %v481, %v480
        %vm483 = vcmp.lt.s32.totalorder %v313, 0
        %v484 = vsub.s32 0, %v313
        %v485 = vsel %vm483, %v484, %v313
        %v486 = vshrl.u32 %v485, 4
        %v487 = vand.u32 %v485, 15
        %v488 = vsub.s32 0, %v487
        %v489 = vsel %vm483, %v488, %v487
        %vm490 = vcmp.lt.s32.totalorder %v314, 0
        %v491 = vsub.s32 0, %v314
        %v492 = vsel %vm490, %v491, %v314
        %v493 = vshrl.u32 %v492, 4
        %v494 = vand.u32 %v492, 15
        %v495 = vsub.s32 0, %v494
        %v496 = vsel %vm490, %v495, %v494
        %vm497 = vcmp.lt.s32.totalorder %v315, 0
        %v498 = vsub.s32 0, %v315
        %v499 = vsel %vm497, %v498, %v315
        %v500 = vshrl.u32 %v499, 4
        %v501 = vand.u32 %v499, 15
        %v502 = vsub.s32 0, %v501
        %v503 = vsel %vm497, %v502, %v501
        %vm504 = vcmp.lt.s32.totalorder %v316, 0
        %v505 = vsub.s32 0, %v316
        %v506 = vsel %vm504, %v505, %v316
        %v507 = vshrl.u32 %v506, 4
        %v508 = vand.u32 %v506, 15
        %v509 = vsub.s32 0, %v508
        %v510 = vsel %vm504, %v509, %v508
        %vm511 = vcmp.lt.s32.totalorder %v317, 0
        %v512 = vsub.s32 0, %v317
        %v513 = vsel %vm511, %v512, %v317
        %v514 = vshrl.u32 %v513, 4
        %v515 = vand.u32 %v513, 15
        %v516 = vsub.s32 0, %v515
        %v517 = vsel %vm511, %v516, %v515
        %vm518 = vcmp.lt.s32.totalorder %v318, 0
        %v519 = vsub.s32 0, %v318
        %v520 = vsel %vm518, %v519, %v318
        %v521 = vshrl.u32 %v520, 4
        %v522 = vand.u32 %v520, 15
        %v523 = vsub.s32 0, %v522
        %v524 = vsel %vm518, %v523, %v522
        %vm525 = vcmp.lt.s32.totalorder %v319, 0
        %v526 = vsub.s32 0, %v319
        %v527 = vsel %vm525, %v526, %v319
        %v528 = vshrl.u32 %v527, 4
        %v529 = vand.u32 %v527, 15
        %v530 = vsub.s32 0, %v529
        %v531 = vsel %vm525, %v530, %v529
        %vm532 = vcmp.lt.s32.totalorder %v320, 0
        %v533 = vsub.s32 0, %v320
        %v534 = vsel %vm532, %v533, %v320
        %v535 = vshrl.u32 %v534, 4
        %v536 = vand.u32 %v534, 15
        %v537 = vsub.s32 0, %v536
        %v538 = vsel %vm532, %v537, %v536
        %vm539 = vcmp.lt.s32.totalorder %v321, 0
        %v540 = vsub.s32 0, %v321
        %v541 = vsel %vm539, %v540, %v321
        %v542 = vshrl.u32 %v541, 4
        %v543 = vand.u32 %v541, 15
        %v544 = vsub.s32 0, %v543
        %v545 = vsel %vm539, %v544, %v543
        %vm546 = vcmp.ne.s32.totalorder %v328, 0
        %vm547 = vcmp.ne.s32.totalorder %v335, 0
        %vm548 = vcmp.ne.s32.totalorder %v342, 0
        %vm549 = vcmp.ne.s32.totalorder %v349, 0
        %vm550 = vcmp.ne.s32.totalorder %v356, 0
        %vm551 = vcmp.ne.s32.totalorder %v363, 0
        %vm552 = vcmp.ne.s32.totalorder %v370, 0
        %vm553 = vcmp.ne.s32.totalorder %v377, 0
        %vm554 = vcmp.ne.s32.totalorder %v384, 0
        %vm555 = vcmp.ne.s32.totalorder %v391, 0
        %vm556 = vcmp.ne.s32.totalorder %v398, 0
        %vm557 = vcmp.ne.s32.totalorder %v405, 0
        %vm558 = vcmp.ne.s32.totalorder %v412, 0
        %vm559 = vcmp.ne.s32.totalorder %v419, 0
        %vm560 = vcmp.ne.s32.totalorder %v426, 0
        %vm561 = vcmp.ne.s32.totalorder %v433, 0
        %vm562 = vcmp.ne.s32.totalorder %v440, 0
        %vm563 = vcmp.ne.s32.totalorder %v447, 0
        %vm564 = vcmp.ne.s32.totalorder %v454, 0
        %vm565 = vcmp.ne.s32.totalorder %v461, 0
        %vm566 = vcmp.ne.s32.totalorder %v468, 0
        %vm567 = vcmp.ne.s32.totalorder %v475, 0
        %vm568 = vcmp.ne.s32.totalorder %v482, 0
        %vm569 = vcmp.ne.s32.totalorder %v489, 0
        %vm570 = vcmp.ne.s32.totalorder %v496, 0
        %vm571 = vcmp.ne.s32.totalorder %v503, 0
        %vm572 = vcmp.ne.s32.totalorder %v510, 0
        %vm573 = vcmp.ne.s32.totalorder %v517, 0
        %vm574 = vcmp.ne.s32.totalorder %v524, 0
        %vm575 = vcmp.ne.s32.totalorder %v531, 0
        %vm576 = vcmp.ne.s32.totalorder %v538, 0
        %vm577 = vcmp.ne.s32.totalorder %v545, 0
        %vm578 = vcmp.lt.s32.totalorder %v328, 0
        %vm579 = vcmp.lt.s32.totalorder %v335, 0
        %vm580 = vcmp.lt.s32.totalorder %v342, 0
        %vm581 = vcmp.lt.s32.totalorder %v349, 0
        %vm582 = vcmp.lt.s32.totalorder %v356, 0
        %vm583 = vcmp.lt.s32.totalorder %v363, 0
        %vm584 = vcmp.lt.s32.totalorder %v370, 0
        %vm585 = vcmp.lt.s32.totalorder %v377, 0
        %vm586 = vcmp.lt.s32.totalorder %v384, 0
        %vm587 = vcmp.lt.s32.totalorder %v391, 0
        %vm588 = vcmp.lt.s32.totalorder %v398, 0
        %vm589 = vcmp.lt.s32.totalorder %v405, 0
        %vm590 = vcmp.lt.s32.totalorder %v412, 0
        %vm591 = vcmp.lt.s32.totalorder %v419, 0
        %vm592 = vcmp.lt.s32.totalorder %v426, 0
        %vm593 = vcmp.lt.s32.totalorder %v433, 0
        %vm594 = vcmp.lt.s32.totalorder %v440, 0
        %vm595 = vcmp.lt.s32.totalorder %v447, 0
        %vm596 = vcmp.lt.s32.totalorder %v454, 0
        %vm597 = vcmp.lt.s32.totalorder %v461, 0
        %vm598 = vcmp.lt.s32.totalorder %v468, 0
        %vm599 = vcmp.lt.s32.totalorder %v475, 0
        %vm600 = vcmp.lt.s32.totalorder %v482, 0
        %vm601 = vcmp.lt.s32.totalorder %v489, 0
        %vm602 = vcmp.lt.s32.totalorder %v496, 0
        %vm603 = vcmp.lt.s32.totalorder %v503, 0
        %vm604 = vcmp.lt.s32.totalorder %v510, 0
        %vm605 = vcmp.lt.s32.totalorder %v517, 0
        %vm606 = vcmp.lt.s32.totalorder %v524, 0
        %vm607 = vcmp.lt.s32.totalorder %v531, 0
        %vm608 = vcmp.lt.s32.totalorder %v538, 0
        %vm609 = vcmp.lt.s32.totalorder %v545, 0
        %vm610 = vmand %vm578, %vm546
        %vm611 = vmand %vm579, %vm547
        %vm612 = vmand %vm580, %vm548
        %vm613 = vmand %vm581, %vm549
        %vm614 = vmand %vm582, %vm550
        %vm615 = vmand %vm583, %vm551
        %vm616 = vmand %vm584, %vm552
        %vm617 = vmand %vm585, %vm553
        %vm618 = vmand %vm586, %vm554
        %vm619 = vmand %vm587, %vm555
        %vm620 = vmand %vm588, %vm556
        %vm621 = vmand %vm589, %vm557
        %vm622 = vmand %vm590, %vm558
        %vm623 = vmand %vm591, %vm559
        %vm624 = vmand %vm592, %vm560
        %vm625 = vmand %vm593, %vm561
        %vm626 = vmand %vm594, %vm562
        %vm627 = vmand %vm595, %vm563
        %vm628 = vmand %vm596, %vm564
        %vm629 = vmand %vm597, %vm565
        %vm630 = vmand %vm598, %vm566
        %vm631 = vmand %vm599, %vm567
        %vm632 = vmand %vm600, %vm568
        %vm633 = vmand %vm601, %vm569
        %vm634 = vmand %vm602, %vm570
        %vm635 = vmand %vm603, %vm571
        %vm636 = vmand %vm604, %vm572
        %vm637 = vmand %vm605, %vm573
        %vm638 = vmand %vm606, %vm574
        %vm639 = vmand %vm607, %vm575
        %vm640 = vmand %vm608, %vm576
        %vm641 = vmand %vm609, %vm577
        %v642 = vadd.s32 %v328, 16
        %v643 = vadd.s32 %v335, 16
        %v644 = vadd.s32 %v342, 16
        %v645 = vadd.s32 %v349, 16
        %v646 = vadd.s32 %v356, 16
        %v647 = vadd.s32 %v363, 16
        %v648 = vadd.s32 %v370, 16
        %v649 = vadd.s32 %v377, 16
        %v650 = vadd.s32 %v384, 16
        %v651 = vadd.s32 %v391, 16
        %v652 = vadd.s32 %v398, 16
        %v653 = vadd.s32 %v405, 16
        %v654 = vadd.s32 %v412, 16
        %v655 = vadd.s32 %v419, 16
        %v656 = vadd.s32 %v426, 16
        %v657 = vadd.s32 %v433, 16
        %v658 = vadd.s32 %v440, 16
        %v659 = vadd.s32 %v447, 16
        %v660 = vadd.s32 %v454, 16
        %v661 = vadd.s32 %v461, 16
        %v662 = vadd.s32 %v468, 16
        %v663 = vadd.s32 %v475, 16
        %v664 = vadd.s32 %v482, 16
        %v665 = vadd.s32 %v489, 16
        %v666 = vadd.s32 %v496, 16
        %v667 = vadd.s32 %v503, 16
        %v668 = vadd.s32 %v510, 16
        %v669 = vadd.s32 %v517, 16
        %v670 = vadd.s32 %v524, 16
        %v671 = vadd.s32 %v531, 16
        %v672 = vadd.s32 %v538, 16
        %v673 = vadd.s32 %v545, 16
        %v674 = vsel %vm610, %v642, %v328
        %v675 = vsel %vm611, %v643, %v335
        %v676 = vsel %vm612, %v644, %v342
        %v677 = vsel %vm613, %v645, %v349
        %v678 = vsel %vm614, %v646, %v356
        %v679 = vsel %vm615, %v647, %v363
        %v680 = vsel %vm616, %v648, %v370
        %v681 = vsel %vm617, %v649, %v377
        %v682 = vsel %vm618, %v650, %v384
        %v683 = vsel %vm619, %v651, %v391
        %v684 = vsel %vm620, %v652, %v398
        %v685 = vsel %vm621, %v653, %v405
        %v686 = vsel %vm622, %v654, %v412
        %v687 = vsel %vm623, %v655, %v419
        %v688 = vsel %vm624, %v656, %v426
        %v689 = vsel %vm625, %v657, %v433
        %v690 = vsel %vm626, %v658, %v440
        %v691 = vsel %vm627, %v659, %v447
        %v692 = vsel %vm628, %v660, %v454
        %v693 = vsel %vm629, %v661, %v461
        %v694 = vsel %vm630, %v662, %v468
        %v695 = vsel %vm631, %v663, %v475
        %v696 = vsel %vm632, %v664, %v482
        %v697 = vsel %vm633, %v665, %v489
        %v698 = vsel %vm634, %v666, %v496
        %v699 = vsel %vm635, %v667, %v503
        %v700 = vsel %vm636, %v668, %v510
        %v701 = vsel %vm637, %v669, %v517
        %v702 = vsel %vm638, %v670, %v524
        %v703 = vsel %vm639, %v671, %v531
        %v704 = vsel %vm640, %v672, %v538
        %v705 = vsel %vm641, %v673, %v545
        %vm706 = vcmp.ne.s32.totalorder %v674, 0
        %vm707 = vcmp.ne.s32.totalorder %v675, 0
        %vm708 = vcmp.ne.s32.totalorder %v676, 0
        %vm709 = vcmp.ne.s32.totalorder %v677, 0
        %vm710 = vcmp.ne.s32.totalorder %v678, 0
        %vm711 = vcmp.ne.s32.totalorder %v679, 0
        %vm712 = vcmp.ne.s32.totalorder %v680, 0
        %vm713 = vcmp.ne.s32.totalorder %v681, 0
        %vm714 = vcmp.ne.s32.totalorder %v682, 0
        %vm715 = vcmp.ne.s32.totalorder %v683, 0
        %vm716 = vcmp.ne.s32.totalorder %v684, 0
        %vm717 = vcmp.ne.s32.totalorder %v685, 0
        %vm718 = vcmp.ne.s32.totalorder %v686, 0
        %vm719 = vcmp.ne.s32.totalorder %v687, 0
        %vm720 = vcmp.ne.s32.totalorder %v688, 0
        %vm721 = vcmp.ne.s32.totalorder %v689, 0
        %vm722 = vcmp.ne.s32.totalorder %v690, 0
        %vm723 = vcmp.ne.s32.totalorder %v691, 0
        %vm724 = vcmp.ne.s32.totalorder %v692, 0
        %vm725 = vcmp.ne.s32.totalorder %v693, 0
        %vm726 = vcmp.ne.s32.totalorder %v694, 0
        %vm727 = vcmp.ne.s32.totalorder %v695, 0
        %vm728 = vcmp.ne.s32.totalorder %v696, 0
        %vm729 = vcmp.ne.s32.totalorder %v697, 0
        %vm730 = vcmp.ne.s32.totalorder %v698, 0
        %vm731 = vcmp.ne.s32.totalorder %v699, 0
        %vm732 = vcmp.ne.s32.totalorder %v700, 0
        %vm733 = vcmp.ne.s32.totalorder %v701, 0
        %vm734 = vcmp.ne.s32.totalorder %v702, 0
        %vm735 = vcmp.ne.s32.totalorder %v703, 0
        %vm736 = vcmp.ne.s32.totalorder %v704, 0
        %vm737 = vcmp.ne.s32.totalorder %v705, 0
        %vm738 = vcmp.ne.s32.totalorder %v674, 15
        %vm739 = vcmp.ne.s32.totalorder %v675, 15
        %vm740 = vcmp.ne.s32.totalorder %v676, 15
        %vm741 = vcmp.ne.s32.totalorder %v677, 15
        %vm742 = vcmp.ne.s32.totalorder %v678, 15
        %vm743 = vcmp.ne.s32.totalorder %v679, 15
        %vm744 = vcmp.ne.s32.totalorder %v680, 15
        %vm745 = vcmp.ne.s32.totalorder %v681, 15
        %vm746 = vcmp.ne.s32.totalorder %v682, 15
        %vm747 = vcmp.ne.s32.totalorder %v683, 15
        %vm748 = vcmp.ne.s32.totalorder %v684, 15
        %vm749 = vcmp.ne.s32.totalorder %v685, 15
        %vm750 = vcmp.ne.s32.totalorder %v686, 15
        %vm751 = vcmp.ne.s32.totalorder %v687, 15
        %vm752 = vcmp.ne.s32.totalorder %v688, 15
        %vm753 = vcmp.ne.s32.totalorder %v689, 15
        %vm754 = vcmp.ne.s32.totalorder %v690, 15
        %vm755 = vcmp.ne.s32.totalorder %v691, 15
        %vm756 = vcmp.ne.s32.totalorder %v692, 15
        %vm757 = vcmp.ne.s32.totalorder %v693, 15
        %vm758 = vcmp.ne.s32.totalorder %v694, 15
        %vm759 = vcmp.ne.s32.totalorder %v695, 15
        %vm760 = vcmp.ne.s32.totalorder %v696, 15
        %vm761 = vcmp.ne.s32.totalorder %v697, 15
        %vm762 = vcmp.ne.s32.totalorder %v698, 15
        %vm763 = vcmp.ne.s32.totalorder %v699, 15
        %vm764 = vcmp.ne.s32.totalorder %v700, 15
        %vm765 = vcmp.ne.s32.totalorder %v701, 15
        %vm766 = vcmp.ne.s32.totalorder %v702, 15
        %vm767 = vcmp.ne.s32.totalorder %v703, 15
        %vm768 = vcmp.ne.s32.totalorder %v704, 15
        %vm769 = vcmp.ne.s32.totalorder %v705, 15
        %v770 = vld [vmem:[%s1] sm:$0xf]
        %v771 = vld [vmem:[%s1 + $0x4] sm:$0xf]
        %v772 = vld [vmem:[%s1 + $0x8] sm:$0xf]
        %v773 = vld [vmem:[%s1 + $0xc] sm:$0xf]
        %v774 = vld [vmem:[%s1 + $0x10] sm:$0xf]
        %v775 = vld [vmem:[%s1 + $0x14] sm:$0xf]
        %v776 = vld [vmem:[%s1 + $0x18] sm:$0xf]
        %v777 = vld [vmem:[%s1 + $0x1c] sm:$0xf]
        %v778 = vld [vmem:[%s1 + $0x20] sm:$0xf]
        %v779 = vld [vmem:[%s1 + $0x24] sm:$0xf]
        %v780 = vld [vmem:[%s1 + $0x28] sm:$0xf]
        %v781 = vld [vmem:[%s1 + $0x2c] sm:$0xf]
        %v782 = vld [vmem:[%s1 + $0x30] sm:$0xf]
        %v783 = vld [vmem:[%s1 + $0x34] sm:$0xf]
        %v784 = vld [vmem:[%s1 + $0x38] sm:$0xf]
        %v785 = vld [vmem:[%s1 + $0x3c] sm:$0xf]
        %v786 = vld [vmem:[%s3] sm:$0xf]
        %v787 = vld [vmem:[%s3 + $0x4] sm:$0xf]
        %v788 = vld [vmem:[%s3 + $0x8] sm:$0xf]
        %v789 = vld [vmem:[%s3 + $0xc] sm:$0xf]
        %v790 = vld [vmem:[%s3 + $0x10] sm:$0xf]
        %v791 = vld [vmem:[%s3 + $0x14] sm:$0xf]
        %v792 = vld [vmem:[%s3 + $0x18] sm:$0xf]
        %v793 = vld [vmem:[%s3 + $0x1c] sm:$0xf]
        %v794 = vld [vmem:[%s3 + $0x20] sm:$0xf]
        %v795 = vld [vmem:[%s3 + $0x24] sm:$0xf]
        %v796 = vld [vmem:[%s3 + $0x28] sm:$0xf]
        %v797 = vld [vmem:[%s3 + $0x2c] sm:$0xf]
        %v798 = vld [vmem:[%s3 + $0x30] sm:$0xf]
        %v799 = vld [vmem:[%s3 + $0x34] sm:$0xf]
        %v800 = vld [vmem:[%s3 + $0x38] sm:$0xf]
        %v801 = vld [vmem:[%s3 + $0x3c] sm:$0xf]
        %v802 = vld [vmem:[%s3 + $0x40] sm:$0xf]
        %v803 = vld [vmem:[%s3 + $0x44] sm:$0xf]
        %v804 = vld [vmem:[%s3 + $0x48] sm:$0xf]
        %v805 = vld [vmem:[%s3 + $0x4c] sm:$0xf]
        %v806 = vld [vmem:[%s3 + $0x50] sm:$0xf]
        %v807 = vld [vmem:[%s3 + $0x54] sm:$0xf]
        %v808 = vld [vmem:[%s3 + $0x58] sm:$0xf]
        %v809 = vld [vmem:[%s3 + $0x5c] sm:$0xf]
        %v810 = vld [vmem:[%s3 + $0x60] sm:$0xf]
        %v811 = vld [vmem:[%s3 + $0x64] sm:$0xf]
        %v812 = vld [vmem:[%s3 + $0x68] sm:$0xf]
        %v813 = vld [vmem:[%s3 + $0x6c] sm:$0xf]
        %v814 = vld [vmem:[%s3 + $0x70] sm:$0xf]
        %v815 = vld [vmem:[%s3 + $0x74] sm:$0xf]
        %v816 = vld [vmem:[%s3 + $0x78] sm:$0xf]
        %v817 = vld [vmem:[%s3 + $0x7c] sm:$0xf]
        %v818 = vld [vmem:[%s3 + $0x80] sm:$0xf]
        %v819 = vld [vmem:[%s3 + $0x84] sm:$0xf]
        %v820 = vld [vmem:[%s3 + $0x88] sm:$0xf]
        %v821 = vld [vmem:[%s3 + $0x8c] sm:$0xf]
        %v822 = vld [vmem:[%s5] sm:$0xf]
        %v823 = vld [vmem:[%s5 + $0x4] sm:$0xf]
        %v824 = vld [vmem:[%s5 + $0x8] sm:$0xf]
        %v825 = vld [vmem:[%s5 + $0xc] sm:$0xf]
        %v826 = vld [vmem:[%s2] sm:$0x1]
        %v827 = vld [vmem:[%s4] sm:$0x1]
        %v828 = vld [vmem:[%s6] sm:$0x1]
        %v829 = vld [vmem:[%s276] sm:$0xf]
        %v830 = vld [vmem:[%s276 + $0x4] sm:$0xf]
        %v831 = vld [vmem:[%s276 + $0x8] sm:$0xf]
        %v832 = vld [vmem:[%s276 + $0xc] sm:$0xf]
        %v833 = vld [vmem:[%s276 + $0x10] sm:$0xf]
        %v834 = vld [vmem:[%s276 + $0x14] sm:$0xf]
        %v835 = vld [vmem:[%s276 + $0x18] sm:$0xf]
        %v836 = vld [vmem:[%s276 + $0x1c] sm:$0xf]
        %v837 = vld [vmem:[%s276 + $0x20] sm:$0xf]
        %v838 = vld [vmem:[%s276 + $0x24] sm:$0xf]
        %v839 = vld [vmem:[%s276 + $0x28] sm:$0xf]
        %v840 = vld [vmem:[%s276 + $0x2c] sm:$0xf]
        %v841 = vld [vmem:[%s276 + $0x30] sm:$0xf]
        %v842 = vld [vmem:[%s276 + $0x34] sm:$0xf]
        %v843 = vld [vmem:[%s276 + $0x38] sm:$0xf]
        %v844 = vld [vmem:[%s276 + $0x3c] sm:$0xf]
        %v845 = vld [vmem:[%s276 + $0x40] sm:$0xf]
        %v846 = vld [vmem:[%s276 + $0x44] sm:$0xf]
        %v847 = vld [vmem:[%s276 + $0x48] sm:$0xf]
        %v848 = vld [vmem:[%s276 + $0x4c] sm:$0xf]
        %v849 = vld [vmem:[%s276 + $0x50] sm:$0xf]
        %v850 = vld [vmem:[%s276 + $0x54] sm:$0xf]
        %v851 = vld [vmem:[%s276 + $0x58] sm:$0xf]
        %v852 = vld [vmem:[%s276 + $0x5c] sm:$0xf]
        %v853 = vld [vmem:[%s276 + $0x60] sm:$0xf]
        %v854 = vld [vmem:[%s276 + $0x64] sm:$0xf]
        %v855 = vld [vmem:[%s276 + $0x68] sm:$0xf]
        %v856 = vld [vmem:[%s276 + $0x6c] sm:$0xf]
        %v857 = vld [vmem:[%s276 + $0x70] sm:$0xf]
        %v858 = vld [vmem:[%s276 + $0x74] sm:$0xf]
        %v859 = vld [vmem:[%s276 + $0x78] sm:$0xf]
        %v860 = vld [vmem:[%s276 + $0x7c] sm:$0xf]
        %v862 = vlaneseq
        %v863 = vshrl.u32 %v862, 7
        %v864 = vsub.s32 0, %v863
        %v865 = vrot.slane %v826, %v864
        %v899 = vunpack.c.l.b16 %v829
        %v900 = vunpack.c.l.b16 %v830
        %v901 = vunpack.c.l.b16 %v831
        %v902 = vunpack.c.l.b16 %v832
        %v903 = vunpack.c.l.b16 %v833
        %v904 = vunpack.c.l.b16 %v834
        %v905 = vunpack.c.l.b16 %v835
        %v906 = vunpack.c.l.b16 %v836
        %v907 = vunpack.c.l.b16 %v837
        %v908 = vunpack.c.l.b16 %v838
        %v909 = vunpack.c.l.b16 %v839
        %v910 = vunpack.c.l.b16 %v840
        %v911 = vunpack.c.l.b16 %v841
        %v912 = vunpack.c.l.b16 %v842
        %v913 = vunpack.c.l.b16 %v843
        %v914 = vunpack.c.l.b16 %v844
        %v915 = vunpack.c.l.b16 %v845
        %v916 = vunpack.c.l.b16 %v846
        %v917 = vunpack.c.l.b16 %v847
        %v918 = vunpack.c.l.b16 %v848
        %v919 = vunpack.c.l.b16 %v849
        %v920 = vunpack.c.l.b16 %v850
        %v921 = vunpack.c.l.b16 %v851
        %v922 = vunpack.c.l.b16 %v852
        %v923 = vunpack.c.l.b16 %v853
        %v924 = vunpack.c.l.b16 %v854
        %v925 = vunpack.c.l.b16 %v855
        %v926 = vunpack.c.l.b16 %v856
        %v927 = vunpack.c.l.b16 %v857
        %v928 = vunpack.c.l.b16 %v858
        %v929 = vunpack.c.l.b16 %v859
        %v930 = vunpack.c.l.b16 %v860
        %v931 = vpack.c.b16 %v900, %v899
        %v932 = vpack.c.b16 %v902, %v901
        %v933 = vpack.c.b16 %v904, %v903
        %v934 = vpack.c.b16 %v906, %v905
        %v935 = vpack.c.b16 %v908, %v907
        %v936 = vpack.c.b16 %v910, %v909
        %v937 = vpack.c.b16 %v912, %v911
        %v938 = vpack.c.b16 %v914, %v913
        %v939 = vpack.c.b16 %v916, %v915
        %v940 = vpack.c.b16 %v918, %v917
        %v941 = vpack.c.b16 %v920, %v919
        %v942 = vpack.c.b16 %v922, %v921
        %v943 = vpack.c.b16 %v924, %v923
        %v944 = vpack.c.b16 %v926, %v925
        %v945 = vpack.c.b16 %v928, %v927
        %v946 = vpack.c.b16 %v930, %v929
        %v979 = vunpack.c.l.b16 %v770
        %v980 = vunpack.c.l.b16 %v771
        %v981 = vunpack.c.l.b16 %v772
        %v982 = vunpack.c.l.b16 %v773
        %v983 = vunpack.c.l.b16 %v774
        %v984 = vunpack.c.l.b16 %v775
        %v985 = vunpack.c.l.b16 %v776
        %v986 = vunpack.c.l.b16 %v777
        %v987 = vunpack.c.l.b16 %v778
        %v988 = vunpack.c.l.b16 %v779
        %v989 = vunpack.c.l.b16 %v780
        %v990 = vunpack.c.l.b16 %v781
        %v991 = vunpack.c.l.b16 %v782
        %v992 = vunpack.c.l.b16 %v783
        %v993 = vunpack.c.l.b16 %v784
        %v994 = vunpack.c.l.b16 %v785
        %v995 = vpack.c.b16 %v980, %v979
        %v996 = vpack.c.b16 %v982, %v981
        %v997 = vpack.c.b16 %v984, %v983
        %v998 = vpack.c.b16 %v986, %v985
        %v999 = vpack.c.b16 %v988, %v987
        %v1000 = vpack.c.b16 %v990, %v989
        %v1001 = vpack.c.b16 %v992, %v991
        %v1002 = vpack.c.b16 %v994, %v993
        %1011 = vmatprep.subr.bf16.mxu0 0
        %1012 = vmatpush1.bf16.msra.mxu0 %v1002
        %1013 = vmatprep.subr.bf16.mxu0 0
        %1014 = vmatpush1.bf16.msra.mxu0 %v1001
        %1015 = vmatprep.subr.bf16.mxu0 0
        %1016 = vmatpush1.bf16.msra.mxu0 %v1000
        %1017 = vmatprep.subr.bf16.mxu0 0
        %1018 = vmatpush1.bf16.msra.mxu0 %v999
        %1019 = vmatprep.subr.bf16.mxu0 0
        %1020 = vmatpush1.bf16.msra.mxu0 %v998
        %1021 = vmatprep.subr.bf16.mxu0 0
        %1022 = vmatpush1.bf16.msra.mxu0 %v997
        %1023 = vmatprep.subr.bf16.mxu0 0
        %1024 = vmatpush1.bf16.msra.mxu0 %v996
        %1025 = vmatprep.subr.bf16.mxu0 0
        %1026 = vmatpush1.bf16.msra.mxu0 %v995
        %1027 = vmatprep.subr.bf16.mxu0 0
        %1028 = vmatpush2.bf16.msra.mxu0 0
        %1029 = vmatprep.subr.bf16.mxu0 0
        %1030 = vmatpush2.bf16.msra.mxu0 0
        %1031 = vmatprep.subr.bf16.mxu0 0
        %1032 = vmatpush2.bf16.msra.mxu0 0
        %1033 = vmatprep.subr.bf16.mxu0 0
        %1034 = vmatpush2.bf16.msra.mxu0 0
        %1035 = vmatprep.subr.bf16.mxu0 0
        %1036 = vmatpush2.bf16.msra.mxu0 0
        %1037 = vmatprep.subr.bf16.mxu0 0
        %1038 = vmatpush2.bf16.msra.mxu0 0
        %1039 = vmatprep.subr.bf16.mxu0 0
        %1040 = vmatpush2.bf16.msra.mxu0 0
        %1041 = vmatprep.subr.bf16.mxu0 0
        %1042 = vmatpush2.bf16.msra.mxu0 0
        %1043 = vmatprep.mubr.bf16.mxu0 0
        %1044 = vmatmul.mubr.bf16.gmra.mxu0 %v931
        %v1045 = vpop.f32.mrf.mxu0
        %v1046 = vadd.f32 %v865, %v1045
        %v1047 = vpop.f32.mrf.mxu0
        %v1048 = vpop.f32.mrf.mxu0
        %v1049 = vadd.f32 %v865, %v1048
        %v1050 = vpop.f32.mrf.mxu0
        %1051 = vmatprep.mubr.bf16.mxu0 0
        %1052 = vmatmul.mubr.bf16.gmra.mxu0 %v932
        %v1053 = vpop.f32.mrf.mxu0
        %v1054 = vadd.f32 %v865, %v1053
        %v1055 = vpop.f32.mrf.mxu0
        %v1056 = vpop.f32.mrf.mxu0
        %v1057 = vadd.f32 %v865, %v1056
        %v1058 = vpop.f32.mrf.mxu0
        %1059 = vmatprep.mubr.bf16.mxu0 0
        %1060 = vmatmul.mubr.bf16.gmra.mxu0 %v933
        %v1061 = vpop.f32.mrf.mxu0
        %v1062 = vadd.f32 %v865, %v1061
        %v1063 = vpop.f32.mrf.mxu0
        %v1064 = vpop.f32.mrf.mxu0
        %v1065 = vadd.f32 %v865, %v1064
        %v1066 = vpop.f32.mrf.mxu0
        %1067 = vmatprep.mubr.bf16.mxu0 0
        %1068 = vmatmul.mubr.bf16.gmra.mxu0 %v934
        %v1069 = vpop.f32.mrf.mxu0
        %v1070 = vadd.f32 %v865, %v1069
        %v1071 = vpop.f32.mrf.mxu0
        %v1072 = vpop.f32.mrf.mxu0
        %v1073 = vadd.f32 %v865, %v1072
        %v1074 = vpop.f32.mrf.mxu0
        %1075 = vmatprep.mubr.bf16.mxu0 0
        %1076 = vmatmul.mubr.bf16.gmra.mxu0 %v935
        %v1077 = vpop.f32.mrf.mxu0
        %v1078 = vadd.f32 %v865, %v1077
        %v1079 = vpop.f32.mrf.mxu0
        %v1080 = vpop.f32.mrf.mxu0
        %v1081 = vadd.f32 %v865, %v1080
        %v1082 = vpop.f32.mrf.mxu0
        %1083 = vmatprep.mubr.bf16.mxu0 0
        %1084 = vmatmul.mubr.bf16.gmra.mxu0 %v936
        %v1085 = vpop.f32.mrf.mxu0
        %v1086 = vadd.f32 %v865, %v1085
        %v1087 = vpop.f32.mrf.mxu0
        %v1088 = vpop.f32.mrf.mxu0
        %v1089 = vadd.f32 %v865, %v1088
        %v1090 = vpop.f32.mrf.mxu0
        %1091 = vmatprep.mubr.bf16.mxu0 0
        %1092 = vmatmul.mubr.bf16.gmra.mxu0 %v937
        %v1093 = vpop.f32.mrf.mxu0
        %v1094 = vadd.f32 %v865, %v1093
        %v1095 = vpop.f32.mrf.mxu0
        %v1096 = vpop.f32.mrf.mxu0
        %v1097 = vadd.f32 %v865, %v1096
        %v1098 = vpop.f32.mrf.mxu0
        %1099 = vmatprep.mubr.bf16.mxu0 0
        %1100 = vmatmul.mubr.bf16.gmra.mxu0 %v938
        %v1101 = vpop.f32.mrf.mxu0
        %v1102 = vadd.f32 %v865, %v1101
        %v1103 = vpop.f32.mrf.mxu0
        %v1104 = vpop.f32.mrf.mxu0
        %v1105 = vadd.f32 %v865, %v1104
        %v1106 = vpop.f32.mrf.mxu0
        %1107 = vmatprep.mubr.bf16.mxu0 0
        %1108 = vmatmul.mubr.bf16.gmra.mxu0 %v939
        %v1109 = vpop.f32.mrf.mxu0
        %v1110 = vadd.f32 %v865, %v1109
        %v1111 = vpop.f32.mrf.mxu0
        %v1112 = vpop.f32.mrf.mxu0
        %v1113 = vadd.f32 %v865, %v1112
        %v1114 = vpop.f32.mrf.mxu0
        %1115 = vmatprep.mubr.bf16.mxu0 0
        %1116 = vmatmul.mubr.bf16.gmra.mxu0 %v940
        %v1117 = vpop.f32.mrf.mxu0
        %v1118 = vadd.f32 %v865, %v1117
        %v1119 = vpop.f32.mrf.mxu0
        %v1120 = vpop.f32.mrf.mxu0
        %v1121 = vadd.f32 %v865, %v1120
        %v1122 = vpop.f32.mrf.mxu0
        %1123 = vmatprep.mubr.bf16.mxu0 0
        %1124 = vmatmul.mubr.bf16.gmra.mxu0 %v941
        %v1125 = vpop.f32.mrf.mxu0
        %v1126 = vadd.f32 %v865, %v1125
        %v1127 = vpop.f32.mrf.mxu0
        %v1128 = vpop.f32.mrf.mxu0
        %v1129 = vadd.f32 %v865, %v1128
        %v1130 = vpop.f32.mrf.mxu0
        %1131 = vmatprep.mubr.bf16.mxu0 0
        %1132 = vmatmul.mubr.bf16.gmra.mxu0 %v942
        %v1133 = vpop.f32.mrf.mxu0
        %v1134 = vadd.f32 %v865, %v1133
        %v1135 = vpop.f32.mrf.mxu0
        %v1136 = vpop.f32.mrf.mxu0
        %v1137 = vadd.f32 %v865, %v1136
        %v1138 = vpop.f32.mrf.mxu0
        %1139 = vmatprep.mubr.bf16.mxu0 0
        %1140 = vmatmul.mubr.bf16.gmra.mxu0 %v943
        %v1141 = vpop.f32.mrf.mxu0
        %v1142 = vadd.f32 %v865, %v1141
        %v1143 = vpop.f32.mrf.mxu0
        %v1144 = vpop.f32.mrf.mxu0
        %v1145 = vadd.f32 %v865, %v1144
        %v1146 = vpop.f32.mrf.mxu0
        %1147 = vmatprep.mubr.bf16.mxu0 0
        %1148 = vmatmul.mubr.bf16.gmra.mxu0 %v944
        %v1149 = vpop.f32.mrf.mxu0
        %v1150 = vadd.f32 %v865, %v1149
        %v1151 = vpop.f32.mrf.mxu0
        %v1152 = vpop.f32.mrf.mxu0
        %v1153 = vadd.f32 %v865, %v1152
        %v1154 = vpop.f32.mrf.mxu0
        %1155 = vmatprep.mubr.bf16.mxu0 0
        %1156 = vmatmul.mubr.bf16.gmra.mxu0 %v945
        %v1157 = vpop.f32.mrf.mxu0
        %v1158 = vadd.f32 %v865, %v1157
        %v1159 = vpop.f32.mrf.mxu0
        %v1160 = vpop.f32.mrf.mxu0
        %v1161 = vadd.f32 %v865, %v1160
        %v1162 = vpop.f32.mrf.mxu0
        %1163 = vmatprep.mubr.bf16.mxu0 0
        %1164 = vmatmul.mubr.bf16.gmra.mxu0 %v946
        %v1165 = vpop.f32.mrf.mxu0
        %v1166 = vadd.f32 %v865, %v1165
        %v1167 = vpop.f32.mrf.mxu0
        %v1168 = vpop.f32.mrf.mxu0
        %v1169 = vadd.f32 %v865, %v1168
        %v1170 = vpop.f32.mrf.mxu0
        %1171 = vdwg.mxu0
        %v1172 = vmax.f32 %v1046, 0.0
        %v1173 = vmax.f32 %v1049, 0.0
        %v1174 = vmax.f32 %v1054, 0.0
        %v1175 = vmax.f32 %v1057, 0.0
        %v1176 = vmax.f32 %v1062, 0.0
        %v1177 = vmax.f32 %v1065, 0.0
        %v1178 = vmax.f32 %v1070, 0.0
        %v1179 = vmax.f32 %v1073, 0.0
        %v1180 = vmax.f32 %v1078, 0.0
        %v1181 = vmax.f32 %v1081, 0.0
        %v1182 = vmax.f32 %v1086, 0.0
        %v1183 = vmax.f32 %v1089, 0.0
        %v1184 = vmax.f32 %v1094, 0.0
        %v1185 = vmax.f32 %v1097, 0.0
        %v1186 = vmax.f32 %v1102, 0.0
        %v1187 = vmax.f32 %v1105, 0.0
        %v1188 = vmax.f32 %v1110, 0.0
        %v1189 = vmax.f32 %v1113, 0.0
        %v1190 = vmax.f32 %v1118, 0.0
        %v1191 = vmax.f32 %v1121, 0.0
        %v1192 = vmax.f32 %v1126, 0.0
        %v1193 = vmax.f32 %v1129, 0.0
        %v1194 = vmax.f32 %v1134, 0.0
        %v1195 = vmax.f32 %v1137, 0.0
        %v1196 = vmax.f32 %v1142, 0.0
        %v1197 = vmax.f32 %v1145, 0.0
        %v1198 = vmax.f32 %v1150, 0.0
        %v1199 = vmax.f32 %v1153, 0.0
        %v1200 = vmax.f32 %v1158, 0.0
        %v1201 = vmax.f32 %v1161, 0.0
        %v1202 = vmax.f32 %v1166, 0.0
        %v1203 = vmax.f32 %v1169, 0.0
        %v1204 = vpack.c.bf16 %v1173, %v1172
        %v1205 = vpack.c.bf16 %v1175, %v1174
        %v1206 = vpack.c.bf16 %v1177, %v1176
        %v1207 = vpack.c.bf16 %v1179, %v1178
        %v1208 = vpack.c.bf16 %v1181, %v1180
        %v1209 = vpack.c.bf16 %v1183, %v1182
        %v1210 = vpack.c.bf16 %v1185, %v1184
        %v1211 = vpack.c.bf16 %v1187, %v1186
        %v1212 = vpack.c.bf16 %v1189, %v1188
        %v1213 = vpack.c.bf16 %v1191, %v1190
        %v1214 = vpack.c.bf16 %v1193, %v1192
        %v1215 = vpack.c.bf16 %v1195, %v1194
        %v1216 = vpack.c.bf16 %v1197, %v1196
        %v1217 = vpack.c.bf16 %v1199, %v1198
        %v1218 = vpack.c.bf16 %v1201, %v1200
        %v1219 = vpack.c.bf16 %v1203, %v1202
        %v1236 = vunpack.c.l.b16 %v1204
        %v1237 = vunpack.c.h.b16 %v1204
        %v1238 = vunpack.c.l.b16 %v1205
        %v1239 = vunpack.c.h.b16 %v1205
        %v1240 = vunpack.c.l.b16 %v1206
        %v1241 = vunpack.c.h.b16 %v1206
        %v1242 = vunpack.c.l.b16 %v1207
        %v1243 = vunpack.c.h.b16 %v1207
        %v1244 = vunpack.c.l.b16 %v1208
        %v1245 = vunpack.c.h.b16 %v1208
        %v1246 = vunpack.c.l.b16 %v1209
        %v1247 = vunpack.c.h.b16 %v1209
        %v1248 = vunpack.c.l.b16 %v1210
        %v1249 = vunpack.c.h.b16 %v1210
        %v1250 = vunpack.c.l.b16 %v1211
        %v1251 = vunpack.c.h.b16 %v1211
        %v1252 = vunpack.c.l.b16 %v1212
        %v1253 = vunpack.c.h.b16 %v1212
        %v1254 = vunpack.c.l.b16 %v1213
        %v1255 = vunpack.c.h.b16 %v1213
        %v1256 = vunpack.c.l.b16 %v1214
        %v1257 = vunpack.c.h.b16 %v1214
        %v1258 = vunpack.c.l.b16 %v1215
        %v1259 = vunpack.c.h.b16 %v1215
        %v1260 = vunpack.c.l.b16 %v1216
        %v1261 = vunpack.c.h.b16 %v1216
        %v1262 = vunpack.c.l.b16 %v1217
        %v1263 = vunpack.c.h.b16 %v1217
        %v1264 = vunpack.c.l.b16 %v1218
        %v1265 = vunpack.c.h.b16 %v1218
        %v1266 = vunpack.c.l.b16 %v1219
        %v1267 = vunpack.c.h.b16 %v1219
        %v1268 = vpack.c.b16 %v1236, %v1236
        %v1269 = vpack.c.b16 %v1237, %v1237
        %v1270 = vpack.c.b16 %v1238, %v1238
        %v1271 = vpack.c.b16 %v1239, %v1239
        %v1272 = vpack.c.b16 %v1240, %v1240
        %v1273 = vpack.c.b16 %v1241, %v1241
        %v1274 = vpack.c.b16 %v1242, %v1242
        %v1275 = vpack.c.b16 %v1243, %v1243
        %v1276 = vpack.c.b16 %v1244, %v1244
        %v1277 = vpack.c.b16 %v1245, %v1245
        %v1278 = vpack.c.b16 %v1246, %v1246
        %v1279 = vpack.c.b16 %v1247, %v1247
        %v1280 = vpack.c.b16 %v1248, %v1248
        %v1281 = vpack.c.b16 %v1249, %v1249
        %v1282 = vpack.c.b16 %v1250, %v1250
        %v1283 = vpack.c.b16 %v1251, %v1251
        %v1284 = vpack.c.b16 %v1252, %v1252
        %v1285 = vpack.c.b16 %v1253, %v1253
        %v1286 = vpack.c.b16 %v1254, %v1254
        %v1287 = vpack.c.b16 %v1255, %v1255
        %v1288 = vpack.c.b16 %v1256, %v1256
        %v1289 = vpack.c.b16 %v1257, %v1257
        %v1290 = vpack.c.b16 %v1258, %v1258
        %v1291 = vpack.c.b16 %v1259, %v1259
        %v1292 = vpack.c.b16 %v1260, %v1260
        %v1293 = vpack.c.b16 %v1261, %v1261
        %v1294 = vpack.c.b16 %v1262, %v1262
        %v1295 = vpack.c.b16 %v1263, %v1263
        %v1296 = vpack.c.b16 %v1264, %v1264
        %v1297 = vpack.c.b16 %v1265, %v1265
        %v1298 = vpack.c.b16 %v1266, %v1266
        %v1299 = vpack.c.b16 %v1267, %v1267
        %1332 = vst.msk [vmem:[#allocation2 + $0x10] sm:$0xf] %vm280, %v1268
        %1333 = vst.msk [vmem:[#allocation2 + $0x14] sm:$0xf] %vm280, %v1269
        %1334 = vst.msk [vmem:[#allocation2 + $0x18] sm:$0xf] %vm280, %v1270
        %1335 = vst.msk [vmem:[#allocation2 + $0x1c] sm:$0xf] %vm280, %v1271
        %1336 = vst.msk [vmem:[#allocation2 + $0x20] sm:$0xf] %vm280, %v1272
        %1337 = vst.msk [vmem:[#allocation2 + $0x24] sm:$0xf] %vm280, %v1273
        %1338 = vst.msk [vmem:[#allocation2 + $0x28] sm:$0xf] %vm280, %v1274
        %1339 = vst.msk [vmem:[#allocation2 + $0x2c] sm:$0xf] %vm280, %v1275
        %1340 = vst.msk [vmem:[#allocation2 + $0x30] sm:$0xf] %vm280, %v1276
        %1341 = vst.msk [vmem:[#allocation2 + $0x34] sm:$0xf] %vm280, %v1277
        %1342 = vst.msk [vmem:[#allocation2 + $0x38] sm:$0xf] %vm280, %v1278
        %1343 = vst.msk [vmem:[#allocation2 + $0x3c] sm:$0xf] %vm280, %v1279
        %1344 = vst.msk [vmem:[#allocation2 + $0x40] sm:$0xf] %vm280, %v1280
        %1345 = vst.msk [vmem:[#allocation2 + $0x44] sm:$0xf] %vm280, %v1281
        %1346 = vst.msk [vmem:[#allocation2 + $0x48] sm:$0xf] %vm280, %v1282
        %1347 = vst.msk [vmem:[#allocation2 + $0x4c] sm:$0xf] %vm280, %v1283
        %1348 = vst.msk [vmem:[#allocation2 + $0x50] sm:$0xf] %vm280, %v1284
        %1349 = vst.msk [vmem:[#allocation2 + $0x54] sm:$0xf] %vm280, %v1285
        %1350 = vst.msk [vmem:[#allocation2 + $0x58] sm:$0xf] %vm280, %v1286
        %1351 = vst.msk [vmem:[#allocation2 + $0x5c] sm:$0xf] %vm280, %v1287
        %1352 = vst.msk [vmem:[#allocation2 + $0x60] sm:$0xf] %vm280, %v1288
        %1353 = vst.msk [vmem:[#allocation2 + $0x64] sm:$0xf] %vm280, %v1289
        %1354 = vst.msk [vmem:[#allocation2 + $0x68] sm:$0xf] %vm280, %v1290
        %1355 = vst.msk [vmem:[#allocation2 + $0x6c] sm:$0xf] %vm280, %v1291
        %1356 = vst.msk [vmem:[#allocation2 + $0x70] sm:$0xf] %vm280, %v1292
        %1357 = vst.msk [vmem:[#allocation2 + $0x74] sm:$0xf] %vm280, %v1293
        %1358 = vst.msk [vmem:[#allocation2 + $0x78] sm:$0xf] %vm280, %v1294
        %1359 = vst.msk [vmem:[#allocation2 + $0x7c] sm:$0xf] %vm280, %v1295
        %1360 = vst.msk [vmem:[#allocation2 + $0x80] sm:$0xf] %vm280, %v1296
        %1361 = vst.msk [vmem:[#allocation2 + $0x84] sm:$0xf] %vm280, %v1297
        %1362 = vst.msk [vmem:[#allocation2 + $0x88] sm:$0xf] %vm280, %v1298
        %1363 = vst.msk [vmem:[#allocation2 + $0x8c] sm:$0xf] %vm280, %v1299
        %v1364 = vld [vmem:[#allocation2 + $0x4] sm:$0x8]
        %v1365 = vld [vmem:[#allocation2 + $0x8] sm:$0xf]
        %v1366 = vld [vmem:[#allocation2 + $0xc] sm:$0xf]
        %v1367 = vld [vmem:[#allocation2 + $0x10] sm:$0xf]
        %v1368 = vld [vmem:[#allocation2 + $0x14] sm:$0xf]
        %v1369 = vld [vmem:[#allocation2 + $0x18] sm:$0xf]
        %v1370 = vld [vmem:[#allocation2 + $0x1c] sm:$0xf]
        %v1371 = vld [vmem:[#allocation2 + $0x20] sm:$0xf]
        %v1372 = vld [vmem:[#allocation2 + $0x24] sm:$0xf]
        %v1373 = vld [vmem:[#allocation2 + $0x28] sm:$0xf]
        %v1374 = vld [vmem:[#allocation2 + $0x2c] sm:$0xf]
        %v1375 = vld [vmem:[#allocation2 + $0x30] sm:$0xf]
        %v1376 = vld [vmem:[#allocation2 + $0x34] sm:$0xf]
        %v1377 = vld [vmem:[#allocation2 + $0x38] sm:$0xf]
        %v1378 = vld [vmem:[#allocation2 + $0x3c] sm:$0xf]
        %v1379 = vld [vmem:[#allocation2 + $0x40] sm:$0xf]
        %v1380 = vld [vmem:[#allocation2 + $0x44] sm:$0xf]
        %v1381 = vld [vmem:[#allocation2 + $0x48] sm:$0xf]
        %v1382 = vld [vmem:[#allocation2 + $0x4c] sm:$0xf]
        %v1383 = vld [vmem:[#allocation2 + $0x50] sm:$0xf]
        %v1384 = vld [vmem:[#allocation2 + $0x54] sm:$0xf]
        %v1385 = vld [vmem:[#allocation2 + $0x58] sm:$0xf]
        %v1386 = vld [vmem:[#allocation2 + $0x5c] sm:$0xf]
        %v1387 = vld [vmem:[#allocation2 + $0x60] sm:$0xf]
        %v1388 = vld [vmem:[#allocation2 + $0x64] sm:$0xf]
        %v1389 = vld [vmem:[#allocation2 + $0x68] sm:$0xf]
        %v1390 = vld [vmem:[#allocation2 + $0x6c] sm:$0xf]
        %v1391 = vld [vmem:[#allocation2 + $0x70] sm:$0xf]
        %v1392 = vld [vmem:[#allocation2 + $0x74] sm:$0xf]
        %v1393 = vld [vmem:[#allocation2 + $0x78] sm:$0xf]
        %v1394 = vld [vmem:[#allocation2 + $0x7c] sm:$0xf]
        %v1395 = vld [vmem:[#allocation2 + $0x80] sm:$0xf]
        %v1396 = vld [vmem:[#allocation2 + $0x84] sm:$0xf]
        %v1397 = vld [vmem:[#allocation2 + $0x88] sm:$0x1]
        %vm1398 = vmpackc.low %vm706, %vm706
        %vm1399 = vmpackc.low %vm707, %vm707
        %vm1400 = vmpackc.low %vm708, %vm708
        %vm1401 = vmpackc.low %vm709, %vm709
        %vm1402 = vmpackc.low %vm710, %vm710
        %vm1403 = vmpackc.low %vm711, %vm711
        %vm1404 = vmpackc.low %vm712, %vm712
        %vm1405 = vmpackc.low %vm713, %vm713
        %vm1406 = vmpackc.low %vm714, %vm714
        %vm1407 = vmpackc.low %vm715, %vm715
        %vm1408 = vmpackc.low %vm716, %vm716
        %vm1409 = vmpackc.low %vm717, %vm717
        %vm1410 = vmpackc.low %vm718, %vm718
        %vm1411 = vmpackc.low %vm719, %vm719
        %vm1412 = vmpackc.low %vm720, %vm720
        %vm1413 = vmpackc.low %vm721, %vm721
        %vm1414 = vmpackc.low %vm722, %vm722
        %vm1415 = vmpackc.low %vm723, %vm723
        %vm1416 = vmpackc.low %vm724, %vm724
        %vm1417 = vmpackc.low %vm725, %vm725
        %vm1418 = vmpackc.low %vm726, %vm726
        %vm1419 = vmpackc.low %vm727, %vm727
        %vm1420 = vmpackc.low %vm728, %vm728
        %vm1421 = vmpackc.low %vm729, %vm729
        %vm1422 = vmpackc.low %vm730, %vm730
        %vm1423 = vmpackc.low %vm731, %vm731
        %vm1424 = vmpackc.low %vm732, %vm732
        %vm1425 = vmpackc.low %vm733, %vm733
        %vm1426 = vmpackc.low %vm734, %vm734
        %vm1427 = vmpackc.low %vm735, %vm735
        %vm1428 = vmpackc.low %vm736, %vm736
        %vm1429 = vmpackc.low %vm737, %vm737
        %v1430 = vsel %vm1398, 65537, 0
        %v1431 = vsel %vm1399, 65537, 0
        %v1432 = vsel %vm1400, 65537, 0
        %v1433 = vsel %vm1401, 65537, 0
        %v1434 = vsel %vm1402, 65537, 0
        %v1435 = vsel %vm1403, 65537, 0
        %v1436 = vsel %vm1404, 65537, 0
        %v1437 = vsel %vm1405, 65537, 0
        %v1438 = vsel %vm1406, 65537, 0
        %v1439 = vsel %vm1407, 65537, 0
        %v1440 = vsel %vm1408, 65537, 0
        %v1441 = vsel %vm1409, 65537, 0
        %v1442 = vsel %vm1410, 65537, 0
        %v1443 = vsel %vm1411, 65537, 0
        %v1444 = vsel %vm1412, 65537, 0
        %v1445 = vsel %vm1413, 65537, 0
        %v1446 = vsel %vm1414, 65537, 0
        %v1447 = vsel %vm1415, 65537, 0
        %v1448 = vsel %vm1416, 65537, 0
        %v1449 = vsel %vm1417, 65537, 0
        %v1450 = vsel %vm1418, 65537, 0
        %v1451 = vsel %vm1419, 65537, 0
        %v1452 = vsel %vm1420, 65537, 0
        %v1453 = vsel %vm1421, 65537, 0
        %v1454 = vsel %vm1422, 65537, 0
        %v1455 = vsel %vm1423, 65537, 0
        %v1456 = vsel %vm1424, 65537, 0
        %v1457 = vsel %vm1425, 65537, 0
        %v1458 = vsel %vm1426, 65537, 0
        %v1459 = vsel %vm1427, 65537, 0
        %v1460 = vsel %vm1428, 65537, 0
        %v1461 = vsel %vm1429, 65537, 0
        %vm1462 = vsmask.f32 3328
        %vm1463 = vsmask.f32 7440
        %vm1464 = vmor %vm1462, %vm1463
        %v1466 = vshll.u32 %v1430, 16
        %v1468 = vrot.slane %v1466, 5
        %v1469 = vshrl.u32 %v1430, 16
        %v1471 = vrot.slane %v1469, 4
        %v1472 = vor.u32 %v1471, %v1468
        %v1473 = vrot.slane %v1472, 4
        %v1475 = vshll.u32 %v1431, 16
        %v1477 = vrot.slane %v1475, 5
        %v1478 = vsel %vm1464, %v1473, %v1477
        %v1479 = vshrl.u32 %v1431, 16
        %v1481 = vrot.slane %v1479, 4
        %v1482 = vor.u32 %v1481, %v1477
        %v1483 = vrot.slane %v1482, 4
        %v1485 = vshll.u32 %v1432, 16
        %v1487 = vrot.slane %v1485, 5
        %v1488 = vsel %vm1464, %v1483, %v1487
        %v1489 = vshrl.u32 %v1432, 16
        %v1491 = vrot.slane %v1489, 4
        %v1492 = vor.u32 %v1491, %v1487
        %v1493 = vrot.slane %v1492, 4
        %v1495 = vshll.u32 %v1433, 16
        %v1497 = vrot.slane %v1495, 5
        %v1498 = vsel %vm1464, %v1493, %v1497
        %v1499 = vshrl.u32 %v1433, 16
        %v1501 = vrot.slane %v1499, 4
        %v1502 = vor.u32 %v1501, %v1497
        %v1503 = vrot.slane %v1502, 4
        %v1505 = vshll.u32 %v1434, 16
        %v1507 = vrot.slane %v1505, 5
        %v1508 = vsel %vm1464, %v1503, %v1507
        %v1509 = vshrl.u32 %v1434, 16
        %v1511 = vrot.slane %v1509, 4
        %v1512 = vor.u32 %v1511, %v1507
        %v1513 = vrot.slane %v1512, 4
        %v1515 = vshll.u32 %v1435, 16
        %v1517 = vrot.slane %v1515, 5
        %v1518 = vsel %vm1464, %v1513, %v1517
        %v1519 = vshrl.u32 %v1435, 16
        %v1521 = vrot.slane %v1519, 4
        %v1522 = vor.u32 %v1521, %v1517
        %v1523 = vrot.slane %v1522, 4
        %v1525 = vshll.u32 %v1436, 16
        %v1527 = vrot.slane %v1525, 5
        %v1528 = vsel %vm1464, %v1523, %v1527
        %v1529 = vshrl.u32 %v1436, 16
        %v1531 = vrot.slane %v1529, 4
        %v1532 = vor.u32 %v1531, %v1527
        %v1533 = vrot.slane %v1532, 4
        %v1535 = vshll.u32 %v1437, 16
        %v1537 = vrot.slane %v1535, 5
        %v1538 = vsel %vm1464, %v1533, %v1537
        %v1539 = vshrl.u32 %v1437, 16
        %v1541 = vrot.slane %v1539, 4
        %v1542 = vor.u32 %v1541, %v1537
        %v1543 = vrot.slane %v1542, 4
        %v1545 = vshll.u32 %v1438, 16
        %v1547 = vrot.slane %v1545, 5
        %v1548 = vsel %vm1464, %v1543, %v1547
        %v1549 = vshrl.u32 %v1438, 16
        %v1551 = vrot.slane %v1549, 4
        %v1552 = vor.u32 %v1551, %v1547
        %v1553 = vrot.slane %v1552, 4
        %v1555 = vshll.u32 %v1439, 16
        %v1557 = vrot.slane %v1555, 5
        %v1558 = vsel %vm1464, %v1553, %v1557
        %v1559 = vshrl.u32 %v1439, 16
        %v1561 = vrot.slane %v1559, 4
        %v1562 = vor.u32 %v1561, %v1557
        %v1563 = vrot.slane %v1562, 4
        %v1565 = vshll.u32 %v1440, 16
        %v1567 = vrot.slane %v1565, 5
        %v1568 = vsel %vm1464, %v1563, %v1567
        %v1569 = vshrl.u32 %v1440, 16
        %v1571 = vrot.slane %v1569, 4
        %v1572 = vor.u32 %v1571, %v1567
        %v1573 = vrot.slane %v1572, 4
        %v1575 = vshll.u32 %v1441, 16
        %v1577 = vrot.slane %v1575, 5
        %v1578 = vsel %vm1464, %v1573, %v1577
        %v1579 = vshrl.u32 %v1441, 16
        %v1581 = vrot.slane %v1579, 4
        %v1582 = vor.u32 %v1581, %v1577
        %v1583 = vrot.slane %v1582, 4
        %v1585 = vshll.u32 %v1442, 16
        %v1587 = vrot.slane %v1585, 5
        %v1588 = vsel %vm1464, %v1583, %v1587
        %v1589 = vshrl.u32 %v1442, 16
        %v1591 = vrot.slane %v1589, 4
        %v1592 = vor.u32 %v1591, %v1587
        %v1593 = vrot.slane %v1592, 4
        %v1595 = vshll.u32 %v1443, 16
        %v1597 = vrot.slane %v1595, 5
        %v1598 = vsel %vm1464, %v1593, %v1597
        %v1599 = vshrl.u32 %v1443, 16
        %v1601 = vrot.slane %v1599, 4
        %v1602 = vor.u32 %v1601, %v1597
        %v1603 = vrot.slane %v1602, 4
        %v1605 = vshll.u32 %v1444, 16
        %v1607 = vrot.slane %v1605, 5
        %v1608 = vsel %vm1464, %v1603, %v1607
        %v1609 = vshrl.u32 %v1444, 16
        %v1611 = vrot.slane %v1609, 4
        %v1612 = vor.u32 %v1611, %v1607
        %v1613 = vrot.slane %v1612, 4
        %v1615 = vshll.u32 %v1445, 16
        %v1617 = vrot.slane %v1615, 5
        %v1618 = vsel %vm1464, %v1613, %v1617
        %v1619 = vshrl.u32 %v1445, 16
        %v1621 = vrot.slane %v1619, 4
        %v1622 = vor.u32 %v1621, %v1617
        %v1623 = vrot.slane %v1622, 4
        %v1625 = vshll.u32 %v1446, 16
        %v1627 = vrot.slane %v1625, 5
        %v1628 = vsel %vm1464, %v1623, %v1627
        %v1629 = vshrl.u32 %v1446, 16
        %v1631 = vrot.slane %v1629, 4
        %v1632 = vor.u32 %v1631, %v1627
        %v1633 = vrot.slane %v1632, 4
        %v1635 = vshll.u32 %v1447, 16
        %v1637 = vrot.slane %v1635, 5
        %v1638 = vsel %vm1464, %v1633, %v1637
        %v1639 = vshrl.u32 %v1447, 16
        %v1641 = vrot.slane %v1639, 4
        %v1642 = vor.u32 %v1641, %v1637
        %v1643 = vrot.slane %v1642, 4
        %v1645 = vshll.u32 %v1448, 16
        %v1647 = vrot.slane %v1645, 5
        %v1648 = vsel %vm1464, %v1643, %v1647
        %v1649 = vshrl.u32 %v1448, 16
        %v1651 = vrot.slane %v1649, 4
        %v1652 = vor.u32 %v1651, %v1647
        %v1653 = vrot.slane %v1652, 4
        %v1655 = vshll.u32 %v1449, 16
        %v1657 = vrot.slane %v1655, 5
        %v1658 = vsel %vm1464, %v1653, %v1657
        %v1659 = vshrl.u32 %v1449, 16
        %v1661 = vrot.slane %v1659, 4
        %v1662 = vor.u32 %v1661, %v1657
        %v1663 = vrot.slane %v1662, 4
        %v1665 = vshll.u32 %v1450, 16
        %v1667 = vrot.slane %v1665, 5
        %v1668 = vsel %vm1464, %v1663, %v1667
        %v1669 = vshrl.u32 %v1450, 16
        %v1671 = vrot.slane %v1669, 4
        %v1672 = vor.u32 %v1671, %v1667
        %v1673 = vrot.slane %v1672, 4
        %v1675 = vshll.u32 %v1451, 16
        %v1677 = vrot.slane %v1675, 5
        %v1678 = vsel %vm1464, %v1673, %v1677
        %v1679 = vshrl.u32 %v1451, 16
        %v1681 = vrot.slane %v1679, 4
        %v1682 = vor.u32 %v1681, %v1677
        %v1683 = vrot.slane %v1682, 4
        %v1685 = vshll.u32 %v1452, 16
        %v1687 = vrot.slane %v1685, 5
        %v1688 = vsel %vm1464, %v1683, %v1687
        %v1689 = vshrl.u32 %v1452, 16
        %v1691 = vrot.slane %v1689, 4
        %v1692 = vor.u32 %v1691, %v1687
        %v1693 = vrot.slane %v1692, 4
        %v1695 = vshll.u32 %v1453, 16
        %v1697 = vrot.slane %v1695, 5
        %v1698 = vsel %vm1464, %v1693, %v1697
        %v1699 = vshrl.u32 %v1453, 16
        %v1701 = vrot.slane %v1699, 4
        %v1702 = vor.u32 %v1701, %v1697
        %v1703 = vrot.slane %v1702, 4
        %v1705 = vshll.u32 %v1454, 16
        %v1707 = vrot.slane %v1705, 5
        %v1708 = vsel %vm1464, %v1703, %v1707
        %v1709 = vshrl.u32 %v1454, 16
        %v1711 = vrot.slane %v1709, 4
        %v1712 = vor.u32 %v1711, %v1707
        %v1713 = vrot.slane %v1712, 4
        %v1715 = vshll.u32 %v1455, 16
        %v1717 = vrot.slane %v1715, 5
        %v1718 = vsel %vm1464, %v1713, %v1717
        %v1719 = vshrl.u32 %v1455, 16
        %v1721 = vrot.slane %v1719, 4
        %v1722 = vor.u32 %v1721, %v1717
        %v1723 = vrot.slane %v1722, 4
        %v1725 = vshll.u32 %v1456, 16
        %v1727 = vrot.slane %v1725, 5
        %v1728 = vsel %vm1464, %v1723, %v1727
        %v1729 = vshrl.u32 %v1456, 16
        %v1731 = vrot.slane %v1729, 4
        %v1732 = vor.u32 %v1731, %v1727
        %v1733 = vrot.slane %v1732, 4
        %v1735 = vshll.u32 %v1457, 16
        %v1737 = vrot.slane %v1735, 5
        %v1738 = vsel %vm1464, %v1733, %v1737
        %v1739 = vshrl.u32 %v1457, 16
        %v1741 = vrot.slane %v1739, 4
        %v1742 = vor.u32 %v1741, %v1737
        %v1743 = vrot.slane %v1742, 4
        %v1745 = vshll.u32 %v1458, 16
        %v1747 = vrot.slane %v1745, 5
        %v1748 = vsel %vm1464, %v1743, %v1747
        %v1749 = vshrl.u32 %v1458, 16
        %v1751 = vrot.slane %v1749, 4
        %v1752 = vor.u32 %v1751, %v1747
        %v1753 = vrot.slane %v1752, 4
        %v1755 = vshll.u32 %v1459, 16
        %v1757 = vrot.slane %v1755, 5
        %v1758 = vsel %vm1464, %v1753, %v1757
        %v1759 = vshrl.u32 %v1459, 16
        %v1761 = vrot.slane %v1759, 4
        %v1762 = vor.u32 %v1761, %v1757
        %v1763 = vrot.slane %v1762, 4
        %v1765 = vshll.u32 %v1460, 16
        %v1767 = vrot.slane %v1765, 5
        %v1768 = vsel %vm1464, %v1763, %v1767
        %v1769 = vshrl.u32 %v1460, 16
        %v1771 = vrot.slane %v1769, 4
        %v1772 = vor.u32 %v1771, %v1767
        %v1773 = vrot.slane %v1772, 4
        %v1775 = vshll.u32 %v1461, 16
        %v1777 = vrot.slane %v1775, 5
        %v1778 = vsel %vm1464, %v1773, %v1777
        %v1779 = vshrl.u32 %v1461, 16
        %v1781 = vrot.slane %v1779, 4
        %v1782 = vor.u32 %v1781, %v1777
        %v1783 = vrot.slane %v1782, 4
        %vm1784 = vcmp.ne.s16.totalorder %v1468, 0
        %vm1785 = vcmp.ne.s16.totalorder %v1478, 0
        %vm1786 = vcmp.ne.s16.totalorder %v1488, 0
        %vm1787 = vcmp.ne.s16.totalorder %v1498, 0
        %vm1788 = vcmp.ne.s16.totalorder %v1508, 0
        %vm1789 = vcmp.ne.s16.totalorder %v1518, 0
        %vm1790 = vcmp.ne.s16.totalorder %v1528, 0
        %vm1791 = vcmp.ne.s16.totalorder %v1538, 0
        %vm1792 = vcmp.ne.s16.totalorder %v1548, 0
        %vm1793 = vcmp.ne.s16.totalorder %v1558, 0
        %vm1794 = vcmp.ne.s16.totalorder %v1568, 0
        %vm1795 = vcmp.ne.s16.totalorder %v1578, 0
        %vm1796 = vcmp.ne.s16.totalorder %v1588, 0
        %vm1797 = vcmp.ne.s16.totalorder %v1598, 0
        %vm1798 = vcmp.ne.s16.totalorder %v1608, 0
        %vm1799 = vcmp.ne.s16.totalorder %v1618, 0
        %vm1800 = vcmp.ne.s16.totalorder %v1628, 0
        %vm1801 = vcmp.ne.s16.totalorder %v1638, 0
        %vm1802 = vcmp.ne.s16.totalorder %v1648, 0
        %vm1803 = vcmp.ne.s16.totalorder %v1658, 0
        %vm1804 = vcmp.ne.s16.totalorder %v1668, 0
        %vm1805 = vcmp.ne.s16.totalorder %v1678, 0
        %vm1806 = vcmp.ne.s16.totalorder %v1688, 0
        %vm1807 = vcmp.ne.s16.totalorder %v1698, 0
        %vm1808 = vcmp.ne.s16.totalorder %v1708, 0
        %vm1809 = vcmp.ne.s16.totalorder %v1718, 0
        %vm1810 = vcmp.ne.s16.totalorder %v1728, 0
        %vm1811 = vcmp.ne.s16.totalorder %v1738, 0
        %vm1812 = vcmp.ne.s16.totalorder %v1748, 0
        %vm1813 = vcmp.ne.s16.totalorder %v1758, 0
        %vm1814 = vcmp.ne.s16.totalorder %v1768, 0
        %vm1815 = vcmp.ne.s16.totalorder %v1778, 0
        %vm1816 = vcmp.ne.s16.totalorder %v1783, 0
        %v1817 = vsel %vm1784, %v1364, 0
        %v1818 = vsel %vm1785, %v1365, 0
        %v1819 = vsel %vm1786, %v1366, 0
        %v1820 = vsel %vm1787, %v1367, 0
        %v1821 = vsel %vm1788, %v1368, 0
        %v1822 = vsel %vm1789, %v1369, 0
        %v1823 = vsel %vm1790, %v1370, 0
        %v1824 = vsel %vm1791, %v1371, 0
        %v1825 = vsel %vm1792, %v1372, 0
        %v1826 = vsel %vm1793, %v1373, 0
        %v1827 = vsel %vm1794, %v1374, 0
        %v1828 = vsel %vm1795, %v1375, 0
        %v1829 = vsel %vm1796, %v1376, 0
        %v1830 = vsel %vm1797, %v1377, 0
        %v1831 = vsel %vm1798, %v1378, 0
        %v1832 = vsel %vm1799, %v1379, 0
        %v1833 = vsel %vm1800, %v1380, 0
        %v1834 = vsel %vm1801, %v1381, 0
        %v1835 = vsel %vm1802, %v1382, 0
        %v1836 = vsel %vm1803, %v1383, 0
        %v1837 = vsel %vm1804, %v1384, 0
        %v1838 = vsel %vm1805, %v1385, 0
        %v1839 = vsel %vm1806, %v1386, 0
        %v1840 = vsel %vm1807, %v1387, 0
        %v1841 = vsel %vm1808, %v1388, 0
        %v1842 = vsel %vm1809, %v1389, 0
        %v1843 = vsel %vm1810, %v1390, 0
        %v1844 = vsel %vm1811, %v1391, 0
        %v1845 = vsel %vm1812, %v1392, 0
        %v1846 = vsel %vm1813, %v1393, 0
        %v1847 = vsel %vm1814, %v1394, 0
        %v1848 = vsel %vm1815, %v1395, 0
        %v1849 = vsel %vm1816, %v1396, 0
        %vm1850 = vmpackc.low %vm738, %vm738
        %vm1851 = vmpackc.low %vm739, %vm739
        %vm1852 = vmpackc.low %vm740, %vm740
        %vm1853 = vmpackc.low %vm741, %vm741
        %vm1854 = vmpackc.low %vm742, %vm742
        %vm1855 = vmpackc.low %vm743, %vm743
        %vm1856 = vmpackc.low %vm744, %vm744
        %vm1857 = vmpackc.low %vm745, %vm745
        %vm1858 = vmpackc.low %vm746, %vm746
        %vm1859 = vmpackc.low %vm747, %vm747
        %vm1860 = vmpackc.low %vm748, %vm748
        %vm1861 = vmpackc.low %vm749, %vm749
        %vm1862 = vmpackc.low %vm750, %vm750
        %vm1863 = vmpackc.low %vm751, %vm751
        %vm1864 = vmpackc.low %vm752, %vm752
        %vm1865 = vmpackc.low %vm753, %vm753
        %vm1866 = vmpackc.low %vm754, %vm754
        %vm1867 = vmpackc.low %vm755, %vm755
        %vm1868 = vmpackc.low %vm756, %vm756
        %vm1869 = vmpackc.low %vm757, %vm757
        %vm1870 = vmpackc.low %vm758, %vm758
        %vm1871 = vmpackc.low %vm759, %vm759
        %vm1872 = vmpackc.low %vm760, %vm760
        %vm1873 = vmpackc.low %vm761, %vm761
        %vm1874 = vmpackc.low %vm762, %vm762
        %vm1875 = vmpackc.low %vm763, %vm763
        %vm1876 = vmpackc.low %vm764, %vm764
        %vm1877 = vmpackc.low %vm765, %vm765
        %vm1878 = vmpackc.low %vm766, %vm766
        %vm1879 = vmpackc.low %vm767, %vm767
        %vm1880 = vmpackc.low %vm768, %vm768
        %vm1881 = vmpackc.low %vm769, %vm769
        %v1882 = vsel %vm1850, 65537, 0
        %v1883 = vsel %vm1851, 65537, 0
        %v1884 = vsel %vm1852, 65537, 0
        %v1885 = vsel %vm1853, 65537, 0
        %v1886 = vsel %vm1854, 65537, 0
        %v1887 = vsel %vm1855, 65537, 0
        %v1888 = vsel %vm1856, 65537, 0
        %v1889 = vsel %vm1857, 65537, 0
        %v1890 = vsel %vm1858, 65537, 0
        %v1891 = vsel %vm1859, 65537, 0
        %v1892 = vsel %vm1860, 65537, 0
        %v1893 = vsel %vm1861, 65537, 0
        %v1894 = vsel %vm1862, 65537, 0
        %v1895 = vsel %vm1863, 65537, 0
        %v1896 = vsel %vm1864, 65537, 0
        %v1897 = vsel %vm1865, 65537, 0
        %v1898 = vsel %vm1866, 65537, 0
        %v1899 = vsel %vm1867, 65537, 0
        %v1900 = vsel %vm1868, 65537, 0
        %v1901 = vsel %vm1869, 65537, 0
        %v1902 = vsel %vm1870, 65537, 0
        %v1903 = vsel %vm1871, 65537, 0
        %v1904 = vsel %vm1872, 65537, 0
        %v1905 = vsel %vm1873, 65537, 0
        %v1906 = vsel %vm1874, 65537, 0
        %v1907 = vsel %vm1875, 65537, 0
        %v1908 = vsel %vm1876, 65537, 0
        %v1909 = vsel %vm1877, 65537, 0
        %v1910 = vsel %vm1878, 65537, 0
        %v1911 = vsel %vm1879, 65537, 0
        %v1912 = vsel %vm1880, 65537, 0
        %v1913 = vsel %vm1881, 65537, 0
        %vm1914 = vsmask.f32 256
        %vm1915 = vsmask.f32 4368
        %vm1916 = vmor %vm1914, %vm1915
        %v1918 = vshrl.u32 %v1882, 16
        %v1920 = vrot.slane %v1918, 7
        %v1921 = vshll.u32 %v1882, 16
        %v1923 = vor.u32 %v1920, %v1921
        %v1924 = vrot.slane %v1920, 4
        %v1926 = vshrl.u32 %v1883, 16
        %v1928 = vrot.slane %v1926, 7
        %v1929 = vshll.u32 %v1883, 16
        %v1931 = vor.u32 %v1928, %v1929
        %v1932 = vsel %vm1916, %v1924, %v1931
        %v1933 = vrot.slane %v1928, 4
        %v1935 = vshrl.u32 %v1884, 16
        %v1937 = vrot.slane %v1935, 7
        %v1938 = vshll.u32 %v1884, 16
        %v1940 = vor.u32 %v1937, %v1938
        %v1941 = vsel %vm1916, %v1933, %v1940
        %v1942 = vrot.slane %v1937, 4
        %v1944 = vshrl.u32 %v1885, 16
        %v1946 = vrot.slane %v1944, 7
        %v1947 = vshll.u32 %v1885, 16
        %v1949 = vor.u32 %v1946, %v1947
        %v1950 = vsel %vm1916, %v1942, %v1949
        %v1951 = vrot.slane %v1946, 4
        %v1953 = vshrl.u32 %v1886, 16
        %v1955 = vrot.slane %v1953, 7
        %v1956 = vshll.u32 %v1886, 16
        %v1958 = vor.u32 %v1955, %v1956
        %v1959 = vsel %vm1916, %v1951, %v1958
        %v1960 = vrot.slane %v1955, 4
        %v1962 = vshrl.u32 %v1887, 16
        %v1964 = vrot.slane %v1962, 7
        %v1965 = vshll.u32 %v1887, 16
        %v1967 = vor.u32 %v1964, %v1965
        %v1968 = vsel %vm1916, %v1960, %v1967
        %v1969 = vrot.slane %v1964, 4
        %v1971 = vshrl.u32 %v1888, 16
        %v1973 = vrot.slane %v1971, 7
        %v1974 = vshll.u32 %v1888, 16
        %v1976 = vor.u32 %v1973, %v1974
        %v1977 = vsel %vm1916, %v1969, %v1976
        %v1978 = vrot.slane %v1973, 4
        %v1980 = vshrl.u32 %v1889, 16
        %v1982 = vrot.slane %v1980, 7
        %v1983 = vshll.u32 %v1889, 16
        %v1985 = vor.u32 %v1982, %v1983
        %v1986 = vsel %vm1916, %v1978, %v1985
        %v1987 = vrot.slane %v1982, 4
        %v1989 = vshrl.u32 %v1890, 16
        %v1991 = vrot.slane %v1989, 7
        %v1992 = vshll.u32 %v1890, 16
        %v1994 = vor.u32 %v1991, %v1992
        %v1995 = vsel %vm1916, %v1987, %v1994
        %v1996 = vrot.slane %v1991, 4
        %v1998 = vshrl.u32 %v1891, 16
        %v2000 = vrot.slane %v1998, 7
        %v2001 = vshll.u32 %v1891, 16
        %v2003 = vor.u32 %v2000, %v2001
        %v2004 = vsel %vm1916, %v1996, %v2003
        %v2005 = vrot.slane %v2000, 4
        %v2007 = vshrl.u32 %v1892, 16
        %v2009 = vrot.slane %v2007, 7
        %v2010 = vshll.u32 %v1892, 16
        %v2012 = vor.u32 %v2009, %v2010
        %v2013 = vsel %vm1916, %v2005, %v2012
        %v2014 = vrot.slane %v2009, 4
        %v2016 = vshrl.u32 %v1893, 16
        %v2018 = vrot.slane %v2016, 7
        %v2019 = vshll.u32 %v1893, 16
        %v2021 = vor.u32 %v2018, %v2019
        %v2022 = vsel %vm1916, %v2014, %v2021
        %v2023 = vrot.slane %v2018, 4
        %v2025 = vshrl.u32 %v1894, 16
        %v2027 = vrot.slane %v2025, 7
        %v2028 = vshll.u32 %v1894, 16
        %v2030 = vor.u32 %v2027, %v2028
        %v2031 = vsel %vm1916, %v2023, %v2030
        %v2032 = vrot.slane %v2027, 4
        %v2034 = vshrl.u32 %v1895, 16
        %v2036 = vrot.slane %v2034, 7
        %v2037 = vshll.u32 %v1895, 16
        %v2039 = vor.u32 %v2036, %v2037
        %v2040 = vsel %vm1916, %v2032, %v2039
        %v2041 = vrot.slane %v2036, 4
        %v2043 = vshrl.u32 %v1896, 16
        %v2045 = vrot.slane %v2043, 7
        %v2046 = vshll.u32 %v1896, 16
        %v2048 = vor.u32 %v2045, %v2046
        %v2049 = vsel %vm1916, %v2041, %v2048
        %v2050 = vrot.slane %v2045, 4
        %v2052 = vshrl.u32 %v1897, 16
        %v2054 = vrot.slane %v2052, 7
        %v2055 = vshll.u32 %v1897, 16
        %v2057 = vor.u32 %v2054, %v2055
        %v2058 = vsel %vm1916, %v2050, %v2057
        %v2059 = vrot.slane %v2054, 4
        %v2061 = vshrl.u32 %v1898, 16
        %v2063 = vrot.slane %v2061, 7
        %v2064 = vshll.u32 %v1898, 16
        %v2066 = vor.u32 %v2063, %v2064
        %v2067 = vsel %vm1916, %v2059, %v2066
        %v2068 = vrot.slane %v2063, 4
        %v2070 = vshrl.u32 %v1899, 16
        %v2072 = vrot.slane %v2070, 7
        %v2073 = vshll.u32 %v1899, 16
        %v2075 = vor.u32 %v2072, %v2073
        %v2076 = vsel %vm1916, %v2068, %v2075
        %v2077 = vrot.slane %v2072, 4
        %v2079 = vshrl.u32 %v1900, 16
        %v2081 = vrot.slane %v2079, 7
        %v2082 = vshll.u32 %v1900, 16
        %v2084 = vor.u32 %v2081, %v2082
        %v2085 = vsel %vm1916, %v2077, %v2084
        %v2086 = vrot.slane %v2081, 4
        %v2088 = vshrl.u32 %v1901, 16
        %v2090 = vrot.slane %v2088, 7
        %v2091 = vshll.u32 %v1901, 16
        %v2093 = vor.u32 %v2090, %v2091
        %v2094 = vsel %vm1916, %v2086, %v2093
        %v2095 = vrot.slane %v2090, 4
        %v2097 = vshrl.u32 %v1902, 16
        %v2099 = vrot.slane %v2097, 7
        %v2100 = vshll.u32 %v1902, 16
        %v2102 = vor.u32 %v2099, %v2100
        %v2103 = vsel %vm1916, %v2095, %v2102
        %v2104 = vrot.slane %v2099, 4
        %v2106 = vshrl.u32 %v1903, 16
        %v2108 = vrot.slane %v2106, 7
        %v2109 = vshll.u32 %v1903, 16
        %v2111 = vor.u32 %v2108, %v2109
        %v2112 = vsel %vm1916, %v2104, %v2111
        %v2113 = vrot.slane %v2108, 4
        %v2115 = vshrl.u32 %v1904, 16
        %v2117 = vrot.slane %v2115, 7
        %v2118 = vshll.u32 %v1904, 16
        %v2120 = vor.u32 %v2117, %v2118
        %v2121 = vsel %vm1916, %v2113, %v2120
        %v2122 = vrot.slane %v2117, 4
        %v2124 = vshrl.u32 %v1905, 16
        %v2126 = vrot.slane %v2124, 7
        %v2127 = vshll.u32 %v1905, 16
        %v2129 = vor.u32 %v2126, %v2127
        %v2130 = vsel %vm1916, %v2122, %v2129
        %v2131 = vrot.slane %v2126, 4
        %v2133 = vshrl.u32 %v1906, 16
        %v2135 = vrot.slane %v2133, 7
        %v2136 = vshll.u32 %v1906, 16
        %v2138 = vor.u32 %v2135, %v2136
        %v2139 = vsel %vm1916, %v2131, %v2138
        %v2140 = vrot.slane %v2135, 4
        %v2142 = vshrl.u32 %v1907, 16
        %v2144 = vrot.slane %v2142, 7
        %v2145 = vshll.u32 %v1907, 16
        %v2147 = vor.u32 %v2144, %v2145
        %v2148 = vsel %vm1916, %v2140, %v2147
        %v2149 = vrot.slane %v2144, 4
        %v2151 = vshrl.u32 %v1908, 16
        %v2153 = vrot.slane %v2151, 7
        %v2154 = vshll.u32 %v1908, 16
        %v2156 = vor.u32 %v2153, %v2154
        %v2157 = vsel %vm1916, %v2149, %v2156
        %v2158 = vrot.slane %v2153, 4
        %v2160 = vshrl.u32 %v1909, 16
        %v2162 = vrot.slane %v2160, 7
        %v2163 = vshll.u32 %v1909, 16
        %v2165 = vor.u32 %v2162, %v2163
        %v2166 = vsel %vm1916, %v2158, %v2165
        %v2167 = vrot.slane %v2162, 4
        %v2169 = vshrl.u32 %v1910, 16
        %v2171 = vrot.slane %v2169, 7
        %v2172 = vshll.u32 %v1910, 16
        %v2174 = vor.u32 %v2171, %v2172
        %v2175 = vsel %vm1916, %v2167, %v2174
        %v2176 = vrot.slane %v2171, 4
        %v2178 = vshrl.u32 %v1911, 16
        %v2180 = vrot.slane %v2178, 7
        %v2181 = vshll.u32 %v1911, 16
        %v2183 = vor.u32 %v2180, %v2181
        %v2184 = vsel %vm1916, %v2176, %v2183
        %v2185 = vrot.slane %v2180, 4
        %v2187 = vshrl.u32 %v1912, 16
        %v2189 = vrot.slane %v2187, 7
        %v2190 = vshll.u32 %v1912, 16
        %v2192 = vor.u32 %v2189, %v2190
        %v2193 = vsel %vm1916, %v2185, %v2192
        %v2194 = vrot.slane %v2189, 4
        %v2196 = vshrl.u32 %v1913, 16
        %v2198 = vrot.slane %v2196, 7
        %v2199 = vshll.u32 %v1913, 16
        %v2201 = vor.u32 %v2198, %v2199
        %v2202 = vsel %vm1916, %v2194, %v2201
        %v2203 = vrot.slane %v2198, 4
        %vm2204 = vcmp.ne.s16.totalorder %v1923, 0
        %vm2205 = vcmp.ne.s16.totalorder %v1932, 0
        %vm2206 = vcmp.ne.s16.totalorder %v1941, 0
        %vm2207 = vcmp.ne.s16.totalorder %v1950, 0
        %vm2208 = vcmp.ne.s16.totalorder %v1959, 0
        %vm2209 = vcmp.ne.s16.totalorder %v1968, 0
        %vm2210 = vcmp.ne.s16.totalorder %v1977, 0
        %vm2211 = vcmp.ne.s16.totalorder %v1986, 0
        %vm2212 = vcmp.ne.s16.totalorder %v1995, 0
        %vm2213 = vcmp.ne.s16.totalorder %v2004, 0
        %vm2214 = vcmp.ne.s16.totalorder %v2013, 0
        %vm2215 = vcmp.ne.s16.totalorder %v2022, 0
        %vm2216 = vcmp.ne.s16.totalorder %v2031, 0
        %vm2217 = vcmp.ne.s16.totalorder %v2040, 0
        %vm2218 = vcmp.ne.s16.totalorder %v2049, 0
        %vm2219 = vcmp.ne.s16.totalorder %v2058, 0
        %vm2220 = vcmp.ne.s16.totalorder %v2067, 0
        %vm2221 = vcmp.ne.s16.totalorder %v2076, 0
        %vm2222 = vcmp.ne.s16.totalorder %v2085, 0
        %vm2223 = vcmp.ne.s16.totalorder %v2094, 0
        %vm2224 = vcmp.ne.s16.totalorder %v2103, 0
        %vm2225 = vcmp.ne.s16.totalorder %v2112, 0
        %vm2226 = vcmp.ne.s16.totalorder %v2121, 0
        %vm2227 = vcmp.ne.s16.totalorder %v2130, 0
        %vm2228 = vcmp.ne.s16.totalorder %v2139, 0
        %vm2229 = vcmp.ne.s16.totalorder %v2148, 0
        %vm2230 = vcmp.ne.s16.totalorder %v2157, 0
        %vm2231 = vcmp.ne.s16.totalorder %v2166, 0
        %vm2232 = vcmp.ne.s16.totalorder %v2175, 0
        %vm2233 = vcmp.ne.s16.totalorder %v2184, 0
        %vm2234 = vcmp.ne.s16.totalorder %v2193, 0
        %vm2235 = vcmp.ne.s16.totalorder %v2202, 0
        %vm2236 = vcmp.ne.s16.totalorder %v2203, 0
        %v2237 = vsel %vm2204, %v1365, 0
        %v2238 = vsel %vm2205, %v1366, 0
        %v2239 = vsel %vm2206, %v1367, 0
        %v2240 = vsel %vm2207, %v1368, 0
        %v2241 = vsel %vm2208, %v1369, 0
        %v2242 = vsel %vm2209, %v1370, 0
        %v2243 = vsel %vm2210, %v1371, 0
        %v2244 = vsel %vm2211, %v1372, 0
        %v2245 = vsel %vm2212, %v1373, 0
        %v2246 = vsel %vm2213, %v1374, 0
        %v2247 = vsel %vm2214, %v1375, 0
        %v2248 = vsel %vm2215, %v1376, 0
        %v2249 = vsel %vm2216, %v1377, 0
        %v2250 = vsel %vm2217, %v1378, 0
        %v2251 = vsel %vm2218, %v1379, 0
        %v2252 = vsel %vm2219, %v1380, 0
        %v2253 = vsel %vm2220, %v1381, 0
        %v2254 = vsel %vm2221, %v1382, 0
        %v2255 = vsel %vm2222, %v1383, 0
        %v2256 = vsel %vm2223, %v1384, 0
        %v2257 = vsel %vm2224, %v1385, 0
        %v2258 = vsel %vm2225, %v1386, 0
        %v2259 = vsel %vm2226, %v1387, 0
        %v2260 = vsel %vm2227, %v1388, 0
        %v2261 = vsel %vm2228, %v1389, 0
        %v2262 = vsel %vm2229, %v1390, 0
        %v2263 = vsel %vm2230, %v1391, 0
        %v2264 = vsel %vm2231, %v1392, 0
        %v2265 = vsel %vm2232, %v1393, 0
        %v2266 = vsel %vm2233, %v1394, 0
        %v2267 = vsel %vm2234, %v1395, 0
        %v2268 = vsel %vm2235, %v1396, 0
        %v2269 = vsel %vm2236, %v1397, 0
        %v2303 = vunpack.c.l.b16 %v1817
        %v2304 = vunpack.c.l.b16 %v1818
        %v2305 = vunpack.c.l.b16 %v1819
        %v2306 = vunpack.c.l.b16 %v1820
        %v2307 = vunpack.c.l.b16 %v1821
        %v2308 = vunpack.c.l.b16 %v1822
        %v2309 = vunpack.c.l.b16 %v1823
        %v2310 = vunpack.c.l.b16 %v1824
        %v2311 = vunpack.c.l.b16 %v1825
        %v2312 = vunpack.c.l.b16 %v1826
        %v2313 = vunpack.c.l.b16 %v1827
        %v2314 = vunpack.c.l.b16 %v1828
        %v2315 = vunpack.c.l.b16 %v1829
        %v2316 = vunpack.c.l.b16 %v1830
        %v2317 = vunpack.c.l.b16 %v1831
        %v2318 = vunpack.c.l.b16 %v1832
        %v2319 = vunpack.c.l.b16 %v1833
        %v2320 = vunpack.c.l.b16 %v1834
        %v2321 = vunpack.c.l.b16 %v1835
        %v2322 = vunpack.c.l.b16 %v1836
        %v2323 = vunpack.c.l.b16 %v1837
        %v2324 = vunpack.c.l.b16 %v1838
        %v2325 = vunpack.c.l.b16 %v1839
        %v2326 = vunpack.c.l.b16 %v1840
        %v2327 = vunpack.c.l.b16 %v1841
        %v2328 = vunpack.c.l.b16 %v1842
        %v2329 = vunpack.c.l.b16 %v1843
        %v2330 = vunpack.c.l.b16 %v1844
        %v2331 = vunpack.c.l.b16 %v1845
        %v2332 = vunpack.c.l.b16 %v1846
        %v2333 = vunpack.c.l.b16 %v1847
        %v2334 = vunpack.c.l.b16 %v1848
        %v2335 = vunpack.c.l.b16 %v1849
        %v2336 = vpack.c.b16 %v2304, %v2303
        %v2337 = vpack.c.b16 %v2306, %v2305
        %v2338 = vpack.c.b16 %v2308, %v2307
        %v2339 = vpack.c.b16 %v2310, %v2309
        %v2340 = vpack.c.b16 %v2312, %v2311
        %v2341 = vpack.c.b16 %v2314, %v2313
        %v2342 = vpack.c.b16 %v2316, %v2315
        %v2343 = vpack.c.b16 %v2318, %v2317
        %v2344 = vpack.c.b16 %v2320, %v2319
        %v2345 = vpack.c.b16 %v2322, %v2321
        %v2346 = vpack.c.b16 %v2324, %v2323
        %v2347 = vpack.c.b16 %v2326, %v2325
        %v2348 = vpack.c.b16 %v2328, %v2327
        %v2349 = vpack.c.b16 %v2330, %v2329
        %v2350 = vpack.c.b16 %v2332, %v2331
        %v2351 = vpack.c.b16 %v2334, %v2333
        %v2352 = vpack.c.b16 %v2335, %v2335
        %v2385 = vunpack.c.l.b16 %v1365
        %v2386 = vunpack.c.l.b16 %v1366
        %v2387 = vunpack.c.l.b16 %v1367
        %v2388 = vunpack.c.l.b16 %v1368
        %v2389 = vunpack.c.l.b16 %v1369
        %v2390 = vunpack.c.l.b16 %v1370
        %v2391 = vunpack.c.l.b16 %v1371
        %v2392 = vunpack.c.l.b16 %v1372
        %v2393 = vunpack.c.l.b16 %v1373
        %v2394 = vunpack.c.l.b16 %v1374
        %v2395 = vunpack.c.l.b16 %v1375
        %v2396 = vunpack.c.l.b16 %v1376
        %v2397 = vunpack.c.l.b16 %v1377
        %v2398 = vunpack.c.l.b16 %v1378
        %v2399 = vunpack.c.l.b16 %v1379
        %v2400 = vunpack.c.l.b16 %v1380
        %v2401 = vunpack.c.l.b16 %v1381
        %v2402 = vunpack.c.l.b16 %v1382
        %v2403 = vunpack.c.l.b16 %v1383
        %v2404 = vunpack.c.l.b16 %v1384
        %v2405 = vunpack.c.l.b16 %v1385
        %v2406 = vunpack.c.l.b16 %v1386
        %v2407 = vunpack.c.l.b16 %v1387
        %v2408 = vunpack.c.l.b16 %v1388
        %v2409 = vunpack.c.l.b16 %v1389
        %v2410 = vunpack.c.l.b16 %v1390
        %v2411 = vunpack.c.l.b16 %v1391
        %v2412 = vunpack.c.l.b16 %v1392
        %v2413 = vunpack.c.l.b16 %v1393
        %v2414 = vunpack.c.l.b16 %v1394
        %v2415 = vunpack.c.l.b16 %v1395
        %v2416 = vunpack.c.l.b16 %v1396
        %v2417 = vpack.c.b16 %v2386, %v2385
        %v2418 = vpack.c.b16 %v2388, %v2387
        %v2419 = vpack.c.b16 %v2390, %v2389
        %v2420 = vpack.c.b16 %v2392, %v2391
        %v2421 = vpack.c.b16 %v2394, %v2393
        %v2422 = vpack.c.b16 %v2396, %v2395
        %v2423 = vpack.c.b16 %v2398, %v2397
        %v2424 = vpack.c.b16 %v2400, %v2399
        %v2425 = vpack.c.b16 %v2402, %v2401
        %v2426 = vpack.c.b16 %v2404, %v2403
        %v2427 = vpack.c.b16 %v2406, %v2405
        %v2428 = vpack.c.b16 %v2408, %v2407
        %v2429 = vpack.c.b16 %v2410, %v2409
        %v2430 = vpack.c.b16 %v2412, %v2411
        %v2431 = vpack.c.b16 %v2414, %v2413
        %v2432 = vpack.c.b16 %v2416, %v2415
        %v2434 = vshrl.u32 %v2417, 16
        %v2436 = vrot.slane %v2434, 4
        %v2437 = vshll.u32 %v2417, 16
        %v2439 = vrot.slane %v2437, 5
        %v2440 = vor.u32 %v2436, %v2439
        %v2442 = vshrl.u32 %v2418, 16
        %v2444 = vrot.slane %v2442, 4
        %v2445 = vshll.u32 %v2418, 16
        %v2447 = vrot.slane %v2445, 5
        %v2448 = vor.u32 %v2444, %v2447
        %v2449 = vsel %vm1462, %v2440, %v2448
        %v2451 = vshrl.u32 %v2419, 16
        %v2453 = vrot.slane %v2451, 4
        %v2454 = vshll.u32 %v2419, 16
        %v2456 = vrot.slane %v2454, 5
        %v2457 = vor.u32 %v2453, %v2456
        %v2458 = vsel %vm1462, %v2448, %v2457
        %v2460 = vshrl.u32 %v2420, 16
        %v2462 = vrot.slane %v2460, 4
        %v2463 = vshll.u32 %v2420, 16
        %v2465 = vrot.slane %v2463, 5
        %v2466 = vor.u32 %v2462, %v2465
        %v2467 = vsel %vm1462, %v2457, %v2466
        %v2469 = vshrl.u32 %v2421, 16
        %v2471 = vrot.slane %v2469, 4
        %v2472 = vshll.u32 %v2421, 16
        %v2474 = vrot.slane %v2472, 5
        %v2475 = vor.u32 %v2471, %v2474
        %v2476 = vsel %vm1462, %v2466, %v2475
        %v2478 = vshrl.u32 %v2422, 16
        %v2480 = vrot.slane %v2478, 4
        %v2481 = vshll.u32 %v2422, 16
        %v2483 = vrot.slane %v2481, 5
        %v2484 = vor.u32 %v2480, %v2483
        %v2485 = vsel %vm1462, %v2475, %v2484
        %v2487 = vshrl.u32 %v2423, 16
        %v2489 = vrot.slane %v2487, 4
        %v2490 = vshll.u32 %v2423, 16
        %v2492 = vrot.slane %v2490, 5
        %v2493 = vor.u32 %v2489, %v2492
        %v2494 = vsel %vm1462, %v2484, %v2493
        %v2496 = vshrl.u32 %v2424, 16
        %v2498 = vrot.slane %v2496, 4
        %v2499 = vshll.u32 %v2424, 16
        %v2501 = vrot.slane %v2499, 5
        %v2502 = vor.u32 %v2498, %v2501
        %v2503 = vsel %vm1462, %v2493, %v2502
        %v2505 = vshrl.u32 %v2425, 16
        %v2507 = vrot.slane %v2505, 4
        %v2508 = vshll.u32 %v2425, 16
        %v2510 = vrot.slane %v2508, 5
        %v2511 = vor.u32 %v2507, %v2510
        %v2512 = vsel %vm1462, %v2502, %v2511
        %v2514 = vshrl.u32 %v2426, 16
        %v2516 = vrot.slane %v2514, 4
        %v2517 = vshll.u32 %v2426, 16
        %v2519 = vrot.slane %v2517, 5
        %v2520 = vor.u32 %v2516, %v2519
        %v2521 = vsel %vm1462, %v2511, %v2520
        %v2523 = vshrl.u32 %v2427, 16
        %v2525 = vrot.slane %v2523, 4
        %v2526 = vshll.u32 %v2427, 16
        %v2528 = vrot.slane %v2526, 5
        %v2529 = vor.u32 %v2525, %v2528
        %v2530 = vsel %vm1462, %v2520, %v2529
        %v2532 = vshrl.u32 %v2428, 16
        %v2534 = vrot.slane %v2532, 4
        %v2535 = vshll.u32 %v2428, 16
        %v2537 = vrot.slane %v2535, 5
        %v2538 = vor.u32 %v2534, %v2537
        %v2539 = vsel %vm1462, %v2529, %v2538
        %v2541 = vshrl.u32 %v2429, 16
        %v2543 = vrot.slane %v2541, 4
        %v2544 = vshll.u32 %v2429, 16
        %v2546 = vrot.slane %v2544, 5
        %v2547 = vor.u32 %v2543, %v2546
        %v2548 = vsel %vm1462, %v2538, %v2547
        %v2550 = vshrl.u32 %v2430, 16
        %v2552 = vrot.slane %v2550, 4
        %v2553 = vshll.u32 %v2430, 16
        %v2555 = vrot.slane %v2553, 5
        %v2556 = vor.u32 %v2552, %v2555
        %v2557 = vsel %vm1462, %v2547, %v2556
        %v2559 = vshrl.u32 %v2431, 16
        %v2561 = vrot.slane %v2559, 4
        %v2562 = vshll.u32 %v2431, 16
        %v2564 = vrot.slane %v2562, 5
        %v2565 = vor.u32 %v2561, %v2564
        %v2566 = vsel %vm1462, %v2556, %v2565
        %v2568 = vshrl.u32 %v2432, 16
        %v2570 = vrot.slane %v2568, 4
        %v2571 = vshll.u32 %v2432, 16
        %v2573 = vrot.slane %v2571, 5
        %v2574 = vor.u32 %v2570, %v2573
        %v2575 = vsel %vm1462, %v2565, %v2574
        %2576 = vrot.lane.b32.xlu0 %v2440, 32
        %v2577 = vpop.permute.xlu0 %2576
        %2578 = vrot.lane.b32.xlu0 %v2449, 32
        %v2579 = vpop.permute.xlu0 %2578
        %2580 = vrot.lane.b32.xlu0 %v2458, 32
        %v2581 = vpop.permute.xlu0 %2580
        %2582 = vrot.lane.b32.xlu0 %v2467, 32
        %v2583 = vpop.permute.xlu0 %2582
        %2584 = vrot.lane.b32.xlu0 %v2476, 32
        %v2585 = vpop.permute.xlu0 %2584
        %2586 = vrot.lane.b32.xlu0 %v2485, 32
        %v2587 = vpop.permute.xlu0 %2586
        %2588 = vrot.lane.b32.xlu0 %v2494, 32
        %v2589 = vpop.permute.xlu0 %2588
        %2590 = vrot.lane.b32.xlu0 %v2503, 32
        %v2591 = vpop.permute.xlu0 %2590
        %2592 = vrot.lane.b32.xlu0 %v2512, 32
        %v2593 = vpop.permute.xlu0 %2592
        %2594 = vrot.lane.b32.xlu0 %v2521, 32
        %v2595 = vpop.permute.xlu0 %2594
        %2596 = vrot.lane.b32.xlu0 %v2530, 32
        %v2597 = vpop.permute.xlu0 %2596
        %2598 = vrot.lane.b32.xlu0 %v2539, 32
        %v2599 = vpop.permute.xlu0 %2598
        %2600 = vrot.lane.b32.xlu0 %v2548, 32
        %v2601 = vpop.permute.xlu0 %2600
        %2602 = vrot.lane.b32.xlu0 %v2557, 32
        %v2603 = vpop.permute.xlu0 %2602
        %2604 = vrot.lane.b32.xlu0 %v2566, 32
        %v2605 = vpop.permute.xlu0 %2604
        %2606 = vrot.lane.b32.xlu0 %v2575, 32
        %v2607 = vpop.permute.xlu0 %2606
        %2608 = vrot.lane.b32.xlu0 %v2574, 32
        %v2609 = vpop.permute.xlu0 %2608
        %v2643 = vunpack.c.l.b16 %v2237
        %v2644 = vunpack.c.l.b16 %v2238
        %v2645 = vunpack.c.l.b16 %v2239
        %v2646 = vunpack.c.l.b16 %v2240
        %v2647 = vunpack.c.l.b16 %v2241
        %v2648 = vunpack.c.l.b16 %v2242
        %v2649 = vunpack.c.l.b16 %v2243
        %v2650 = vunpack.c.l.b16 %v2244
        %v2651 = vunpack.c.l.b16 %v2245
        %v2652 = vunpack.c.l.b16 %v2246
        %v2653 = vunpack.c.l.b16 %v2247
        %v2654 = vunpack.c.l.b16 %v2248
        %v2655 = vunpack.c.l.b16 %v2249
        %v2656 = vunpack.c.l.b16 %v2250
        %v2657 = vunpack.c.l.b16 %v2251
        %v2658 = vunpack.c.l.b16 %v2252
        %v2659 = vunpack.c.l.b16 %v2253
        %v2660 = vunpack.c.l.b16 %v2254
        %v2661 = vunpack.c.l.b16 %v2255
        %v2662 = vunpack.c.l.b16 %v2256
        %v2663 = vunpack.c.l.b16 %v2257
        %v2664 = vunpack.c.l.b16 %v2258
        %v2665 = vunpack.c.l.b16 %v2259
        %v2666 = vunpack.c.l.b16 %v2260
        %v2667 = vunpack.c.l.b16 %v2261
        %v2668 = vunpack.c.l.b16 %v2262
        %v2669 = vunpack.c.l.b16 %v2263
        %v2670 = vunpack.c.l.b16 %v2264
        %v2671 = vunpack.c.l.b16 %v2265
        %v2672 = vunpack.c.l.b16 %v2266
        %v2673 = vunpack.c.l.b16 %v2267
        %v2674 = vunpack.c.l.b16 %v2268
        %v2675 = vunpack.c.l.b16 %v2269
        %v2676 = vpack.c.b16 %v2644, %v2643
        %v2677 = vpack.c.b16 %v2646, %v2645
        %v2678 = vpack.c.b16 %v2648, %v2647
        %v2679 = vpack.c.b16 %v2650, %v2649
        %v2680 = vpack.c.b16 %v2652, %v2651
        %v2681 = vpack.c.b16 %v2654, %v2653
        %v2682 = vpack.c.b16 %v2656, %v2655
        %v2683 = vpack.c.b16 %v2658, %v2657
        %v2684 = vpack.c.b16 %v2660, %v2659
        %v2685 = vpack.c.b16 %v2662, %v2661
        %v2686 = vpack.c.b16 %v2664, %v2663
        %v2687 = vpack.c.b16 %v2666, %v2665
        %v2688 = vpack.c.b16 %v2668, %v2667
        %v2689 = vpack.c.b16 %v2670, %v2669
        %v2690 = vpack.c.b16 %v2672, %v2671
        %v2691 = vpack.c.b16 %v2674, %v2673
        %v2692 = vpack.c.b16 %v2675, %v2675
        %vm2693 = vcmask 1042432
        %v2694 = vrot.slane %v2676, 5
        %v2695 = vrot.slane %v2677, 5
        %v2696 = vsel %vm2693, %v2694, %v2695
        %v2697 = vrot.slane %v2678, 5
        %v2698 = vsel %vm2693, %v2695, %v2697
        %v2699 = vrot.slane %v2679, 5
        %v2700 = vsel %vm2693, %v2697, %v2699
        %v2701 = vrot.slane %v2680, 5
        %v2702 = vsel %vm2693, %v2699, %v2701
        %v2703 = vrot.slane %v2681, 5
        %v2704 = vsel %vm2693, %v2701, %v2703
        %v2705 = vrot.slane %v2682, 5
        %v2706 = vsel %vm2693, %v2703, %v2705
        %v2707 = vrot.slane %v2683, 5
        %v2708 = vsel %vm2693, %v2705, %v2707
        %v2709 = vrot.slane %v2684, 5
        %v2710 = vsel %vm2693, %v2707, %v2709
        %v2711 = vrot.slane %v2685, 5
        %v2712 = vsel %vm2693, %v2709, %v2711
        %v2713 = vrot.slane %v2686, 5
        %v2714 = vsel %vm2693, %v2711, %v2713
        %v2715 = vrot.slane %v2687, 5
        %v2716 = vsel %vm2693, %v2713, %v2715
        %v2717 = vrot.slane %v2688, 5
        %v2718 = vsel %vm2693, %v2715, %v2717
        %v2719 = vrot.slane %v2689, 5
        %v2720 = vsel %vm2693, %v2717, %v2719
        %v2721 = vrot.slane %v2690, 5
        %v2722 = vsel %vm2693, %v2719, %v2721
        %v2723 = vrot.slane %v2691, 5
        %v2724 = vsel %vm2693, %v2721, %v2723
        %v2725 = vrot.slane %v2692, 5
        %v2726 = vsel %vm2693, %v2723, %v2725
        %2727 = vrot.lane.b32.xlu0 %v2694, 64
        %v2728 = vpop.permute.xlu0 %2727
        %2729 = vrot.lane.b32.xlu0 %v2696, 64
        %v2730 = vpop.permute.xlu0 %2729
        %2731 = vrot.lane.b32.xlu0 %v2698, 64
        %v2732 = vpop.permute.xlu0 %2731
        %2733 = vrot.lane.b32.xlu0 %v2700, 64
        %v2734 = vpop.permute.xlu0 %2733
        %2735 = vrot.lane.b32.xlu0 %v2702, 64
        %v2736 = vpop.permute.xlu0 %2735
        %2737 = vrot.lane.b32.xlu0 %v2704, 64
        %v2738 = vpop.permute.xlu0 %2737
        %2739 = vrot.lane.b32.xlu0 %v2706, 64
        %v2740 = vpop.permute.xlu0 %2739
        %2741 = vrot.lane.b32.xlu0 %v2708, 64
        %v2742 = vpop.permute.xlu0 %2741
        %2743 = vrot.lane.b32.xlu0 %v2710, 64
        %v2744 = vpop.permute.xlu0 %2743
        %2745 = vrot.lane.b32.xlu0 %v2712, 64
        %v2746 = vpop.permute.xlu0 %2745
        %2747 = vrot.lane.b32.xlu0 %v2714, 64
        %v2748 = vpop.permute.xlu0 %2747
        %2749 = vrot.lane.b32.xlu0 %v2716, 64
        %v2750 = vpop.permute.xlu0 %2749
        %2751 = vrot.lane.b32.xlu0 %v2718, 64
        %v2752 = vpop.permute.xlu0 %2751
        %2753 = vrot.lane.b32.xlu0 %v2720, 64
        %v2754 = vpop.permute.xlu0 %2753
        %2755 = vrot.lane.b32.xlu0 %v2722, 64
        %v2756 = vpop.permute.xlu0 %2755
        %2757 = vrot.lane.b32.xlu0 %v2724, 64
        %v2758 = vpop.permute.xlu0 %2757
        %2759 = vrot.lane.b32.xlu0 %v2726, 64
        %v2760 = vpop.permute.xlu0 %2759
        %vm2761 = vcmask 261120
        %v2764 = vsel %vm2761, %v2336, %v2577
        %v2767 = vsel %vm2761, %v2337, %v2579
        %v2770 = vsel %vm2761, %v2338, %v2581
        %v2773 = vsel %vm2761, %v2339, %v2583
        %v2776 = vsel %vm2761, %v2340, %v2585
        %v2779 = vsel %vm2761, %v2341, %v2587
        %v2782 = vsel %vm2761, %v2342, %v2589
        %v2785 = vsel %vm2761, %v2343, %v2591
        %v2788 = vsel %vm2761, %v2344, %v2593
        %v2791 = vsel %vm2761, %v2345, %v2595
        %v2794 = vsel %vm2761, %v2346, %v2597
        %v2797 = vsel %vm2761, %v2347, %v2599
        %v2800 = vsel %vm2761, %v2348, %v2601
        %v2803 = vsel %vm2761, %v2349, %v2603
        %v2806 = vsel %vm2761, %v2350, %v2605
        %v2809 = vsel %vm2761, %v2351, %v2607
        %v2812 = vsel %vm2761, %v2352, %v2609
        %vm2813 = vcmask 523264
        %v2815 = vsel %vm2813, %v2764, %v2728
        %v2817 = vsel %vm2813, %v2767, %v2730
        %v2819 = vsel %vm2813, %v2770, %v2732
        %v2821 = vsel %vm2813, %v2773, %v2734
        %v2823 = vsel %vm2813, %v2776, %v2736
        %v2825 = vsel %vm2813, %v2779, %v2738
        %v2827 = vsel %vm2813, %v2782, %v2740
        %v2829 = vsel %vm2813, %v2785, %v2742
        %v2831 = vsel %vm2813, %v2788, %v2744
        %v2833 = vsel %vm2813, %v2791, %v2746
        %v2835 = vsel %vm2813, %v2794, %v2748
        %v2837 = vsel %vm2813, %v2797, %v2750
        %v2839 = vsel %vm2813, %v2800, %v2752
        %v2841 = vsel %vm2813, %v2803, %v2754
        %v2843 = vsel %vm2813, %v2806, %v2756
        %v2845 = vsel %vm2813, %v2809, %v2758
        %v2847 = vsel %vm2813, %v2812, %v2760
        %v2848 = vld [vmem:[#allocation2 + $0xc] sm:$0x8]
        %v2849 = vld [vmem:[#allocation2 + $0x88] sm:$0xf]
        %v2850 = vld [vmem:[#allocation2 + $0x8c] sm:$0xf]
        %v2851 = vld [vmem:[#allocation2 + $0x90] sm:$0x1]
        %v2852 = vsel %vm1784, %v2848, 0
        %v2853 = vsel %vm1785, %v1367, 0
        %v2854 = vsel %vm1786, %v1368, 0
        %v2855 = vsel %vm1787, %v1369, 0
        %v2856 = vsel %vm1788, %v1370, 0
        %v2857 = vsel %vm1789, %v1371, 0
        %v2858 = vsel %vm1790, %v1372, 0
        %v2859 = vsel %vm1791, %v1373, 0
        %v2860 = vsel %vm1792, %v1374, 0
        %v2861 = vsel %vm1793, %v1375, 0
        %v2862 = vsel %vm1794, %v1376, 0
        %v2863 = vsel %vm1795, %v1377, 0
        %v2864 = vsel %vm1796, %v1378, 0
        %v2865 = vsel %vm1797, %v1379, 0
        %v2866 = vsel %vm1798, %v1380, 0
        %v2867 = vsel %vm1799, %v1381, 0
        %v2868 = vsel %vm1800, %v1382, 0
        %v2869 = vsel %vm1801, %v1383, 0
        %v2870 = vsel %vm1802, %v1384, 0
        %v2871 = vsel %vm1803, %v1385, 0
        %v2872 = vsel %vm1804, %v1386, 0
        %v2873 = vsel %vm1805, %v1387, 0
        %v2874 = vsel %vm1806, %v1388, 0
        %v2875 = vsel %vm1807, %v1389, 0
        %v2876 = vsel %vm1808, %v1390, 0
        %v2877 = vsel %vm1809, %v1391, 0
        %v2878 = vsel %vm1810, %v1392, 0
        %v2879 = vsel %vm1811, %v1393, 0
        %v2880 = vsel %vm1812, %v1394, 0
        %v2881 = vsel %vm1813, %v1395, 0
        %v2882 = vsel %vm1814, %v1396, 0
        %v2883 = vsel %vm1815, %v2849, 0
        %v2884 = vsel %vm1816, %v2850, 0
        %v2885 = vsel %vm2204, %v1367, 0
        %v2886 = vsel %vm2205, %v1368, 0
        %v2887 = vsel %vm2206, %v1369, 0
        %v2888 = vsel %vm2207, %v1370, 0
        %v2889 = vsel %vm2208, %v1371, 0
        %v2890 = vsel %vm2209, %v1372, 0
        %v2891 = vsel %vm2210, %v1373, 0
        %v2892 = vsel %vm2211, %v1374, 0
        %v2893 = vsel %vm2212, %v1375, 0
        %v2894 = vsel %vm2213, %v1376, 0
        %v2895 = vsel %vm2214, %v1377, 0
        %v2896 = vsel %vm2215, %v1378, 0
        %v2897 = vsel %vm2216, %v1379, 0
        %v2898 = vsel %vm2217, %v1380, 0
        %v2899 = vsel %vm2218, %v1381, 0
        %v2900 = vsel %vm2219, %v1382, 0
        %v2901 = vsel %vm2220, %v1383, 0
        %v2902 = vsel %vm2221, %v1384, 0
        %v2903 = vsel %vm2222, %v1385, 0
        %v2904 = vsel %vm2223, %v1386, 0
        %v2905 = vsel %vm2224, %v1387, 0
        %v2906 = vsel %vm2225, %v1388, 0
        %v2907 = vsel %vm2226, %v1389, 0
        %v2908 = vsel %vm2227, %v1390, 0
        %v2909 = vsel %vm2228, %v1391, 0
        %v2910 = vsel %vm2229, %v1392, 0
        %v2911 = vsel %vm2230, %v1393, 0
        %v2912 = vsel %vm2231, %v1394, 0
        %v2913 = vsel %vm2232, %v1395, 0
        %v2914 = vsel %vm2233, %v1396, 0
        %v2915 = vsel %vm2234, %v2849, 0
        %v2916 = vsel %vm2235, %v2850, 0
        %v2917 = vsel %vm2236, %v2851, 0
        %v2951 = vunpack.c.l.b16 %v2852
        %v2952 = vunpack.c.l.b16 %v2853
        %v2953 = vunpack.c.l.b16 %v2854
        %v2954 = vunpack.c.l.b16 %v2855
        %v2955 = vunpack.c.l.b16 %v2856
        %v2956 = vunpack.c.l.b16 %v2857
        %v2957 = vunpack.c.l.b16 %v2858
        %v2958 = vunpack.c.l.b16 %v2859
        %v2959 = vunpack.c.l.b16 %v2860
        %v2960 = vunpack.c.l.b16 %v2861
        %v2961 = vunpack.c.l.b16 %v2862
        %v2962 = vunpack.c.l.b16 %v2863
        %v2963 = vunpack.c.l.b16 %v2864
        %v2964 = vunpack.c.l.b16 %v2865
        %v2965 = vunpack.c.l.b16 %v2866
        %v2966 = vunpack.c.l.b16 %v2867
        %v2967 = vunpack.c.l.b16 %v2868
        %v2968 = vunpack.c.l.b16 %v2869
        %v2969 = vunpack.c.l.b16 %v2870
        %v2970 = vunpack.c.l.b16 %v2871
        %v2971 = vunpack.c.l.b16 %v2872
        %v2972 = vunpack.c.l.b16 %v2873
        %v2973 = vunpack.c.l.b16 %v2874
        %v2974 = vunpack.c.l.b16 %v2875
        %v2975 = vunpack.c.l.b16 %v2876
        %v2976 = vunpack.c.l.b16 %v2877
        %v2977 = vunpack.c.l.b16 %v2878
        %v2978 = vunpack.c.l.b16 %v2879
        %v2979 = vunpack.c.l.b16 %v2880
        %v2980 = vunpack.c.l.b16 %v2881
        %v2981 = vunpack.c.l.b16 %v2882
        %v2982 = vunpack.c.l.b16 %v2883
        %v2983 = vunpack.c.l.b16 %v2884
        %v2984 = vpack.c.b16 %v2952, %v2951
        %v2985 = vpack.c.b16 %v2954, %v2953
        %v2986 = vpack.c.b16 %v2956, %v2955
        %v2987 = vpack.c.b16 %v2958, %v2957
        %v2988 = vpack.c.b16 %v2960, %v2959
        %v2989 = vpack.c.b16 %v2962, %v2961
        %v2990 = vpack.c.b16 %v2964, %v2963
        %v2991 = vpack.c.b16 %v2966, %v2965
        %v2992 = vpack.c.b16 %v2968, %v2967
        %v2993 = vpack.c.b16 %v2970, %v2969
        %v2994 = vpack.c.b16 %v2972, %v2971
        %v2995 = vpack.c.b16 %v2974, %v2973
        %v2996 = vpack.c.b16 %v2976, %v2975
        %v2997 = vpack.c.b16 %v2978, %v2977
        %v2998 = vpack.c.b16 %v2980, %v2979
        %v2999 = vpack.c.b16 %v2982, %v2981
        %v3000 = vpack.c.b16 %v2983, %v2983
        %v3003 = vunpack.c.l.b16 %v2849
        %v3004 = vunpack.c.l.b16 %v2850
        %v3005 = vpack.c.b16 %v3004, %v3003
        %v3007 = vshrl.u32 %v3005, 16
        %v3009 = vrot.slane %v3007, 4
        %v3010 = vshll.u32 %v3005, 16
        %v3012 = vrot.slane %v3010, 5
        %v3013 = vor.u32 %v3009, %v3012
        %v3014 = vsel %vm1462, %v2574, %v3013
        %3015 = vrot.lane.b32.xlu0 %v2448, 32
        %v3016 = vpop.permute.xlu0 %3015
        %3017 = vrot.lane.b32.xlu0 %v3014, 32
        %v3018 = vpop.permute.xlu0 %3017
        %3019 = vrot.lane.b32.xlu0 %v3013, 32
        %v3020 = vpop.permute.xlu0 %3019
        %v3054 = vunpack.c.l.b16 %v2885
        %v3055 = vunpack.c.l.b16 %v2886
        %v3056 = vunpack.c.l.b16 %v2887
        %v3057 = vunpack.c.l.b16 %v2888
        %v3058 = vunpack.c.l.b16 %v2889
        %v3059 = vunpack.c.l.b16 %v2890
        %v3060 = vunpack.c.l.b16 %v2891
        %v3061 = vunpack.c.l.b16 %v2892
        %v3062 = vunpack.c.l.b16 %v2893
        %v3063 = vunpack.c.l.b16 %v2894
        %v3064 = vunpack.c.l.b16 %v2895
        %v3065 = vunpack.c.l.b16 %v2896
        %v3066 = vunpack.c.l.b16 %v2897
        %v3067 = vunpack.c.l.b16 %v2898
        %v3068 = vunpack.c.l.b16 %v2899
        %v3069 = vunpack.c.l.b16 %v2900
        %v3070 = vunpack.c.l.b16 %v2901
        %v3071 = vunpack.c.l.b16 %v2902
        %v3072 = vunpack.c.l.b16 %v2903
        %v3073 = vunpack.c.l.b16 %v2904
        %v3074 = vunpack.c.l.b16 %v2905
        %v3075 = vunpack.c.l.b16 %v2906
        %v3076 = vunpack.c.l.b16 %v2907
        %v3077 = vunpack.c.l.b16 %v2908
        %v3078 = vunpack.c.l.b16 %v2909
        %v3079 = vunpack.c.l.b16 %v2910
        %v3080 = vunpack.c.l.b16 %v2911
        %v3081 = vunpack.c.l.b16 %v2912
        %v3082 = vunpack.c.l.b16 %v2913
        %v3083 = vunpack.c.l.b16 %v2914
        %v3084 = vunpack.c.l.b16 %v2915
        %v3085 = vunpack.c.l.b16 %v2916
        %v3086 = vunpack.c.l.b16 %v2917
        %v3087 = vpack.c.b16 %v3055, %v3054
        %v3088 = vpack.c.b16 %v3057, %v3056
        %v3089 = vpack.c.b16 %v3059, %v3058
        %v3090 = vpack.c.b16 %v3061, %v3060
        %v3091 = vpack.c.b16 %v3063, %v3062
        %v3092 = vpack.c.b16 %v3065, %v3064
        %v3093 = vpack.c.b16 %v3067, %v3066
        %v3094 = vpack.c.b16 %v3069, %v3068
        %v3095 = vpack.c.b16 %v3071, %v3070
        %v3096 = vpack.c.b16 %v3073, %v3072
        %v3097 = vpack.c.b16 %v3075, %v3074
        %v3098 = vpack.c.b16 %v3077, %v3076
        %v3099 = vpack.c.b16 %v3079, %v3078
        %v3100 = vpack.c.b16 %v3081, %v3080
        %v3101 = vpack.c.b16 %v3083, %v3082
        %v3102 = vpack.c.b16 %v3085, %v3084
        %v3103 = vpack.c.b16 %v3086, %v3086
        %v3104 = vrot.slane %v3087, 5
        %v3105 = vrot.slane %v3088, 5
        %v3106 = vsel %vm2693, %v3104, %v3105
        %v3107 = vrot.slane %v3089, 5
        %v3108 = vsel %vm2693, %v3105, %v3107
        %v3109 = vrot.slane %v3090, 5
        %v3110 = vsel %vm2693, %v3107, %v3109
        %v3111 = vrot.slane %v3091, 5
        %v3112 = vsel %vm2693, %v3109, %v3111
        %v3113 = vrot.slane %v3092, 5
        %v3114 = vsel %vm2693, %v3111, %v3113
        %v3115 = vrot.slane %v3093, 5
        %v3116 = vsel %vm2693, %v3113, %v3115
        %v3117 = vrot.slane %v3094, 5
        %v3118 = vsel %vm2693, %v3115, %v3117
        %v3119 = vrot.slane %v3095, 5
        %v3120 = vsel %vm2693, %v3117, %v3119
        %v3121 = vrot.slane %v3096, 5
        %v3122 = vsel %vm2693, %v3119, %v3121
        %v3123 = vrot.slane %v3097, 5
        %v3124 = vsel %vm2693, %v3121, %v3123
        %v3125 = vrot.slane %v3098, 5
        %v3126 = vsel %vm2693, %v3123, %v3125
        %v3127 = vrot.slane %v3099, 5
        %v3128 = vsel %vm2693, %v3125, %v3127
        %v3129 = vrot.slane %v3100, 5
        %v3130 = vsel %vm2693, %v3127, %v3129
        %v3131 = vrot.slane %v3101, 5
        %v3132 = vsel %vm2693, %v3129, %v3131
        %v3133 = vrot.slane %v3102, 5
        %v3134 = vsel %vm2693, %v3131, %v3133
        %v3135 = vrot.slane %v3103, 5
        %v3136 = vsel %vm2693, %v3133, %v3135
        %3137 = vrot.lane.b32.xlu0 %v3104, 64
        %v3138 = vpop.permute.xlu0 %3137
        %3139 = vrot.lane.b32.xlu0 %v3106, 64
        %v3140 = vpop.permute.xlu0 %3139
        %3141 = vrot.lane.b32.xlu0 %v3108, 64
        %v3142 = vpop.permute.xlu0 %3141
        %3143 = vrot.lane.b32.xlu0 %v3110, 64
        %v3144 = vpop.permute.xlu0 %3143
        %3145 = vrot.lane.b32.xlu0 %v3112, 64
        %v3146 = vpop.permute.xlu0 %3145
        %3147 = vrot.lane.b32.xlu0 %v3114, 64
        %v3148 = vpop.permute.xlu0 %3147
        %3149 = vrot.lane.b32.xlu0 %v3116, 64
        %v3150 = vpop.permute.xlu0 %3149
        %3151 = vrot.lane.b32.xlu0 %v3118, 64
        %v3152 = vpop.permute.xlu0 %3151
        %3153 = vrot.lane.b32.xlu0 %v3120, 64
        %v3154 = vpop.permute.xlu0 %3153
        %3155 = vrot.lane.b32.xlu0 %v3122, 64
        %v3156 = vpop.permute.xlu0 %3155
        %3157 = vrot.lane.b32.xlu0 %v3124, 64
        %v3158 = vpop.permute.xlu0 %3157
        %3159 = vrot.lane.b32.xlu0 %v3126, 64
        %v3160 = vpop.permute.xlu0 %3159
        %3161 = vrot.lane.b32.xlu0 %v3128, 64
        %v3162 = vpop.permute.xlu0 %3161
        %3163 = vrot.lane.b32.xlu0 %v3130, 64
        %v3164 = vpop.permute.xlu0 %3163
        %3165 = vrot.lane.b32.xlu0 %v3132, 64
        %v3166 = vpop.permute.xlu0 %3165
        %3167 = vrot.lane.b32.xlu0 %v3134, 64
        %v3168 = vpop.permute.xlu0 %3167
        %3169 = vrot.lane.b32.xlu0 %v3136, 64
        %v3170 = vpop.permute.xlu0 %3169
        %v3173 = vsel %vm2761, %v2984, %v3016
        %v3175 = vsel %vm2761, %v2985, %v2581
        %v3177 = vsel %vm2761, %v2986, %v2583
        %v3179 = vsel %vm2761, %v2987, %v2585
        %v3181 = vsel %vm2761, %v2988, %v2587
        %v3183 = vsel %vm2761, %v2989, %v2589
        %v3185 = vsel %vm2761, %v2990, %v2591
        %v3187 = vsel %vm2761, %v2991, %v2593
        %v3189 = vsel %vm2761, %v2992, %v2595
        %v3191 = vsel %vm2761, %v2993, %v2597
        %v3193 = vsel %vm2761, %v2994, %v2599
        %v3195 = vsel %vm2761, %v2995, %v2601
        %v3197 = vsel %vm2761, %v2996, %v2603
        %v3199 = vsel %vm2761, %v2997, %v2605
        %v3201 = vsel %vm2761, %v2998, %v2607
        %v3204 = vsel %vm2761, %v2999, %v3018
        %v3207 = vsel %vm2761, %v3000, %v3020
        %v3209 = vsel %vm2813, %v3173, %v3138
        %v3211 = vsel %vm2813, %v3175, %v3140
        %v3213 = vsel %vm2813, %v3177, %v3142
        %v3215 = vsel %vm2813, %v3179, %v3144
        %v3217 = vsel %vm2813, %v3181, %v3146
        %v3219 = vsel %vm2813, %v3183, %v3148
        %v3221 = vsel %vm2813, %v3185, %v3150
        %v3223 = vsel %vm2813, %v3187, %v3152
        %v3225 = vsel %vm2813, %v3189, %v3154
        %v3227 = vsel %vm2813, %v3191, %v3156
        %v3229 = vsel %vm2813, %v3193, %v3158
        %v3231 = vsel %vm2813, %v3195, %v3160
        %v3233 = vsel %vm2813, %v3197, %v3162
        %v3235 = vsel %vm2813, %v3199, %v3164
        %v3237 = vsel %vm2813, %v3201, %v3166
        %v3239 = vsel %vm2813, %v3204, %v3168
        %v3241 = vsel %vm2813, %v3207, %v3170
        %vm3242 = vsmask.f32 4352
        %v3243 = vshrl.u32 %v3209, 16
        %v3245 = vrot.slane %v3243, 3
        %v3246 = vshll.u32 %v3209, 16
        %v3248 = vrot.slane %v3246, 4
        %v3249 = vor.u32 %v3245, %v3248
        %v3250 = vshrl.u32 %v3211, 16
        %v3252 = vrot.slane %v3250, 3
        %v3253 = vshll.u32 %v3211, 16
        %v3255 = vrot.slane %v3253, 4
        %v3256 = vor.u32 %v3252, %v3255
        %v3257 = vsel %vm3242, %v3249, %v3256
        %v3258 = vshrl.u32 %v3213, 16
        %v3260 = vrot.slane %v3258, 3
        %v3261 = vshll.u32 %v3213, 16
        %v3263 = vrot.slane %v3261, 4
        %v3264 = vor.u32 %v3260, %v3263
        %v3265 = vsel %vm3242, %v3256, %v3264
        %v3266 = vshrl.u32 %v3215, 16
        %v3268 = vrot.slane %v3266, 3
        %v3269 = vshll.u32 %v3215, 16
        %v3271 = vrot.slane %v3269, 4
        %v3272 = vor.u32 %v3268, %v3271
        %v3273 = vsel %vm3242, %v3264, %v3272
        %v3274 = vshrl.u32 %v3217, 16
        %v3276 = vrot.slane %v3274, 3
        %v3277 = vshll.u32 %v3217, 16
        %v3279 = vrot.slane %v3277, 4
        %v3280 = vor.u32 %v3276, %v3279
        %v3281 = vsel %vm3242, %v3272, %v3280
        %v3282 = vshrl.u32 %v3219, 16
        %v3284 = vrot.slane %v3282, 3
        %v3285 = vshll.u32 %v3219, 16
        %v3287 = vrot.slane %v3285, 4
        %v3288 = vor.u32 %v3284, %v3287
        %v3289 = vsel %vm3242, %v3280, %v3288
        %v3290 = vshrl.u32 %v3221, 16
        %v3292 = vrot.slane %v3290, 3
        %v3293 = vshll.u32 %v3221, 16
        %v3295 = vrot.slane %v3293, 4
        %v3296 = vor.u32 %v3292, %v3295
        %v3297 = vsel %vm3242, %v3288, %v3296
        %v3298 = vshrl.u32 %v3223, 16
        %v3300 = vrot.slane %v3298, 3
        %v3301 = vshll.u32 %v3223, 16
        %v3303 = vrot.slane %v3301, 4
        %v3304 = vor.u32 %v3300, %v3303
        %v3305 = vsel %vm3242, %v3296, %v3304
        %v3306 = vshrl.u32 %v3225, 16
        %v3308 = vrot.slane %v3306, 3
        %v3309 = vshll.u32 %v3225, 16
        %v3311 = vrot.slane %v3309, 4
        %v3312 = vor.u32 %v3308, %v3311
        %v3313 = vsel %vm3242, %v3304, %v3312
        %v3314 = vshrl.u32 %v3227, 16
        %v3316 = vrot.slane %v3314, 3
        %v3317 = vshll.u32 %v3227, 16
        %v3319 = vrot.slane %v3317, 4
        %v3320 = vor.u32 %v3316, %v3319
        %v3321 = vsel %vm3242, %v3312, %v3320
        %v3322 = vshrl.u32 %v3229, 16
        %v3324 = vrot.slane %v3322, 3
        %v3325 = vshll.u32 %v3229, 16
        %v3327 = vrot.slane %v3325, 4
        %v3328 = vor.u32 %v3324, %v3327
        %v3329 = vsel %vm3242, %v3320, %v3328
        %v3330 = vshrl.u32 %v3231, 16
        %v3332 = vrot.slane %v3330, 3
        %v3333 = vshll.u32 %v3231, 16
        %v3335 = vrot.slane %v3333, 4
        %v3336 = vor.u32 %v3332, %v3335
        %v3337 = vsel %vm3242, %v3328, %v3336
        %v3338 = vshrl.u32 %v3233, 16
        %v3340 = vrot.slane %v3338, 3
        %v3341 = vshll.u32 %v3233, 16
        %v3343 = vrot.slane %v3341, 4
        %v3344 = vor.u32 %v3340, %v3343
        %v3345 = vsel %vm3242, %v3336, %v3344
        %v3346 = vshrl.u32 %v3235, 16
        %v3348 = vrot.slane %v3346, 3
        %v3349 = vshll.u32 %v3235, 16
        %v3351 = vrot.slane %v3349, 4
        %v3352 = vor.u32 %v3348, %v3351
        %v3353 = vsel %vm3242, %v3344, %v3352
        %v3354 = vshrl.u32 %v3237, 16
        %v3356 = vrot.slane %v3354, 3
        %v3357 = vshll.u32 %v3237, 16
        %v3359 = vrot.slane %v3357, 4
        %v3360 = vor.u32 %v3356, %v3359
        %v3361 = vsel %vm3242, %v3352, %v3360
        %v3362 = vshrl.u32 %v3239, 16
        %v3364 = vrot.slane %v3362, 3
        %v3365 = vshll.u32 %v3239, 16
        %v3367 = vrot.slane %v3365, 4
        %v3368 = vor.u32 %v3364, %v3367
        %v3369 = vsel %vm3242, %v3360, %v3368
        %v3370 = vshrl.u32 %v3241, 16
        %v3372 = vrot.slane %v3370, 3
        %v3373 = vshll.u32 %v3241, 16
        %v3375 = vrot.slane %v3373, 4
        %v3376 = vor.u32 %v3372, %v3375
        %v3377 = vsel %vm3242, %v3368, %v3376
        %v3390 = vunpack.c.l.b16 %v798
        %v3391 = vunpack.c.l.b16 %v799
        %v3392 = vunpack.c.l.b16 %v800
        %v3393 = vunpack.c.l.b16 %v801
        %v3394 = vunpack.c.l.b16 %v802
        %v3395 = vunpack.c.l.b16 %v803
        %v3396 = vunpack.c.l.b16 %v804
        %v3397 = vunpack.c.l.b16 %v805
        %v3398 = vunpack.c.l.b16 %v806
        %v3399 = vunpack.c.l.b16 %v807
        %v3400 = vunpack.c.l.b16 %v808
        %v3401 = vunpack.c.l.b16 %v809
        %v3402 = vpack.c.b16 %v3391, %v3390
        %v3403 = vpack.c.b16 %v3393, %v3392
        %v3404 = vpack.c.b16 %v3395, %v3394
        %v3405 = vpack.c.b16 %v3397, %v3396
        %v3406 = vpack.c.b16 %v3399, %v3398
        %v3407 = vpack.c.b16 %v3401, %v3400
        %vm3414 = vcmask 785408
        %v3416 = vsel %vm3414, %v3257, 0
        %v3419 = vsel %vm3414, %v3265, 0
        %v3422 = vsel %vm3414, %v3273, 0
        %v3425 = vsel %vm3414, %v3281, 0
        %v3428 = vsel %vm3414, %v3289, 0
        %v3431 = vsel %vm3414, %v3297, 0
        %v3434 = vsel %vm3414, %v3305, 0
        %v3437 = vsel %vm3414, %v3313, 0
        %v3440 = vsel %vm3414, %v3321, 0
        %v3443 = vsel %vm3414, %v3329, 0
        %v3446 = vsel %vm3414, %v3337, 0
        %v3449 = vsel %vm3414, %v3345, 0
        %v3452 = vsel %vm3414, %v3353, 0
        %v3455 = vsel %vm3414, %v3361, 0
        %v3458 = vsel %vm3414, %v3369, 0
        %v3461 = vsel %vm3414, %v3377, 0
        %3463 = vmatprep.subr.bf16.mxu0 0
        %3464 = vmatpush1.bf16.msra.mxu0 0
        %3465 = vmatprep.subr.bf16.mxu0 0
        %3466 = vmatpush1.bf16.msra.mxu0 0
        %3467 = vmatprep.subr.bf16.mxu0 0
        %3468 = vmatpush1.bf16.msra.mxu0 %v3407
        %3469 = vmatprep.subr.bf16.mxu0 0
        %3470 = vmatpush1.bf16.msra.mxu0 %v3406
        %3471 = vmatprep.subr.bf16.mxu0 0
        %3472 = vmatpush1.bf16.msra.mxu0 %v3405
        %3473 = vmatprep.subr.bf16.mxu0 0
        %3474 = vmatpush1.bf16.msra.mxu0 %v3404
        %3475 = vmatprep.subr.bf16.mxu0 0
        %3476 = vmatpush1.bf16.msra.mxu0 %v3403
        %3477 = vmatprep.subr.bf16.mxu0 0
        %3478 = vmatpush1.bf16.msra.mxu0 %v3402
        %3479 = vmatprep.subr.bf16.mxu0 0
        %3480 = vmatpush2.bf16.msra.mxu0 0
        %3481 = vmatprep.subr.bf16.mxu0 0
        %3482 = vmatpush2.bf16.msra.mxu0 0
        %3483 = vmatprep.subr.bf16.mxu0 0
        %3484 = vmatpush2.bf16.msra.mxu0 0
        %3485 = vmatprep.subr.bf16.mxu0 0
        %3486 = vmatpush2.bf16.msra.mxu0 0
        %3487 = vmatprep.subr.bf16.mxu0 0
        %3488 = vmatpush2.bf16.msra.mxu0 0
        %3489 = vmatprep.subr.bf16.mxu0 0
        %3490 = vmatpush2.bf16.msra.mxu0 0
        %3491 = vmatprep.subr.bf16.mxu0 0
        %3492 = vmatpush2.bf16.msra.mxu0 0
        %3493 = vmatprep.subr.bf16.mxu0 0
        %3494 = vmatpush2.bf16.msra.mxu0 0
        %3495 = vmatprep.mubr.bf16.mxu0 0
        %3496 = vmatmul.mubr.bf16.gmra.mxu0 %v3416
        %v3497 = vpop.f32.mrf.mxu0
        %v3498 = vadd.f32 0.0, %v3497
        %v3499 = vpop.f32.mrf.mxu0
        %v3500 = vpop.f32.mrf.mxu0
        %v3501 = vadd.f32 0.0, %v3500
        %v3502 = vpop.f32.mrf.mxu0
        %3503 = vmatprep.mubr.bf16.mxu0 0
        %3504 = vmatmul.mubr.bf16.gmra.mxu0 %v3419
        %v3505 = vpop.f32.mrf.mxu0
        %v3506 = vadd.f32 0.0, %v3505
        %v3507 = vpop.f32.mrf.mxu0
        %v3508 = vpop.f32.mrf.mxu0
        %v3509 = vadd.f32 0.0, %v3508
        %v3510 = vpop.f32.mrf.mxu0
        %3511 = vmatprep.mubr.bf16.mxu0 0
        %3512 = vmatmul.mubr.bf16.gmra.mxu0 %v3422
        %v3513 = vpop.f32.mrf.mxu0
        %v3514 = vadd.f32 0.0, %v3513
        %v3515 = vpop.f32.mrf.mxu0
        %v3516 = vpop.f32.mrf.mxu0
        %v3517 = vadd.f32 0.0, %v3516
        %v3518 = vpop.f32.mrf.mxu0
        %3519 = vmatprep.mubr.bf16.mxu0 0
        %3520 = vmatmul.mubr.bf16.gmra.mxu0 %v3425
        %v3521 = vpop.f32.mrf.mxu0
        %v3522 = vadd.f32 0.0, %v3521
        %v3523 = vpop.f32.mrf.mxu0
        %v3524 = vpop.f32.mrf.mxu0
        %v3525 = vadd.f32 0.0, %v3524
        %v3526 = vpop.f32.mrf.mxu0
        %3527 = vmatprep.mubr.bf16.mxu0 0
        %3528 = vmatmul.mubr.bf16.gmra.mxu0 %v3428
        %v3529 = vpop.f32.mrf.mxu0
        %v3530 = vadd.f32 0.0, %v3529
        %v3531 = vpop.f32.mrf.mxu0
        %v3532 = vpop.f32.mrf.mxu0
        %v3533 = vadd.f32 0.0, %v3532
        %v3534 = vpop.f32.mrf.mxu0
        %3535 = vmatprep.mubr.bf16.mxu0 0
        %3536 = vmatmul.mubr.bf16.gmra.mxu0 %v3431
        %v3537 = vpop.f32.mrf.mxu0
        %v3538 = vadd.f32 0.0, %v3537
        %v3539 = vpop.f32.mrf.mxu0
        %v3540 = vpop.f32.mrf.mxu0
        %v3541 = vadd.f32 0.0, %v3540
        %v3542 = vpop.f32.mrf.mxu0
        %3543 = vmatprep.mubr.bf16.mxu0 0
        %3544 = vmatmul.mubr.bf16.gmra.mxu0 %v3434
        %v3545 = vpop.f32.mrf.mxu0
        %v3546 = vadd.f32 0.0, %v3545
        %v3547 = vpop.f32.mrf.mxu0
        %v3548 = vpop.f32.mrf.mxu0
        %v3549 = vadd.f32 0.0, %v3548
        %v3550 = vpop.f32.mrf.mxu0
        %3551 = vmatprep.mubr.bf16.mxu0 0
        %3552 = vmatmul.mubr.bf16.gmra.mxu0 %v3437
        %v3553 = vpop.f32.mrf.mxu0
        %v3554 = vadd.f32 0.0, %v3553
        %v3555 = vpop.f32.mrf.mxu0
        %v3556 = vpop.f32.mrf.mxu0
        %v3557 = vadd.f32 0.0, %v3556
        %v3558 = vpop.f32.mrf.mxu0
        %3559 = vmatprep.mubr.bf16.mxu0 0
        %3560 = vmatmul.mubr.bf16.gmra.mxu0 %v3440
        %v3561 = vpop.f32.mrf.mxu0
        %v3562 = vadd.f32 0.0, %v3561
        %v3563 = vpop.f32.mrf.mxu0
        %v3564 = vpop.f32.mrf.mxu0
        %v3565 = vadd.f32 0.0, %v3564
        %v3566 = vpop.f32.mrf.mxu0
        %3567 = vmatprep.mubr.bf16.mxu0 0
        %3568 = vmatmul.mubr.bf16.gmra.mxu0 %v3443
        %v3569 = vpop.f32.mrf.mxu0
        %v3570 = vadd.f32 0.0, %v3569
        %v3571 = vpop.f32.mrf.mxu0
        %v3572 = vpop.f32.mrf.mxu0
        %v3573 = vadd.f32 0.0, %v3572
        %v3574 = vpop.f32.mrf.mxu0
        %3575 = vmatprep.mubr.bf16.mxu0 0
        %3576 = vmatmul.mubr.bf16.gmra.mxu0 %v3446
        %v3577 = vpop.f32.mrf.mxu0
        %v3578 = vadd.f32 0.0, %v3577
        %v3579 = vpop.f32.mrf.mxu0
        %v3580 = vpop.f32.mrf.mxu0
        %v3581 = vadd.f32 0.0, %v3580
        %v3582 = vpop.f32.mrf.mxu0
        %3583 = vmatprep.mubr.bf16.mxu0 0
        %3584 = vmatmul.mubr.bf16.gmra.mxu0 %v3449
        %v3585 = vpop.f32.mrf.mxu0
        %v3586 = vadd.f32 0.0, %v3585
        %v3587 = vpop.f32.mrf.mxu0
        %v3588 = vpop.f32.mrf.mxu0
        %v3589 = vadd.f32 0.0, %v3588
        %v3590 = vpop.f32.mrf.mxu0
        %3591 = vmatprep.mubr.bf16.mxu0 0
        %3592 = vmatmul.mubr.bf16.gmra.mxu0 %v3452
        %v3593 = vpop.f32.mrf.mxu0
        %v3594 = vadd.f32 0.0, %v3593
        %v3595 = vpop.f32.mrf.mxu0
        %v3596 = vpop.f32.mrf.mxu0
        %v3597 = vadd.f32 0.0, %v3596
        %v3598 = vpop.f32.mrf.mxu0
        %3599 = vmatprep.mubr.bf16.mxu0 0
        %3600 = vmatmul.mubr.bf16.gmra.mxu0 %v3455
        %v3601 = vpop.f32.mrf.mxu0
        %v3602 = vadd.f32 0.0, %v3601
        %v3603 = vpop.f32.mrf.mxu0
        %v3604 = vpop.f32.mrf.mxu0
        %v3605 = vadd.f32 0.0, %v3604
        %v3606 = vpop.f32.mrf.mxu0
        %3607 = vmatprep.mubr.bf16.mxu0 0
        %3608 = vmatmul.mubr.bf16.gmra.mxu0 %v3458
        %v3609 = vpop.f32.mrf.mxu0
        %v3610 = vadd.f32 0.0, %v3609
        %v3611 = vpop.f32.mrf.mxu0
        %v3612 = vpop.f32.mrf.mxu0
        %v3613 = vadd.f32 0.0, %v3612
        %v3614 = vpop.f32.mrf.mxu0
        %3615 = vmatprep.mubr.bf16.mxu0 0
        %3616 = vmatmul.mubr.bf16.gmra.mxu0 %v3461
        %v3617 = vpop.f32.mrf.mxu0
        %v3618 = vadd.f32 0.0, %v3617
        %v3619 = vpop.f32.mrf.mxu0
        %v3620 = vpop.f32.mrf.mxu0
        %v3621 = vadd.f32 0.0, %v3620
        %v3622 = vpop.f32.mrf.mxu0
        %3623 = vdwg.mxu0
        %v3624 = vshrl.u32 %v2815, 16
        %v3626 = vrot.slane %v3624, 3
        %v3627 = vshll.u32 %v2815, 16
        %v3629 = vrot.slane %v3627, 4
        %v3630 = vor.u32 %v3626, %v3629
        %v3631 = vshrl.u32 %v2817, 16
        %v3633 = vrot.slane %v3631, 3
        %v3634 = vshll.u32 %v2817, 16
        %v3636 = vrot.slane %v3634, 4
        %v3637 = vor.u32 %v3633, %v3636
        %v3638 = vsel %vm3242, %v3630, %v3637
        %v3639 = vshrl.u32 %v2819, 16
        %v3641 = vrot.slane %v3639, 3
        %v3642 = vshll.u32 %v2819, 16
        %v3644 = vrot.slane %v3642, 4
        %v3645 = vor.u32 %v3641, %v3644
        %v3646 = vsel %vm3242, %v3637, %v3645
        %v3647 = vshrl.u32 %v2821, 16
        %v3649 = vrot.slane %v3647, 3
        %v3650 = vshll.u32 %v2821, 16
        %v3652 = vrot.slane %v3650, 4
        %v3653 = vor.u32 %v3649, %v3652
        %v3654 = vsel %vm3242, %v3645, %v3653
        %v3655 = vshrl.u32 %v2823, 16
        %v3657 = vrot.slane %v3655, 3
        %v3658 = vshll.u32 %v2823, 16
        %v3660 = vrot.slane %v3658, 4
        %v3661 = vor.u32 %v3657, %v3660
        %v3662 = vsel %vm3242, %v3653, %v3661
        %v3663 = vshrl.u32 %v2825, 16
        %v3665 = vrot.slane %v3663, 3
        %v3666 = vshll.u32 %v2825, 16
        %v3668 = vrot.slane %v3666, 4
        %v3669 = vor.u32 %v3665, %v3668
        %v3670 = vsel %vm3242, %v3661, %v3669
        %v3671 = vshrl.u32 %v2827, 16
        %v3673 = vrot.slane %v3671, 3
        %v3674 = vshll.u32 %v2827, 16
        %v3676 = vrot.slane %v3674, 4
        %v3677 = vor.u32 %v3673, %v3676
        %v3678 = vsel %vm3242, %v3669, %v3677
        %v3679 = vshrl.u32 %v2829, 16
        %v3681 = vrot.slane %v3679, 3
        %v3682 = vshll.u32 %v2829, 16
        %v3684 = vrot.slane %v3682, 4
        %v3685 = vor.u32 %v3681, %v3684
        %v3686 = vsel %vm3242, %v3677, %v3685
        %v3687 = vshrl.u32 %v2831, 16
        %v3689 = vrot.slane %v3687, 3
        %v3690 = vshll.u32 %v2831, 16
        %v3692 = vrot.slane %v3690, 4
        %v3693 = vor.u32 %v3689, %v3692
        %v3694 = vsel %vm3242, %v3685, %v3693
        %v3695 = vshrl.u32 %v2833, 16
        %v3697 = vrot.slane %v3695, 3
        %v3698 = vshll.u32 %v2833, 16
        %v3700 = vrot.slane %v3698, 4
        %v3701 = vor.u32 %v3697, %v3700
        %v3702 = vsel %vm3242, %v3693, %v3701
        %v3703 = vshrl.u32 %v2835, 16
        %v3705 = vrot.slane %v3703, 3
        %v3706 = vshll.u32 %v2835, 16
        %v3708 = vrot.slane %v3706, 4
        %v3709 = vor.u32 %v3705, %v3708
        %v3710 = vsel %vm3242, %v3701, %v3709
        %v3711 = vshrl.u32 %v2837, 16
        %v3713 = vrot.slane %v3711, 3
        %v3714 = vshll.u32 %v2837, 16
        %v3716 = vrot.slane %v3714, 4
        %v3717 = vor.u32 %v3713, %v3716
        %v3718 = vsel %vm3242, %v3709, %v3717
        %v3719 = vshrl.u32 %v2839, 16
        %v3721 = vrot.slane %v3719, 3
        %v3722 = vshll.u32 %v2839, 16
        %v3724 = vrot.slane %v3722, 4
        %v3725 = vor.u32 %v3721, %v3724
        %v3726 = vsel %vm3242, %v3717, %v3725
        %v3727 = vshrl.u32 %v2841, 16
        %v3729 = vrot.slane %v3727, 3
        %v3730 = vshll.u32 %v2841, 16
        %v3732 = vrot.slane %v3730, 4
        %v3733 = vor.u32 %v3729, %v3732
        %v3734 = vsel %vm3242, %v3725, %v3733
        %v3735 = vshrl.u32 %v2843, 16
        %v3737 = vrot.slane %v3735, 3
        %v3738 = vshll.u32 %v2843, 16
        %v3740 = vrot.slane %v3738, 4
        %v3741 = vor.u32 %v3737, %v3740
        %v3742 = vsel %vm3242, %v3733, %v3741
        %v3743 = vshrl.u32 %v2845, 16
        %v3745 = vrot.slane %v3743, 3
        %v3746 = vshll.u32 %v2845, 16
        %v3748 = vrot.slane %v3746, 4
        %v3749 = vor.u32 %v3745, %v3748
        %v3750 = vsel %vm3242, %v3741, %v3749
        %v3751 = vshrl.u32 %v2847, 16
        %v3753 = vrot.slane %v3751, 3
        %v3754 = vshll.u32 %v2847, 16
        %v3756 = vrot.slane %v3754, 4
        %v3757 = vor.u32 %v3753, %v3756
        %v3758 = vsel %vm3242, %v3749, %v3757
        %v3771 = vunpack.c.l.b16 %v786
        %v3772 = vunpack.c.l.b16 %v787
        %v3773 = vunpack.c.l.b16 %v788
        %v3774 = vunpack.c.l.b16 %v789
        %v3775 = vunpack.c.l.b16 %v790
        %v3776 = vunpack.c.l.b16 %v791
        %v3777 = vunpack.c.l.b16 %v792
        %v3778 = vunpack.c.l.b16 %v793
        %v3779 = vunpack.c.l.b16 %v794
        %v3780 = vunpack.c.l.b16 %v795
        %v3781 = vunpack.c.l.b16 %v796
        %v3782 = vunpack.c.l.b16 %v797
        %v3783 = vpack.c.b16 %v3772, %v3771
        %v3784 = vpack.c.b16 %v3774, %v3773
        %v3785 = vpack.c.b16 %v3776, %v3775
        %v3786 = vpack.c.b16 %v3778, %v3777
        %v3787 = vpack.c.b16 %v3780, %v3779
        %v3788 = vpack.c.b16 %v3782, %v3781
        %v3796 = vsel %vm3414, %v3638, 0
        %v3799 = vsel %vm3414, %v3646, 0
        %v3802 = vsel %vm3414, %v3654, 0
        %v3805 = vsel %vm3414, %v3662, 0
        %v3808 = vsel %vm3414, %v3670, 0
        %v3811 = vsel %vm3414, %v3678, 0
        %v3814 = vsel %vm3414, %v3686, 0
        %v3817 = vsel %vm3414, %v3694, 0
        %v3820 = vsel %vm3414, %v3702, 0
        %v3823 = vsel %vm3414, %v3710, 0
        %v3826 = vsel %vm3414, %v3718, 0
        %v3829 = vsel %vm3414, %v3726, 0
        %v3832 = vsel %vm3414, %v3734, 0
        %v3835 = vsel %vm3414, %v3742, 0
        %v3838 = vsel %vm3414, %v3750, 0
        %v3841 = vsel %vm3414, %v3758, 0
        %3843 = vmatprep.subr.bf16.mxu0 0
        %3844 = vmatpush1.bf16.msra.mxu0 0
        %3845 = vmatprep.subr.bf16.mxu0 0
        %3846 = vmatpush1.bf16.msra.mxu0 0
        %3847 = vmatprep.subr.bf16.mxu0 0
        %3848 = vmatpush1.bf16.msra.mxu0 %v3788
        %3849 = vmatprep.subr.bf16.mxu0 0
        %3850 = vmatpush1.bf16.msra.mxu0 %v3787
        %3851 = vmatprep.subr.bf16.mxu0 0
        %3852 = vmatpush1.bf16.msra.mxu0 %v3786
        %3853 = vmatprep.subr.bf16.mxu0 0
        %3854 = vmatpush1.bf16.msra.mxu0 %v3785
        %3855 = vmatprep.subr.bf16.mxu0 0
        %3856 = vmatpush1.bf16.msra.mxu0 %v3784
        %3857 = vmatprep.subr.bf16.mxu0 0
        %3858 = vmatpush1.bf16.msra.mxu0 %v3783
        %3859 = vmatprep.subr.bf16.mxu0 0
        %3860 = vmatpush2.bf16.msra.mxu0 0
        %3861 = vmatprep.subr.bf16.mxu0 0
        %3862 = vmatpush2.bf16.msra.mxu0 0
        %3863 = vmatprep.subr.bf16.mxu0 0
        %3864 = vmatpush2.bf16.msra.mxu0 0
        %3865 = vmatprep.subr.bf16.mxu0 0
        %3866 = vmatpush2.bf16.msra.mxu0 0
        %3867 = vmatprep.subr.bf16.mxu0 0
        %3868 = vmatpush2.bf16.msra.mxu0 0
        %3869 = vmatprep.subr.bf16.mxu0 0
        %3870 = vmatpush2.bf16.msra.mxu0 0
        %3871 = vmatprep.subr.bf16.mxu0 0
        %3872 = vmatpush2.bf16.msra.mxu0 0
        %3873 = vmatprep.subr.bf16.mxu0 0
        %3874 = vmatpush2.bf16.msra.mxu0 0
        %3875 = vmatprep.mubr.bf16.mxu0 0
        %3876 = vmatmul.mubr.bf16.gmra.mxu0 %v3796
        %v3877 = vpop.f32.mrf.mxu0
        %v3878 = vadd.f32 %v3498, %v3877
        %v3879 = vpop.f32.mrf.mxu0
        %v3880 = vpop.f32.mrf.mxu0
        %v3881 = vadd.f32 %v3501, %v3880
        %v3882 = vpop.f32.mrf.mxu0
        %3883 = vmatprep.mubr.bf16.mxu0 0
        %3884 = vmatmul.mubr.bf16.gmra.mxu0 %v3799
        %v3885 = vpop.f32.mrf.mxu0
        %v3886 = vadd.f32 %v3506, %v3885
        %v3887 = vpop.f32.mrf.mxu0
        %v3888 = vpop.f32.mrf.mxu0
        %v3889 = vadd.f32 %v3509, %v3888
        %v3890 = vpop.f32.mrf.mxu0
        %3891 = vmatprep.mubr.bf16.mxu0 0
        %3892 = vmatmul.mubr.bf16.gmra.mxu0 %v3802
        %v3893 = vpop.f32.mrf.mxu0
        %v3894 = vadd.f32 %v3514, %v3893
        %v3895 = vpop.f32.mrf.mxu0
        %v3896 = vpop.f32.mrf.mxu0
        %v3897 = vadd.f32 %v3517, %v3896
        %v3898 = vpop.f32.mrf.mxu0
        %3899 = vmatprep.mubr.bf16.mxu0 0
        %3900 = vmatmul.mubr.bf16.gmra.mxu0 %v3805
        %v3901 = vpop.f32.mrf.mxu0
        %v3902 = vadd.f32 %v3522, %v3901
        %v3903 = vpop.f32.mrf.mxu0
        %v3904 = vpop.f32.mrf.mxu0
        %v3905 = vadd.f32 %v3525, %v3904
        %v3906 = vpop.f32.mrf.mxu0
        %3907 = vmatprep.mubr.bf16.mxu0 0
        %3908 = vmatmul.mubr.bf16.gmra.mxu0 %v3808
        %v3909 = vpop.f32.mrf.mxu0
        %v3910 = vadd.f32 %v3530, %v3909
        %v3911 = vpop.f32.mrf.mxu0
        %v3912 = vpop.f32.mrf.mxu0
        %v3913 = vadd.f32 %v3533, %v3912
        %v3914 = vpop.f32.mrf.mxu0
        %3915 = vmatprep.mubr.bf16.mxu0 0
        %3916 = vmatmul.mubr.bf16.gmra.mxu0 %v3811
        %v3917 = vpop.f32.mrf.mxu0
        %v3918 = vadd.f32 %v3538, %v3917
        %v3919 = vpop.f32.mrf.mxu0
        %v3920 = vpop.f32.mrf.mxu0
        %v3921 = vadd.f32 %v3541, %v3920
        %v3922 = vpop.f32.mrf.mxu0
        %3923 = vmatprep.mubr.bf16.mxu0 0
        %3924 = vmatmul.mubr.bf16.gmra.mxu0 %v3814
        %v3925 = vpop.f32.mrf.mxu0
        %v3926 = vadd.f32 %v3546, %v3925
        %v3927 = vpop.f32.mrf.mxu0
        %v3928 = vpop.f32.mrf.mxu0
        %v3929 = vadd.f32 %v3549, %v3928
        %v3930 = vpop.f32.mrf.mxu0
        %3931 = vmatprep.mubr.bf16.mxu0 0
        %3932 = vmatmul.mubr.bf16.gmra.mxu0 %v3817
        %v3933 = vpop.f32.mrf.mxu0
        %v3934 = vadd.f32 %v3554, %v3933
        %v3935 = vpop.f32.mrf.mxu0
        %v3936 = vpop.f32.mrf.mxu0
        %v3937 = vadd.f32 %v3557, %v3936
        %v3938 = vpop.f32.mrf.mxu0
        %3939 = vmatprep.mubr.bf16.mxu0 0
        %3940 = vmatmul.mubr.bf16.gmra.mxu0 %v3820
        %v3941 = vpop.f32.mrf.mxu0
        %v3942 = vadd.f32 %v3562, %v3941
        %v3943 = vpop.f32.mrf.mxu0
        %v3944 = vpop.f32.mrf.mxu0
        %v3945 = vadd.f32 %v3565, %v3944
        %v3946 = vpop.f32.mrf.mxu0
        %3947 = vmatprep.mubr.bf16.mxu0 0
        %3948 = vmatmul.mubr.bf16.gmra.mxu0 %v3823
        %v3949 = vpop.f32.mrf.mxu0
        %v3950 = vadd.f32 %v3570, %v3949
        %v3951 = vpop.f32.mrf.mxu0
        %v3952 = vpop.f32.mrf.mxu0
        %v3953 = vadd.f32 %v3573, %v3952
        %v3954 = vpop.f32.mrf.mxu0
        %3955 = vmatprep.mubr.bf16.mxu0 0
        %3956 = vmatmul.mubr.bf16.gmra.mxu0 %v3826
        %v3957 = vpop.f32.mrf.mxu0
        %v3958 = vadd.f32 %v3578, %v3957
        %v3959 = vpop.f32.mrf.mxu0
        %v3960 = vpop.f32.mrf.mxu0
        %v3961 = vadd.f32 %v3581, %v3960
        %v3962 = vpop.f32.mrf.mxu0
        %3963 = vmatprep.mubr.bf16.mxu0 0
        %3964 = vmatmul.mubr.bf16.gmra.mxu0 %v3829
        %v3965 = vpop.f32.mrf.mxu0
        %v3966 = vadd.f32 %v3586, %v3965
        %v3967 = vpop.f32.mrf.mxu0
        %v3968 = vpop.f32.mrf.mxu0
        %v3969 = vadd.f32 %v3589, %v3968
        %v3970 = vpop.f32.mrf.mxu0
        %3971 = vmatprep.mubr.bf16.mxu0 0
        %3972 = vmatmul.mubr.bf16.gmra.mxu0 %v3832
        %v3973 = vpop.f32.mrf.mxu0
        %v3974 = vadd.f32 %v3594, %v3973
        %v3975 = vpop.f32.mrf.mxu0
        %v3976 = vpop.f32.mrf.mxu0
        %v3977 = vadd.f32 %v3597, %v3976
        %v3978 = vpop.f32.mrf.mxu0
        %3979 = vmatprep.mubr.bf16.mxu0 0
        %3980 = vmatmul.mubr.bf16.gmra.mxu0 %v3835
        %v3981 = vpop.f32.mrf.mxu0
        %v3982 = vadd.f32 %v3602, %v3981
        %v3983 = vpop.f32.mrf.mxu0
        %v3984 = vpop.f32.mrf.mxu0
        %v3985 = vadd.f32 %v3605, %v3984
        %v3986 = vpop.f32.mrf.mxu0
        %3987 = vmatprep.mubr.bf16.mxu0 0
        %3988 = vmatmul.mubr.bf16.gmra.mxu0 %v3838
        %v3989 = vpop.f32.mrf.mxu0
        %v3990 = vadd.f32 %v3610, %v3989
        %v3991 = vpop.f32.mrf.mxu0
        %v3992 = vpop.f32.mrf.mxu0
        %v3993 = vadd.f32 %v3613, %v3992
        %v3994 = vpop.f32.mrf.mxu0
        %3995 = vmatprep.mubr.bf16.mxu0 0
        %3996 = vmatmul.mubr.bf16.gmra.mxu0 %v3841
        %v3997 = vpop.f32.mrf.mxu0
        %v3998 = vadd.f32 %v3618, %v3997
        %v3999 = vpop.f32.mrf.mxu0
        %v4000 = vpop.f32.mrf.mxu0
        %v4001 = vadd.f32 %v3621, %v4000
        %v4002 = vpop.f32.mrf.mxu0
        %4003 = vdwg.mxu0
        %v4004 = vld [vmem:[#allocation2 + $0x14] sm:$0x8]
        %v4005 = vld [vmem:[#allocation2 + $0x18] sm:$0xf]
        %v4006 = vld [vmem:[#allocation2 + $0x1c] sm:$0xf]
        %v4007 = vld [vmem:[#allocation2 + $0x20] sm:$0xf]
        %v4008 = vld [vmem:[#allocation2 + $0x24] sm:$0xf]
        %v4009 = vld [vmem:[#allocation2 + $0x28] sm:$0xf]
        %v4010 = vld [vmem:[#allocation2 + $0x2c] sm:$0xf]
        %v4011 = vld [vmem:[#allocation2 + $0x30] sm:$0xf]
        %v4012 = vld [vmem:[#allocation2 + $0x34] sm:$0xf]
        %v4013 = vld [vmem:[#allocation2 + $0x38] sm:$0xf]
        %v4014 = vld [vmem:[#allocation2 + $0x3c] sm:$0xf]
        %v4015 = vld [vmem:[#allocation2 + $0x40] sm:$0xf]
        %v4016 = vld [vmem:[#allocation2 + $0x44] sm:$0xf]
        %v4017 = vld [vmem:[#allocation2 + $0x48] sm:$0xf]
        %v4018 = vld [vmem:[#allocation2 + $0x4c] sm:$0xf]
        %v4019 = vld [vmem:[#allocation2 + $0x50] sm:$0xf]
        %v4020 = vld [vmem:[#allocation2 + $0x54] sm:$0xf]
        %v4021 = vld [vmem:[#allocation2 + $0x58] sm:$0xf]
        %v4022 = vld [vmem:[#allocation2 + $0x5c] sm:$0xf]
        %v4023 = vld [vmem:[#allocation2 + $0x60] sm:$0xf]
        %v4024 = vld [vmem:[#allocation2 + $0x64] sm:$0xf]
        %v4025 = vld [vmem:[#allocation2 + $0x68] sm:$0xf]
        %v4026 = vld [vmem:[#allocation2 + $0x6c] sm:$0xf]
        %v4027 = vld [vmem:[#allocation2 + $0x70] sm:$0xf]
        %v4028 = vld [vmem:[#allocation2 + $0x74] sm:$0xf]
        %v4029 = vld [vmem:[#allocation2 + $0x78] sm:$0xf]
        %v4030 = vld [vmem:[#allocation2 + $0x7c] sm:$0xf]
        %v4031 = vld [vmem:[#allocation2 + $0x80] sm:$0xf]
        %v4032 = vld [vmem:[#allocation2 + $0x84] sm:$0xf]
        %v4033 = vld [vmem:[#allocation2 + $0x88] sm:$0xf]
        %v4034 = vld [vmem:[#allocation2 + $0x8c] sm:$0xf]
        %v4035 = vld [vmem:[#allocation2 + $0x90] sm:$0xf]
        %v4036 = vld [vmem:[#allocation2 + $0x94] sm:$0xf]
        %v4037 = vld [vmem:[#allocation2 + $0x98] sm:$0x1]
        %v4038 = vsel %vm1784, %v4004, 0
        %v4039 = vsel %vm1785, %v4005, 0
        %v4040 = vsel %vm1786, %v4006, 0
        %v4041 = vsel %vm1787, %v4007, 0
        %v4042 = vsel %vm1788, %v4008, 0
        %v4043 = vsel %vm1789, %v4009, 0
        %v4044 = vsel %vm1790, %v4010, 0
        %v4045 = vsel %vm1791, %v4011, 0
        %v4046 = vsel %vm1792, %v4012, 0
        %v4047 = vsel %vm1793, %v4013, 0
        %v4048 = vsel %vm1794, %v4014, 0
        %v4049 = vsel %vm1795, %v4015, 0
        %v4050 = vsel %vm1796, %v4016, 0
        %v4051 = vsel %vm1797, %v4017, 0
        %v4052 = vsel %vm1798, %v4018, 0
        %v4053 = vsel %vm1799, %v4019, 0
        %v4054 = vsel %vm1800, %v4020, 0
        %v4055 = vsel %vm1801, %v4021, 0
        %v4056 = vsel %vm1802, %v4022, 0
        %v4057 = vsel %vm1803, %v4023, 0
        %v4058 = vsel %vm1804, %v4024, 0
        %v4059 = vsel %vm1805, %v4025, 0
        %v4060 = vsel %vm1806, %v4026, 0
        %v4061 = vsel %vm1807, %v4027, 0
        %v4062 = vsel %vm1808, %v4028, 0
        %v4063 = vsel %vm1809, %v4029, 0
        %v4064 = vsel %vm1810, %v4030, 0
        %v4065 = vsel %vm1811, %v4031, 0
        %v4066 = vsel %vm1812, %v4032, 0
        %v4067 = vsel %vm1813, %v4033, 0
        %v4068 = vsel %vm1814, %v4034, 0
        %v4069 = vsel %vm1815, %v4035, 0
        %v4070 = vsel %vm1816, %v4036, 0
        %v4071 = vsel %vm2204, %v4005, 0
        %v4072 = vsel %vm2205, %v4006, 0
        %v4073 = vsel %vm2206, %v4007, 0
        %v4074 = vsel %vm2207, %v4008, 0
        %v4075 = vsel %vm2208, %v4009, 0
        %v4076 = vsel %vm2209, %v4010, 0
        %v4077 = vsel %vm2210, %v4011, 0
        %v4078 = vsel %vm2211, %v4012, 0
        %v4079 = vsel %vm2212, %v4013, 0
        %v4080 = vsel %vm2213, %v4014, 0
        %v4081 = vsel %vm2214, %v4015, 0
        %v4082 = vsel %vm2215, %v4016, 0
        %v4083 = vsel %vm2216, %v4017, 0
        %v4084 = vsel %vm2217, %v4018, 0
        %v4085 = vsel %vm2218, %v4019, 0
        %v4086 = vsel %vm2219, %v4020, 0
        %v4087 = vsel %vm2220, %v4021, 0
        %v4088 = vsel %vm2221, %v4022, 0
        %v4089 = vsel %vm2222, %v4023, 0
        %v4090 = vsel %vm2223, %v4024, 0
        %v4091 = vsel %vm2224, %v4025, 0
        %v4092 = vsel %vm2225, %v4026, 0
        %v4093 = vsel %vm2226, %v4027, 0
        %v4094 = vsel %vm2227, %v4028, 0
        %v4095 = vsel %vm2228, %v4029, 0
        %v4096 = vsel %vm2229, %v4030, 0
        %v4097 = vsel %vm2230, %v4031, 0
        %v4098 = vsel %vm2231, %v4032, 0
        %v4099 = vsel %vm2232, %v4033, 0
        %v4100 = vsel %vm2233, %v4034, 0
        %v4101 = vsel %vm2234, %v4035, 0
        %v4102 = vsel %vm2235, %v4036, 0
        %v4103 = vsel %vm2236, %v4037, 0
        %v4137 = vunpack.c.l.b16 %v4038
        %v4138 = vunpack.c.l.b16 %v4039
        %v4139 = vunpack.c.l.b16 %v4040
        %v4140 = vunpack.c.l.b16 %v4041
        %v4141 = vunpack.c.l.b16 %v4042
        %v4142 = vunpack.c.l.b16 %v4043
        %v4143 = vunpack.c.l.b16 %v4044
        %v4144 = vunpack.c.l.b16 %v4045
        %v4145 = vunpack.c.l.b16 %v4046
        %v4146 = vunpack.c.l.b16 %v4047
        %v4147 = vunpack.c.l.b16 %v4048
        %v4148 = vunpack.c.l.b16 %v4049
        %v4149 = vunpack.c.l.b16 %v4050
        %v4150 = vunpack.c.l.b16 %v4051
        %v4151 = vunpack.c.l.b16 %v4052
        %v4152 = vunpack.c.l.b16 %v4053
        %v4153 = vunpack.c.l.b16 %v4054
        %v4154 = vunpack.c.l.b16 %v4055
        %v4155 = vunpack.c.l.b16 %v4056
        %v4156 = vunpack.c.l.b16 %v4057
        %v4157 = vunpack.c.l.b16 %v4058
        %v4158 = vunpack.c.l.b16 %v4059
        %v4159 = vunpack.c.l.b16 %v4060
        %v4160 = vunpack.c.l.b16 %v4061
        %v4161 = vunpack.c.l.b16 %v4062
        %v4162 = vunpack.c.l.b16 %v4063
        %v4163 = vunpack.c.l.b16 %v4064
        %v4164 = vunpack.c.l.b16 %v4065
        %v4165 = vunpack.c.l.b16 %v4066
        %v4166 = vunpack.c.l.b16 %v4067
        %v4167 = vunpack.c.l.b16 %v4068
        %v4168 = vunpack.c.l.b16 %v4069
        %v4169 = vunpack.c.l.b16 %v4070
        %v4170 = vpack.c.b16 %v4138, %v4137
        %v4171 = vpack.c.b16 %v4140, %v4139
        %v4172 = vpack.c.b16 %v4142, %v4141
        %v4173 = vpack.c.b16 %v4144, %v4143
        %v4174 = vpack.c.b16 %v4146, %v4145
        %v4175 = vpack.c.b16 %v4148, %v4147
        %v4176 = vpack.c.b16 %v4150, %v4149
        %v4177 = vpack.c.b16 %v4152, %v4151
        %v4178 = vpack.c.b16 %v4154, %v4153
        %v4179 = vpack.c.b16 %v4156, %v4155
        %v4180 = vpack.c.b16 %v4158, %v4157
        %v4181 = vpack.c.b16 %v4160, %v4159
        %v4182 = vpack.c.b16 %v4162, %v4161
        %v4183 = vpack.c.b16 %v4164, %v4163
        %v4184 = vpack.c.b16 %v4166, %v4165
        %v4185 = vpack.c.b16 %v4168, %v4167
        %v4186 = vpack.c.b16 %v4169, %v4169
        %v4219 = vunpack.c.l.b16 %v4005
        %v4220 = vunpack.c.l.b16 %v4006
        %v4221 = vunpack.c.l.b16 %v4007
        %v4222 = vunpack.c.l.b16 %v4008
        %v4223 = vunpack.c.l.b16 %v4009
        %v4224 = vunpack.c.l.b16 %v4010
        %v4225 = vunpack.c.l.b16 %v4011
        %v4226 = vunpack.c.l.b16 %v4012
        %v4227 = vunpack.c.l.b16 %v4013
        %v4228 = vunpack.c.l.b16 %v4014
        %v4229 = vunpack.c.l.b16 %v4015
        %v4230 = vunpack.c.l.b16 %v4016
        %v4231 = vunpack.c.l.b16 %v4017
        %v4232 = vunpack.c.l.b16 %v4018
        %v4233 = vunpack.c.l.b16 %v4019
        %v4234 = vunpack.c.l.b16 %v4020
        %v4235 = vunpack.c.l.b16 %v4021
        %v4236 = vunpack.c.l.b16 %v4022
        %v4237 = vunpack.c.l.b16 %v4023
        %v4238 = vunpack.c.l.b16 %v4024
        %v4239 = vunpack.c.l.b16 %v4025
        %v4240 = vunpack.c.l.b16 %v4026
        %v4241 = vunpack.c.l.b16 %v4027
        %v4242 = vunpack.c.l.b16 %v4028
        %v4243 = vunpack.c.l.b16 %v4029
        %v4244 = vunpack.c.l.b16 %v4030
        %v4245 = vunpack.c.l.b16 %v4031
        %v4246 = vunpack.c.l.b16 %v4032
        %v4247 = vunpack.c.l.b16 %v4033
        %v4248 = vunpack.c.l.b16 %v4034
        %v4249 = vunpack.c.l.b16 %v4035
        %v4250 = vunpack.c.l.b16 %v4036
        %v4251 = vpack.c.b16 %v4220, %v4219
        %v4252 = vpack.c.b16 %v4222, %v4221
        %v4253 = vpack.c.b16 %v4224, %v4223
        %v4254 = vpack.c.b16 %v4226, %v4225
        %v4255 = vpack.c.b16 %v4228, %v4227
        %v4256 = vpack.c.b16 %v4230, %v4229
        %v4257 = vpack.c.b16 %v4232, %v4231
        %v4258 = vpack.c.b16 %v4234, %v4233
        %v4259 = vpack.c.b16 %v4236, %v4235
        %v4260 = vpack.c.b16 %v4238, %v4237
        %v4261 = vpack.c.b16 %v4240, %v4239
        %v4262 = vpack.c.b16 %v4242, %v4241
        %v4263 = vpack.c.b16 %v4244, %v4243
        %v4264 = vpack.c.b16 %v4246, %v4245
        %v4265 = vpack.c.b16 %v4248, %v4247
        %v4266 = vpack.c.b16 %v4250, %v4249
        %v4268 = vshrl.u32 %v4251, 16
        %v4270 = vrot.slane %v4268, 4
        %v4271 = vshll.u32 %v4251, 16
        %v4273 = vrot.slane %v4271, 5
        %v4274 = vor.u32 %v4270, %v4273
        %v4276 = vshrl.u32 %v4252, 16
        %v4278 = vrot.slane %v4276, 4
        %v4279 = vshll.u32 %v4252, 16
        %v4281 = vrot.slane %v4279, 5
        %v4282 = vor.u32 %v4278, %v4281
        %v4283 = vsel %vm1462, %v4274, %v4282
        %v4285 = vshrl.u32 %v4253, 16
        %v4287 = vrot.slane %v4285, 4
        %v4288 = vshll.u32 %v4253, 16
        %v4290 = vrot.slane %v4288, 5
        %v4291 = vor.u32 %v4287, %v4290
        %v4292 = vsel %vm1462, %v4282, %v4291
        %v4294 = vshrl.u32 %v4254, 16
        %v4296 = vrot.slane %v4294, 4
        %v4297 = vshll.u32 %v4254, 16
        %v4299 = vrot.slane %v4297, 5
        %v4300 = vor.u32 %v4296, %v4299
        %v4301 = vsel %vm1462, %v4291, %v4300
        %v4303 = vshrl.u32 %v4255, 16
        %v4305 = vrot.slane %v4303, 4
        %v4306 = vshll.u32 %v4255, 16
        %v4308 = vrot.slane %v4306, 5
        %v4309 = vor.u32 %v4305, %v4308
        %v4310 = vsel %vm1462, %v4300, %v4309
        %v4312 = vshrl.u32 %v4256, 16
        %v4314 = vrot.slane %v4312, 4
        %v4315 = vshll.u32 %v4256, 16
        %v4317 = vrot.slane %v4315, 5
        %v4318 = vor.u32 %v4314, %v4317
        %v4319 = vsel %vm1462, %v4309, %v4318
        %v4321 = vshrl.u32 %v4257, 16
        %v4323 = vrot.slane %v4321, 4
        %v4324 = vshll.u32 %v4257, 16
        %v4326 = vrot.slane %v4324, 5
        %v4327 = vor.u32 %v4323, %v4326
        %v4328 = vsel %vm1462, %v4318, %v4327
        %v4330 = vshrl.u32 %v4258, 16
        %v4332 = vrot.slane %v4330, 4
        %v4333 = vshll.u32 %v4258, 16
        %v4335 = vrot.slane %v4333, 5
        %v4336 = vor.u32 %v4332, %v4335
        %v4337 = vsel %vm1462, %v4327, %v4336
        %v4339 = vshrl.u32 %v4259, 16
        %v4341 = vrot.slane %v4339, 4
        %v4342 = vshll.u32 %v4259, 16
        %v4344 = vrot.slane %v4342, 5
        %v4345 = vor.u32 %v4341, %v4344
        %v4346 = vsel %vm1462, %v4336, %v4345
        %v4348 = vshrl.u32 %v4260, 16
        %v4350 = vrot.slane %v4348, 4
        %v4351 = vshll.u32 %v4260, 16
        %v4353 = vrot.slane %v4351, 5
        %v4354 = vor.u32 %v4350, %v4353
        %v4355 = vsel %vm1462, %v4345, %v4354
        %v4357 = vshrl.u32 %v4261, 16
        %v4359 = vrot.slane %v4357, 4
        %v4360 = vshll.u32 %v4261, 16
        %v4362 = vrot.slane %v4360, 5
        %v4363 = vor.u32 %v4359, %v4362
        %v4364 = vsel %vm1462, %v4354, %v4363
        %v4366 = vshrl.u32 %v4262, 16
        %v4368 = vrot.slane %v4366, 4
        %v4369 = vshll.u32 %v4262, 16
        %v4371 = vrot.slane %v4369, 5
        %v4372 = vor.u32 %v4368, %v4371
        %v4373 = vsel %vm1462, %v4363, %v4372
        %v4375 = vshrl.u32 %v4263, 16
        %v4377 = vrot.slane %v4375, 4
        %v4378 = vshll.u32 %v4263, 16
        %v4380 = vrot.slane %v4378, 5
        %v4381 = vor.u32 %v4377, %v4380
        %v4382 = vsel %vm1462, %v4372, %v4381
        %v4384 = vshrl.u32 %v4264, 16
        %v4386 = vrot.slane %v4384, 4
        %v4387 = vshll.u32 %v4264, 16
        %v4389 = vrot.slane %v4387, 5
        %v4390 = vor.u32 %v4386, %v4389
        %v4391 = vsel %vm1462, %v4381, %v4390
        %v4393 = vshrl.u32 %v4265, 16
        %v4395 = vrot.slane %v4393, 4
        %v4396 = vshll.u32 %v4265, 16
        %v4398 = vrot.slane %v4396, 5
        %v4399 = vor.u32 %v4395, %v4398
        %v4400 = vsel %vm1462, %v4390, %v4399
        %v4402 = vshrl.u32 %v4266, 16
        %v4404 = vrot.slane %v4402, 4
        %v4405 = vshll.u32 %v4266, 16
        %v4407 = vrot.slane %v4405, 5
        %v4408 = vor.u32 %v4404, %v4407
        %v4409 = vsel %vm1462, %v4399, %v4408
        %4410 = vrot.lane.b32.xlu0 %v4274, 32
        %v4411 = vpop.permute.xlu0 %4410
        %4412 = vrot.lane.b32.xlu0 %v4283, 32
        %v4413 = vpop.permute.xlu0 %4412
        %4414 = vrot.lane.b32.xlu0 %v4292, 32
        %v4415 = vpop.permute.xlu0 %4414
        %4416 = vrot.lane.b32.xlu0 %v4301, 32
        %v4417 = vpop.permute.xlu0 %4416
        %4418 = vrot.lane.b32.xlu0 %v4310, 32
        %v4419 = vpop.permute.xlu0 %4418
        %4420 = vrot.lane.b32.xlu0 %v4319, 32
        %v4421 = vpop.permute.xlu0 %4420
        %4422 = vrot.lane.b32.xlu0 %v4328, 32
        %v4423 = vpop.permute.xlu0 %4422
        %4424 = vrot.lane.b32.xlu0 %v4337, 32
        %v4425 = vpop.permute.xlu0 %4424
        %4426 = vrot.lane.b32.xlu0 %v4346, 32
        %v4427 = vpop.permute.xlu0 %4426
        %4428 = vrot.lane.b32.xlu0 %v4355, 32
        %v4429 = vpop.permute.xlu0 %4428
        %4430 = vrot.lane.b32.xlu0 %v4364, 32
        %v4431 = vpop.permute.xlu0 %4430
        %4432 = vrot.lane.b32.xlu0 %v4373, 32
        %v4433 = vpop.permute.xlu0 %4432
        %4434 = vrot.lane.b32.xlu0 %v4382, 32
        %v4435 = vpop.permute.xlu0 %4434
        %4436 = vrot.lane.b32.xlu0 %v4391, 32
        %v4437 = vpop.permute.xlu0 %4436
        %4438 = vrot.lane.b32.xlu0 %v4400, 32
        %v4439 = vpop.permute.xlu0 %4438
        %4440 = vrot.lane.b32.xlu0 %v4409, 32
        %v4441 = vpop.permute.xlu0 %4440
        %4442 = vrot.lane.b32.xlu0 %v4408, 32
        %v4443 = vpop.permute.xlu0 %4442
        %v4477 = vunpack.c.l.b16 %v4071
        %v4478 = vunpack.c.l.b16 %v4072
        %v4479 = vunpack.c.l.b16 %v4073
        %v4480 = vunpack.c.l.b16 %v4074
        %v4481 = vunpack.c.l.b16 %v4075
        %v4482 = vunpack.c.l.b16 %v4076
        %v4483 = vunpack.c.l.b16 %v4077
        %v4484 = vunpack.c.l.b16 %v4078
        %v4485 = vunpack.c.l.b16 %v4079
        %v4486 = vunpack.c.l.b16 %v4080
        %v4487 = vunpack.c.l.b16 %v4081
        %v4488 = vunpack.c.l.b16 %v4082
        %v4489 = vunpack.c.l.b16 %v4083
        %v4490 = vunpack.c.l.b16 %v4084
        %v4491 = vunpack.c.l.b16 %v4085
        %v4492 = vunpack.c.l.b16 %v4086
        %v4493 = vunpack.c.l.b16 %v4087
        %v4494 = vunpack.c.l.b16 %v4088
        %v4495 = vunpack.c.l.b16 %v4089
        %v4496 = vunpack.c.l.b16 %v4090
        %v4497 = vunpack.c.l.b16 %v4091
        %v4498 = vunpack.c.l.b16 %v4092
        %v4499 = vunpack.c.l.b16 %v4093
        %v4500 = vunpack.c.l.b16 %v4094
        %v4501 = vunpack.c.l.b16 %v4095
        %v4502 = vunpack.c.l.b16 %v4096
        %v4503 = vunpack.c.l.b16 %v4097
        %v4504 = vunpack.c.l.b16 %v4098
        %v4505 = vunpack.c.l.b16 %v4099
        %v4506 = vunpack.c.l.b16 %v4100
        %v4507 = vunpack.c.l.b16 %v4101
        %v4508 = vunpack.c.l.b16 %v4102
        %v4509 = vunpack.c.l.b16 %v4103
        %v4510 = vpack.c.b16 %v4478, %v4477
        %v4511 = vpack.c.b16 %v4480, %v4479
        %v4512 = vpack.c.b16 %v4482, %v4481
        %v4513 = vpack.c.b16 %v4484, %v4483
        %v4514 = vpack.c.b16 %v4486, %v4485
        %v4515 = vpack.c.b16 %v4488, %v4487
        %v4516 = vpack.c.b16 %v4490, %v4489
        %v4517 = vpack.c.b16 %v4492, %v4491
        %v4518 = vpack.c.b16 %v4494, %v4493
        %v4519 = vpack.c.b16 %v4496, %v4495
        %v4520 = vpack.c.b16 %v4498, %v4497
        %v4521 = vpack.c.b16 %v4500, %v4499
        %v4522 = vpack.c.b16 %v4502, %v4501
        %v4523 = vpack.c.b16 %v4504, %v4503
        %v4524 = vpack.c.b16 %v4506, %v4505
        %v4525 = vpack.c.b16 %v4508, %v4507
        %v4526 = vpack.c.b16 %v4509, %v4509
        %v4527 = vrot.slane %v4510, 5
        %v4528 = vrot.slane %v4511, 5
        %v4529 = vsel %vm2693, %v4527, %v4528
        %v4530 = vrot.slane %v4512, 5
        %v4531 = vsel %vm2693, %v4528, %v4530
        %v4532 = vrot.slane %v4513, 5
        %v4533 = vsel %vm2693, %v4530, %v4532
        %v4534 = vrot.slane %v4514, 5
        %v4535 = vsel %vm2693, %v4532, %v4534
        %v4536 = vrot.slane %v4515, 5
        %v4537 = vsel %vm2693, %v4534, %v4536
        %v4538 = vrot.slane %v4516, 5
        %v4539 = vsel %vm2693, %v4536, %v4538
        %v4540 = vrot.slane %v4517, 5
        %v4541 = vsel %vm2693, %v4538, %v4540
        %v4542 = vrot.slane %v4518, 5
        %v4543 = vsel %vm2693, %v4540, %v4542
        %v4544 = vrot.slane %v4519, 5
        %v4545 = vsel %vm2693, %v4542, %v4544
        %v4546 = vrot.slane %v4520, 5
        %v4547 = vsel %vm2693, %v4544, %v4546
        %v4548 = vrot.slane %v4521, 5
        %v4549 = vsel %vm2693, %v4546, %v4548
        %v4550 = vrot.slane %v4522, 5
        %v4551 = vsel %vm2693, %v4548, %v4550
        %v4552 = vrot.slane %v4523, 5
        %v4553 = vsel %vm2693, %v4550, %v4552
        %v4554 = vrot.slane %v4524, 5
        %v4555 = vsel %vm2693, %v4552, %v4554
        %v4556 = vrot.slane %v4525, 5
        %v4557 = vsel %vm2693, %v4554, %v4556
        %v4558 = vrot.slane %v4526, 5
        %v4559 = vsel %vm2693, %v4556, %v4558
        %4560 = vrot.lane.b32.xlu0 %v4527, 64
        %v4561 = vpop.permute.xlu0 %4560
        %4562 = vrot.lane.b32.xlu0 %v4529, 64
        %v4563 = vpop.permute.xlu0 %4562
        %4564 = vrot.lane.b32.xlu0 %v4531, 64
        %v4565 = vpop.permute.xlu0 %4564
        %4566 = vrot.lane.b32.xlu0 %v4533, 64
        %v4567 = vpop.permute.xlu0 %4566
        %4568 = vrot.lane.b32.xlu0 %v4535, 64
        %v4569 = vpop.permute.xlu0 %4568
        %4570 = vrot.lane.b32.xlu0 %v4537, 64
        %v4571 = vpop.permute.xlu0 %4570
        %4572 = vrot.lane.b32.xlu0 %v4539, 64
        %v4573 = vpop.permute.xlu0 %4572
        %4574 = vrot.lane.b32.xlu0 %v4541, 64
        %v4575 = vpop.permute.xlu0 %4574
        %4576 = vrot.lane.b32.xlu0 %v4543, 64
        %v4577 = vpop.permute.xlu0 %4576
        %4578 = vrot.lane.b32.xlu0 %v4545, 64
        %v4579 = vpop.permute.xlu0 %4578
        %4580 = vrot.lane.b32.xlu0 %v4547, 64
        %v4581 = vpop.permute.xlu0 %4580
        %4582 = vrot.lane.b32.xlu0 %v4549, 64
        %v4583 = vpop.permute.xlu0 %4582
        %4584 = vrot.lane.b32.xlu0 %v4551, 64
        %v4585 = vpop.permute.xlu0 %4584
        %4586 = vrot.lane.b32.xlu0 %v4553, 64
        %v4587 = vpop.permute.xlu0 %4586
        %4588 = vrot.lane.b32.xlu0 %v4555, 64
        %v4589 = vpop.permute.xlu0 %4588
        %4590 = vrot.lane.b32.xlu0 %v4557, 64
        %v4591 = vpop.permute.xlu0 %4590
        %4592 = vrot.lane.b32.xlu0 %v4559, 64
        %v4593 = vpop.permute.xlu0 %4592
        %v4596 = vsel %vm2761, %v4170, %v4411
        %v4599 = vsel %vm2761, %v4171, %v4413
        %v4602 = vsel %vm2761, %v4172, %v4415
        %v4605 = vsel %vm2761, %v4173, %v4417
        %v4608 = vsel %vm2761, %v4174, %v4419
        %v4611 = vsel %vm2761, %v4175, %v4421
        %v4614 = vsel %vm2761, %v4176, %v4423
        %v4617 = vsel %vm2761, %v4177, %v4425
        %v4620 = vsel %vm2761, %v4178, %v4427
        %v4623 = vsel %vm2761, %v4179, %v4429
        %v4626 = vsel %vm2761, %v4180, %v4431
        %v4629 = vsel %vm2761, %v4181, %v4433
        %v4632 = vsel %vm2761, %v4182, %v4435
        %v4635 = vsel %vm2761, %v4183, %v4437
        %v4638 = vsel %vm2761, %v4184, %v4439
        %v4641 = vsel %vm2761, %v4185, %v4441
        %v4644 = vsel %vm2761, %v4186, %v4443
        %v4646 = vsel %vm2813, %v4596, %v4561
        %v4648 = vsel %vm2813, %v4599, %v4563
        %v4650 = vsel %vm2813, %v4602, %v4565
        %v4652 = vsel %vm2813, %v4605, %v4567
        %v4654 = vsel %vm2813, %v4608, %v4569
        %v4656 = vsel %vm2813, %v4611, %v4571
        %v4658 = vsel %vm2813, %v4614, %v4573
        %v4660 = vsel %vm2813, %v4617, %v4575
        %v4662 = vsel %vm2813, %v4620, %v4577
        %v4664 = vsel %vm2813, %v4623, %v4579
        %v4666 = vsel %vm2813, %v4626, %v4581
        %v4668 = vsel %vm2813, %v4629, %v4583
        %v4670 = vsel %vm2813, %v4632, %v4585
        %v4672 = vsel %vm2813, %v4635, %v4587
        %v4674 = vsel %vm2813, %v4638, %v4589
        %v4676 = vsel %vm2813, %v4641, %v4591
        %v4678 = vsel %vm2813, %v4644, %v4593
        %v4679 = vshrl.u32 %v4646, 16
        %v4681 = vrot.slane %v4679, 3
        %v4682 = vshll.u32 %v4646, 16
        %v4684 = vrot.slane %v4682, 4
        %v4685 = vor.u32 %v4681, %v4684
        %v4686 = vshrl.u32 %v4648, 16
        %v4688 = vrot.slane %v4686, 3
        %v4689 = vshll.u32 %v4648, 16
        %v4691 = vrot.slane %v4689, 4
        %v4692 = vor.u32 %v4688, %v4691
        %v4693 = vsel %vm3242, %v4685, %v4692
        %v4694 = vshrl.u32 %v4650, 16
        %v4696 = vrot.slane %v4694, 3
        %v4697 = vshll.u32 %v4650, 16
        %v4699 = vrot.slane %v4697, 4
        %v4700 = vor.u32 %v4696, %v4699
        %v4701 = vsel %vm3242, %v4692, %v4700
        %v4702 = vshrl.u32 %v4652, 16
        %v4704 = vrot.slane %v4702, 3
        %v4705 = vshll.u32 %v4652, 16
        %v4707 = vrot.slane %v4705, 4
        %v4708 = vor.u32 %v4704, %v4707
        %v4709 = vsel %vm3242, %v4700, %v4708
        %v4710 = vshrl.u32 %v4654, 16
        %v4712 = vrot.slane %v4710, 3
        %v4713 = vshll.u32 %v4654, 16
        %v4715 = vrot.slane %v4713, 4
        %v4716 = vor.u32 %v4712, %v4715
        %v4717 = vsel %vm3242, %v4708, %v4716
        %v4718 = vshrl.u32 %v4656, 16
        %v4720 = vrot.slane %v4718, 3
        %v4721 = vshll.u32 %v4656, 16
        %v4723 = vrot.slane %v4721, 4
        %v4724 = vor.u32 %v4720, %v4723
        %v4725 = vsel %vm3242, %v4716, %v4724
        %v4726 = vshrl.u32 %v4658, 16
        %v4728 = vrot.slane %v4726, 3
        %v4729 = vshll.u32 %v4658, 16
        %v4731 = vrot.slane %v4729, 4
        %v4732 = vor.u32 %v4728, %v4731
        %v4733 = vsel %vm3242, %v4724, %v4732
        %v4734 = vshrl.u32 %v4660, 16
        %v4736 = vrot.slane %v4734, 3
        %v4737 = vshll.u32 %v4660, 16
        %v4739 = vrot.slane %v4737, 4
        %v4740 = vor.u32 %v4736, %v4739
        %v4741 = vsel %vm3242, %v4732, %v4740
        %v4742 = vshrl.u32 %v4662, 16
        %v4744 = vrot.slane %v4742, 3
        %v4745 = vshll.u32 %v4662, 16
        %v4747 = vrot.slane %v4745, 4
        %v4748 = vor.u32 %v4744, %v4747
        %v4749 = vsel %vm3242, %v4740, %v4748
        %v4750 = vshrl.u32 %v4664, 16
        %v4752 = vrot.slane %v4750, 3
        %v4753 = vshll.u32 %v4664, 16
        %v4755 = vrot.slane %v4753, 4
        %v4756 = vor.u32 %v4752, %v4755
        %v4757 = vsel %vm3242, %v4748, %v4756
        %v4758 = vshrl.u32 %v4666, 16
        %v4760 = vrot.slane %v4758, 3
        %v4761 = vshll.u32 %v4666, 16
        %v4763 = vrot.slane %v4761, 4
        %v4764 = vor.u32 %v4760, %v4763
        %v4765 = vsel %vm3242, %v4756, %v4764
        %v4766 = vshrl.u32 %v4668, 16
        %v4768 = vrot.slane %v4766, 3
        %v4769 = vshll.u32 %v4668, 16
        %v4771 = vrot.slane %v4769, 4
        %v4772 = vor.u32 %v4768, %v4771
        %v4773 = vsel %vm3242, %v4764, %v4772
        %v4774 = vshrl.u32 %v4670, 16
        %v4776 = vrot.slane %v4774, 3
        %v4777 = vshll.u32 %v4670, 16
        %v4779 = vrot.slane %v4777, 4
        %v4780 = vor.u32 %v4776, %v4779
        %v4781 = vsel %vm3242, %v4772, %v4780
        %v4782 = vshrl.u32 %v4672, 16
        %v4784 = vrot.slane %v4782, 3
        %v4785 = vshll.u32 %v4672, 16
        %v4787 = vrot.slane %v4785, 4
        %v4788 = vor.u32 %v4784, %v4787
        %v4789 = vsel %vm3242, %v4780, %v4788
        %v4790 = vshrl.u32 %v4674, 16
        %v4792 = vrot.slane %v4790, 3
        %v4793 = vshll.u32 %v4674, 16
        %v4795 = vrot.slane %v4793, 4
        %v4796 = vor.u32 %v4792, %v4795
        %v4797 = vsel %vm3242, %v4788, %v4796
        %v4798 = vshrl.u32 %v4676, 16
        %v4800 = vrot.slane %v4798, 3
        %v4801 = vshll.u32 %v4676, 16
        %v4803 = vrot.slane %v4801, 4
        %v4804 = vor.u32 %v4800, %v4803
        %v4805 = vsel %vm3242, %v4796, %v4804
        %v4806 = vshrl.u32 %v4678, 16
        %v4808 = vrot.slane %v4806, 3
        %v4809 = vshll.u32 %v4678, 16
        %v4811 = vrot.slane %v4809, 4
        %v4812 = vor.u32 %v4808, %v4811
        %v4813 = vsel %vm3242, %v4804, %v4812
        %v4826 = vunpack.c.l.b16 %v810
        %v4827 = vunpack.c.l.b16 %v811
        %v4828 = vunpack.c.l.b16 %v812
        %v4829 = vunpack.c.l.b16 %v813
        %v4830 = vunpack.c.l.b16 %v814
        %v4831 = vunpack.c.l.b16 %v815
        %v4832 = vunpack.c.l.b16 %v816
        %v4833 = vunpack.c.l.b16 %v817
        %v4834 = vunpack.c.l.b16 %v818
        %v4835 = vunpack.c.l.b16 %v819
        %v4836 = vunpack.c.l.b16 %v820
        %v4837 = vunpack.c.l.b16 %v821
        %v4838 = vpack.c.b16 %v4827, %v4826
        %v4839 = vpack.c.b16 %v4829, %v4828
        %v4840 = vpack.c.b16 %v4831, %v4830
        %v4841 = vpack.c.b16 %v4833, %v4832
        %v4842 = vpack.c.b16 %v4835, %v4834
        %v4843 = vpack.c.b16 %v4837, %v4836
        %v4851 = vsel %vm3414, %v4693, 0
        %v4854 = vsel %vm3414, %v4701, 0
        %v4857 = vsel %vm3414, %v4709, 0
        %v4860 = vsel %vm3414, %v4717, 0
        %v4863 = vsel %vm3414, %v4725, 0
        %v4866 = vsel %vm3414, %v4733, 0
        %v4869 = vsel %vm3414, %v4741, 0
        %v4872 = vsel %vm3414, %v4749, 0
        %v4875 = vsel %vm3414, %v4757, 0
        %v4878 = vsel %vm3414, %v4765, 0
        %v4881 = vsel %vm3414, %v4773, 0
        %v4884 = vsel %vm3414, %v4781, 0
        %v4887 = vsel %vm3414, %v4789, 0
        %v4890 = vsel %vm3414, %v4797, 0
        %v4893 = vsel %vm3414, %v4805, 0
        %v4896 = vsel %vm3414, %v4813, 0
        %4898 = vmatprep.subr.bf16.mxu0 0
        %4899 = vmatpush1.bf16.msra.mxu0 0
        %4900 = vmatprep.subr.bf16.mxu0 0
        %4901 = vmatpush1.bf16.msra.mxu0 0
        %4902 = vmatprep.subr.bf16.mxu0 0
        %4903 = vmatpush1.bf16.msra.mxu0 %v4843
        %4904 = vmatprep.subr.bf16.mxu0 0
        %4905 = vmatpush1.bf16.msra.mxu0 %v4842
        %4906 = vmatprep.subr.bf16.mxu0 0
        %4907 = vmatpush1.bf16.msra.mxu0 %v4841
        %4908 = vmatprep.subr.bf16.mxu0 0
        %4909 = vmatpush1.bf16.msra.mxu0 %v4840
        %4910 = vmatprep.subr.bf16.mxu0 0
        %4911 = vmatpush1.bf16.msra.mxu0 %v4839
        %4912 = vmatprep.subr.bf16.mxu0 0
        %4913 = vmatpush1.bf16.msra.mxu0 %v4838
        %4914 = vmatprep.subr.bf16.mxu0 0
        %4915 = vmatpush2.bf16.msra.mxu0 0
        %4916 = vmatprep.subr.bf16.mxu0 0
        %4917 = vmatpush2.bf16.msra.mxu0 0
        %4918 = vmatprep.subr.bf16.mxu0 0
        %4919 = vmatpush2.bf16.msra.mxu0 0
        %4920 = vmatprep.subr.bf16.mxu0 0
        %4921 = vmatpush2.bf16.msra.mxu0 0
        %4922 = vmatprep.subr.bf16.mxu0 0
        %4923 = vmatpush2.bf16.msra.mxu0 0
        %4924 = vmatprep.subr.bf16.mxu0 0
        %4925 = vmatpush2.bf16.msra.mxu0 0
        %4926 = vmatprep.subr.bf16.mxu0 0
        %4927 = vmatpush2.bf16.msra.mxu0 0
        %4928 = vmatprep.subr.bf16.mxu0 0
        %4929 = vmatpush2.bf16.msra.mxu0 0
        %4930 = vmatprep.mubr.bf16.mxu0 0
        %4931 = vmatmul.mubr.bf16.gmra.mxu0 %v4851
        %v4932 = vpop.f32.mrf.mxu0
        %v4933 = vadd.f32 0.0, %v4932
        %v4934 = vpop.f32.mrf.mxu0
        %v4935 = vpop.f32.mrf.mxu0
        %v4936 = vadd.f32 0.0, %v4935
        %v4937 = vpop.f32.mrf.mxu0
        %4938 = vmatprep.mubr.bf16.mxu0 0
        %4939 = vmatmul.mubr.bf16.gmra.mxu0 %v4854
        %v4940 = vpop.f32.mrf.mxu0
        %v4941 = vadd.f32 0.0, %v4940
        %v4942 = vpop.f32.mrf.mxu0
        %v4943 = vpop.f32.mrf.mxu0
        %v4944 = vadd.f32 0.0, %v4943
        %v4945 = vpop.f32.mrf.mxu0
        %4946 = vmatprep.mubr.bf16.mxu0 0
        %4947 = vmatmul.mubr.bf16.gmra.mxu0 %v4857
        %v4948 = vpop.f32.mrf.mxu0
        %v4949 = vadd.f32 0.0, %v4948
        %v4950 = vpop.f32.mrf.mxu0
        %v4951 = vpop.f32.mrf.mxu0
        %v4952 = vadd.f32 0.0, %v4951
        %v4953 = vpop.f32.mrf.mxu0
        %4954 = vmatprep.mubr.bf16.mxu0 0
        %4955 = vmatmul.mubr.bf16.gmra.mxu0 %v4860
        %v4956 = vpop.f32.mrf.mxu0
        %v4957 = vadd.f32 0.0, %v4956
        %v4958 = vpop.f32.mrf.mxu0
        %v4959 = vpop.f32.mrf.mxu0
        %v4960 = vadd.f32 0.0, %v4959
        %v4961 = vpop.f32.mrf.mxu0
        %4962 = vmatprep.mubr.bf16.mxu0 0
        %4963 = vmatmul.mubr.bf16.gmra.mxu0 %v4863
        %v4964 = vpop.f32.mrf.mxu0
        %v4965 = vadd.f32 0.0, %v4964
        %v4966 = vpop.f32.mrf.mxu0
        %v4967 = vpop.f32.mrf.mxu0
        %v4968 = vadd.f32 0.0, %v4967
        %v4969 = vpop.f32.mrf.mxu0
        %4970 = vmatprep.mubr.bf16.mxu0 0
        %4971 = vmatmul.mubr.bf16.gmra.mxu0 %v4866
        %v4972 = vpop.f32.mrf.mxu0
        %v4973 = vadd.f32 0.0, %v4972
        %v4974 = vpop.f32.mrf.mxu0
        %v4975 = vpop.f32.mrf.mxu0
        %v4976 = vadd.f32 0.0, %v4975
        %v4977 = vpop.f32.mrf.mxu0
        %4978 = vmatprep.mubr.bf16.mxu0 0
        %4979 = vmatmul.mubr.bf16.gmra.mxu0 %v4869
        %v4980 = vpop.f32.mrf.mxu0
        %v4981 = vadd.f32 0.0, %v4980
        %v4982 = vpop.f32.mrf.mxu0
        %v4983 = vpop.f32.mrf.mxu0
        %v4984 = vadd.f32 0.0, %v4983
        %v4985 = vpop.f32.mrf.mxu0
        %4986 = vmatprep.mubr.bf16.mxu0 0
        %4987 = vmatmul.mubr.bf16.gmra.mxu0 %v4872
        %v4988 = vpop.f32.mrf.mxu0
        %v4989 = vadd.f32 0.0, %v4988
        %v4990 = vpop.f32.mrf.mxu0
        %v4991 = vpop.f32.mrf.mxu0
        %v4992 = vadd.f32 0.0, %v4991
        %v4993 = vpop.f32.mrf.mxu0
        %4994 = vmatprep.mubr.bf16.mxu0 0
        %4995 = vmatmul.mubr.bf16.gmra.mxu0 %v4875
        %v4996 = vpop.f32.mrf.mxu0
        %v4997 = vadd.f32 0.0, %v4996
        %v4998 = vpop.f32.mrf.mxu0
        %v4999 = vpop.f32.mrf.mxu0
        %v5000 = vadd.f32 0.0, %v4999
        %v5001 = vpop.f32.mrf.mxu0
        %5002 = vmatprep.mubr.bf16.mxu0 0
        %5003 = vmatmul.mubr.bf16.gmra.mxu0 %v4878
        %v5004 = vpop.f32.mrf.mxu0
        %v5005 = vadd.f32 0.0, %v5004
        %v5006 = vpop.f32.mrf.mxu0
        %v5007 = vpop.f32.mrf.mxu0
        %v5008 = vadd.f32 0.0, %v5007
        %v5009 = vpop.f32.mrf.mxu0
        %5010 = vmatprep.mubr.bf16.mxu0 0
        %5011 = vmatmul.mubr.bf16.gmra.mxu0 %v4881
        %v5012 = vpop.f32.mrf.mxu0
        %v5013 = vadd.f32 0.0, %v5012
        %v5014 = vpop.f32.mrf.mxu0
        %v5015 = vpop.f32.mrf.mxu0
        %v5016 = vadd.f32 0.0, %v5015
        %v5017 = vpop.f32.mrf.mxu0
        %5018 = vmatprep.mubr.bf16.mxu0 0
        %5019 = vmatmul.mubr.bf16.gmra.mxu0 %v4884
        %v5020 = vpop.f32.mrf.mxu0
        %v5021 = vadd.f32 0.0, %v5020
        %v5022 = vpop.f32.mrf.mxu0
        %v5023 = vpop.f32.mrf.mxu0
        %v5024 = vadd.f32 0.0, %v5023
        %v5025 = vpop.f32.mrf.mxu0
        %5026 = vmatprep.mubr.bf16.mxu0 0
        %5027 = vmatmul.mubr.bf16.gmra.mxu0 %v4887
        %v5028 = vpop.f32.mrf.mxu0
        %v5029 = vadd.f32 0.0, %v5028
        %v5030 = vpop.f32.mrf.mxu0
        %v5031 = vpop.f32.mrf.mxu0
        %v5032 = vadd.f32 0.0, %v5031
        %v5033 = vpop.f32.mrf.mxu0
        %5034 = vmatprep.mubr.bf16.mxu0 0
        %5035 = vmatmul.mubr.bf16.gmra.mxu0 %v4890
        %v5036 = vpop.f32.mrf.mxu0
        %v5037 = vadd.f32 0.0, %v5036
        %v5038 = vpop.f32.mrf.mxu0
        %v5039 = vpop.f32.mrf.mxu0
        %v5040 = vadd.f32 0.0, %v5039
        %v5041 = vpop.f32.mrf.mxu0
        %5042 = vmatprep.mubr.bf16.mxu0 0
        %5043 = vmatmul.mubr.bf16.gmra.mxu0 %v4893
        %v5044 = vpop.f32.mrf.mxu0
        %v5045 = vadd.f32 0.0, %v5044
        %v5046 = vpop.f32.mrf.mxu0
        %v5047 = vpop.f32.mrf.mxu0
        %v5048 = vadd.f32 0.0, %v5047
        %v5049 = vpop.f32.mrf.mxu0
        %5050 = vmatprep.mubr.bf16.mxu0 0
        %5051 = vmatmul.mubr.bf16.gmra.mxu0 %v4896
        %v5052 = vpop.f32.mrf.mxu0
        %v5053 = vadd.f32 0.0, %v5052
        %v5054 = vpop.f32.mrf.mxu0
        %v5055 = vpop.f32.mrf.mxu0
        %v5056 = vadd.f32 0.0, %v5055
        %v5057 = vpop.f32.mrf.mxu0
        %5058 = vdwg.mxu0
        %v5059 = vadd.f32 %v3878, %v4933
        %v5060 = vadd.f32 %v3881, %v4936
        %v5061 = vadd.f32 %v3886, %v4941
        %v5062 = vadd.f32 %v3889, %v4944
        %v5063 = vadd.f32 %v3894, %v4949
        %v5064 = vadd.f32 %v3897, %v4952
        %v5065 = vadd.f32 %v3902, %v4957
        %v5066 = vadd.f32 %v3905, %v4960
        %v5067 = vadd.f32 %v3910, %v4965
        %v5068 = vadd.f32 %v3913, %v4968
        %v5069 = vadd.f32 %v3918, %v4973
        %v5070 = vadd.f32 %v3921, %v4976
        %v5071 = vadd.f32 %v3926, %v4981
        %v5072 = vadd.f32 %v3929, %v4984
        %v5073 = vadd.f32 %v3934, %v4989
        %v5074 = vadd.f32 %v3937, %v4992
        %v5075 = vadd.f32 %v3942, %v4997
        %v5076 = vadd.f32 %v3945, %v5000
        %v5077 = vadd.f32 %v3950, %v5005
        %v5078 = vadd.f32 %v3953, %v5008
        %v5079 = vadd.f32 %v3958, %v5013
        %v5080 = vadd.f32 %v3961, %v5016
        %v5081 = vadd.f32 %v3966, %v5021
        %v5082 = vadd.f32 %v3969, %v5024
        %v5083 = vadd.f32 %v3974, %v5029
        %v5084 = vadd.f32 %v3977, %v5032
        %v5085 = vadd.f32 %v3982, %v5037
        %v5086 = vadd.f32 %v3985, %v5040
        %v5087 = vadd.f32 %v3990, %v5045
        %v5088 = vadd.f32 %v3993, %v5048
        %v5089 = vadd.f32 %v3998, %v5053
        %v5090 = vadd.f32 %v4001, %v5056
        %v5092 = vlaneseq
        %v5093 = vshrl.u32 %v5092, 7
        %v5094 = vsub.s32 0, %v5093
        %v5095 = vrot.slane %v827, %v5094
        %v5097 = vadd.f32 %v5059, %v5095
        %v5098 = vadd.f32 %v5060, %v5095
        %v5099 = vadd.f32 %v5061, %v5095
        %v5100 = vadd.f32 %v5062, %v5095
        %v5101 = vadd.f32 %v5063, %v5095
        %v5102 = vadd.f32 %v5064, %v5095
        %v5103 = vadd.f32 %v5065, %v5095
        %v5104 = vadd.f32 %v5066, %v5095
        %v5105 = vadd.f32 %v5067, %v5095
        %v5106 = vadd.f32 %v5068, %v5095
        %v5107 = vadd.f32 %v5069, %v5095
        %v5108 = vadd.f32 %v5070, %v5095
        %v5109 = vadd.f32 %v5071, %v5095
        %v5110 = vadd.f32 %v5072, %v5095
        %v5111 = vadd.f32 %v5073, %v5095
        %v5112 = vadd.f32 %v5074, %v5095
        %v5113 = vadd.f32 %v5075, %v5095
        %v5114 = vadd.f32 %v5076, %v5095
        %v5115 = vadd.f32 %v5077, %v5095
        %v5116 = vadd.f32 %v5078, %v5095
        %v5117 = vadd.f32 %v5079, %v5095
        %v5118 = vadd.f32 %v5080, %v5095
        %v5119 = vadd.f32 %v5081, %v5095
        %v5120 = vadd.f32 %v5082, %v5095
        %v5121 = vadd.f32 %v5083, %v5095
        %v5122 = vadd.f32 %v5084, %v5095
        %v5123 = vadd.f32 %v5085, %v5095
        %v5124 = vadd.f32 %v5086, %v5095
        %v5125 = vadd.f32 %v5087, %v5095
        %v5126 = vadd.f32 %v5088, %v5095
        %v5127 = vadd.f32 %v5089, %v5095
        %v5128 = vadd.f32 %v5090, %v5095
        %v5129 = vmax.f32 %v5097, 0.0
        %v5130 = vmax.f32 %v5098, 0.0
        %v5131 = vmax.f32 %v5099, 0.0
        %v5132 = vmax.f32 %v5100, 0.0
        %v5133 = vmax.f32 %v5101, 0.0
        %v5134 = vmax.f32 %v5102, 0.0
        %v5135 = vmax.f32 %v5103, 0.0
        %v5136 = vmax.f32 %v5104, 0.0
        %v5137 = vmax.f32 %v5105, 0.0
        %v5138 = vmax.f32 %v5106, 0.0
        %v5139 = vmax.f32 %v5107, 0.0
        %v5140 = vmax.f32 %v5108, 0.0
        %v5141 = vmax.f32 %v5109, 0.0
        %v5142 = vmax.f32 %v5110, 0.0
        %v5143 = vmax.f32 %v5111, 0.0
        %v5144 = vmax.f32 %v5112, 0.0
        %v5145 = vmax.f32 %v5113, 0.0
        %v5146 = vmax.f32 %v5114, 0.0
        %v5147 = vmax.f32 %v5115, 0.0
        %v5148 = vmax.f32 %v5116, 0.0
        %v5149 = vmax.f32 %v5117, 0.0
        %v5150 = vmax.f32 %v5118, 0.0
        %v5151 = vmax.f32 %v5119, 0.0
        %v5152 = vmax.f32 %v5120, 0.0
        %v5153 = vmax.f32 %v5121, 0.0
        %v5154 = vmax.f32 %v5122, 0.0
        %v5155 = vmax.f32 %v5123, 0.0
        %v5156 = vmax.f32 %v5124, 0.0
        %v5157 = vmax.f32 %v5125, 0.0
        %v5158 = vmax.f32 %v5126, 0.0
        %v5159 = vmax.f32 %v5127, 0.0
        %v5160 = vmax.f32 %v5128, 0.0
        %v5161 = vpack.c.bf16 %v5130, %v5129
        %v5162 = vpack.c.bf16 %v5132, %v5131
        %v5163 = vpack.c.bf16 %v5134, %v5133
        %v5164 = vpack.c.bf16 %v5136, %v5135
        %v5165 = vpack.c.bf16 %v5138, %v5137
        %v5166 = vpack.c.bf16 %v5140, %v5139
        %v5167 = vpack.c.bf16 %v5142, %v5141
        %v5168 = vpack.c.bf16 %v5144, %v5143
        %v5169 = vpack.c.bf16 %v5146, %v5145
        %v5170 = vpack.c.bf16 %v5148, %v5147
        %v5171 = vpack.c.bf16 %v5150, %v5149
        %v5172 = vpack.c.bf16 %v5152, %v5151
        %v5173 = vpack.c.bf16 %v5154, %v5153
        %v5174 = vpack.c.bf16 %v5156, %v5155
        %v5175 = vpack.c.bf16 %v5158, %v5157
        %v5176 = vpack.c.bf16 %v5160, %v5159
        %v5178 = vlaneseq
        %v5179 = vshrl.u32 %v5178, 7
        %v5180 = vsub.s32 0, %v5179
        %v5181 = vrot.slane %v828, %v5180
        %v5187 = vunpack.c.l.b16 %v822
        %v5188 = vunpack.c.l.b16 %v823
        %v5189 = vunpack.c.l.b16 %v824
        %v5190 = vunpack.c.l.b16 %v825
        %v5191 = vpack.c.b16 %v5188, %v5187
        %v5192 = vpack.c.b16 %v5190, %v5189
        %v5196 = vsel %vm2761, %v5161, 0
        %v5199 = vsel %vm2761, %v5162, 0
        %v5202 = vsel %vm2761, %v5163, 0
        %v5205 = vsel %vm2761, %v5164, 0
        %v5208 = vsel %vm2761, %v5165, 0
        %v5211 = vsel %vm2761, %v5166, 0
        %v5214 = vsel %vm2761, %v5167, 0
        %v5217 = vsel %vm2761, %v5168, 0
        %v5220 = vsel %vm2761, %v5169, 0
        %v5223 = vsel %vm2761, %v5170, 0
        %v5226 = vsel %vm2761, %v5171, 0
        %v5229 = vsel %vm2761, %v5172, 0
        %v5232 = vsel %vm2761, %v5173, 0
        %v5235 = vsel %vm2761, %v5174, 0
        %v5238 = vsel %vm2761, %v5175, 0
        %v5241 = vsel %vm2761, %v5176, 0
        %5243 = vmatprep.subr.bf16.mxu0 0
        %5244 = vmatpush1.bf16.msra.mxu0 0
        %5245 = vmatprep.subr.bf16.mxu0 0
        %5246 = vmatpush1.bf16.msra.mxu0 0
        %5247 = vmatprep.subr.bf16.mxu0 0
        %5248 = vmatpush1.bf16.msra.mxu0 0
        %5249 = vmatprep.subr.bf16.mxu0 0
        %5250 = vmatpush1.bf16.msra.mxu0 0
        %5251 = vmatprep.subr.bf16.mxu0 0
        %5252 = vmatpush1.bf16.msra.mxu0 0
        %5253 = vmatprep.subr.bf16.mxu0 0
        %5254 = vmatpush1.bf16.msra.mxu0 0
        %5255 = vmatprep.subr.bf16.mxu0 0
        %5256 = vmatpush1.bf16.msra.mxu0 %v5192
        %5257 = vmatprep.subr.bf16.mxu0 0
        %5258 = vmatpush1.bf16.msra.mxu0 %v5191
        %5259 = vmatprep.subr.bf16.mxu0 0
        %5260 = vmatpush2.bf16.msra.mxu0 0
        %5261 = vmatprep.subr.bf16.mxu0 0
        %5262 = vmatpush2.bf16.msra.mxu0 0
        %5263 = vmatprep.subr.bf16.mxu0 0
        %5264 = vmatpush2.bf16.msra.mxu0 0
        %5265 = vmatprep.subr.bf16.mxu0 0
        %5266 = vmatpush2.bf16.msra.mxu0 0
        %5267 = vmatprep.subr.bf16.mxu0 0
        %5268 = vmatpush2.bf16.msra.mxu0 0
        %5269 = vmatprep.subr.bf16.mxu0 0
        %5270 = vmatpush2.bf16.msra.mxu0 0
        %5271 = vmatprep.subr.bf16.mxu0 0
        %5272 = vmatpush2.bf16.msra.mxu0 0
        %5273 = vmatprep.subr.bf16.mxu0 0
        %5274 = vmatpush2.bf16.msra.mxu0 0
        %5275 = vmatprep.mubr.bf16.mxu0 0
        %5276 = vmatmul.mubr.bf16.gmra.mxu0 %v5196
        %v5277 = vpop.f32.mrf.mxu0
        %v5278 = vadd.f32 %v5181, %v5277
        %v5279 = vpop.f32.mrf.mxu0
        %v5280 = vpop.f32.mrf.mxu0
        %v5281 = vadd.f32 %v5181, %v5280
        %v5282 = vpop.f32.mrf.mxu0
        %5283 = vmatprep.mubr.bf16.mxu0 0
        %5284 = vmatmul.mubr.bf16.gmra.mxu0 %v5199
        %v5285 = vpop.f32.mrf.mxu0
        %v5286 = vadd.f32 %v5181, %v5285
        %v5287 = vpop.f32.mrf.mxu0
        %v5288 = vpop.f32.mrf.mxu0
        %v5289 = vadd.f32 %v5181, %v5288
        %v5290 = vpop.f32.mrf.mxu0
        %5291 = vmatprep.mubr.bf16.mxu0 0
        %5292 = vmatmul.mubr.bf16.gmra.mxu0 %v5202
        %v5293 = vpop.f32.mrf.mxu0
        %v5294 = vadd.f32 %v5181, %v5293
        %v5295 = vpop.f32.mrf.mxu0
        %v5296 = vpop.f32.mrf.mxu0
        %v5297 = vadd.f32 %v5181, %v5296
        %v5298 = vpop.f32.mrf.mxu0
        %5299 = vmatprep.mubr.bf16.mxu0 0
        %5300 = vmatmul.mubr.bf16.gmra.mxu0 %v5205
        %v5301 = vpop.f32.mrf.mxu0
        %v5302 = vadd.f32 %v5181, %v5301
        %v5303 = vpop.f32.mrf.mxu0
        %v5304 = vpop.f32.mrf.mxu0
        %v5305 = vadd.f32 %v5181, %v5304
        %v5306 = vpop.f32.mrf.mxu0
        %5307 = vmatprep.mubr.bf16.mxu0 0
        %5308 = vmatmul.mubr.bf16.gmra.mxu0 %v5208
        %v5309 = vpop.f32.mrf.mxu0
        %v5310 = vadd.f32 %v5181, %v5309
        %v5311 = vpop.f32.mrf.mxu0
        %v5312 = vpop.f32.mrf.mxu0
        %v5313 = vadd.f32 %v5181, %v5312
        %v5314 = vpop.f32.mrf.mxu0
        %5315 = vmatprep.mubr.bf16.mxu0 0
        %5316 = vmatmul.mubr.bf16.gmra.mxu0 %v5211
        %v5317 = vpop.f32.mrf.mxu0
        %v5318 = vadd.f32 %v5181, %v5317
        %v5319 = vpop.f32.mrf.mxu0
        %v5320 = vpop.f32.mrf.mxu0
        %v5321 = vadd.f32 %v5181, %v5320
        %v5322 = vpop.f32.mrf.mxu0
        %5323 = vmatprep.mubr.bf16.mxu0 0
        %5324 = vmatmul.mubr.bf16.gmra.mxu0 %v5214
        %v5325 = vpop.f32.mrf.mxu0
        %v5326 = vadd.f32 %v5181, %v5325
        %v5327 = vpop.f32.mrf.mxu0
        %v5328 = vpop.f32.mrf.mxu0
        %v5329 = vadd.f32 %v5181, %v5328
        %v5330 = vpop.f32.mrf.mxu0
        %5331 = vmatprep.mubr.bf16.mxu0 0
        %5332 = vmatmul.mubr.bf16.gmra.mxu0 %v5217
        %v5333 = vpop.f32.mrf.mxu0
        %v5334 = vadd.f32 %v5181, %v5333
        %v5335 = vpop.f32.mrf.mxu0
        %v5336 = vpop.f32.mrf.mxu0
        %v5337 = vadd.f32 %v5181, %v5336
        %v5338 = vpop.f32.mrf.mxu0
        %5339 = vmatprep.mubr.bf16.mxu0 0
        %5340 = vmatmul.mubr.bf16.gmra.mxu0 %v5220
        %v5341 = vpop.f32.mrf.mxu0
        %v5342 = vadd.f32 %v5181, %v5341
        %v5343 = vpop.f32.mrf.mxu0
        %v5344 = vpop.f32.mrf.mxu0
        %v5345 = vadd.f32 %v5181, %v5344
        %v5346 = vpop.f32.mrf.mxu0
        %5347 = vmatprep.mubr.bf16.mxu0 0
        %5348 = vmatmul.mubr.bf16.gmra.mxu0 %v5223
        %v5349 = vpop.f32.mrf.mxu0
        %v5350 = vadd.f32 %v5181, %v5349
        %v5351 = vpop.f32.mrf.mxu0
        %v5352 = vpop.f32.mrf.mxu0
        %v5353 = vadd.f32 %v5181, %v5352
        %v5354 = vpop.f32.mrf.mxu0
        %5355 = vmatprep.mubr.bf16.mxu0 0
        %5356 = vmatmul.mubr.bf16.gmra.mxu0 %v5226
        %v5357 = vpop.f32.mrf.mxu0
        %v5358 = vadd.f32 %v5181, %v5357
        %v5359 = vpop.f32.mrf.mxu0
        %v5360 = vpop.f32.mrf.mxu0
        %v5361 = vadd.f32 %v5181, %v5360
        %v5362 = vpop.f32.mrf.mxu0
        %5363 = vmatprep.mubr.bf16.mxu0 0
        %5364 = vmatmul.mubr.bf16.gmra.mxu0 %v5229
        %v5365 = vpop.f32.mrf.mxu0
        %v5366 = vadd.f32 %v5181, %v5365
        %v5367 = vpop.f32.mrf.mxu0
        %v5368 = vpop.f32.mrf.mxu0
        %v5369 = vadd.f32 %v5181, %v5368
        %v5370 = vpop.f32.mrf.mxu0
        %5371 = vmatprep.mubr.bf16.mxu0 0
        %5372 = vmatmul.mubr.bf16.gmra.mxu0 %v5232
        %v5373 = vpop.f32.mrf.mxu0
        %v5374 = vadd.f32 %v5181, %v5373
        %v5375 = vpop.f32.mrf.mxu0
        %v5376 = vpop.f32.mrf.mxu0
        %v5377 = vadd.f32 %v5181, %v5376
        %v5378 = vpop.f32.mrf.mxu0
        %5379 = vmatprep.mubr.bf16.mxu0 0
        %5380 = vmatmul.mubr.bf16.gmra.mxu0 %v5235
        %v5381 = vpop.f32.mrf.mxu0
        %v5382 = vadd.f32 %v5181, %v5381
        %v5383 = vpop.f32.mrf.mxu0
        %v5384 = vpop.f32.mrf.mxu0
        %v5385 = vadd.f32 %v5181, %v5384
        %v5386 = vpop.f32.mrf.mxu0
        %5387 = vmatprep.mubr.bf16.mxu0 0
        %5388 = vmatmul.mubr.bf16.gmra.mxu0 %v5238
        %v5389 = vpop.f32.mrf.mxu0
        %v5390 = vadd.f32 %v5181, %v5389
        %v5391 = vpop.f32.mrf.mxu0
        %v5392 = vpop.f32.mrf.mxu0
        %v5393 = vadd.f32 %v5181, %v5392
        %v5394 = vpop.f32.mrf.mxu0
        %5395 = vmatprep.mubr.bf16.mxu0 0
        %5396 = vmatmul.mubr.bf16.gmra.mxu0 %v5241
        %v5397 = vpop.f32.mrf.mxu0
        %v5398 = vadd.f32 %v5181, %v5397
        %v5399 = vpop.f32.mrf.mxu0
        %v5400 = vpop.f32.mrf.mxu0
        %v5401 = vadd.f32 %v5181, %v5400
        %v5402 = vpop.f32.mrf.mxu0
        %5403 = vdwg.mxu0
        %v5404 = vunpack.c.l.bf16 %v829
        %v5405 = vunpack.c.l.bf16 %v830
        %v5406 = vunpack.c.l.bf16 %v831
        %v5407 = vunpack.c.l.bf16 %v832
        %v5408 = vunpack.c.l.bf16 %v833
        %v5409 = vunpack.c.l.bf16 %v834
        %v5410 = vunpack.c.l.bf16 %v835
        %v5411 = vunpack.c.l.bf16 %v836
        %v5412 = vunpack.c.l.bf16 %v837
        %v5413 = vunpack.c.l.bf16 %v838
        %v5414 = vunpack.c.l.bf16 %v839
        %v5415 = vunpack.c.l.bf16 %v840
        %v5416 = vunpack.c.l.bf16 %v841
        %v5417 = vunpack.c.l.bf16 %v842
        %v5418 = vunpack.c.l.bf16 %v843
        %v5419 = vunpack.c.l.bf16 %v844
        %v5420 = vunpack.c.l.bf16 %v845
        %v5421 = vunpack.c.l.bf16 %v846
        %v5422 = vunpack.c.l.bf16 %v847
        %v5423 = vunpack.c.l.bf16 %v848
        %v5424 = vunpack.c.l.bf16 %v849
        %v5425 = vunpack.c.l.bf16 %v850
        %v5426 = vunpack.c.l.bf16 %v851
        %v5427 = vunpack.c.l.bf16 %v852
        %v5428 = vunpack.c.l.bf16 %v853
        %v5429 = vunpack.c.l.bf16 %v854
        %v5430 = vunpack.c.l.bf16 %v855
        %v5431 = vunpack.c.l.bf16 %v856
        %v5432 = vunpack.c.l.bf16 %v857
        %v5433 = vunpack.c.l.bf16 %v858
        %v5434 = vunpack.c.l.bf16 %v859
        %v5435 = vunpack.c.l.bf16 %v860
        %v5436 = vadd.f32 %v5278, %v5404
        %v5437 = vadd.f32 %v5281, %v5405
        %v5438 = vadd.f32 %v5286, %v5406
        %v5439 = vadd.f32 %v5289, %v5407
        %v5440 = vadd.f32 %v5294, %v5408
        %v5441 = vadd.f32 %v5297, %v5409
        %v5442 = vadd.f32 %v5302, %v5410
        %v5443 = vadd.f32 %v5305, %v5411
        %v5444 = vadd.f32 %v5310, %v5412
        %v5445 = vadd.f32 %v5313, %v5413
        %v5446 = vadd.f32 %v5318, %v5414
        %v5447 = vadd.f32 %v5321, %v5415
        %v5448 = vadd.f32 %v5326, %v5416
        %v5449 = vadd.f32 %v5329, %v5417
        %v5450 = vadd.f32 %v5334, %v5418
        %v5451 = vadd.f32 %v5337, %v5419
        %v5452 = vadd.f32 %v5342, %v5420
        %v5453 = vadd.f32 %v5345, %v5421
        %v5454 = vadd.f32 %v5350, %v5422
        %v5455 = vadd.f32 %v5353, %v5423
        %v5456 = vadd.f32 %v5358, %v5424
        %v5457 = vadd.f32 %v5361, %v5425
        %v5458 = vadd.f32 %v5366, %v5426
        %v5459 = vadd.f32 %v5369, %v5427
        %v5460 = vadd.f32 %v5374, %v5428
        %v5461 = vadd.f32 %v5377, %v5429
        %v5462 = vadd.f32 %v5382, %v5430
        %v5463 = vadd.f32 %v5385, %v5431
        %v5464 = vadd.f32 %v5390, %v5432
        %v5465 = vadd.f32 %v5393, %v5433
        %v5466 = vadd.f32 %v5398, %v5434
        %v5467 = vadd.f32 %v5401, %v5435
        %v5468 = vmax.f32 %v5436, 0.0
        %v5469 = vmax.f32 %v5437, 0.0
        %v5470 = vmax.f32 %v5438, 0.0
        %v5471 = vmax.f32 %v5439, 0.0
        %v5472 = vmax.f32 %v5440, 0.0
        %v5473 = vmax.f32 %v5441, 0.0
        %v5474 = vmax.f32 %v5442, 0.0
        %v5475 = vmax.f32 %v5443, 0.0
        %v5476 = vmax.f32 %v5444, 0.0
        %v5477 = vmax.f32 %v5445, 0.0
        %v5478 = vmax.f32 %v5446, 0.0
        %v5479 = vmax.f32 %v5447, 0.0
        %v5480 = vmax.f32 %v5448, 0.0
        %v5481 = vmax.f32 %v5449, 0.0
        %v5482 = vmax.f32 %v5450, 0.0
        %v5483 = vmax.f32 %v5451, 0.0
        %v5484 = vmax.f32 %v5452, 0.0
        %v5485 = vmax.f32 %v5453, 0.0
        %v5486 = vmax.f32 %v5454, 0.0
        %v5487 = vmax.f32 %v5455, 0.0
        %v5488 = vmax.f32 %v5456, 0.0
        %v5489 = vmax.f32 %v5457, 0.0
        %v5490 = vmax.f32 %v5458, 0.0
        %v5491 = vmax.f32 %v5459, 0.0
        %v5492 = vmax.f32 %v5460, 0.0
        %v5493 = vmax.f32 %v5461, 0.0
        %v5494 = vmax.f32 %v5462, 0.0
        %v5495 = vmax.f32 %v5463, 0.0
        %v5496 = vmax.f32 %v5464, 0.0
        %v5497 = vmax.f32 %v5465, 0.0
        %v5498 = vmax.f32 %v5466, 0.0
        %v5499 = vmax.f32 %v5467, 0.0
        %5500 = vst [vmem:[%s271] sm:$0xff] %v5468
        %5501 = vst [vmem:[%s271 + $0x8] sm:$0xff] %v5469
        %5502 = vst [vmem:[%s271 + $0x10] sm:$0xff] %v5470
        %5503 = vst [vmem:[%s271 + $0x18] sm:$0xff] %v5471
        %5504 = vst [vmem:[%s271 + $0x20] sm:$0xff] %v5472
        %5505 = vst [vmem:[%s271 + $0x28] sm:$0xff] %v5473
        %5506 = vst [vmem:[%s271 + $0x30] sm:$0xff] %v5474
        %5507 = vst [vmem:[%s271 + $0x38] sm:$0xff] %v5475
        %5508 = vst [vmem:[%s271 + $0x40] sm:$0xff] %v5476
        %5509 = vst [vmem:[%s271 + $0x48] sm:$0xff] %v5477
        %5510 = vst [vmem:[%s271 + $0x50] sm:$0xff] %v5478
        %5511 = vst [vmem:[%s271 + $0x58] sm:$0xff] %v5479
        %5512 = vst [vmem:[%s271 + $0x60] sm:$0xff] %v5480
        %5513 = vst [vmem:[%s271 + $0x68] sm:$0xff] %v5481
        %5514 = vst [vmem:[%s271 + $0x70] sm:$0xff] %v5482
        %5515 = vst [vmem:[%s271 + $0x78] sm:$0xff] %v5483
        %5516 = vst [vmem:[%s271 + $0x80] sm:$0xff] %v5484
        %5517 = vst [vmem:[%s271 + $0x88] sm:$0xff] %v5485
        %5518 = vst [vmem:[%s271 + $0x90] sm:$0xff] %v5486
        %5519 = vst [vmem:[%s271 + $0x98] sm:$0xff] %v5487
        %5520 = vst [vmem:[%s271 + $0xa0] sm:$0xff] %v5488
        %5521 = vst [vmem:[%s271 + $0xa8] sm:$0xff] %v5489
        %5522 = vst [vmem:[%s271 + $0xb0] sm:$0xff] %v5490
        %5523 = vst [vmem:[%s271 + $0xb8] sm:$0xff] %v5491
        %5524 = vst [vmem:[%s271 + $0xc0] sm:$0xff] %v5492
        %5525 = vst [vmem:[%s271 + $0xc8] sm:$0xff] %v5493
        %5526 = vst [vmem:[%s271 + $0xd0] sm:$0xff] %v5494
        %5527 = vst [vmem:[%s271 + $0xd8] sm:$0xff] %v5495
        %5528 = vst [vmem:[%s271 + $0xe0] sm:$0xff] %v5496
        %5529 = vst [vmem:[%s271 + $0xe8] sm:$0xff] %v5497
        %5530 = vst [vmem:[%s271 + $0xf0] sm:$0xff] %v5498
        %5531 = vst [vmem:[%s271 + $0xf8] sm:$0xff] %v5499
        %s5532 = sand.u32 %s181, 1
        %s5533 = scalar_lea.sflag [#allocation4], %s5532
        %s5534 = sand.u32 %s181, 1
        %s5535 = smul.addr %s5534, 256
        %s5536 = scalar_lea.vmem [#allocation3], %s5535
        // Predicated region
        $region49: #{forward.3} parent=47 // pred_check
          %p5537 = pneg %p191
        $region50: #{forward.3} parent=47 // pred_check_branch
          %5539 = sbr.rel (%p5537) target = $region52
        $region51: #{forward.3} parent=47 // pred_region
          %s5541 = ssub.s32 4096, 4096
          %5542 = vsyncadd %s5533, %s5541
          %s5543 = smul.addr %s21, 32
          %s5544 = smul.addr %s5543, 128
          %s5545 = scalar_lea.hbm %s7, %s5544
          %s5546 = sshll.u32 %s5536, 4
          %s5547 = int_to_ptr.vmem [resolvable:$true] %s5546
          %5552 = dma.vmem_to_hbm [thread:$0]  %s5547, 4096, %s5545, %s5533, 128, 128, 8
        $region52: #{forward.3} parent=47 // pred_fallthru
          _
      $region48: #{forward.3} parent=5 // pred_fallthru
        _
      %p5553 = scmp.le.s32.totalorder 2, %s16
      // Predicated region
      $region53: #{forward.3} parent=5 // pred_check
        %p5554 = pneg %p5553
      $region54: #{forward.3} parent=5 // pred_check_branch
        %5556 = sbr.rel (%p5554) target = $region56
      $region55: #{forward.3} parent=5 // pred_region
        %s5557 = ssub.s32 %s16, 2
        // Predicated region
        $region57: #{forward.3} parent=55 // pred_check
          %p5558 = pneg %p197
        $region58: #{forward.3} parent=55 // pred_check_branch
          %5560 = sbr.rel (%p5558) target = $region60
        $region59: #{forward.3} parent=55 // pred_region
          %s5561 = sand.u32 %s182, 1
          %s5562 = scalar_lea.sflag [#allocation4], %s5561
          %s5563 = sand.u32 %s182, 1
          %s5564 = smul.addr %s5563, 256
          %s5565 = scalar_lea.vmem [#allocation3], %s5564
          %5566 = dma.done %s5562, 4096
        $region60: #{forward.3} parent=55 // pred_fallthru
          _
      $region56: #{forward.3} parent=5 // pred_fallthru
        _
    $region6: #{forward.3} parent=1 // loop_footer
      %s20 = sadd.s32 1, %s16
    $region7: #{forward.3} parent=1 // loop_footer_branch
      %15 = sbr.rel target = $region3
    $region8: #{forward.3} parent=1 // loop_exit
      _
    %5567 = vsyncpa [#allocation4], 1
    %s5568 = scalar_lea.sflag [#allocation4], 1
    %5569 = vsyncpa %s5568, 1

</llo_original>
